<compile_context>
chip_gen: v7x
topology: tpu7x:2x2x1
jax: 0.10.0
libtpu: 0.0.40
codegen_flags: <defaults>
</compile_context>

<pallas_src>
import math
import numpy as np
import jax
import jax.numpy as jnp
from jax.experimental import pallas as pl
from jax.experimental.pallas import tpu as pltpu

# ----------------------------- configuration -----------------------------
HIDDEN = 128                 # d_model (module default)
NUM_HEAD = 4                 # num_head (module default)
CH = HIDDEN // NUM_HEAD      # 32 per-head channels
FFN_HD = 1960                # hard-coded hidden dim in FusionFeedForward
KERNEL = (7, 7)              # t2t kernel_size (gives the "49" in the module)
STRIDE = (3, 3)
PADDING = (3, 3)
OUTPUT_SIZE = (12, 12)       # t2t_params['output_size'] (small synthetic size)
LN_EPS = 1e-5


def n_patches(out, k, s, p):
    return (out + 2 * p - k) // s + 1


NPH = n_patches(OUTPUT_SIZE[0], KERNEL[0], STRIDE[0], PADDING[0])
NPW = n_patches(OUTPUT_SIZE[1], KERNEL[1], STRIDE[1], PADDING[1])
N_VECS = NPH * NPW           # tokens per frame (== n_vecs in the module)   = 16
KK = KERNEL[0] * KERNEL[1]   # 49 kernel positions
GROUPS = FFN_HD // KK        # 40 fold channels
KP = 64                      # kernel positions padded 49 -> 64 (tile aligned)
HD_PAD = KP * GROUPS         # 2560 = 20*128  (lane-dense padded FFN hidden)
P_PAD = N_VECS * KP          # 1024 = 8*128   (padded patch-position dim)
NPIX = OUTPUT_SIZE[0] * OUTPUT_SIZE[1]   # 144 image pixels

_PAR = pltpu.CompilerParams(dimension_semantics=("parallel",))


# ------------------------------ Pallas kernels ----------------------------
def attn_ffn1_kernel(x_ref, g1_ref, b1_ref, watt_ref, batt_ref, wo_ref, bo_ref,
                     g2_ref, b2_ref, w1_ref, bb1_ref, x2_ref, h1_ref):
    """Per-batch: LN1 + multi-head attention + Wo + residual + LN2 + W1."""
    x = x_ref[0]                                           # (n, D) f32
    n, d = x.shape
    scale = 1.0 / math.sqrt(CH)

    # ---- LayerNorm 1
    mean = jnp.mean(x, axis=-1, keepdims=True)
    var = jnp.mean((x - mean) ** 2, axis=-1, keepdims=True)
    y = (x - mean) * jax.lax.rsqrt(var + LN_EPS) * g1_ref[...] + b1_ref[...]
    y_bf = y.astype(jnp.bfloat16)

    # ---- per-head attention; all slices below are 128-lane aligned because the
    #      per-head weights are zero-padded to 128 output columns each.
    att = jnp.zeros((n, d), jnp.float32)
    for h in range(NUM_HEAD):                              # static unroll
        proj = jnp.dot(y_bf, watt_ref[h],
                       preferred_element_type=jnp.float32) + batt_ref[h]
        q = proj[:, 0:d]                                   # (n, 128), cols>=32 == 0
        k = proj[:, d:2 * d]
        v = proj[:, 2 * d:3 * d]
        s = jax.lax.dot_general(
            q.astype(jnp.bfloat16), k.astype(jnp.bfloat16),
            (((1,), (1,)), ((), ())),
            preferred_element_type=jnp.float32) * scale    # (n, n) exact scores
        s_max = jnp.max(s, axis=-1, keepdims=True)
        p = jnp.exp(s - s_max)
        denom = jnp.sum(p, axis=-1, keepdims=True)
        p = p * pl.reciprocal(denom, approx=True)          # EUP reciprocal
        pv = jnp.dot(p.astype(jnp.bfloat16), v.astype(jnp.bfloat16),
                     preferred_element_type=jnp.float32)   # (n, 128), cols>=32 == 0
        att = att + jnp.dot(pv.astype(jnp.bfloat16), wo_ref[h],
                            preferred_element_type=jnp.float32)

    x2 = x + att + bo_ref[...]
    x2_ref[0] = x2

    # ---- LayerNorm 2 + W1 (kernel-position-major columns, k padded 49->64)
    mean2 = jnp.mean(x2, axis=-1, keepdims=True)
    var2 = jnp.mean((x2 - mean2) ** 2, axis=-1, keepdims=True)
    y2 = (x2 - mean2) * jax.lax.rsqrt(var2 + LN_EPS) * g2_ref[...] + b2_ref[...]
    h1 = jnp.dot(y2.astype(jnp.bfloat16), w1_ref[...],
                 preferred_element_type=jnp.float32) + bb1_ref[...]
    h1_ref[0] = h1.astype(jnp.bfloat16)                    # lane-dense 2560 store


def fold_relu_kernel(h_ref, st_ref, s_ref, invc_ref, o_ref):
    """Per-frame fold -> normalize by overlap counts -> unfold -> ReLU."""
    h = h_ref[0]                                           # (P_PAD, G) bf16
    img = jnp.dot(st_ref[...], h,
                  preferred_element_type=jnp.float32)      # (NPIX, G) scatter-sum
    img = img * invc_ref[...]                              # exact f32 1/counts
    y = jnp.dot(s_ref[...], img.astype(jnp.bfloat16),
                preferred_element_type=jnp.float32)        # (P_PAD, G) gather back
    o_ref[0] = jnp.maximum(y, 0.0).astype(jnp.bfloat16)


def w2_res_kernel(h_ref, xres_ref, w2_ref, b2_ref, o_ref):
    """Fused W2 projection + bias + residual add (h already ReLU'd, bf16)."""
    o_ref[...] = (
        xres_ref[...]
        + jnp.dot(h_ref[...], w2_ref[...], preferred_element_type=jnp.float32)
        + b2_ref[...]
    )


# ------------------------------ kernel wrappers ----------------------------
def attention_ffn1(x, kp):
    B, N, D = x.shape
    return pl.pallas_call(
        attn_ffn1_kernel,
        grid=(B,),
        in_specs=[
            pl.BlockSpec((1, N, D), lambda i: (i, 0, 0)),
            pl.BlockSpec((1, D), lambda i: (0, 0)),
            pl.BlockSpec((1, D), lambda i: (0, 0)),
            pl.BlockSpec((NUM_HEAD, D, 3 * D), lambda i: (0, 0, 0)),
            pl.BlockSpec((NUM_HEAD, 1, 3 * D), lambda i: (0, 0, 0)),
            pl.BlockSpec((NUM_HEAD, D, D), lambda i: (0, 0, 0)),
            pl.BlockSpec((1, D), lambda i: (0, 0)),
            pl.BlockSpec((1, D), lambda i: (0, 0)),
            pl.BlockSpec((1, D), lambda i: (0, 0)),
            pl.BlockSpec((D, HD_PAD), lambda i: (0, 0)),
            pl.BlockSpec((1, HD_PAD), lambda i: (0, 0)),
        ],
        out_specs=[
            pl.BlockSpec((1, N, D), lambda i: (i, 0, 0)),
            pl.BlockSpec((1, N, HD_PAD), lambda i: (i, 0, 0)),
        ],
        out_shape=[
            jax.ShapeDtypeStruct((B, N, D), jnp.float32),
            jax.ShapeDtypeStruct((B, N, HD_PAD), jnp.bfloat16),
        ],
        compiler_params=_PAR,
    )(x, kp["ln1_g"], kp["ln1_b"], kp["w_att"], kp["b_att"], kp["w_o"],
      kp["bo"], kp["ln2_g"], kp["ln2_b"], kp["w1p"], kp["b1p"])


def fold_relu(hf, kp):
    bt = hf.shape[0]
    return pl.pallas_call(
        fold_relu_kernel,
        grid=(bt,),
        in_specs=[
            pl.BlockSpec((1, P_PAD, GROUPS), lambda i: (i, 0, 0)),
            pl.BlockSpec((NPIX, P_PAD), lambda i: (0, 0)),
            pl.BlockSpec((P_PAD, NPIX), lambda i: (0, 0)),
            pl.BlockSpec((NPIX, 1), lambda i: (0, 0)),
        ],
        out_specs=pl.BlockSpec((1, P_PAD, GROUPS), lambda i: (i, 0, 0)),
        out_shape=jax.ShapeDtypeStruct((bt, P_PAD, GROUPS), jnp.bfloat16),
        compiler_params=_PAR,
    )(hf, kp["st"], kp["sc"], kp["invc"])


def w2_residual(h2, xres, kp):
    M, K = h2.shape
    D = HIDDEN
    tm = 32
    assert M % tm == 0
    return pl.pallas_call(
        w2_res_kernel,
        grid=(M // tm,),
        in_specs=[
            pl.BlockSpec((tm, K), lambda i: (i, 0)),
            pl.BlockSpec((tm, D), lambda i: (i, 0)),
            pl.BlockSpec((K, D), lambda i: (0, 0)),
            pl.BlockSpec((1, D), lambda i: (0, 0)),
        ],
        out_specs=pl.BlockSpec((tm, D), lambda i: (i, 0)),
        out_shape=jax.ShapeDtypeStruct((M, D), jnp.float32),
        compiler_params=_PAR,
    )(h2, xres, kp["w2p"], kp["b2"])


# --------------------------- TransformerBlock forward ----------------------
def transformer_block(x, kp):
    b, n, d = x.shape
    M = b * n
    assert M % N_VECS == 0, "(b*n) must be a multiple of n_vecs"
    bt = M // N_VECS

    # Kernel A: attention block + LN2 + W1 (h1 in kernel-position-major layout)
    x2, h1 = attention_ffn1(x, kp)          # x2 (b,n,D) f32 ; h1 (b,n,2560) bf16

    # Kernel B: fold / normalize / unfold / ReLU, per frame.
    # (b,n,2560) -> (bt, 1024, 40) is a plain contiguous row-major reshape.
    hf = h1.reshape(bt, P_PAD, GROUPS)
    yr = fold_relu(hf, kp)                  # (bt, 1024, 40) bf16

    # Kernel C: W2 + bias + residual, token-major again (free reshape back).
    h2 = yr.reshape(M, HD_PAD)
    out = w2_residual(h2, x2.reshape(M, d), kp)
    return out.reshape(b, n, d)


# --------------------------- fold / unfold matrices ------------------------
def build_fold_matrices_np():
    H, W = OUTPUT_SIZE
    kh, kw = KERNEL
    sh, sw = STRIDE
    ph, pw = PADDING
    s_pad = np.zeros((P_PAD, NPIX), dtype=np.float32)        # p = v*64 + k
    s_ref = np.zeros((N_VECS * KK, NPIX), dtype=np.float32)  # p = v*49 + k
    for v in range(N_VECS):
        pi, pj = v // NPW, v % NPW
        for ki in range(kh):
            for kj in range(kw):
                hh = pi * sh - ph + ki
                ww = pj * sw - pw + kj
                if 0 <= hh < H and 0 <= ww < W:
                    s_pad[v * KP + ki * kw + kj, hh * W + ww] = 1.0
                    s_ref[v * KK + ki * kw + kj, hh * W + ww] = 1.0
    counts = s_ref.sum(axis=0)                               # (NPIX,) all >= 1
    return s_pad, s_ref, counts


# ------------------------------ pure-JAX reference -------------------------
def reference_forward(x, params, S, counts):
    b, n, d = x.shape
    head = NUM_HEAD
    ch = d // head

    def ln(t, g, be):
        m = jnp.mean(t, -1, keepdims=True)
        v = jnp.mean((t - m) ** 2, -1, keepdims=True)
        return (t - m) / jnp.sqrt(v + LN_EPS) * g + be

    y = ln(x, params["ln1_g"], params["ln1_b"])
    q = y @ params["wq"] + params["bq"]
    k = y @ params["wk"] + params["bk"]
    v = y @ params["wv"] + params["bv"]

    def heads(t):
        return t.reshape(b, n, head, ch).transpose(0, 2, 1, 3)

    qh, kh_, vh = heads(q), heads(k), heads(v)
    sc = jnp.einsum("bhqc,bhkc->bhqk", qh, kh_) / math.sqrt(ch)
    p = jax.nn.softmax(sc, axis=-1)
    att = jnp.einsum("bhqk,bhkc->bhqc", p, vh).transpose(0, 2, 1, 3).reshape(b, n, d)
    x2 = x + (att @ params["wo"] + params["bo"])

    y2 = ln(x2, params["ln2_g"], params["ln2_b"])
    h1 = y2 @ params["w1"] + params["b1"]
    bt = (b * n) // N_VECS
    A = (
        h1.reshape(bt, N_VECS, GROUPS, KK)
        .transpose(0, 2, 1, 3)
        .reshape(bt * GROUPS, N_VECS * KK)
    )
    Y = ((A @ S) / counts) @ S.T
    h1b = (
        Y.reshape(bt, GROUPS, N_VECS, KK)
        .transpose(0, 2, 1, 3)
        .reshape(b, n, FFN_HD)
    )
    h2 = jnp.maximum(h1b, 0.0) @ params["w2"] + params["b2"]
    return x2 + h2


# ----------------------------------- params --------------------------------
def init_params(key):
    ks = jax.random.split(key, 12)
    d, hd = HIDDEN, FFN_HD
    scale = 0.02
    return {
        "ln1_g": jnp.ones((d,), jnp.float32),
        "ln1_b": jnp.zeros((d,), jnp.float32),
        "ln2_g": jnp.ones((d,), jnp.float32),
        "ln2_b": jnp.zeros((d,), jnp.float32),
        "wq": scale * jax.random.normal(ks[0], (d, d), jnp.float32),
        "bq": scale * jax.random.normal(ks[1], (d,), jnp.float32),
        "wk": scale * jax.random.normal(ks[2], (d, d), jnp.float32),
        "bk": scale * jax.random.normal(ks[3], (d,), jnp.float32),
        "wv": scale * jax.random.normal(ks[4], (d, d), jnp.float32),
        "bv": scale * jax.random.normal(ks[5], (d,), jnp.float32),
        "wo": scale * jax.random.normal(ks[6], (d, d), jnp.float32),
        "bo": scale * jax.random.normal(ks[7], (d,), jnp.float32),
        "w1": scale * jax.random.normal(ks[8], (d, hd), jnp.float32),
        "b1": scale * jax.random.normal(ks[9], (hd,), jnp.float32),
        "w2": scale * jax.random.normal(ks[10], (hd, d), jnp.float32),
        "b2": scale * jax.random.normal(ks[11], (d,), jnp.float32),
    }


def prepare_kernel_params(p, s_pad, counts):
    d = HIDDEN
    wq, wk, wv = (np.asarray(p[k]) for k in ("wq", "wk", "wv"))
    bq, bk, bv = (np.asarray(p[k]) for k in ("bq", "bk", "bv"))
    wo = np.asarray(p["wo"])

    # Per-head attention weights, zero-padded so every in-kernel slice is
    # 128-lane aligned: head h projects to [q_h | 0 | k_h | 0 | v_h | 0].
    w_att = np.zeros((NUM_HEAD, d, 3 * d), np.float32)
    b_att = np.zeros((NUM_HEAD, 1, 3 * d), np.float32)
    w_o = np.zeros((NUM_HEAD, d, d), np.float32)
    for h in range(NUM_HEAD):
        sl = slice(h * CH, (h + 1) * CH)
        w_att[h, :, 0:CH] = wq[:, sl]
        w_att[h, :, d:d + CH] = wk[:, sl]
        w_att[h, :, 2 * d:2 * d + CH] = wv[:, sl]
        b_att[h, 0, 0:CH] = bq[sl]
        b_att[h, 0, d:d + CH] = bk[sl]
        b_att[h, 0, 2 * d:2 * d + CH] = bv[sl]
        w_o[h, 0:CH, :] = wo[sl, :]

    # FFN: kernel-position-major columns (new col = k*G + g), k padded 49->64.
    w1 = np.asarray(p["w1"])
    b1 = np.asarray(p["b1"])
    w2 = np.asarray(p["w2"])
    k_idx, g_idx = np.meshgrid(np.arange(KK), np.arange(GROUPS), indexing="ij")
    new_c = (k_idx * GROUPS + g_idx).ravel()
    old_c = (g_idx * KK + k_idx).ravel()
    w1p = np.zeros((d, HD_PAD), np.float32)
    b1p = np.zeros((1, HD_PAD), np.float32)
    w2p = np.zeros((HD_PAD, d), np.float32)
    w1p[:, new_c] = w1[:, old_c]
    b1p[0, new_c] = b1[old_c]
    w2p[new_c, :] = w2[old_c, :]

    inv_counts = (1.0 / np.maximum(counts, 1.0)).astype(np.float32).reshape(NPIX, 1)

    return {
        "ln1_g": jnp.asarray(p["ln1_g"]).reshape(1, d),
        "ln1_b": jnp.asarray(p["ln1_b"]).reshape(1, d),
        "ln2_g": jnp.asarray(p["ln2_g"]).reshape(1, d),
        "ln2_b": jnp.asarray(p["ln2_b"]).reshape(1, d),
        "w_att": jnp.asarray(w_att, jnp.bfloat16),
        "b_att": jnp.asarray(b_att, jnp.float32),
        "w_o": jnp.asarray(w_o, jnp.bfloat16),
        "bo": jnp.asarray(p["bo"]).reshape(1, d),
        "w1p": jnp.asarray(w1p, jnp.bfloat16),
        "b1p": jnp.asarray(b1p, jnp.float32),
        "w2p": jnp.asarray(w2p, jnp.bfloat16),
        "b2": jnp.asarray(p["b2"]).reshape(1, d),
        # fold/unfold scatter matrix (exact 0/1 in bf16) + exact f32 1/counts
        "st": jnp.asarray(s_pad.T, jnp.bfloat16),     # (NPIX, P_PAD)
        "sc": jnp.asarray(s_pad, jnp.bfloat16),       # (P_PAD, NPIX)
        "invc": jnp.asarray(inv_counts, jnp.float32),  # (NPIX, 1)
    }


# ----------------------------------- main ----------------------------------
if __name__ == "__main__":
    key = jax.random.PRNGKey(0)
    k_x, k_p = jax.random.split(key)

    B = 2                       # batch
    T_FRAMES = 2                # frames per batch element
    N = T_FRAMES * N_VECS       # 32 tokens; (B*N) % n_vecs == 0 as required
    x = jax.random.normal(k_x, (B, N, HIDDEN), jnp.float32)
    params = init_params(k_p)

    s_pad_np, s_ref_np, counts_np = build_fold_matrices_np()
    kparams = prepare_kernel_params(params, s_pad_np, counts_np)

    fwd = jax.jit(transformer_block)
    out = jax.block_until_ready(fwd(x, kparams))

    ref = jax.block_until_ready(
        reference_forward(x, params, jnp.asarray(s_ref_np),
                          jnp.asarray(counts_np.reshape(1, NPIX))))
    np.testing.assert_allclose(np.asarray(out), np.asarray(ref),
                               rtol=2e-2, atol=2e-2)

    print("KERNEL_OK")
</pallas_src>

<mosaic_0001>
module attributes {stable_mosaic.version = 11 : i64} {
  func.func @attn_ffn1_kernel(%arg0: i32, %arg1: memref<1x32x128xf32, #tpu.memory_space<vmem>>, %arg2: memref<1x128xf32, #tpu.memory_space<vmem>>, %arg3: memref<1x128xf32, #tpu.memory_space<vmem>>, %arg4: memref<4x128x384xbf16, #tpu.memory_space<vmem>>, %arg5: memref<4x1x384xf32, #tpu.memory_space<vmem>>, %arg6: memref<4x128x128xbf16, #tpu.memory_space<vmem>>, %arg7: memref<1x128xf32, #tpu.memory_space<vmem>>, %arg8: memref<1x128xf32, #tpu.memory_space<vmem>>, %arg9: memref<1x128xf32, #tpu.memory_space<vmem>>, %arg10: memref<128x2560xbf16, #tpu.memory_space<vmem>>, %arg11: memref<1x2560xf32, #tpu.memory_space<vmem>>, %arg12: memref<1x32x128xf32, #tpu.memory_space<vmem>>, %arg13: memref<1x32x2560xbf16, #tpu.memory_space<vmem>>) attributes {dimension_semantics = [#tpu.dimension_semantics<parallel>], iteration_bounds = array<i64: 2>, scalar_prefetch = 0 : i64, scratch_operands = 0 : i64, tpu.core_type = #tpu.core_type<tc>, window_params = [{transform_indices = @transform_0, window_bounds = array<i64: 1, 32, 128>}, {pipeline_mode = #tpu.pipeline_mode<synchronous>, transform_indices = @transform_1, window_bounds = array<i64: 1, 128>}, {pipeline_mode = #tpu.pipeline_mode<synchronous>, transform_indices = @transform_2, window_bounds = array<i64: 1, 128>}, {pipeline_mode = #tpu.pipeline_mode<synchronous>, transform_indices = @transform_3, window_bounds = array<i64: 4, 128, 384>}, {pipeline_mode = #tpu.pipeline_mode<synchronous>, transform_indices = @transform_4, window_bounds = array<i64: 4, 1, 384>}, {pipeline_mode = #tpu.pipeline_mode<synchronous>, transform_indices = @transform_5, window_bounds = array<i64: 4, 128, 128>}, {pipeline_mode = #tpu.pipeline_mode<synchronous>, transform_indices = @transform_6, window_bounds = array<i64: 1, 128>}, {pipeline_mode = #tpu.pipeline_mode<synchronous>, transform_indices = @transform_7, window_bounds = array<i64: 1, 128>}, {pipeline_mode = #tpu.pipeline_mode<synchronous>, transform_indices = @transform_8, window_bounds = array<i64: 1, 128>}, {pipeline_mode = #tpu.pipeline_mode<synchronous>, transform_indices = @transform_9, window_bounds = array<i64: 128, 2560>}, {pipeline_mode = #tpu.pipeline_mode<synchronous>, transform_indices = @transform_10, window_bounds = array<i64: 1, 2560>}, {transform_indices = @transform_11, window_bounds = array<i64: 1, 32, 128>}, {transform_indices = @transform_12, window_bounds = array<i64: 1, 32, 2560>}]} {
    %c0 = arith.constant 0 : index
    %c0_0 = arith.constant 0 : index
    %c0_1 = arith.constant 0 : index
    %0 = vector.load %arg1[%c0, %c0_0, %c0_1] : memref<1x32x128xf32, #tpu.memory_space<vmem>>, vector<1x32x128xf32>
    %1 = vector.shape_cast %0 : vector<1x32x128xf32> to vector<32x128xf32>
    %cst = arith.constant dense<0.000000e+00> : vector<32xf32>
    %2 = vector.multi_reduction <add>, %1, %cst [1] : vector<32x128xf32> to vector<32xf32>
    %3 = vector.shape_cast %2 : vector<32xf32> to vector<32x1xf32>
    %cst_2 = arith.constant 1.280000e+02 : f32
    %4 = vector.broadcast %cst_2 : f32 to vector<32x1xf32>
    %5 = arith.divf %3, %4 : vector<32x1xf32>
    %6 = vector.broadcast %5 : vector<32x1xf32> to vector<32x128xf32>
    %7 = arith.subf %1, %6 : vector<32x128xf32>
    %8 = arith.mulf %7, %7 : vector<32x128xf32>
    %cst_3 = arith.constant dense<0.000000e+00> : vector<32xf32>
    %9 = vector.multi_reduction <add>, %8, %cst_3 [1] : vector<32x128xf32> to vector<32xf32>
    %10 = vector.shape_cast %9 : vector<32xf32> to vector<32x1xf32>
    %cst_4 = arith.constant 1.280000e+02 : f32
    %11 = vector.broadcast %cst_4 : f32 to vector<32x1xf32>
    %12 = arith.divf %10, %11 : vector<32x1xf32>
    %13 = vector.broadcast %5 : vector<32x1xf32> to vector<32x128xf32>
    %14 = arith.subf %1, %13 : vector<32x128xf32>
    %cst_5 = arith.constant 9.99999974E-6 : f32
    %15 = vector.broadcast %cst_5 : f32 to vector<32x1xf32>
    %16 = arith.addf %12, %15 : vector<32x1xf32>
    %17 = math.rsqrt %16 : vector<32x1xf32>
    %18 = vector.broadcast %17 : vector<32x1xf32> to vector<32x128xf32>
    %19 = arith.mulf %14, %18 : vector<32x128xf32>
    %c0_6 = arith.constant 0 : index
    %c0_7 = arith.constant 0 : index
    %20 = vector.load %arg2[%c0_6, %c0_7] : memref<1x128xf32, #tpu.memory_space<vmem>>, vector<1x128xf32>
    %21 = vector.broadcast %20 : vector<1x128xf32> to vector<32x128xf32>
    %22 = arith.mulf %19, %21 : vector<32x128xf32>
    %c0_8 = arith.constant 0 : index
    %c0_9 = arith.constant 0 : index
    %23 = vector.load %arg3[%c0_8, %c0_9] : memref<1x128xf32, #tpu.memory_space<vmem>>, vector<1x128xf32>
    %24 = vector.broadcast %23 : vector<1x128xf32> to vector<32x128xf32>
    %25 = arith.addf %22, %24 : vector<32x128xf32>
    %26 = arith.truncf %25 : vector<32x128xf32> to vector<32x128xbf16>
    %cst_10 = arith.constant 0.000000e+00 : f32
    %27 = vector.broadcast %cst_10 : f32 to vector<32x128xf32>
    %c0_11 = arith.constant 0 : index
    %c0_12 = arith.constant 0 : index
    %c0_13 = arith.constant 0 : index
    %28 = vector.load %arg4[%c0_11, %c0_12, %c0_13] : memref<4x128x384xbf16, #tpu.memory_space<vmem>>, vector<1x128x384xbf16>
    %29 = vector.shape_cast %28 : vector<1x128x384xbf16> to vector<128x384xbf16>
    %cst_14 = arith.constant dense<0.000000e+00> : vector<32x384xf32>
    %30 = tpu.matmul %26, %29, %cst_14 {dimension_numbers = #tpu.dot_dimension_numbers<[1], [0], [0], [1], [0, 0, 1, 1], [], []>} : vector<32x128xbf16>, vector<128x384xbf16>, vector<32x384xf32> -> vector<32x384xf32>
    %c0_15 = arith.constant 0 : index
    %c0_16 = arith.constant 0 : index
    %c0_17 = arith.constant 0 : index
    %31 = vector.load %arg5[%c0_15, %c0_16, %c0_17] : memref<4x1x384xf32, #tpu.memory_space<vmem>>, vector<1x1x384xf32>
    %32 = vector.shape_cast %31 : vector<1x1x384xf32> to vector<1x384xf32>
    %33 = vector.broadcast %32 : vector<1x384xf32> to vector<32x384xf32>
    %34 = arith.addf %30, %33 : vector<32x384xf32>
    %35 = vector.extract_strided_slice %34 {offsets = [0, 0], sizes = [32, 128], strides = [1, 1]} : vector<32x384xf32> to vector<32x128xf32>
    %36 = vector.extract_strided_slice %34 {offsets = [0, 128], sizes = [32, 128], strides = [1, 1]} : vector<32x384xf32> to vector<32x128xf32>
    %37 = vector.extract_strided_slice %34 {offsets = [0, 256], sizes = [32, 128], strides = [1, 1]} : vector<32x384xf32> to vector<32x128xf32>
    %38 = arith.truncf %35 : vector<32x128xf32> to vector<32x128xbf16>
    %39 = arith.truncf %36 : vector<32x128xf32> to vector<32x128xbf16>
    %cst_18 = arith.constant dense<0.000000e+00> : vector<32x32xf32>
    %40 = tpu.matmul %38, %39, %cst_18 {dimension_numbers = #tpu.dot_dimension_numbers<[1], [1], [0], [0], [0, 0, 1, 0], [], []>} : vector<32x128xbf16>, vector<32x128xbf16>, vector<32x32xf32> -> vector<32x32xf32>
    %cst_19 = arith.constant 0.176776692 : f32
    %41 = vector.broadcast %cst_19 : f32 to vector<32x32xf32>
    %42 = arith.mulf %40, %41 : vector<32x32xf32>
    %cst_20 = arith.constant dense<0xFF800000> : vector<32xf32>
    %43 = vector.multi_reduction <maximumf>, %42, %cst_20 [1] : vector<32x32xf32> to vector<32xf32>
    %44 = vector.shape_cast %43 : vector<32xf32> to vector<32x1xf32>
    %45 = vector.broadcast %44 : vector<32x1xf32> to vector<32x32xf32>
    %46 = arith.subf %42, %45 : vector<32x32xf32>
    %47 = math.exp %46 : vector<32x32xf32>
    %cst_21 = arith.constant dense<0.000000e+00> : vector<32xf32>
    %48 = vector.multi_reduction <add>, %47, %cst_21 [1] : vector<32x32xf32> to vector<32xf32>
    %49 = vector.shape_cast %48 : vector<32xf32> to vector<32x1xf32>
    %50 = tpu.reciprocal %49 {approx = true} : vector<32x1xf32> -> vector<32x1xf32>
    %51 = vector.broadcast %50 : vector<32x1xf32> to vector<32x32xf32>
    %52 = arith.mulf %47, %51 : vector<32x32xf32>
    %53 = arith.truncf %52 : vector<32x32xf32> to vector<32x32xbf16>
    %54 = arith.truncf %37 : vector<32x128xf32> to vector<32x128xbf16>
    %cst_22 = arith.constant dense<0.000000e+00> : vector<32x128xf32>
    %55 = tpu.matmul %53, %54, %cst_22 {dimension_numbers = #tpu.dot_dimension_numbers<[1], [0], [0], [1], [0, 0, 1, 1], [], []>} : vector<32x32xbf16>, vector<32x128xbf16>, vector<32x128xf32> -> vector<32x128xf32>
    %56 = arith.truncf %55 : vector<32x128xf32> to vector<32x128xbf16>
    %c0_23 = arith.constant 0 : index
    %c0_24 = arith.constant 0 : index
    %c0_25 = arith.constant 0 : index
    %57 = vector.load %arg6[%c0_23, %c0_24, %c0_25] : memref<4x128x128xbf16, #tpu.memory_space<vmem>>, vector<1x128x128xbf16>
    %58 = vector.shape_cast %57 : vector<1x128x128xbf16> to vector<128x128xbf16>
    %cst_26 = arith.constant dense<0.000000e+00> : vector<32x128xf32>
    %59 = tpu.matmul %56, %58, %cst_26 {dimension_numbers = #tpu.dot_dimension_numbers<[1], [0], [0], [1], [0, 0, 1, 1], [], []>} : vector<32x128xbf16>, vector<128x128xbf16>, vector<32x128xf32> -> vector<32x128xf32>
    %60 = arith.addf %27, %59 : vector<32x128xf32>
    %c1 = arith.constant 1 : index
    %c0_27 = arith.constant 0 : index
    %c0_28 = arith.constant 0 : index
    %61 = vector.load %arg4[%c1, %c0_27, %c0_28] : memref<4x128x384xbf16, #tpu.memory_space<vmem>>, vector<1x128x384xbf16>
    %62 = vector.shape_cast %61 : vector<1x128x384xbf16> to vector<128x384xbf16>
    %cst_29 = arith.constant dense<0.000000e+00> : vector<32x384xf32>
    %63 = tpu.matmul %26, %62, %cst_29 {dimension_numbers = #tpu.dot_dimension_numbers<[1], [0], [0], [1], [0, 0, 1, 1], [], []>} : vector<32x128xbf16>, vector<128x384xbf16>, vector<32x384xf32> -> vector<32x384xf32>
    %c1_30 = arith.constant 1 : index
    %c0_31 = arith.constant 0 : index
    %c0_32 = arith.constant 0 : index
    %64 = vector.load %arg5[%c1_30, %c0_31, %c0_32] : memref<4x1x384xf32, #tpu.memory_space<vmem>>, vector<1x1x384xf32>
    %65 = vector.shape_cast %64 : vector<1x1x384xf32> to vector<1x384xf32>
    %66 = vector.broadcast %65 : vector<1x384xf32> to vector<32x384xf32>
    %67 = arith.addf %63, %66 : vector<32x384xf32>
    %68 = vector.extract_strided_slice %67 {offsets = [0, 0], sizes = [32, 128], strides = [1, 1]} : vector<32x384xf32> to vector<32x128xf32>
    %69 = vector.extract_strided_slice %67 {offsets = [0, 128], sizes = [32, 128], strides = [1, 1]} : vector<32x384xf32> to vector<32x128xf32>
    %70 = vector.extract_strided_slice %67 {offsets = [0, 256], sizes = [32, 128], strides = [1, 1]} : vector<32x384xf32> to vector<32x128xf32>
    %71 = arith.truncf %68 : vector<32x128xf32> to vector<32x128xbf16>
    %72 = arith.truncf %69 : vector<32x128xf32> to vector<32x128xbf16>
    %cst_33 = arith.constant dense<0.000000e+00> : vector<32x32xf32>
    %73 = tpu.matmul %71, %72, %cst_33 {dimension_numbers = #tpu.dot_dimension_numbers<[1], [1], [0], [0], [0, 0, 1, 0], [], []>} : vector<32x128xbf16>, vector<32x128xbf16>, vector<32x32xf32> -> vector<32x32xf32>
    %cst_34 = arith.constant 0.176776692 : f32
    %74 = vector.broadcast %cst_34 : f32 to vector<32x32xf32>
    %75 = arith.mulf %73, %74 : vector<32x32xf32>
    %cst_35 = arith.constant dense<0xFF800000> : vector<32xf32>
    %76 = vector.multi_reduction <maximumf>, %75, %cst_35 [1] : vector<32x32xf32> to vector<32xf32>
    %77 = vector.shape_cast %76 : vector<32xf32> to vector<32x1xf32>
    %78 = vector.broadcast %77 : vector<32x1xf32> to vector<32x32xf32>
    %79 = arith.subf %75, %78 : vector<32x32xf32>
    %80 = math.exp %79 : vector<32x32xf32>
    %cst_36 = arith.constant dense<0.000000e+00> : vector<32xf32>
    %81 = vector.multi_reduction <add>, %80, %cst_36 [1] : vector<32x32xf32> to vector<32xf32>
    %82 = vector.shape_cast %81 : vector<32xf32> to vector<32x1xf32>
    %83 = tpu.reciprocal %82 {approx = true} : vector<32x1xf32> -> vector<32x1xf32>
    %84 = vector.broadcast %83 : vector<32x1xf32> to vector<32x32xf32>
    %85 = arith.mulf %80, %84 : vector<32x32xf32>
    %86 = arith.truncf %85 : vector<32x32xf32> to vector<32x32xbf16>
    %87 = arith.truncf %70 : vector<32x128xf32> to vector<32x128xbf16>
    %cst_37 = arith.constant dense<0.000000e+00> : vector<32x128xf32>
    %88 = tpu.matmul %86, %87, %cst_37 {dimension_numbers = #tpu.dot_dimension_numbers<[1], [0], [0], [1], [0, 0, 1, 1], [], []>} : vector<32x32xbf16>, vector<32x128xbf16>, vector<32x128xf32> -> vector<32x128xf32>
    %89 = arith.truncf %88 : vector<32x128xf32> to vector<32x128xbf16>
    %c1_38 = arith.constant 1 : index
    %c0_39 = arith.constant 0 : index
    %c0_40 = arith.constant 0 : index
    %90 = vector.load %arg6[%c1_38, %c0_39, %c0_40] : memref<4x128x128xbf16, #tpu.memory_space<vmem>>, vector<1x128x128xbf16>
    %91 = vector.shape_cast %90 : vector<1x128x128xbf16> to vector<128x128xbf16>
    %cst_41 = arith.constant dense<0.000000e+00> : vector<32x128xf32>
    %92 = tpu.matmul %89, %91, %cst_41 {dimension_numbers = #tpu.dot_dimension_numbers<[1], [0], [0], [1], [0, 0, 1, 1], [], []>} : vector<32x128xbf16>, vector<128x128xbf16>, vector<32x128xf32> -> vector<32x128xf32>
    %93 = arith.addf %60, %92 : vector<32x128xf32>
    %c2 = arith.constant 2 : index
    %c0_42 = arith.constant 0 : index
    %c0_43 = arith.constant 0 : index
    %94 = vector.load %arg4[%c2, %c0_42, %c0_43] : memref<4x128x384xbf16, #tpu.memory_space<vmem>>, vector<1x128x384xbf16>
    %95 = vector.shape_cast %94 : vector<1x128x384xbf16> to vector<128x384xbf16>
    %cst_44 = arith.constant dense<0.000000e+00> : vector<32x384xf32>
    %96 = tpu.matmul %26, %95, %cst_44 {dimension_numbers = #tpu.dot_dimension_numbers<[1], [0], [0], [1], [0, 0, 1, 1], [], []>} : vector<32x128xbf16>, vector<128x384xbf16>, vector<32x384xf32> -> vector<32x384xf32>
    %c2_45 = arith.constant 2 : index
    %c0_46 = arith.constant 0 : index
    %c0_47 = arith.constant 0 : index
    %97 = vector.load %arg5[%c2_45, %c0_46, %c0_47] : memref<4x1x384xf32, #tpu.memory_space<vmem>>, vector<1x1x384xf32>
    %98 = vector.shape_cast %97 : vector<1x1x384xf32> to vector<1x384xf32>
    %99 = vector.broadcast %98 : vector<1x384xf32> to vector<32x384xf32>
    %100 = arith.addf %96, %99 : vector<32x384xf32>
    %101 = vector.extract_strided_slice %100 {offsets = [0, 0], sizes = [32, 128], strides = [1, 1]} : vector<32x384xf32> to vector<32x128xf32>
    %102 = vector.extract_strided_slice %100 {offsets = [0, 128], sizes = [32, 128], strides = [1, 1]} : vector<32x384xf32> to vector<32x128xf32>
    %103 = vector.extract_strided_slice %100 {offsets = [0, 256], sizes = [32, 128], strides = [1, 1]} : vector<32x384xf32> to vector<32x128xf32>
    %104 = arith.truncf %101 : vector<32x128xf32> to vector<32x128xbf16>
    %105 = arith.truncf %102 : vector<32x128xf32> to vector<32x128xbf16>
    %cst_48 = arith.constant dense<0.000000e+00> : vector<32x32xf32>
    %106 = tpu.matmul %104, %105, %cst_48 {dimension_numbers = #tpu.dot_dimension_numbers<[1], [1], [0], [0], [0, 0, 1, 0], [], []>} : vector<32x128xbf16>, vector<32x128xbf16>, vector<32x32xf32> -> vector<32x32xf32>
    %cst_49 = arith.constant 0.176776692 : f32
    %107 = vector.broadcast %cst_49 : f32 to vector<32x32xf32>
    %108 = arith.mulf %106, %107 : vector<32x32xf32>
    %cst_50 = arith.constant dense<0xFF800000> : vector<32xf32>
    %109 = vector.multi_reduction <maximumf>, %108, %cst_50 [1] : vector<32x32xf32> to vector<32xf32>
    %110 = vector.shape_cast %109 : vector<32xf32> to vector<32x1xf32>
    %111 = vector.broadcast %110 : vector<32x1xf32> to vector<32x32xf32>
    %112 = arith.subf %108, %111 : vector<32x32xf32>
    %113 = math.exp %112 : vector<32x32xf32>
    %cst_51 = arith.constant dense<0.000000e+00> : vector<32xf32>
    %114 = vector.multi_reduction <add>, %113, %cst_51 [1] : vector<32x32xf32> to vector<32xf32>
    %115 = vector.shape_cast %114 : vector<32xf32> to vector<32x1xf32>
    %116 = tpu.reciprocal %115 {approx = true} : vector<32x1xf32> -> vector<32x1xf32>
    %117 = vector.broadcast %116 : vector<32x1xf32> to vector<32x32xf32>
    %118 = arith.mulf %113, %117 : vector<32x32xf32>
    %119 = arith.truncf %118 : vector<32x32xf32> to vector<32x32xbf16>
    %120 = arith.truncf %103 : vector<32x128xf32> to vector<32x128xbf16>
    %cst_52 = arith.constant dense<0.000000e+00> : vector<32x128xf32>
    %121 = tpu.matmul %119, %120, %cst_52 {dimension_numbers = #tpu.dot_dimension_numbers<[1], [0], [0], [1], [0, 0, 1, 1], [], []>} : vector<32x32xbf16>, vector<32x128xbf16>, vector<32x128xf32> -> vector<32x128xf32>
    %122 = arith.truncf %121 : vector<32x128xf32> to vector<32x128xbf16>
    %c2_53 = arith.constant 2 : index
    %c0_54 = arith.constant 0 : index
    %c0_55 = arith.constant 0 : index
    %123 = vector.load %arg6[%c2_53, %c0_54, %c0_55] : memref<4x128x128xbf16, #tpu.memory_space<vmem>>, vector<1x128x128xbf16>
    %124 = vector.shape_cast %123 : vector<1x128x128xbf16> to vector<128x128xbf16>
    %cst_56 = arith.constant dense<0.000000e+00> : vector<32x128xf32>
    %125 = tpu.matmul %122, %124, %cst_56 {dimension_numbers = #tpu.dot_dimension_numbers<[1], [0], [0], [1], [0, 0, 1, 1], [], []>} : vector<32x128xbf16>, vector<128x128xbf16>, vector<32x128xf32> -> vector<32x128xf32>
    %126 = arith.addf %93, %125 : vector<32x128xf32>
    %c3 = arith.constant 3 : index
    %c0_57 = arith.constant 0 : index
    %c0_58 = arith.constant 0 : index
    %127 = vector.load %arg4[%c3, %c0_57, %c0_58] : memref<4x128x384xbf16, #tpu.memory_space<vmem>>, vector<1x128x384xbf16>
    %128 = vector.shape_cast %127 : vector<1x128x384xbf16> to vector<128x384xbf16>
    %cst_59 = arith.constant dense<0.000000e+00> : vector<32x384xf32>
    %129 = tpu.matmul %26, %128, %cst_59 {dimension_numbers = #tpu.dot_dimension_numbers<[1], [0], [0], [1], [0, 0, 1, 1], [], []>} : vector<32x128xbf16>, vector<128x384xbf16>, vector<32x384xf32> -> vector<32x384xf32>
    %c3_60 = arith.constant 3 : index
    %c0_61 = arith.constant 0 : index
    %c0_62 = arith.constant 0 : index
    %130 = vector.load %arg5[%c3_60, %c0_61, %c0_62] : memref<4x1x384xf32, #tpu.memory_space<vmem>>, vector<1x1x384xf32>
    %131 = vector.shape_cast %130 : vector<1x1x384xf32> to vector<1x384xf32>
    %132 = vector.broadcast %131 : vector<1x384xf32> to vector<32x384xf32>
    %133 = arith.addf %129, %132 : vector<32x384xf32>
    %134 = vector.extract_strided_slice %133 {offsets = [0, 0], sizes = [32, 128], strides = [1, 1]} : vector<32x384xf32> to vector<32x128xf32>
    %135 = vector.extract_strided_slice %133 {offsets = [0, 128], sizes = [32, 128], strides = [1, 1]} : vector<32x384xf32> to vector<32x128xf32>
    %136 = vector.extract_strided_slice %133 {offsets = [0, 256], sizes = [32, 128], strides = [1, 1]} : vector<32x384xf32> to vector<32x128xf32>
    %137 = arith.truncf %134 : vector<32x128xf32> to vector<32x128xbf16>
    %138 = arith.truncf %135 : vector<32x128xf32> to vector<32x128xbf16>
    %cst_63 = arith.constant dense<0.000000e+00> : vector<32x32xf32>
    %139 = tpu.matmul %137, %138, %cst_63 {dimension_numbers = #tpu.dot_dimension_numbers<[1], [1], [0], [0], [0, 0, 1, 0], [], []>} : vector<32x128xbf16>, vector<32x128xbf16>, vector<32x32xf32> -> vector<32x32xf32>
    %cst_64 = arith.constant 0.176776692 : f32
    %140 = vector.broadcast %cst_64 : f32 to vector<32x32xf32>
    %141 = arith.mulf %139, %140 : vector<32x32xf32>
    %cst_65 = arith.constant dense<0xFF800000> : vector<32xf32>
    %142 = vector.multi_reduction <maximumf>, %141, %cst_65 [1] : vector<32x32xf32> to vector<32xf32>
    %143 = vector.shape_cast %142 : vector<32xf32> to vector<32x1xf32>
    %144 = vector.broadcast %143 : vector<32x1xf32> to vector<32x32xf32>
    %145 = arith.subf %141, %144 : vector<32x32xf32>
    %146 = math.exp %145 : vector<32x32xf32>
    %cst_66 = arith.constant dense<0.000000e+00> : vector<32xf32>
    %147 = vector.multi_reduction <add>, %146, %cst_66 [1] : vector<32x32xf32> to vector<32xf32>
    %148 = vector.shape_cast %147 : vector<32xf32> to vector<32x1xf32>
    %149 = tpu.reciprocal %148 {approx = true} : vector<32x1xf32> -> vector<32x1xf32>
    %150 = vector.broadcast %149 : vector<32x1xf32> to vector<32x32xf32>
    %151 = arith.mulf %146, %150 : vector<32x32xf32>
    %152 = arith.truncf %151 : vector<32x32xf32> to vector<32x32xbf16>
    %153 = arith.truncf %136 : vector<32x128xf32> to vector<32x128xbf16>
    %cst_67 = arith.constant dense<0.000000e+00> : vector<32x128xf32>
    %154 = tpu.matmul %152, %153, %cst_67 {dimension_numbers = #tpu.dot_dimension_numbers<[1], [0], [0], [1], [0, 0, 1, 1], [], []>} : vector<32x32xbf16>, vector<32x128xbf16>, vector<32x128xf32> -> vector<32x128xf32>
    %155 = arith.truncf %154 : vector<32x128xf32> to vector<32x128xbf16>
    %c3_68 = arith.constant 3 : index
    %c0_69 = arith.constant 0 : index
    %c0_70 = arith.constant 0 : index
    %156 = vector.load %arg6[%c3_68, %c0_69, %c0_70] : memref<4x128x128xbf16, #tpu.memory_space<vmem>>, vector<1x128x128xbf16>
    %157 = vector.shape_cast %156 : vector<1x128x128xbf16> to vector<128x128xbf16>
    %cst_71 = arith.constant dense<0.000000e+00> : vector<32x128xf32>
    %158 = tpu.matmul %155, %157, %cst_71 {dimension_numbers = #tpu.dot_dimension_numbers<[1], [0], [0], [1], [0, 0, 1, 1], [], []>} : vector<32x128xbf16>, vector<128x128xbf16>, vector<32x128xf32> -> vector<32x128xf32>
    %159 = arith.addf %126, %158 : vector<32x128xf32>
    %160 = arith.addf %1, %159 : vector<32x128xf32>
    %c0_72 = arith.constant 0 : index
    %c0_73 = arith.constant 0 : index
    %161 = vector.load %arg7[%c0_72, %c0_73] : memref<1x128xf32, #tpu.memory_space<vmem>>, vector<1x128xf32>
    %162 = vector.broadcast %161 : vector<1x128xf32> to vector<32x128xf32>
    %163 = arith.addf %160, %162 : vector<32x128xf32>
    %c0_74 = arith.constant 0 : index
    %c0_75 = arith.constant 0 : index
    %c0_76 = arith.constant 0 : index
    %164 = vector.load %arg12[%c0_74, %c0_75, %c0_76] : memref<1x32x128xf32, #tpu.memory_space<vmem>>, vector<1x32x128xf32>
    %165 = vector.shape_cast %164 : vector<1x32x128xf32> to vector<32x128xf32>
    %166 = vector.shape_cast %163 : vector<32x128xf32> to vector<1x32x128xf32>
    tpu.vector_store %arg12[%c0_74, %c0_75, %c0_76], %166 {strides = array<i32>} : memref<1x32x128xf32, #tpu.memory_space<vmem>>, vector<1x32x128xf32>,
    %cst_77 = arith.constant dense<0.000000e+00> : vector<32xf32>
    %167 = vector.multi_reduction <add>, %163, %cst_77 [1] : vector<32x128xf32> to vector<32xf32>
    %168 = vector.shape_cast %167 : vector<32xf32> to vector<32x1xf32>
    %cst_78 = arith.constant 1.280000e+02 : f32
    %169 = vector.broadcast %cst_78 : f32 to vector<32x1xf32>
    %170 = arith.divf %168, %169 : vector<32x1xf32>
    %171 = vector.broadcast %170 : vector<32x1xf32> to vector<32x128xf32>
    %172 = arith.subf %163, %171 : vector<32x128xf32>
    %173 = arith.mulf %172, %172 : vector<32x128xf32>
    %cst_79 = arith.constant dense<0.000000e+00> : vector<32xf32>
    %174 = vector.multi_reduction <add>, %173, %cst_79 [1] : vector<32x128xf32> to vector<32xf32>
    %175 = vector.shape_cast %174 : vector<32xf32> to vector<32x1xf32>
    %cst_80 = arith.constant 1.280000e+02 : f32
    %176 = vector.broadcast %cst_80 : f32 to vector<32x1xf32>
    %177 = arith.divf %175, %176 : vector<32x1xf32>
    %178 = vector.broadcast %170 : vector<32x1xf32> to vector<32x128xf32>
    %179 = arith.subf %163, %178 : vector<32x128xf32>
    %cst_81 = arith.constant 9.99999974E-6 : f32
    %180 = vector.broadcast %cst_81 : f32 to vector<32x1xf32>
    %181 = arith.addf %177, %180 : vector<32x1xf32>
    %182 = math.rsqrt %181 : vector<32x1xf32>
    %183 = vector.broadcast %182 : vector<32x1xf32> to vector<32x128xf32>
    %184 = arith.mulf %179, %183 : vector<32x128xf32>
    %c0_82 = arith.constant 0 : index
    %c0_83 = arith.constant 0 : index
    %185 = vector.load %arg8[%c0_82, %c0_83] : memref<1x128xf32, #tpu.memory_space<vmem>>, vector<1x128xf32>
    %186 = vector.broadcast %185 : vector<1x128xf32> to vector<32x128xf32>
    %187 = arith.mulf %184, %186 : vector<32x128xf32>
    %c0_84 = arith.constant 0 : index
    %c0_85 = arith.constant 0 : index
    %188 = vector.load %arg9[%c0_84, %c0_85] : memref<1x128xf32, #tpu.memory_space<vmem>>, vector<1x128xf32>
    %189 = vector.broadcast %188 : vector<1x128xf32> to vector<32x128xf32>
    %190 = arith.addf %187, %189 : vector<32x128xf32>
    %191 = arith.truncf %190 : vector<32x128xf32> to vector<32x128xbf16>
    %c0_86 = arith.constant 0 : index
    %c0_87 = arith.constant 0 : index
    %192 = vector.load %arg10[%c0_86, %c0_87] : memref<128x2560xbf16, #tpu.memory_space<vmem>>, vector<128x2560xbf16>
    %cst_88 = arith.constant dense<0.000000e+00> : vector<32x2560xf32>
    %193 = tpu.matmul %191, %192, %cst_88 {dimension_numbers = #tpu.dot_dimension_numbers<[1], [0], [0], [1], [0, 0, 1, 1], [], []>} : vector<32x128xbf16>, vector<128x2560xbf16>, vector<32x2560xf32> -> vector<32x2560xf32>
    %c0_89 = arith.constant 0 : index
    %c0_90 = arith.constant 0 : index
    %194 = vector.load %arg11[%c0_89, %c0_90] : memref<1x2560xf32, #tpu.memory_space<vmem>>, vector<1x2560xf32>
    %195 = vector.broadcast %194 : vector<1x2560xf32> to vector<32x2560xf32>
    %196 = arith.addf %193, %195 : vector<32x2560xf32>
    %197 = arith.truncf %196 : vector<32x2560xf32> to vector<32x2560xbf16>
    %c0_91 = arith.constant 0 : index
    %c0_92 = arith.constant 0 : index
    %c0_93 = arith.constant 0 : index
    %198 = vector.load %arg13[%c0_91, %c0_92, %c0_93] : memref<1x32x2560xbf16, #tpu.memory_space<vmem>>, vector<1x32x2560xbf16>
    %199 = vector.shape_cast %198 : vector<1x32x2560xbf16> to vector<32x2560xbf16>
    %200 = vector.shape_cast %197 : vector<32x2560xbf16> to vector<1x32x2560xbf16>
    tpu.vector_store %arg13[%c0_91, %c0_92, %c0_93], %200 {strides = array<i32>} : memref<1x32x2560xbf16, #tpu.memory_space<vmem>>, vector<1x32x2560xbf16>,
    return
  }
  func.func @transform_0(%arg0: i32) -> (i32, i32, i32) {
    %c0_i32 = arith.constant 0 : i32
    %c0_i32_0 = arith.constant 0 : i32
    %c0_i32_1 = arith.constant 0 : i32
    return %arg0, %c0_i32, %c0_i32_0 : i32, i32, i32
  }
  func.func @transform_1(%arg0: i32) -> (i32, i32) {
    %c0_i32 = arith.constant 0 : i32
    %c0_i32_0 = arith.constant 0 : i32
    %c0_i32_1 = arith.constant 0 : i32
    return %c0_i32, %c0_i32_0 : i32, i32
  }
  func.func @transform_2(%arg0: i32) -> (i32, i32) {
    %c0_i32 = arith.constant 0 : i32
    %c0_i32_0 = arith.constant 0 : i32
    %c0_i32_1 = arith.constant 0 : i32
    return %c0_i32, %c0_i32_0 : i32, i32
  }
  func.func @transform_3(%arg0: i32) -> (i32, i32, i32) {
    %c0_i32 = arith.constant 0 : i32
    %c0_i32_0 = arith.constant 0 : i32
    %c0_i32_1 = arith.constant 0 : i32
    %c0_i32_2 = arith.constant 0 : i32
    return %c0_i32, %c0_i32_0, %c0_i32_1 : i32, i32, i32
  }
  func.func @transform_4(%arg0: i32) -> (i32, i32, i32) {
    %c0_i32 = arith.constant 0 : i32
    %c0_i32_0 = arith.constant 0 : i32
    %c0_i32_1 = arith.constant 0 : i32
    %c0_i32_2 = arith.constant 0 : i32
    return %c0_i32, %c0_i32_0, %c0_i32_1 : i32, i32, i32
  }
  func.func @transform_5(%arg0: i32) -> (i32, i32, i32) {
    %c0_i32 = arith.constant 0 : i32
    %c0_i32_0 = arith.constant 0 : i32
    %c0_i32_1 = arith.constant 0 : i32
    %c0_i32_2 = arith.constant 0 : i32
    return %c0_i32, %c0_i32_0, %c0_i32_1 : i32, i32, i32
  }
  func.func @transform_6(%arg0: i32) -> (i32, i32) {
    %c0_i32 = arith.constant 0 : i32
    %c0_i32_0 = arith.constant 0 : i32
    %c0_i32_1 = arith.constant 0 : i32
    return %c0_i32, %c0_i32_0 : i32, i32
  }
  func.func @transform_7(%arg0: i32) -> (i32, i32) {
    %c0_i32 = arith.constant 0 : i32
    %c0_i32_0 = arith.constant 0 : i32
    %c0_i32_1 = arith.constant 0 : i32
    return %c0_i32, %c0_i32_0 : i32, i32
  }
  func.func @transform_8(%arg0: i32) -> (i32, i32) {
    %c0_i32 = arith.constant 0 : i32
    %c0_i32_0 = arith.constant 0 : i32
    %c0_i32_1 = arith.constant 0 : i32
    return %c0_i32, %c0_i32_0 : i32, i32
  }
  func.func @transform_9(%arg0: i32) -> (i32, i32) {
    %c0_i32 = arith.constant 0 : i32
    %c0_i32_0 = arith.constant 0 : i32
    %c0_i32_1 = arith.constant 0 : i32
    return %c0_i32, %c0_i32_0 : i32, i32
  }
  func.func @transform_10(%arg0: i32) -> (i32, i32) {
    %c0_i32 = arith.constant 0 : i32
    %c0_i32_0 = arith.constant 0 : i32
    %c0_i32_1 = arith.constant 0 : i32
    return %c0_i32, %c0_i32_0 : i32, i32
  }
  func.func @transform_11(%arg0: i32) -> (i32, i32, i32) {
    %c0_i32 = arith.constant 0 : i32
    %c0_i32_0 = arith.constant 0 : i32
    %c0_i32_1 = arith.constant 0 : i32
    return %arg0, %c0_i32, %c0_i32_0 : i32, i32, i32
  }
  func.func @transform_12(%arg0: i32) -> (i32, i32, i32) {
    %c0_i32 = arith.constant 0 : i32
    %c0_i32_0 = arith.constant 0 : i32
    %c0_i32_1 = arith.constant 0 : i32
    return %arg0, %c0_i32, %c0_i32_0 : i32, i32, i32
  }
}

module attributes {stable_mosaic.version = 11 : i64} {
  func.func @fold_relu_kernel(%arg0: i32, %arg1: memref<1x1024x40xbf16, #tpu.memory_space<vmem>>, %arg2: memref<144x1024xbf16, #tpu.memory_space<vmem>>, %arg3: memref<1024x144xbf16, #tpu.memory_space<vmem>>, %arg4: memref<144x1xf32, #tpu.memory_space<vmem>>, %arg5: memref<1x1024x40xbf16, #tpu.memory_space<vmem>>) attributes {dimension_semantics = [#tpu.dimension_semantics<parallel>], iteration_bounds = array<i64: 4>, scalar_prefetch = 0 : i64, scratch_operands = 0 : i64, tpu.core_type = #tpu.core_type<tc>, window_params = [{transform_indices = @transform_0, window_bounds = array<i64: 1, 1024, 40>}, {pipeline_mode = #tpu.pipeline_mode<synchronous>, transform_indices = @transform_1, window_bounds = array<i64: 144, 1024>}, {pipeline_mode = #tpu.pipeline_mode<synchronous>, transform_indices = @transform_2, window_bounds = array<i64: 1024, 144>}, {pipeline_mode = #tpu.pipeline_mode<synchronous>, transform_indices = @transform_3, window_bounds = array<i64: 144, 1>}, {transform_indices = @transform_4, window_bounds = array<i64: 1, 1024, 40>}]} {
    %c0 = arith.constant 0 : index
    %c0_0 = arith.constant 0 : index
    %c0_1 = arith.constant 0 : index
    %0 = vector.load %arg1[%c0, %c0_0, %c0_1] : memref<1x1024x40xbf16, #tpu.memory_space<vmem>>, vector<1x1024x40xbf16>
    %1 = vector.shape_cast %0 : vector<1x1024x40xbf16> to vector<1024x40xbf16>
    %c0_2 = arith.constant 0 : index
    %c0_3 = arith.constant 0 : index
    %2 = vector.load %arg2[%c0_2, %c0_3] : memref<144x1024xbf16, #tpu.memory_space<vmem>>, vector<144x1024xbf16>
    %cst = arith.constant dense<0.000000e+00> : vector<144x40xf32>
    %3 = tpu.matmul %2, %1, %cst {dimension_numbers = #tpu.dot_dimension_numbers<[1], [0], [0], [1], [0, 0, 1, 1], [], []>} : vector<144x1024xbf16>, vector<1024x40xbf16>, vector<144x40xf32> -> vector<144x40xf32>
    %c0_4 = arith.constant 0 : index
    %c0_5 = arith.constant 0 : index
    %4 = vector.load %arg4[%c0_4, %c0_5] : memref<144x1xf32, #tpu.memory_space<vmem>>, vector<144x1xf32>
    %5 = vector.broadcast %4 : vector<144x1xf32> to vector<144x40xf32>
    %6 = arith.mulf %3, %5 : vector<144x40xf32>
    %c0_6 = arith.constant 0 : index
    %c0_7 = arith.constant 0 : index
    %7 = vector.load %arg3[%c0_6, %c0_7] : memref<1024x144xbf16, #tpu.memory_space<vmem>>, vector<1024x144xbf16>
    %8 = arith.truncf %6 : vector<144x40xf32> to vector<144x40xbf16>
    %cst_8 = arith.constant dense<0.000000e+00> : vector<1024x40xf32>
    %9 = tpu.matmul %7, %8, %cst_8 {dimension_numbers = #tpu.dot_dimension_numbers<[1], [0], [0], [1], [0, 0, 1, 1], [], []>} : vector<1024x144xbf16>, vector<144x40xbf16>, vector<1024x40xf32> -> vector<1024x40xf32>
    %cst_9 = arith.constant 0.000000e+00 : f32
    %10 = vector.broadcast %cst_9 : f32 to vector<1024x40xf32>
    %11 = arith.maximumf %9, %10 : vector<1024x40xf32>
    %12 = arith.truncf %11 : vector<1024x40xf32> to vector<1024x40xbf16>
    %c0_10 = arith.constant 0 : index
    %c0_11 = arith.constant 0 : index
    %c0_12 = arith.constant 0 : index
    %13 = vector.load %arg5[%c0_10, %c0_11, %c0_12] : memref<1x1024x40xbf16, #tpu.memory_space<vmem>>, vector<1x1024x40xbf16>
    %14 = vector.shape_cast %13 : vector<1x1024x40xbf16> to vector<1024x40xbf16>
    %15 = vector.shape_cast %12 : vector<1024x40xbf16> to vector<1x1024x40xbf16>
    tpu.vector_store %arg5[%c0_10, %c0_11, %c0_12], %15 {strides = array<i32>} : memref<1x1024x40xbf16, #tpu.memory_space<vmem>>, vector<1x1024x40xbf16>,
    return
  }
  func.func @transform_0(%arg0: i32) -> (i32, i32, i32) {
    %c0_i32 = arith.constant 0 : i32
    %c0_i32_0 = arith.constant 0 : i32
    %c0_i32_1 = arith.constant 0 : i32
    return %arg0, %c0_i32, %c0_i32_0 : i32, i32, i32
  }
  func.func @transform_1(%arg0: i32) -> (i32, i32) {
    %c0_i32 = arith.constant 0 : i32
    %c0_i32_0 = arith.constant 0 : i32
    %c0_i32_1 = arith.constant 0 : i32
    return %c0_i32, %c0_i32_0 : i32, i32
  }
  func.func @transform_2(%arg0: i32) -> (i32, i32) {
    %c0_i32 = arith.constant 0 : i32
    %c0_i32_0 = arith.constant 0 : i32
    %c0_i32_1 = arith.constant 0 : i32
    return %c0_i32, %c0_i32_0 : i32, i32
  }
  func.func @transform_3(%arg0: i32) -> (i32, i32) {
    %c0_i32 = arith.constant 0 : i32
    %c0_i32_0 = arith.constant 0 : i32
    %c0_i32_1 = arith.constant 0 : i32
    return %c0_i32, %c0_i32_0 : i32, i32
  }
  func.func @transform_4(%arg0: i32) -> (i32, i32, i32) {
    %c0_i32 = arith.constant 0 : i32
    %c0_i32_0 = arith.constant 0 : i32
    %c0_i32_1 = arith.constant 0 : i32
    return %arg0, %c0_i32, %c0_i32_0 : i32, i32, i32
  }
}

module attributes {stable_mosaic.version = 11 : i64} {
  func.func @w2_res_kernel(%arg0: i32, %arg1: memref<32x2560xbf16, #tpu.memory_space<vmem>>, %arg2: memref<32x128xf32, #tpu.memory_space<vmem>>, %arg3: memref<2560x128xbf16, #tpu.memory_space<vmem>>, %arg4: memref<1x128xf32, #tpu.memory_space<vmem>>, %arg5: memref<32x128xf32, #tpu.memory_space<vmem>>) attributes {dimension_semantics = [#tpu.dimension_semantics<parallel>], iteration_bounds = array<i64: 2>, scalar_prefetch = 0 : i64, scratch_operands = 0 : i64, tpu.core_type = #tpu.core_type<tc>, window_params = [{transform_indices = @transform_0, window_bounds = array<i64: 32, 2560>}, {transform_indices = @transform_1, window_bounds = array<i64: 32, 128>}, {pipeline_mode = #tpu.pipeline_mode<synchronous>, transform_indices = @transform_2, window_bounds = array<i64: 2560, 128>}, {pipeline_mode = #tpu.pipeline_mode<synchronous>, transform_indices = @transform_3, window_bounds = array<i64: 1, 128>}, {transform_indices = @transform_4, window_bounds = array<i64: 32, 128>}]} {
    %c0 = arith.constant 0 : index
    %c0_0 = arith.constant 0 : index
    %0 = vector.load %arg2[%c0, %c0_0] : memref<32x128xf32, #tpu.memory_space<vmem>>, vector<32x128xf32>
    %c0_1 = arith.constant 0 : index
    %c0_2 = arith.constant 0 : index
    %1 = vector.load %arg1[%c0_1, %c0_2] : memref<32x2560xbf16, #tpu.memory_space<vmem>>, vector<32x2560xbf16>
    %c0_3 = arith.constant 0 : index
    %c0_4 = arith.constant 0 : index
    %2 = vector.load %arg3[%c0_3, %c0_4] : memref<2560x128xbf16, #tpu.memory_space<vmem>>, vector<2560x128xbf16>
    %cst = arith.constant dense<0.000000e+00> : vector<32x128xf32>
    %3 = tpu.matmul %1, %2, %cst {dimension_numbers = #tpu.dot_dimension_numbers<[1], [0], [0], [1], [0, 0, 1, 1], [], []>} : vector<32x2560xbf16>, vector<2560x128xbf16>, vector<32x128xf32> -> vector<32x128xf32>
    %4 = arith.addf %0, %3 : vector<32x128xf32>
    %c0_5 = arith.constant 0 : index
    %c0_6 = arith.constant 0 : index
    %5 = vector.load %arg4[%c0_5, %c0_6] : memref<1x128xf32, #tpu.memory_space<vmem>>, vector<1x128xf32>
    %6 = vector.broadcast %5 : vector<1x128xf32> to vector<32x128xf32>
    %7 = arith.addf %4, %6 : vector<32x128xf32>
    %c0_7 = arith.constant 0 : index
    %c0_8 = arith.constant 0 : index
    %8 = vector.load %arg5[%c0_7, %c0_8] : memref<32x128xf32, #tpu.memory_space<vmem>>, vector<32x128xf32>
    tpu.vector_store %arg5[%c0_7, %c0_8], %7 {strides = array<i32>} : memref<32x128xf32, #tpu.memory_space<vmem>>, vector<32x128xf32>,
    return
  }
  func.func @transform_0(%arg0: i32) -> (i32, i32) {
    %c0_i32 = arith.constant 0 : i32
    %c0_i32_0 = arith.constant 0 : i32
    return %arg0, %c0_i32 : i32, i32
  }
  func.func @transform_1(%arg0: i32) -> (i32, i32) {
    %c0_i32 = arith.constant 0 : i32
    %c0_i32_0 = arith.constant 0 : i32
    return %arg0, %c0_i32 : i32, i32
  }
  func.func @transform_2(%arg0: i32) -> (i32, i32) {
    %c0_i32 = arith.constant 0 : i32
    %c0_i32_0 = arith.constant 0 : i32
    %c0_i32_1 = arith.constant 0 : i32
    return %c0_i32, %c0_i32_0 : i32, i32
  }
  func.func @transform_3(%arg0: i32) -> (i32, i32) {
    %c0_i32 = arith.constant 0 : i32
    %c0_i32_0 = arith.constant 0 : i32
    %c0_i32_1 = arith.constant 0 : i32
    return %c0_i32, %c0_i32_0 : i32, i32
  }
  func.func @transform_4(%arg0: i32) -> (i32, i32) {
    %c0_i32 = arith.constant 0 : i32
    %c0_i32_0 = arith.constant 0 : i32
    return %arg0, %c0_i32 : i32, i32
  }
}

</mosaic_0001>

<llo_original>
// kernel: transformer_block.4
$region0: #{transformer_block.4}
  #allocation0 [shape = 'u32[]', space=smem, size = 0x4, offset = 0x4, fixed_abs, tag = 'smem constant byte address 0x4 - core index']
  #allocation1 [shape = 'u32[144,128]{1,0:T(1,128)}', space=vmem, size = 0x12000, scoped, tag = 'internal scratch']
  %s0 = inlined_call_operand.vmem [shape: bf16[4,1024,40], index: 0, kind: input, shape index: {}]
  %s1 = inlined_call_operand.vmem [shape: bf16[144,1024], index: 1, kind: input, shape index: {}]
  %s2 = inlined_call_operand.vmem [shape: bf16[1024,144], index: 2, kind: input, shape index: {}]
  %s3 = inlined_call_operand.vmem [shape: f32[144,1], index: 3, kind: input, shape index: {}]
  %s4 = inlined_call_operand.vmem [shape: bf16[4,1024,40], index: 4, kind: output, shape index: {}]
  %s5 = sld [smem:[#allocation0]]
  $region49: #{transformer_block.4} parent=0
    _
  %s7 = ssub.s32 1, %s5
  %s8 = scalar_select 0, %s7, %s5
  loop: start=0, step=1, limit=6
  $region2: #{transformer_block.4} parent=0 // loop_pre_header
    _
  $region3: #{transformer_block.4} parent=0 // loop_header
    %s10 = sphi 0, %s14
    %p11 = scmp.ge.s32.totalorder %s10, 6
    %s20 = sphi 0, %s22
    %s23 = sphi 0, %s20
    %s24 = sphi 0, %s23
    %s40 = sphi 0, %s24
    %s44 = sphi 0, %s44
    %s46 = sphi 0, %s44
    %s47 = sphi 0, %s46
    %s61 = sphi 0, %s47
    %s65 = sphi 0, %s65
    %s67 = sphi 0, %s65
    %s68 = sphi 0, %s67
    %s82 = sphi 0, %s68
    %s86 = sphi 0, %s86
    %s88 = sphi 0, %s86
    %s89 = sphi 0, %s88
    %s103 = sphi 0, %s89
    %s109 = sphi 0, %s111
    %s112 = sphi 0, %s109
    %s113 = sphi 0, %s112
    %s129 = sphi 0, %s113
  $region4: #{transformer_block.4} parent=0 // loop_header_branch
    %13 = sbr.rel (%p11) target = $region8
  $region5: #{transformer_block.4} parent=0 // loop_body
    %s15 = ssub.s32 %s10, 1
    %s16 = ssub.s32 %s10, 2
    %s17 = sadd.s32 %s10, 1
    %s18 = ssub.s32 %s10, %s17
    %p19 = scmp.eq.s32.totalorder %s18, 0
    %s21 = sadd.s32 %s20, 1
    %s22 = scalar_select %p19, %s20, %s21
    %p25 = pneg %p19
    %p26 = scmp.eq.s32.totalorder %s10, 3
    %p27 = por %p25, %p26
    %p28 = scmp.ne.s32.totalorder %s20, %s23
    %p29 = scmp.eq.s32.totalorder %s10, 0
    %p30 = por %p28, %p29
    %p31 = scmp.ne.s32.totalorder %s20, %s23
    %p32 = scmp.eq.s32.totalorder %s15, 3
    %p33 = por %p31, %p32
    %p34 = scmp.ne.s32.totalorder %s23, %s24
    %p35 = scmp.eq.s32.totalorder %s15, 0
    %p36 = por %p34, %p35
    %p37 = scmp.ne.s32.totalorder %s23, %s24
    %p38 = scmp.eq.s32.totalorder %s16, 3
    %p39 = por %p37, %p38
    %p41 = scmp.ne.s32.totalorder %s24, %s40
    %p42 = scmp.eq.s32.totalorder %s16, 0
    %p43 = por %p41, %p42
    %s45 = sadd.s32 %s44, 1
    %p48 = scmp.eq.s32.totalorder %s10, 3
    %p49 = scmp.ne.s32.totalorder %s44, %s46
    %p50 = scmp.eq.s32.totalorder %s10, 0
    %p51 = por %p49, %p50
    %p52 = scmp.ne.s32.totalorder %s44, %s46
    %p53 = scmp.eq.s32.totalorder %s15, 3
    %p54 = por %p52, %p53
    %p55 = scmp.ne.s32.totalorder %s46, %s47
    %p56 = scmp.eq.s32.totalorder %s15, 0
    %p57 = por %p55, %p56
    %p58 = scmp.ne.s32.totalorder %s46, %s47
    %p59 = scmp.eq.s32.totalorder %s16, 3
    %p60 = por %p58, %p59
    %p62 = scmp.ne.s32.totalorder %s47, %s61
    %p63 = scmp.eq.s32.totalorder %s16, 0
    %p64 = por %p62, %p63
    %s66 = sadd.s32 %s65, 1
    %p69 = scmp.eq.s32.totalorder %s10, 3
    %p70 = scmp.ne.s32.totalorder %s65, %s67
    %p71 = scmp.eq.s32.totalorder %s10, 0
    %p72 = por %p70, %p71
    %p73 = scmp.ne.s32.totalorder %s65, %s67
    %p74 = scmp.eq.s32.totalorder %s15, 3
    %p75 = por %p73, %p74
    %p76 = scmp.ne.s32.totalorder %s67, %s68
    %p77 = scmp.eq.s32.totalorder %s15, 0
    %p78 = por %p76, %p77
    %p79 = scmp.ne.s32.totalorder %s67, %s68
    %p80 = scmp.eq.s32.totalorder %s16, 3
    %p81 = por %p79, %p80
    %p83 = scmp.ne.s32.totalorder %s68, %s82
    %p84 = scmp.eq.s32.totalorder %s16, 0
    %p85 = por %p83, %p84
    %s87 = sadd.s32 %s86, 1
    %p90 = scmp.eq.s32.totalorder %s10, 3
    %p91 = scmp.ne.s32.totalorder %s86, %s88
    %p92 = scmp.eq.s32.totalorder %s10, 0
    %p93 = por %p91, %p92
    %p94 = scmp.ne.s32.totalorder %s86, %s88
    %p95 = scmp.eq.s32.totalorder %s15, 3
    %p96 = por %p94, %p95
    %p97 = scmp.ne.s32.totalorder %s88, %s89
    %p98 = scmp.eq.s32.totalorder %s15, 0
    %p99 = por %p97, %p98
    %p100 = scmp.ne.s32.totalorder %s88, %s89
    %p101 = scmp.eq.s32.totalorder %s16, 3
    %p102 = por %p100, %p101
    %p104 = scmp.ne.s32.totalorder %s89, %s103
    %p105 = scmp.eq.s32.totalorder %s16, 0
    %p106 = por %p104, %p105
    %s107 = ssub.s32 %s10, %s17
    %p108 = scmp.eq.s32.totalorder %s107, 0
    %s110 = sadd.s32 %s109, 1
    %s111 = scalar_select %p108, %s109, %s110
    %p114 = pneg %p108
    %p115 = scmp.eq.s32.totalorder %s10, 3
    %p116 = por %p114, %p115
    %p117 = scmp.ne.s32.totalorder %s109, %s112
    %p118 = scmp.eq.s32.totalorder %s10, 0
    %p119 = por %p117, %p118
    %p120 = scmp.ne.s32.totalorder %s109, %s112
    %p121 = scmp.eq.s32.totalorder %s15, 3
    %p122 = por %p120, %p121
    %p123 = scmp.ne.s32.totalorder %s112, %s113
    %p124 = scmp.eq.s32.totalorder %s15, 0
    %p125 = por %p123, %p124
    %p126 = scmp.ne.s32.totalorder %s112, %s113
    %p127 = scmp.eq.s32.totalorder %s16, 3
    %p128 = por %p126, %p127
    %p130 = scmp.ne.s32.totalorder %s113, %s129
    %p131 = scmp.eq.s32.totalorder %s16, 0
    %p132 = por %p130, %p131
    %p133 = scmp.le.s32.totalorder 1, %s10
    %p134 = scmp.lt.s32.totalorder %s10, 5
    %p135 = pnand %p133, %p134
    %p136 = pneg %p135
    // Predicated region
    $region9: #{transformer_block.4} parent=5 // pred_check
      _
    $region10: #{transformer_block.4} parent=5 // pred_check_branch
      %138 = sbr.rel (%p135) target = $region12
    $region11: #{transformer_block.4} parent=5 // pred_region
      %s139 = ssub.s32 %s10, 1
      // Predicated region
      $region13: #{transformer_block.4} parent=11 // pred_check
        %p140 = pneg %p57
      $region14: #{transformer_block.4} parent=11 // pred_check_branch
        %142 = sbr.rel (%p140) target = $region16
      $region15: #{transformer_block.4} parent=11 // pred_region
        _
      $region16: #{transformer_block.4} parent=11 // pred_fallthru
        _
      // Predicated region
      $region17: #{transformer_block.4} parent=11 // pred_check
        %p143 = pneg %p78
      $region18: #{transformer_block.4} parent=11 // pred_check_branch
        %145 = sbr.rel (%p143) target = $region20
      $region19: #{transformer_block.4} parent=11 // pred_region
        _
      $region20: #{transformer_block.4} parent=11 // pred_fallthru
        _
      // Predicated region
      $region21: #{transformer_block.4} parent=11 // pred_check
        %p146 = pneg %p99
      $region22: #{transformer_block.4} parent=11 // pred_check_branch
        %148 = sbr.rel (%p146) target = $region24
      $region23: #{transformer_block.4} parent=11 // pred_region
        _
      $region24: #{transformer_block.4} parent=11 // pred_fallthru
        _
    $region12: #{transformer_block.4} parent=5 // pred_fallthru
      _
    %p149 = scmp.lt.s32.totalorder %s10, 4
    // Predicated region
    $region25: #{transformer_block.4} parent=5 // pred_check
      %p150 = pneg %p149
    $region26: #{transformer_block.4} parent=5 // pred_check_branch
      %152 = sbr.rel (%p150) target = $region28
    $region27: #{transformer_block.4} parent=5 // pred_region
      // Predicated region
      $region29: #{transformer_block.4} parent=27 // pred_check
        %p153 = pneg %p30
      $region30: #{transformer_block.4} parent=27 // pred_check_branch
        %155 = sbr.rel (%p153) target = $region32
      $region31: #{transformer_block.4} parent=27 // pred_region
        %p156 = scmp.lt.s32.totalorder %s10, 3
        %s157 = scalar_select %p156, %s10, 3
        %s158 = smul.addr %s157, 128
        %s159 = smul.addr %s158, 4
        %s160 = scalar_lea.vmem %s0, %s159
      $region32: #{transformer_block.4} parent=27 // pred_fallthru
        _
    $region28: #{transformer_block.4} parent=5 // pred_fallthru
      _
    %p161 = scmp.le.s32.totalorder 1, %s10
    %p162 = scmp.lt.s32.totalorder %s10, 5
    %p163 = pnand %p161, %p162
    %p164 = pneg %p163
    // Predicated region
    $region33: #{transformer_block.4} parent=5 // pred_check
      _
    $region34: #{transformer_block.4} parent=5 // pred_check_branch
      %166 = sbr.rel (%p163) target = $region36
    $region35: #{transformer_block.4} parent=5 // pred_region
      %s167 = ssub.s32 %s10, 1
      %p168 = scmp.lt.s32.totalorder %s15, 3
      %s169 = scalar_select %p168, %s15, 3
      %s170 = smul.addr %s169, 128
      %s171 = smul.addr %s170, 4
      %s172 = scalar_lea.vmem %s0, %s171
      %p173 = pneg %p36
      %p174 = pneg %p33
      %p175 = pneg %p57
      %p176 = pneg %p54
      %p177 = pneg %p78
      %p178 = pneg %p75
      %p179 = pneg %p99
      %p180 = pneg %p96
      %p181 = pneg %p125
      %p182 = pneg %p122
      %p183 = scmp.lt.s32.totalorder %s15, 3
      %s184 = scalar_select %p183, %s15, 3
      %s185 = smul.addr %s184, 128
      %s186 = smul.addr %s185, 4
      %s187 = scalar_lea.vmem %s4, %s186
      %p188 = scmp.lt.s32.totalorder %s15, 3
      %s189 = scalar_select %p188, %s15, 3
      %s190 = smul.addr %s189, 128
      %s191 = smul.addr %s190, 4
      %s192 = scalar_lea.vmem %s0, %s191
      %p193 = scmp.lt.s32.totalorder %s15, 3
      %s194 = scalar_select %p193, %s15, 3
      %s195 = smul.addr %s194, 128
      %s196 = smul.addr %s195, 4
      %s197 = scalar_lea.vmem %s4, %s196
      %v199 = vld [vmem:[%s192] sm:$0xf]
      %v200 = vld [vmem:[%s192 + $0x4] sm:$0xf]
      %v201 = vld [vmem:[%s192 + $0x8] sm:$0xf]
      %v202 = vld [vmem:[%s192 + $0xc] sm:$0xf]
      %v203 = vld [vmem:[%s192 + $0x10] sm:$0xf]
      %v204 = vld [vmem:[%s192 + $0x14] sm:$0xf]
      %v205 = vld [vmem:[%s192 + $0x18] sm:$0xf]
      %v206 = vld [vmem:[%s192 + $0x1c] sm:$0xf]
      %v207 = vld [vmem:[%s192 + $0x20] sm:$0xf]
      %v208 = vld [vmem:[%s192 + $0x24] sm:$0xf]
      %v209 = vld [vmem:[%s192 + $0x28] sm:$0xf]
      %v210 = vld [vmem:[%s192 + $0x2c] sm:$0xf]
      %v211 = vld [vmem:[%s192 + $0x30] sm:$0xf]
      %v212 = vld [vmem:[%s192 + $0x34] sm:$0xf]
      %v213 = vld [vmem:[%s192 + $0x38] sm:$0xf]
      %v214 = vld [vmem:[%s192 + $0x3c] sm:$0xf]
      %v215 = vld [vmem:[%s192 + $0x40] sm:$0xf]
      %v216 = vld [vmem:[%s192 + $0x44] sm:$0xf]
      %v217 = vld [vmem:[%s192 + $0x48] sm:$0xf]
      %v218 = vld [vmem:[%s192 + $0x4c] sm:$0xf]
      %v219 = vld [vmem:[%s192 + $0x50] sm:$0xf]
      %v220 = vld [vmem:[%s192 + $0x54] sm:$0xf]
      %v221 = vld [vmem:[%s192 + $0x58] sm:$0xf]
      %v222 = vld [vmem:[%s192 + $0x5c] sm:$0xf]
      %v223 = vld [vmem:[%s192 + $0x60] sm:$0xf]
      %v224 = vld [vmem:[%s192 + $0x64] sm:$0xf]
      %v225 = vld [vmem:[%s192 + $0x68] sm:$0xf]
      %v226 = vld [vmem:[%s192 + $0x6c] sm:$0xf]
      %v227 = vld [vmem:[%s192 + $0x70] sm:$0xf]
      %v228 = vld [vmem:[%s192 + $0x74] sm:$0xf]
      %v229 = vld [vmem:[%s192 + $0x78] sm:$0xf]
      %v230 = vld [vmem:[%s192 + $0x7c] sm:$0xf]
      %v231 = vld [vmem:[%s192 + $0x80] sm:$0xf]
      %v232 = vld [vmem:[%s192 + $0x84] sm:$0xf]
      %v233 = vld [vmem:[%s192 + $0x88] sm:$0xf]
      %v234 = vld [vmem:[%s192 + $0x8c] sm:$0xf]
      %v235 = vld [vmem:[%s192 + $0x90] sm:$0xf]
      %v236 = vld [vmem:[%s192 + $0x94] sm:$0xf]
      %v237 = vld [vmem:[%s192 + $0x98] sm:$0xf]
      %v238 = vld [vmem:[%s192 + $0x9c] sm:$0xf]
      %v239 = vld [vmem:[%s192 + $0xa0] sm:$0xf]
      %v240 = vld [vmem:[%s192 + $0xa4] sm:$0xf]
      %v241 = vld [vmem:[%s192 + $0xa8] sm:$0xf]
      %v242 = vld [vmem:[%s192 + $0xac] sm:$0xf]
      %v243 = vld [vmem:[%s192 + $0xb0] sm:$0xf]
      %v244 = vld [vmem:[%s192 + $0xb4] sm:$0xf]
      %v245 = vld [vmem:[%s192 + $0xb8] sm:$0xf]
      %v246 = vld [vmem:[%s192 + $0xbc] sm:$0xf]
      %v247 = vld [vmem:[%s192 + $0xc0] sm:$0xf]
      %v248 = vld [vmem:[%s192 + $0xc4] sm:$0xf]
      %v249 = vld [vmem:[%s192 + $0xc8] sm:$0xf]
      %v250 = vld [vmem:[%s192 + $0xcc] sm:$0xf]
      %v251 = vld [vmem:[%s192 + $0xd0] sm:$0xf]
      %v252 = vld [vmem:[%s192 + $0xd4] sm:$0xf]
      %v253 = vld [vmem:[%s192 + $0xd8] sm:$0xf]
      %v254 = vld [vmem:[%s192 + $0xdc] sm:$0xf]
      %v255 = vld [vmem:[%s192 + $0xe0] sm:$0xf]
      %v256 = vld [vmem:[%s192 + $0xe4] sm:$0xf]
      %v257 = vld [vmem:[%s192 + $0xe8] sm:$0xf]
      %v258 = vld [vmem:[%s192 + $0xec] sm:$0xf]
      %v259 = vld [vmem:[%s192 + $0xf0] sm:$0xf]
      %v260 = vld [vmem:[%s192 + $0xf4] sm:$0xf]
      %v261 = vld [vmem:[%s192 + $0xf8] sm:$0xf]
      %v262 = vld [vmem:[%s192 + $0xfc] sm:$0xf]
      %v263 = vld [vmem:[%s192 + $0x100] sm:$0xf]
      %v264 = vld [vmem:[%s192 + $0x104] sm:$0xf]
      %v265 = vld [vmem:[%s192 + $0x108] sm:$0xf]
      %v266 = vld [vmem:[%s192 + $0x10c] sm:$0xf]
      %v267 = vld [vmem:[%s192 + $0x110] sm:$0xf]
      %v268 = vld [vmem:[%s192 + $0x114] sm:$0xf]
      %v269 = vld [vmem:[%s192 + $0x118] sm:$0xf]
      %v270 = vld [vmem:[%s192 + $0x11c] sm:$0xf]
      %v271 = vld [vmem:[%s192 + $0x120] sm:$0xf]
      %v272 = vld [vmem:[%s192 + $0x124] sm:$0xf]
      %v273 = vld [vmem:[%s192 + $0x128] sm:$0xf]
      %v274 = vld [vmem:[%s192 + $0x12c] sm:$0xf]
      %v275 = vld [vmem:[%s192 + $0x130] sm:$0xf]
      %v276 = vld [vmem:[%s192 + $0x134] sm:$0xf]
      %v277 = vld [vmem:[%s192 + $0x138] sm:$0xf]
      %v278 = vld [vmem:[%s192 + $0x13c] sm:$0xf]
      %v279 = vld [vmem:[%s192 + $0x140] sm:$0xf]
      %v280 = vld [vmem:[%s192 + $0x144] sm:$0xf]
      %v281 = vld [vmem:[%s192 + $0x148] sm:$0xf]
      %v282 = vld [vmem:[%s192 + $0x14c] sm:$0xf]
      %v283 = vld [vmem:[%s192 + $0x150] sm:$0xf]
      %v284 = vld [vmem:[%s192 + $0x154] sm:$0xf]
      %v285 = vld [vmem:[%s192 + $0x158] sm:$0xf]
      %v286 = vld [vmem:[%s192 + $0x15c] sm:$0xf]
      %v287 = vld [vmem:[%s192 + $0x160] sm:$0xf]
      %v288 = vld [vmem:[%s192 + $0x164] sm:$0xf]
      %v289 = vld [vmem:[%s192 + $0x168] sm:$0xf]
      %v290 = vld [vmem:[%s192 + $0x16c] sm:$0xf]
      %v291 = vld [vmem:[%s192 + $0x170] sm:$0xf]
      %v292 = vld [vmem:[%s192 + $0x174] sm:$0xf]
      %v293 = vld [vmem:[%s192 + $0x178] sm:$0xf]
      %v294 = vld [vmem:[%s192 + $0x17c] sm:$0xf]
      %v295 = vld [vmem:[%s192 + $0x180] sm:$0xf]
      %v296 = vld [vmem:[%s192 + $0x184] sm:$0xf]
      %v297 = vld [vmem:[%s192 + $0x188] sm:$0xf]
      %v298 = vld [vmem:[%s192 + $0x18c] sm:$0xf]
      %v299 = vld [vmem:[%s192 + $0x190] sm:$0xf]
      %v300 = vld [vmem:[%s192 + $0x194] sm:$0xf]
      %v301 = vld [vmem:[%s192 + $0x198] sm:$0xf]
      %v302 = vld [vmem:[%s192 + $0x19c] sm:$0xf]
      %v303 = vld [vmem:[%s192 + $0x1a0] sm:$0xf]
      %v304 = vld [vmem:[%s192 + $0x1a4] sm:$0xf]
      %v305 = vld [vmem:[%s192 + $0x1a8] sm:$0xf]
      %v306 = vld [vmem:[%s192 + $0x1ac] sm:$0xf]
      %v307 = vld [vmem:[%s192 + $0x1b0] sm:$0xf]
      %v308 = vld [vmem:[%s192 + $0x1b4] sm:$0xf]
      %v309 = vld [vmem:[%s192 + $0x1b8] sm:$0xf]
      %v310 = vld [vmem:[%s192 + $0x1bc] sm:$0xf]
      %v311 = vld [vmem:[%s192 + $0x1c0] sm:$0xf]
      %v312 = vld [vmem:[%s192 + $0x1c4] sm:$0xf]
      %v313 = vld [vmem:[%s192 + $0x1c8] sm:$0xf]
      %v314 = vld [vmem:[%s192 + $0x1cc] sm:$0xf]
      %v315 = vld [vmem:[%s192 + $0x1d0] sm:$0xf]
      %v316 = vld [vmem:[%s192 + $0x1d4] sm:$0xf]
      %v317 = vld [vmem:[%s192 + $0x1d8] sm:$0xf]
      %v318 = vld [vmem:[%s192 + $0x1dc] sm:$0xf]
      %v319 = vld [vmem:[%s192 + $0x1e0] sm:$0xf]
      %v320 = vld [vmem:[%s192 + $0x1e4] sm:$0xf]
      %v321 = vld [vmem:[%s192 + $0x1e8] sm:$0xf]
      %v322 = vld [vmem:[%s192 + $0x1ec] sm:$0xf]
      %v323 = vld [vmem:[%s192 + $0x1f0] sm:$0xf]
      %v324 = vld [vmem:[%s192 + $0x1f4] sm:$0xf]
      %v325 = vld [vmem:[%s192 + $0x1f8] sm:$0xf]
      %v326 = vld [vmem:[%s192 + $0x1fc] sm:$0xf]
      %v327 = vld [vmem:[%s1] sm:$0xff]
      %v328 = vld [vmem:[%s1 + $0x8] sm:$0xff]
      %v329 = vld [vmem:[%s1 + $0x10] sm:$0xff]
      %v330 = vld [vmem:[%s1 + $0x18] sm:$0xff]
      %v331 = vld [vmem:[%s1 + $0x20] sm:$0xff]
      %v332 = vld [vmem:[%s1 + $0x28] sm:$0xff]
      %v333 = vld [vmem:[%s1 + $0x30] sm:$0xff]
      %v334 = vld [vmem:[%s1 + $0x38] sm:$0xff]
      %v335 = vld [vmem:[%s1 + $0x40] sm:$0xff]
      %v336 = vld [vmem:[%s1 + $0x48] sm:$0xff]
      %v337 = vld [vmem:[%s1 + $0x50] sm:$0xff]
      %v338 = vld [vmem:[%s1 + $0x58] sm:$0xff]
      %v339 = vld [vmem:[%s1 + $0x60] sm:$0xff]
      %v340 = vld [vmem:[%s1 + $0x68] sm:$0xff]
      %v341 = vld [vmem:[%s1 + $0x70] sm:$0xff]
      %v342 = vld [vmem:[%s1 + $0x78] sm:$0xff]
      %v343 = vld [vmem:[%s1 + $0x80] sm:$0xff]
      %v344 = vld [vmem:[%s1 + $0x88] sm:$0xff]
      %v345 = vld [vmem:[%s1 + $0x90] sm:$0xff]
      %v346 = vld [vmem:[%s1 + $0x98] sm:$0xff]
      %v347 = vld [vmem:[%s1 + $0xa0] sm:$0xff]
      %v348 = vld [vmem:[%s1 + $0xa8] sm:$0xff]
      %v349 = vld [vmem:[%s1 + $0xb0] sm:$0xff]
      %v350 = vld [vmem:[%s1 + $0xb8] sm:$0xff]
      %v351 = vld [vmem:[%s1 + $0xc0] sm:$0xff]
      %v352 = vld [vmem:[%s1 + $0xc8] sm:$0xff]
      %v353 = vld [vmem:[%s1 + $0xd0] sm:$0xff]
      %v354 = vld [vmem:[%s1 + $0xd8] sm:$0xff]
      %v355 = vld [vmem:[%s1 + $0xe0] sm:$0xff]
      %v356 = vld [vmem:[%s1 + $0xe8] sm:$0xff]
      %v357 = vld [vmem:[%s1 + $0xf0] sm:$0xff]
      %v358 = vld [vmem:[%s1 + $0xf8] sm:$0xff]
      %v359 = vld [vmem:[%s1 + $0x100] sm:$0xff]
      %v360 = vld [vmem:[%s1 + $0x108] sm:$0xff]
      %v361 = vld [vmem:[%s1 + $0x110] sm:$0xff]
      %v362 = vld [vmem:[%s1 + $0x118] sm:$0xff]
      %v363 = vld [vmem:[%s1 + $0x120] sm:$0xff]
      %v364 = vld [vmem:[%s1 + $0x128] sm:$0xff]
      %v365 = vld [vmem:[%s1 + $0x130] sm:$0xff]
      %v366 = vld [vmem:[%s1 + $0x138] sm:$0xff]
      %v367 = vld [vmem:[%s1 + $0x140] sm:$0xff]
      %v368 = vld [vmem:[%s1 + $0x148] sm:$0xff]
      %v369 = vld [vmem:[%s1 + $0x150] sm:$0xff]
      %v370 = vld [vmem:[%s1 + $0x158] sm:$0xff]
      %v371 = vld [vmem:[%s1 + $0x160] sm:$0xff]
      %v372 = vld [vmem:[%s1 + $0x168] sm:$0xff]
      %v373 = vld [vmem:[%s1 + $0x170] sm:$0xff]
      %v374 = vld [vmem:[%s1 + $0x178] sm:$0xff]
      %v375 = vld [vmem:[%s1 + $0x180] sm:$0xff]
      %v376 = vld [vmem:[%s1 + $0x188] sm:$0xff]
      %v377 = vld [vmem:[%s1 + $0x190] sm:$0xff]
      %v378 = vld [vmem:[%s1 + $0x198] sm:$0xff]
      %v379 = vld [vmem:[%s1 + $0x1a0] sm:$0xff]
      %v380 = vld [vmem:[%s1 + $0x1a8] sm:$0xff]
      %v381 = vld [vmem:[%s1 + $0x1b0] sm:$0xff]
      %v382 = vld [vmem:[%s1 + $0x1b8] sm:$0xff]
      %v383 = vld [vmem:[%s1 + $0x1c0] sm:$0xff]
      %v384 = vld [vmem:[%s1 + $0x1c8] sm:$0xff]
      %v385 = vld [vmem:[%s1 + $0x1d0] sm:$0xff]
      %v386 = vld [vmem:[%s1 + $0x1d8] sm:$0xff]
      %v387 = vld [vmem:[%s1 + $0x1e0] sm:$0xff]
      %v388 = vld [vmem:[%s1 + $0x1e8] sm:$0xff]
      %v389 = vld [vmem:[%s1 + $0x1f0] sm:$0xff]
      %v390 = vld [vmem:[%s1 + $0x1f8] sm:$0xff]
      %v391 = vld [vmem:[%s1 + $0x200] sm:$0xff]
      %v392 = vld [vmem:[%s1 + $0x208] sm:$0xff]
      %v393 = vld [vmem:[%s1 + $0x210] sm:$0xff]
      %v394 = vld [vmem:[%s1 + $0x218] sm:$0xff]
      %v395 = vld [vmem:[%s1 + $0x220] sm:$0xff]
      %v396 = vld [vmem:[%s1 + $0x228] sm:$0xff]
      %v397 = vld [vmem:[%s1 + $0x230] sm:$0xff]
      %v398 = vld [vmem:[%s1 + $0x238] sm:$0xff]
      %v471 = vunpack.c.l.b16 %v327
      %v472 = vunpack.c.h.b16 %v327
      %v473 = vunpack.c.l.b16 %v328
      %v474 = vunpack.c.h.b16 %v328
      %v475 = vunpack.c.l.b16 %v329
      %v476 = vunpack.c.h.b16 %v329
      %v477 = vunpack.c.l.b16 %v330
      %v478 = vunpack.c.h.b16 %v330
      %v479 = vunpack.c.l.b16 %v331
      %v480 = vunpack.c.h.b16 %v331
      %v481 = vunpack.c.l.b16 %v332
      %v482 = vunpack.c.h.b16 %v332
      %v483 = vunpack.c.l.b16 %v333
      %v484 = vunpack.c.h.b16 %v333
      %v485 = vunpack.c.l.b16 %v334
      %v486 = vunpack.c.h.b16 %v334
      %v487 = vunpack.c.l.b16 %v335
      %v488 = vunpack.c.h.b16 %v335
      %v489 = vunpack.c.l.b16 %v336
      %v490 = vunpack.c.h.b16 %v336
      %v491 = vunpack.c.l.b16 %v337
      %v492 = vunpack.c.h.b16 %v337
      %v493 = vunpack.c.l.b16 %v338
      %v494 = vunpack.c.h.b16 %v338
      %v495 = vunpack.c.l.b16 %v339
      %v496 = vunpack.c.h.b16 %v339
      %v497 = vunpack.c.l.b16 %v340
      %v498 = vunpack.c.h.b16 %v340
      %v499 = vunpack.c.l.b16 %v341
      %v500 = vunpack.c.h.b16 %v341
      %v501 = vunpack.c.l.b16 %v342
      %v502 = vunpack.c.h.b16 %v342
      %v503 = vunpack.c.l.b16 %v343
      %v504 = vunpack.c.h.b16 %v343
      %v505 = vunpack.c.l.b16 %v344
      %v506 = vunpack.c.h.b16 %v344
      %v507 = vunpack.c.l.b16 %v345
      %v508 = vunpack.c.h.b16 %v345
      %v509 = vunpack.c.l.b16 %v346
      %v510 = vunpack.c.h.b16 %v346
      %v511 = vunpack.c.l.b16 %v347
      %v512 = vunpack.c.h.b16 %v347
      %v513 = vunpack.c.l.b16 %v348
      %v514 = vunpack.c.h.b16 %v348
      %v515 = vunpack.c.l.b16 %v349
      %v516 = vunpack.c.h.b16 %v349
      %v517 = vunpack.c.l.b16 %v350
      %v518 = vunpack.c.h.b16 %v350
      %v519 = vunpack.c.l.b16 %v351
      %v520 = vunpack.c.h.b16 %v351
      %v521 = vunpack.c.l.b16 %v352
      %v522 = vunpack.c.h.b16 %v352
      %v523 = vunpack.c.l.b16 %v353
      %v524 = vunpack.c.h.b16 %v353
      %v525 = vunpack.c.l.b16 %v354
      %v526 = vunpack.c.h.b16 %v354
      %v527 = vunpack.c.l.b16 %v355
      %v528 = vunpack.c.h.b16 %v355
      %v529 = vunpack.c.l.b16 %v356
      %v530 = vunpack.c.h.b16 %v356
      %v531 = vunpack.c.l.b16 %v357
      %v532 = vunpack.c.h.b16 %v357
      %v533 = vunpack.c.l.b16 %v358
      %v534 = vunpack.c.h.b16 %v358
      %v535 = vunpack.c.l.b16 %v359
      %v536 = vunpack.c.h.b16 %v359
      %v537 = vunpack.c.l.b16 %v360
      %v538 = vunpack.c.h.b16 %v360
      %v539 = vunpack.c.l.b16 %v361
      %v540 = vunpack.c.h.b16 %v361
      %v541 = vunpack.c.l.b16 %v362
      %v542 = vunpack.c.h.b16 %v362
      %v543 = vunpack.c.l.b16 %v363
      %v544 = vunpack.c.h.b16 %v363
      %v545 = vunpack.c.l.b16 %v364
      %v546 = vunpack.c.h.b16 %v364
      %v547 = vunpack.c.l.b16 %v365
      %v548 = vunpack.c.h.b16 %v365
      %v549 = vunpack.c.l.b16 %v366
      %v550 = vunpack.c.h.b16 %v366
      %v551 = vunpack.c.l.b16 %v367
      %v552 = vunpack.c.h.b16 %v367
      %v553 = vunpack.c.l.b16 %v368
      %v554 = vunpack.c.h.b16 %v368
      %v555 = vunpack.c.l.b16 %v369
      %v556 = vunpack.c.h.b16 %v369
      %v557 = vunpack.c.l.b16 %v370
      %v558 = vunpack.c.h.b16 %v370
      %v559 = vunpack.c.l.b16 %v371
      %v560 = vunpack.c.h.b16 %v371
      %v561 = vunpack.c.l.b16 %v372
      %v562 = vunpack.c.h.b16 %v372
      %v563 = vunpack.c.l.b16 %v373
      %v564 = vunpack.c.h.b16 %v373
      %v565 = vunpack.c.l.b16 %v374
      %v566 = vunpack.c.h.b16 %v374
      %v567 = vunpack.c.l.b16 %v375
      %v568 = vunpack.c.h.b16 %v375
      %v569 = vunpack.c.l.b16 %v376
      %v570 = vunpack.c.h.b16 %v376
      %v571 = vunpack.c.l.b16 %v377
      %v572 = vunpack.c.h.b16 %v377
      %v573 = vunpack.c.l.b16 %v378
      %v574 = vunpack.c.h.b16 %v378
      %v575 = vunpack.c.l.b16 %v379
      %v576 = vunpack.c.h.b16 %v379
      %v577 = vunpack.c.l.b16 %v380
      %v578 = vunpack.c.h.b16 %v380
      %v579 = vunpack.c.l.b16 %v381
      %v580 = vunpack.c.h.b16 %v381
      %v581 = vunpack.c.l.b16 %v382
      %v582 = vunpack.c.h.b16 %v382
      %v583 = vunpack.c.l.b16 %v383
      %v584 = vunpack.c.h.b16 %v383
      %v585 = vunpack.c.l.b16 %v384
      %v586 = vunpack.c.h.b16 %v384
      %v587 = vunpack.c.l.b16 %v385
      %v588 = vunpack.c.h.b16 %v385
      %v589 = vunpack.c.l.b16 %v386
      %v590 = vunpack.c.h.b16 %v386
      %v591 = vunpack.c.l.b16 %v387
      %v592 = vunpack.c.h.b16 %v387
      %v593 = vunpack.c.l.b16 %v388
      %v594 = vunpack.c.h.b16 %v388
      %v595 = vunpack.c.l.b16 %v389
      %v596 = vunpack.c.h.b16 %v389
      %v597 = vunpack.c.l.b16 %v390
      %v598 = vunpack.c.h.b16 %v390
      %v599 = vunpack.c.l.b16 %v391
      %v600 = vunpack.c.h.b16 %v391
      %v601 = vunpack.c.l.b16 %v392
      %v602 = vunpack.c.h.b16 %v392
      %v603 = vunpack.c.l.b16 %v393
      %v604 = vunpack.c.h.b16 %v393
      %v605 = vunpack.c.l.b16 %v394
      %v606 = vunpack.c.h.b16 %v394
      %v607 = vunpack.c.l.b16 %v395
      %v608 = vunpack.c.h.b16 %v395
      %v609 = vunpack.c.l.b16 %v396
      %v610 = vunpack.c.h.b16 %v396
      %v611 = vunpack.c.l.b16 %v397
      %v612 = vunpack.c.h.b16 %v397
      %v613 = vunpack.c.l.b16 %v398
      %v614 = vunpack.c.h.b16 %v398
      %v615 = vpack.c.b16 %v479, %v471
      %v616 = vpack.c.b16 %v480, %v472
      %v617 = vpack.c.b16 %v481, %v473
      %v618 = vpack.c.b16 %v482, %v474
      %v619 = vpack.c.b16 %v483, %v475
      %v620 = vpack.c.b16 %v484, %v476
      %v621 = vpack.c.b16 %v485, %v477
      %v622 = vpack.c.b16 %v486, %v478
      %v623 = vpack.c.b16 %v495, %v487
      %v624 = vpack.c.b16 %v496, %v488
      %v625 = vpack.c.b16 %v497, %v489
      %v626 = vpack.c.b16 %v498, %v490
      %v627 = vpack.c.b16 %v499, %v491
      %v628 = vpack.c.b16 %v500, %v492
      %v629 = vpack.c.b16 %v501, %v493
      %v630 = vpack.c.b16 %v502, %v494
      %v631 = vpack.c.b16 %v511, %v503
      %v632 = vpack.c.b16 %v512, %v504
      %v633 = vpack.c.b16 %v513, %v505
      %v634 = vpack.c.b16 %v514, %v506
      %v635 = vpack.c.b16 %v515, %v507
      %v636 = vpack.c.b16 %v516, %v508
      %v637 = vpack.c.b16 %v517, %v509
      %v638 = vpack.c.b16 %v518, %v510
      %v639 = vpack.c.b16 %v527, %v519
      %v640 = vpack.c.b16 %v528, %v520
      %v641 = vpack.c.b16 %v529, %v521
      %v642 = vpack.c.b16 %v530, %v522
      %v643 = vpack.c.b16 %v531, %v523
      %v644 = vpack.c.b16 %v532, %v524
      %v645 = vpack.c.b16 %v533, %v525
      %v646 = vpack.c.b16 %v534, %v526
      %v647 = vpack.c.b16 %v543, %v535
      %v648 = vpack.c.b16 %v544, %v536
      %v649 = vpack.c.b16 %v545, %v537
      %v650 = vpack.c.b16 %v546, %v538
      %v651 = vpack.c.b16 %v547, %v539
      %v652 = vpack.c.b16 %v548, %v540
      %v653 = vpack.c.b16 %v549, %v541
      %v654 = vpack.c.b16 %v550, %v542
      %v655 = vpack.c.b16 %v559, %v551
      %v656 = vpack.c.b16 %v560, %v552
      %v657 = vpack.c.b16 %v561, %v553
      %v658 = vpack.c.b16 %v562, %v554
      %v659 = vpack.c.b16 %v563, %v555
      %v660 = vpack.c.b16 %v564, %v556
      %v661 = vpack.c.b16 %v565, %v557
      %v662 = vpack.c.b16 %v566, %v558
      %v663 = vpack.c.b16 %v575, %v567
      %v664 = vpack.c.b16 %v576, %v568
      %v665 = vpack.c.b16 %v577, %v569
      %v666 = vpack.c.b16 %v578, %v570
      %v667 = vpack.c.b16 %v579, %v571
      %v668 = vpack.c.b16 %v580, %v572
      %v669 = vpack.c.b16 %v581, %v573
      %v670 = vpack.c.b16 %v582, %v574
      %v671 = vpack.c.b16 %v591, %v583
      %v672 = vpack.c.b16 %v592, %v584
      %v673 = vpack.c.b16 %v593, %v585
      %v674 = vpack.c.b16 %v594, %v586
      %v675 = vpack.c.b16 %v595, %v587
      %v676 = vpack.c.b16 %v596, %v588
      %v677 = vpack.c.b16 %v597, %v589
      %v678 = vpack.c.b16 %v598, %v590
      %v679 = vpack.c.b16 %v607, %v599
      %v680 = vpack.c.b16 %v608, %v600
      %v681 = vpack.c.b16 %v609, %v601
      %v682 = vpack.c.b16 %v610, %v602
      %v683 = vpack.c.b16 %v611, %v603
      %v684 = vpack.c.b16 %v612, %v604
      %v685 = vpack.c.b16 %v613, %v605
      %v686 = vpack.c.b16 %v614, %v606
      %v887 = vunpack.c.l.b16 %v199
      %v888 = vunpack.c.l.b16 %v200
      %v889 = vunpack.c.l.b16 %v201
      %v890 = vunpack.c.l.b16 %v202
      %v891 = vunpack.c.l.b16 %v203
      %v892 = vunpack.c.l.b16 %v204
      %v893 = vunpack.c.l.b16 %v205
      %v894 = vunpack.c.l.b16 %v206
      %v895 = vunpack.c.l.b16 %v207
      %v896 = vunpack.c.l.b16 %v208
      %v897 = vunpack.c.l.b16 %v209
      %v898 = vunpack.c.l.b16 %v210
      %v899 = vunpack.c.l.b16 %v211
      %v900 = vunpack.c.l.b16 %v212
      %v901 = vunpack.c.l.b16 %v213
      %v902 = vunpack.c.l.b16 %v214
      %v903 = vunpack.c.l.b16 %v215
      %v904 = vunpack.c.l.b16 %v216
      %v905 = vunpack.c.l.b16 %v217
      %v906 = vunpack.c.l.b16 %v218
      %v907 = vunpack.c.l.b16 %v219
      %v908 = vunpack.c.l.b16 %v220
      %v909 = vunpack.c.l.b16 %v221
      %v910 = vunpack.c.l.b16 %v222
      %v911 = vunpack.c.l.b16 %v223
      %v912 = vunpack.c.l.b16 %v224
      %v913 = vunpack.c.l.b16 %v225
      %v914 = vunpack.c.l.b16 %v226
      %v915 = vunpack.c.l.b16 %v227
      %v916 = vunpack.c.l.b16 %v228
      %v917 = vunpack.c.l.b16 %v229
      %v918 = vunpack.c.l.b16 %v230
      %v919 = vunpack.c.l.b16 %v231
      %v920 = vunpack.c.l.b16 %v232
      %v921 = vunpack.c.l.b16 %v233
      %v922 = vunpack.c.l.b16 %v234
      %v923 = vunpack.c.l.b16 %v235
      %v924 = vunpack.c.l.b16 %v236
      %v925 = vunpack.c.l.b16 %v237
      %v926 = vunpack.c.l.b16 %v238
      %v927 = vunpack.c.l.b16 %v239
      %v928 = vunpack.c.l.b16 %v240
      %v929 = vunpack.c.l.b16 %v241
      %v930 = vunpack.c.l.b16 %v242
      %v931 = vunpack.c.l.b16 %v243
      %v932 = vunpack.c.l.b16 %v244
      %v933 = vunpack.c.l.b16 %v245
      %v934 = vunpack.c.l.b16 %v246
      %v935 = vunpack.c.l.b16 %v247
      %v936 = vunpack.c.l.b16 %v248
      %v937 = vunpack.c.l.b16 %v249
      %v938 = vunpack.c.l.b16 %v250
      %v939 = vunpack.c.l.b16 %v251
      %v940 = vunpack.c.l.b16 %v252
      %v941 = vunpack.c.l.b16 %v253
      %v942 = vunpack.c.l.b16 %v254
      %v943 = vunpack.c.l.b16 %v255
      %v944 = vunpack.c.l.b16 %v256
      %v945 = vunpack.c.l.b16 %v257
      %v946 = vunpack.c.l.b16 %v258
      %v947 = vunpack.c.l.b16 %v259
      %v948 = vunpack.c.l.b16 %v260
      %v949 = vunpack.c.l.b16 %v261
      %v950 = vunpack.c.l.b16 %v262
      %v951 = vunpack.c.l.b16 %v263
      %v952 = vunpack.c.l.b16 %v264
      %v953 = vunpack.c.l.b16 %v265
      %v954 = vunpack.c.l.b16 %v266
      %v955 = vunpack.c.l.b16 %v267
      %v956 = vunpack.c.l.b16 %v268
      %v957 = vunpack.c.l.b16 %v269
      %v958 = vunpack.c.l.b16 %v270
      %v959 = vunpack.c.l.b16 %v271
      %v960 = vunpack.c.l.b16 %v272
      %v961 = vunpack.c.l.b16 %v273
      %v962 = vunpack.c.l.b16 %v274
      %v963 = vunpack.c.l.b16 %v275
      %v964 = vunpack.c.l.b16 %v276
      %v965 = vunpack.c.l.b16 %v277
      %v966 = vunpack.c.l.b16 %v278
      %v967 = vunpack.c.l.b16 %v279
      %v968 = vunpack.c.l.b16 %v280
      %v969 = vunpack.c.l.b16 %v281
      %v970 = vunpack.c.l.b16 %v282
      %v971 = vunpack.c.l.b16 %v283
      %v972 = vunpack.c.l.b16 %v284
      %v973 = vunpack.c.l.b16 %v285
      %v974 = vunpack.c.l.b16 %v286
      %v975 = vunpack.c.l.b16 %v287
      %v976 = vunpack.c.l.b16 %v288
      %v977 = vunpack.c.l.b16 %v289
      %v978 = vunpack.c.l.b16 %v290
      %v979 = vunpack.c.l.b16 %v291
      %v980 = vunpack.c.l.b16 %v292
      %v981 = vunpack.c.l.b16 %v293
      %v982 = vunpack.c.l.b16 %v294
      %v983 = vunpack.c.l.b16 %v295
      %v984 = vunpack.c.l.b16 %v296
      %v985 = vunpack.c.l.b16 %v297
      %v986 = vunpack.c.l.b16 %v298
      %v987 = vunpack.c.l.b16 %v299
      %v988 = vunpack.c.l.b16 %v300
      %v989 = vunpack.c.l.b16 %v301
      %v990 = vunpack.c.l.b16 %v302
      %v991 = vunpack.c.l.b16 %v303
      %v992 = vunpack.c.l.b16 %v304
      %v993 = vunpack.c.l.b16 %v305
      %v994 = vunpack.c.l.b16 %v306
      %v995 = vunpack.c.l.b16 %v307
      %v996 = vunpack.c.l.b16 %v308
      %v997 = vunpack.c.l.b16 %v309
      %v998 = vunpack.c.l.b16 %v310
      %v999 = vunpack.c.l.b16 %v311
      %v1000 = vunpack.c.l.b16 %v312
      %v1001 = vunpack.c.l.b16 %v313
      %v1002 = vunpack.c.l.b16 %v314
      %v1003 = vunpack.c.l.b16 %v315
      %v1004 = vunpack.c.l.b16 %v316
      %v1005 = vunpack.c.l.b16 %v317
      %v1006 = vunpack.c.l.b16 %v318
      %v1007 = vunpack.c.l.b16 %v319
      %v1008 = vunpack.c.l.b16 %v320
      %v1009 = vunpack.c.l.b16 %v321
      %v1010 = vunpack.c.l.b16 %v322
      %v1011 = vunpack.c.l.b16 %v323
      %v1012 = vunpack.c.l.b16 %v324
      %v1013 = vunpack.c.l.b16 %v325
      %v1014 = vunpack.c.l.b16 %v326
      %v1015 = vpack.c.b16 %v888, %v887
      %v1016 = vpack.c.b16 %v890, %v889
      %v1017 = vpack.c.b16 %v892, %v891
      %v1018 = vpack.c.b16 %v894, %v893
      %v1019 = vpack.c.b16 %v896, %v895
      %v1020 = vpack.c.b16 %v898, %v897
      %v1021 = vpack.c.b16 %v900, %v899
      %v1022 = vpack.c.b16 %v902, %v901
      %v1023 = vpack.c.b16 %v904, %v903
      %v1024 = vpack.c.b16 %v906, %v905
      %v1025 = vpack.c.b16 %v908, %v907
      %v1026 = vpack.c.b16 %v910, %v909
      %v1027 = vpack.c.b16 %v912, %v911
      %v1028 = vpack.c.b16 %v914, %v913
      %v1029 = vpack.c.b16 %v916, %v915
      %v1030 = vpack.c.b16 %v918, %v917
      %v1031 = vpack.c.b16 %v920, %v919
      %v1032 = vpack.c.b16 %v922, %v921
      %v1033 = vpack.c.b16 %v924, %v923
      %v1034 = vpack.c.b16 %v926, %v925
      %v1035 = vpack.c.b16 %v928, %v927
      %v1036 = vpack.c.b16 %v930, %v929
      %v1037 = vpack.c.b16 %v932, %v931
      %v1038 = vpack.c.b16 %v934, %v933
      %v1039 = vpack.c.b16 %v936, %v935
      %v1040 = vpack.c.b16 %v938, %v937
      %v1041 = vpack.c.b16 %v940, %v939
      %v1042 = vpack.c.b16 %v942, %v941
      %v1043 = vpack.c.b16 %v944, %v943
      %v1044 = vpack.c.b16 %v946, %v945
      %v1045 = vpack.c.b16 %v948, %v947
      %v1046 = vpack.c.b16 %v950, %v949
      %v1047 = vpack.c.b16 %v952, %v951
      %v1048 = vpack.c.b16 %v954, %v953
      %v1049 = vpack.c.b16 %v956, %v955
      %v1050 = vpack.c.b16 %v958, %v957
      %v1051 = vpack.c.b16 %v960, %v959
      %v1052 = vpack.c.b16 %v962, %v961
      %v1053 = vpack.c.b16 %v964, %v963
      %v1054 = vpack.c.b16 %v966, %v965
      %v1055 = vpack.c.b16 %v968, %v967
      %v1056 = vpack.c.b16 %v970, %v969
      %v1057 = vpack.c.b16 %v972, %v971
      %v1058 = vpack.c.b16 %v974, %v973
      %v1059 = vpack.c.b16 %v976, %v975
      %v1060 = vpack.c.b16 %v978, %v977
      %v1061 = vpack.c.b16 %v980, %v979
      %v1062 = vpack.c.b16 %v982, %v981
      %v1063 = vpack.c.b16 %v984, %v983
      %v1064 = vpack.c.b16 %v986, %v985
      %v1065 = vpack.c.b16 %v988, %v987
      %v1066 = vpack.c.b16 %v990, %v989
      %v1067 = vpack.c.b16 %v992, %v991
      %v1068 = vpack.c.b16 %v994, %v993
      %v1069 = vpack.c.b16 %v996, %v995
      %v1070 = vpack.c.b16 %v998, %v997
      %v1071 = vpack.c.b16 %v1000, %v999
      %v1072 = vpack.c.b16 %v1002, %v1001
      %v1073 = vpack.c.b16 %v1004, %v1003
      %v1074 = vpack.c.b16 %v1006, %v1005
      %v1075 = vpack.c.b16 %v1008, %v1007
      %v1076 = vpack.c.b16 %v1010, %v1009
      %v1077 = vpack.c.b16 %v1012, %v1011
      %v1078 = vpack.c.b16 %v1014, %v1013
      %1143 = vmatprep.subr.bf16.mxu0 0
      %1144 = vmatpush1.bf16.msra.mxu0 %v1015
      %1145 = vmatprep.subr.bf16.mxu0 0
      %1146 = vmatpush1.bf16.msra.mxu0 %v1016
      %1147 = vmatprep.subr.bf16.mxu0 0
      %1148 = vmatpush1.bf16.msra.mxu0 %v1017
      %1149 = vmatprep.subr.bf16.mxu0 0
      %1150 = vmatpush1.bf16.msra.mxu0 %v1018
      %1151 = vmatprep.subr.bf16.mxu0 0
      %1152 = vmatpush1.bf16.msra.mxu0 %v1019
      %1153 = vmatprep.subr.bf16.mxu0 0
      %1154 = vmatpush1.bf16.msra.mxu0 %v1020
      %1155 = vmatprep.subr.bf16.mxu0 0
      %1156 = vmatpush1.bf16.msra.mxu0 %v1021
      %1157 = vmatprep.subr.bf16.mxu0 0
      %1158 = vmatpush1.bf16.msra.mxu0 %v1022
      %1159 = vmatprep.subr.bf16.mxu0 0
      %1160 = vmatpush1.bf16.msra.mxu0 %v1023
      %1161 = vmatprep.subr.bf16.mxu0 0
      %1162 = vmatpush1.bf16.msra.mxu0 %v1024
      %1163 = vmatprep.subr.bf16.mxu0 0
      %1164 = vmatpush1.bf16.msra.mxu0 %v1025
      %1165 = vmatprep.subr.bf16.mxu0 0
      %1166 = vmatpush1.bf16.msra.mxu0 %v1026
      %1167 = vmatprep.subr.bf16.mxu0 0
      %1168 = vmatpush1.bf16.msra.mxu0 %v1027
      %1169 = vmatprep.subr.bf16.mxu0 0
      %1170 = vmatpush1.bf16.msra.mxu0 %v1028
      %1171 = vmatprep.subr.bf16.mxu0 0
      %1172 = vmatpush1.bf16.msra.mxu0 %v1029
      %1173 = vmatprep.subr.bf16.mxu0 0
      %1174 = vmatpush1.bf16.msra.mxu0 %v1030
      %1175 = vmatprep.mubr.bf16.mxu0 %v616
      %1176 = vmatmul.mubr.bf16.gmra.mrb[0].mxu0 %v615
      %v1177 = vpop.f32.mrb[0].mxu0
      %v1178 = vadd.f32 0.0, %v1177
      %v1179 = vpop.f32.mrb[0].mxu0
      %v1180 = vpop.f32.mrb[0].mxu0
      %v1181 = vadd.f32 0.0, %v1180
      %v1182 = vpop.f32.mrb[0].mxu0
      %1183 = vmatprep.mubr.bf16.mxu0 %v624
      %1184 = vmatmul.mubr.bf16.gmra.mrb[0].mxu0 %v623
      %v1185 = vpop.f32.mrb[0].mxu0
      %v1186 = vadd.f32 0.0, %v1185
      %v1187 = vpop.f32.mrb[0].mxu0
      %v1188 = vpop.f32.mrb[0].mxu0
      %v1189 = vadd.f32 0.0, %v1188
      %v1190 = vpop.f32.mrb[0].mxu0
      %1191 = vmatprep.mubr.bf16.mxu0 %v632
      %1192 = vmatmul.mubr.bf16.gmra.mrb[0].mxu0 %v631
      %v1193 = vpop.f32.mrb[0].mxu0
      %v1194 = vadd.f32 0.0, %v1193
      %v1195 = vpop.f32.mrb[0].mxu0
      %v1196 = vpop.f32.mrb[0].mxu0
      %v1197 = vadd.f32 0.0, %v1196
      %v1198 = vpop.f32.mrb[0].mxu0
      %1199 = vmatprep.mubr.bf16.mxu0 %v640
      %1200 = vmatmul.mubr.bf16.gmra.mrb[0].mxu0 %v639
      %v1201 = vpop.f32.mrb[0].mxu0
      %v1202 = vadd.f32 0.0, %v1201
      %v1203 = vpop.f32.mrb[0].mxu0
      %v1204 = vpop.f32.mrb[0].mxu0
      %v1205 = vadd.f32 0.0, %v1204
      %v1206 = vpop.f32.mrb[0].mxu0
      %1207 = vmatprep.mubr.bf16.mxu0 %v648
      %1208 = vmatmul.mubr.bf16.gmra.mrb[0].mxu0 %v647
      %v1209 = vpop.f32.mrb[0].mxu0
      %v1210 = vadd.f32 0.0, %v1209
      %v1211 = vpop.f32.mrb[0].mxu0
      %v1212 = vpop.f32.mrb[0].mxu0
      %v1213 = vadd.f32 0.0, %v1212
      %v1214 = vpop.f32.mrb[0].mxu0
      %1215 = vmatprep.mubr.bf16.mxu0 %v656
      %1216 = vmatmul.mubr.bf16.gmra.mrb[0].mxu0 %v655
      %v1217 = vpop.f32.mrb[0].mxu0
      %v1218 = vadd.f32 0.0, %v1217
      %v1219 = vpop.f32.mrb[0].mxu0
      %v1220 = vpop.f32.mrb[0].mxu0
      %v1221 = vadd.f32 0.0, %v1220
      %v1222 = vpop.f32.mrb[0].mxu0
      %1223 = vmatprep.mubr.bf16.mxu0 %v664
      %1224 = vmatmul.mubr.bf16.gmra.mrb[0].mxu0 %v663
      %v1225 = vpop.f32.mrb[0].mxu0
      %v1226 = vadd.f32 0.0, %v1225
      %v1227 = vpop.f32.mrb[0].mxu0
      %v1228 = vpop.f32.mrb[0].mxu0
      %v1229 = vadd.f32 0.0, %v1228
      %v1230 = vpop.f32.mrb[0].mxu0
      %1231 = vmatprep.mubr.bf16.mxu0 %v672
      %1232 = vmatmul.mubr.bf16.gmra.mrb[0].mxu0 %v671
      %v1233 = vpop.f32.mrb[0].mxu0
      %v1234 = vadd.f32 0.0, %v1233
      %v1235 = vpop.f32.mrb[0].mxu0
      %v1236 = vpop.f32.mrb[0].mxu0
      %v1237 = vadd.f32 0.0, %v1236
      %v1238 = vpop.f32.mrb[0].mxu0
      %1239 = vmatprep.mubr.bf16.mxu0 %v680
      %1240 = vmatmul.mubr.bf16.gmra.mrb[0].mxu0 %v679
      %v1241 = vpop.f32.mrb[0].mxu0
      %v1242 = vadd.f32 0.0, %v1241
      %v1243 = vpop.f32.mrb[0].mxu0
      %v1244 = vpop.f32.mrb[0].mxu0
      %v1245 = vadd.f32 0.0, %v1244
      %v1246 = vpop.f32.mrb[0].mxu0
      %1247 = vdwg.mxu0
      %1248 = vmatprep.subr.bf16.mxu0 0
      %1249 = vmatpush1.bf16.msra.mxu0 %v1031
      %1250 = vmatprep.subr.bf16.mxu0 0
      %1251 = vmatpush1.bf16.msra.mxu0 %v1032
      %1252 = vmatprep.subr.bf16.mxu0 0
      %1253 = vmatpush1.bf16.msra.mxu0 %v1033
      %1254 = vmatprep.subr.bf16.mxu0 0
      %1255 = vmatpush1.bf16.msra.mxu0 %v1034
      %1256 = vmatprep.subr.bf16.mxu0 0
      %1257 = vmatpush1.bf16.msra.mxu0 %v1035
      %1258 = vmatprep.subr.bf16.mxu0 0
      %1259 = vmatpush1.bf16.msra.mxu0 %v1036
      %1260 = vmatprep.subr.bf16.mxu0 0
      %1261 = vmatpush1.bf16.msra.mxu0 %v1037
      %1262 = vmatprep.subr.bf16.mxu0 0
      %1263 = vmatpush1.bf16.msra.mxu0 %v1038
      %1264 = vmatprep.subr.bf16.mxu0 0
      %1265 = vmatpush1.bf16.msra.mxu0 %v1039
      %1266 = vmatprep.subr.bf16.mxu0 0
      %1267 = vmatpush1.bf16.msra.mxu0 %v1040
      %1268 = vmatprep.subr.bf16.mxu0 0
      %1269 = vmatpush1.bf16.msra.mxu0 %v1041
      %1270 = vmatprep.subr.bf16.mxu0 0
      %1271 = vmatpush1.bf16.msra.mxu0 %v1042
      %1272 = vmatprep.subr.bf16.mxu0 0
      %1273 = vmatpush1.bf16.msra.mxu0 %v1043
      %1274 = vmatprep.subr.bf16.mxu0 0
      %1275 = vmatpush1.bf16.msra.mxu0 %v1044
      %1276 = vmatprep.subr.bf16.mxu0 0
      %1277 = vmatpush1.bf16.msra.mxu0 %v1045
      %1278 = vmatprep.subr.bf16.mxu0 0
      %1279 = vmatpush1.bf16.msra.mxu0 %v1046
      %1280 = vmatprep.mubr.bf16.mxu0 %v618
      %1281 = vmatmul.mubr.bf16.gmra.mrb[0].mxu0 %v617
      %v1282 = vpop.f32.mrb[0].mxu0
      %v1283 = vadd.f32 %v1178, %v1282
      %v1284 = vpop.f32.mrb[0].mxu0
      %v1285 = vpop.f32.mrb[0].mxu0
      %v1286 = vadd.f32 %v1181, %v1285
      %v1287 = vpop.f32.mrb[0].mxu0
      %1288 = vmatprep.mubr.bf16.mxu0 %v626
      %1289 = vmatmul.mubr.bf16.gmra.mrb[0].mxu0 %v625
      %v1290 = vpop.f32.mrb[0].mxu0
      %v1291 = vadd.f32 %v1186, %v1290
      %v1292 = vpop.f32.mrb[0].mxu0
      %v1293 = vpop.f32.mrb[0].mxu0
      %v1294 = vadd.f32 %v1189, %v1293
      %v1295 = vpop.f32.mrb[0].mxu0
      %1296 = vmatprep.mubr.bf16.mxu0 %v634
      %1297 = vmatmul.mubr.bf16.gmra.mrb[0].mxu0 %v633
      %v1298 = vpop.f32.mrb[0].mxu0
      %v1299 = vadd.f32 %v1194, %v1298
      %v1300 = vpop.f32.mrb[0].mxu0
      %v1301 = vpop.f32.mrb[0].mxu0
      %v1302 = vadd.f32 %v1197, %v1301
      %v1303 = vpop.f32.mrb[0].mxu0
      %1304 = vmatprep.mubr.bf16.mxu0 %v642
      %1305 = vmatmul.mubr.bf16.gmra.mrb[0].mxu0 %v641
      %v1306 = vpop.f32.mrb[0].mxu0
      %v1307 = vadd.f32 %v1202, %v1306
      %v1308 = vpop.f32.mrb[0].mxu0
      %v1309 = vpop.f32.mrb[0].mxu0
      %v1310 = vadd.f32 %v1205, %v1309
      %v1311 = vpop.f32.mrb[0].mxu0
      %1312 = vmatprep.mubr.bf16.mxu0 %v650
      %1313 = vmatmul.mubr.bf16.gmra.mrb[0].mxu0 %v649
      %v1314 = vpop.f32.mrb[0].mxu0
      %v1315 = vadd.f32 %v1210, %v1314
      %v1316 = vpop.f32.mrb[0].mxu0
      %v1317 = vpop.f32.mrb[0].mxu0
      %v1318 = vadd.f32 %v1213, %v1317
      %v1319 = vpop.f32.mrb[0].mxu0
      %1320 = vmatprep.mubr.bf16.mxu0 %v658
      %1321 = vmatmul.mubr.bf16.gmra.mrb[0].mxu0 %v657
      %v1322 = vpop.f32.mrb[0].mxu0
      %v1323 = vadd.f32 %v1218, %v1322
      %v1324 = vpop.f32.mrb[0].mxu0
      %v1325 = vpop.f32.mrb[0].mxu0
      %v1326 = vadd.f32 %v1221, %v1325
      %v1327 = vpop.f32.mrb[0].mxu0
      %1328 = vmatprep.mubr.bf16.mxu0 %v666
      %1329 = vmatmul.mubr.bf16.gmra.mrb[0].mxu0 %v665
      %v1330 = vpop.f32.mrb[0].mxu0
      %v1331 = vadd.f32 %v1226, %v1330
      %v1332 = vpop.f32.mrb[0].mxu0
      %v1333 = vpop.f32.mrb[0].mxu0
      %v1334 = vadd.f32 %v1229, %v1333
      %v1335 = vpop.f32.mrb[0].mxu0
      %1336 = vmatprep.mubr.bf16.mxu0 %v674
      %1337 = vmatmul.mubr.bf16.gmra.mrb[0].mxu0 %v673
      %v1338 = vpop.f32.mrb[0].mxu0
      %v1339 = vadd.f32 %v1234, %v1338
      %v1340 = vpop.f32.mrb[0].mxu0
      %v1341 = vpop.f32.mrb[0].mxu0
      %v1342 = vadd.f32 %v1237, %v1341
      %v1343 = vpop.f32.mrb[0].mxu0
      %1344 = vmatprep.mubr.bf16.mxu0 %v682
      %1345 = vmatmul.mubr.bf16.gmra.mrb[0].mxu0 %v681
      %v1346 = vpop.f32.mrb[0].mxu0
      %v1347 = vadd.f32 %v1242, %v1346
      %v1348 = vpop.f32.mrb[0].mxu0
      %v1349 = vpop.f32.mrb[0].mxu0
      %v1350 = vadd.f32 %v1245, %v1349
      %v1351 = vpop.f32.mrb[0].mxu0
      %1352 = vdwg.mxu0
      %1353 = vmatprep.subr.bf16.mxu0 0
      %1354 = vmatpush1.bf16.msra.mxu0 %v1047
      %1355 = vmatprep.subr.bf16.mxu0 0
      %1356 = vmatpush1.bf16.msra.mxu0 %v1048
      %1357 = vmatprep.subr.bf16.mxu0 0
      %1358 = vmatpush1.bf16.msra.mxu0 %v1049
      %1359 = vmatprep.subr.bf16.mxu0 0
      %1360 = vmatpush1.bf16.msra.mxu0 %v1050
      %1361 = vmatprep.subr.bf16.mxu0 0
      %1362 = vmatpush1.bf16.msra.mxu0 %v1051
      %1363 = vmatprep.subr.bf16.mxu0 0
      %1364 = vmatpush1.bf16.msra.mxu0 %v1052
      %1365 = vmatprep.subr.bf16.mxu0 0
      %1366 = vmatpush1.bf16.msra.mxu0 %v1053
      %1367 = vmatprep.subr.bf16.mxu0 0
      %1368 = vmatpush1.bf16.msra.mxu0 %v1054
      %1369 = vmatprep.subr.bf16.mxu0 0
      %1370 = vmatpush1.bf16.msra.mxu0 %v1055
      %1371 = vmatprep.subr.bf16.mxu0 0
      %1372 = vmatpush1.bf16.msra.mxu0 %v1056
      %1373 = vmatprep.subr.bf16.mxu0 0
      %1374 = vmatpush1.bf16.msra.mxu0 %v1057
      %1375 = vmatprep.subr.bf16.mxu0 0
      %1376 = vmatpush1.bf16.msra.mxu0 %v1058
      %1377 = vmatprep.subr.bf16.mxu0 0
      %1378 = vmatpush1.bf16.msra.mxu0 %v1059
      %1379 = vmatprep.subr.bf16.mxu0 0
      %1380 = vmatpush1.bf16.msra.mxu0 %v1060
      %1381 = vmatprep.subr.bf16.mxu0 0
      %1382 = vmatpush1.bf16.msra.mxu0 %v1061
      %1383 = vmatprep.subr.bf16.mxu0 0
      %1384 = vmatpush1.bf16.msra.mxu0 %v1062
      %1385 = vmatprep.mubr.bf16.mxu0 %v620
      %1386 = vmatmul.mubr.bf16.gmra.mrb[0].mxu0 %v619
      %v1387 = vpop.f32.mrb[0].mxu0
      %v1388 = vadd.f32 %v1283, %v1387
      %v1389 = vpop.f32.mrb[0].mxu0
      %v1390 = vpop.f32.mrb[0].mxu0
      %v1391 = vadd.f32 %v1286, %v1390
      %v1392 = vpop.f32.mrb[0].mxu0
      %1393 = vmatprep.mubr.bf16.mxu0 %v628
      %1394 = vmatmul.mubr.bf16.gmra.mrb[0].mxu0 %v627
      %v1395 = vpop.f32.mrb[0].mxu0
      %v1396 = vadd.f32 %v1291, %v1395
      %v1397 = vpop.f32.mrb[0].mxu0
      %v1398 = vpop.f32.mrb[0].mxu0
      %v1399 = vadd.f32 %v1294, %v1398
      %v1400 = vpop.f32.mrb[0].mxu0
      %1401 = vmatprep.mubr.bf16.mxu0 %v636
      %1402 = vmatmul.mubr.bf16.gmra.mrb[0].mxu0 %v635
      %v1403 = vpop.f32.mrb[0].mxu0
      %v1404 = vadd.f32 %v1299, %v1403
      %v1405 = vpop.f32.mrb[0].mxu0
      %v1406 = vpop.f32.mrb[0].mxu0
      %v1407 = vadd.f32 %v1302, %v1406
      %v1408 = vpop.f32.mrb[0].mxu0
      %1409 = vmatprep.mubr.bf16.mxu0 %v644
      %1410 = vmatmul.mubr.bf16.gmra.mrb[0].mxu0 %v643
      %v1411 = vpop.f32.mrb[0].mxu0
      %v1412 = vadd.f32 %v1307, %v1411
      %v1413 = vpop.f32.mrb[0].mxu0
      %v1414 = vpop.f32.mrb[0].mxu0
      %v1415 = vadd.f32 %v1310, %v1414
      %v1416 = vpop.f32.mrb[0].mxu0
      %1417 = vmatprep.mubr.bf16.mxu0 %v652
      %1418 = vmatmul.mubr.bf16.gmra.mrb[0].mxu0 %v651
      %v1419 = vpop.f32.mrb[0].mxu0
      %v1420 = vadd.f32 %v1315, %v1419
      %v1421 = vpop.f32.mrb[0].mxu0
      %v1422 = vpop.f32.mrb[0].mxu0
      %v1423 = vadd.f32 %v1318, %v1422
      %v1424 = vpop.f32.mrb[0].mxu0
      %1425 = vmatprep.mubr.bf16.mxu0 %v660
      %1426 = vmatmul.mubr.bf16.gmra.mrb[0].mxu0 %v659
      %v1427 = vpop.f32.mrb[0].mxu0
      %v1428 = vadd.f32 %v1323, %v1427
      %v1429 = vpop.f32.mrb[0].mxu0
      %v1430 = vpop.f32.mrb[0].mxu0
      %v1431 = vadd.f32 %v1326, %v1430
      %v1432 = vpop.f32.mrb[0].mxu0
      %1433 = vmatprep.mubr.bf16.mxu0 %v668
      %1434 = vmatmul.mubr.bf16.gmra.mrb[0].mxu0 %v667
      %v1435 = vpop.f32.mrb[0].mxu0
      %v1436 = vadd.f32 %v1331, %v1435
      %v1437 = vpop.f32.mrb[0].mxu0
      %v1438 = vpop.f32.mrb[0].mxu0
      %v1439 = vadd.f32 %v1334, %v1438
      %v1440 = vpop.f32.mrb[0].mxu0
      %1441 = vmatprep.mubr.bf16.mxu0 %v676
      %1442 = vmatmul.mubr.bf16.gmra.mrb[0].mxu0 %v675
      %v1443 = vpop.f32.mrb[0].mxu0
      %v1444 = vadd.f32 %v1339, %v1443
      %v1445 = vpop.f32.mrb[0].mxu0
      %v1446 = vpop.f32.mrb[0].mxu0
      %v1447 = vadd.f32 %v1342, %v1446
      %v1448 = vpop.f32.mrb[0].mxu0
      %1449 = vmatprep.mubr.bf16.mxu0 %v684
      %1450 = vmatmul.mubr.bf16.gmra.mrb[0].mxu0 %v683
      %v1451 = vpop.f32.mrb[0].mxu0
      %v1452 = vadd.f32 %v1347, %v1451
      %v1453 = vpop.f32.mrb[0].mxu0
      %v1454 = vpop.f32.mrb[0].mxu0
      %v1455 = vadd.f32 %v1350, %v1454
      %v1456 = vpop.f32.mrb[0].mxu0
      %1457 = vdwg.mxu0
      %1458 = vmatprep.subr.bf16.mxu0 0
      %1459 = vmatpush1.bf16.msra.mxu0 %v1063
      %1460 = vmatprep.subr.bf16.mxu0 0
      %1461 = vmatpush1.bf16.msra.mxu0 %v1064
      %1462 = vmatprep.subr.bf16.mxu0 0
      %1463 = vmatpush1.bf16.msra.mxu0 %v1065
      %1464 = vmatprep.subr.bf16.mxu0 0
      %1465 = vmatpush1.bf16.msra.mxu0 %v1066
      %1466 = vmatprep.subr.bf16.mxu0 0
      %1467 = vmatpush1.bf16.msra.mxu0 %v1067
      %1468 = vmatprep.subr.bf16.mxu0 0
      %1469 = vmatpush1.bf16.msra.mxu0 %v1068
      %1470 = vmatprep.subr.bf16.mxu0 0
      %1471 = vmatpush1.bf16.msra.mxu0 %v1069
      %1472 = vmatprep.subr.bf16.mxu0 0
      %1473 = vmatpush1.bf16.msra.mxu0 %v1070
      %1474 = vmatprep.subr.bf16.mxu0 0
      %1475 = vmatpush1.bf16.msra.mxu0 %v1071
      %1476 = vmatprep.subr.bf16.mxu0 0
      %1477 = vmatpush1.bf16.msra.mxu0 %v1072
      %1478 = vmatprep.subr.bf16.mxu0 0
      %1479 = vmatpush1.bf16.msra.mxu0 %v1073
      %1480 = vmatprep.subr.bf16.mxu0 0
      %1481 = vmatpush1.bf16.msra.mxu0 %v1074
      %1482 = vmatprep.subr.bf16.mxu0 0
      %1483 = vmatpush1.bf16.msra.mxu0 %v1075
      %1484 = vmatprep.subr.bf16.mxu0 0
      %1485 = vmatpush1.bf16.msra.mxu0 %v1076
      %1486 = vmatprep.subr.bf16.mxu0 0
      %1487 = vmatpush1.bf16.msra.mxu0 %v1077
      %1488 = vmatprep.subr.bf16.mxu0 0
      %1489 = vmatpush1.bf16.msra.mxu0 %v1078
      %1490 = vmatprep.mubr.bf16.mxu0 %v622
      %1491 = vmatmul.mubr.bf16.gmra.mrb[0].mxu0 %v621
      %v1492 = vpop.f32.mrb[0].mxu0
      %v1493 = vadd.f32 %v1388, %v1492
      %v1494 = vpop.f32.mrb[0].mxu0
      %v1495 = vpop.f32.mrb[0].mxu0
      %v1496 = vadd.f32 %v1391, %v1495
      %v1497 = vpop.f32.mrb[0].mxu0
      %1498 = vmatprep.mubr.bf16.mxu0 %v630
      %1499 = vmatmul.mubr.bf16.gmra.mrb[0].mxu0 %v629
      %v1500 = vpop.f32.mrb[0].mxu0
      %v1501 = vadd.f32 %v1396, %v1500
      %v1502 = vpop.f32.mrb[0].mxu0
      %v1503 = vpop.f32.mrb[0].mxu0
      %v1504 = vadd.f32 %v1399, %v1503
      %v1505 = vpop.f32.mrb[0].mxu0
      %1506 = vmatprep.mubr.bf16.mxu0 %v638
      %1507 = vmatmul.mubr.bf16.gmra.mrb[0].mxu0 %v637
      %v1508 = vpop.f32.mrb[0].mxu0
      %v1509 = vadd.f32 %v1404, %v1508
      %v1510 = vpop.f32.mrb[0].mxu0
      %v1511 = vpop.f32.mrb[0].mxu0
      %v1512 = vadd.f32 %v1407, %v1511
      %v1513 = vpop.f32.mrb[0].mxu0
      %1514 = vmatprep.mubr.bf16.mxu0 %v646
      %1515 = vmatmul.mubr.bf16.gmra.mrb[0].mxu0 %v645
      %v1516 = vpop.f32.mrb[0].mxu0
      %v1517 = vadd.f32 %v1412, %v1516
      %v1518 = vpop.f32.mrb[0].mxu0
      %v1519 = vpop.f32.mrb[0].mxu0
      %v1520 = vadd.f32 %v1415, %v1519
      %v1521 = vpop.f32.mrb[0].mxu0
      %1522 = vmatprep.mubr.bf16.mxu0 %v654
      %1523 = vmatmul.mubr.bf16.gmra.mrb[0].mxu0 %v653
      %v1524 = vpop.f32.mrb[0].mxu0
      %v1525 = vadd.f32 %v1420, %v1524
      %v1526 = vpop.f32.mrb[0].mxu0
      %v1527 = vpop.f32.mrb[0].mxu0
      %v1528 = vadd.f32 %v1423, %v1527
      %v1529 = vpop.f32.mrb[0].mxu0
      %1530 = vmatprep.mubr.bf16.mxu0 %v662
      %1531 = vmatmul.mubr.bf16.gmra.mrb[0].mxu0 %v661
      %v1532 = vpop.f32.mrb[0].mxu0
      %v1533 = vadd.f32 %v1428, %v1532
      %v1534 = vpop.f32.mrb[0].mxu0
      %v1535 = vpop.f32.mrb[0].mxu0
      %v1536 = vadd.f32 %v1431, %v1535
      %v1537 = vpop.f32.mrb[0].mxu0
      %1538 = vmatprep.mubr.bf16.mxu0 %v670
      %1539 = vmatmul.mubr.bf16.gmra.mrb[0].mxu0 %v669
      %v1540 = vpop.f32.mrb[0].mxu0
      %v1541 = vadd.f32 %v1436, %v1540
      %v1542 = vpop.f32.mrb[0].mxu0
      %v1543 = vpop.f32.mrb[0].mxu0
      %v1544 = vadd.f32 %v1439, %v1543
      %v1545 = vpop.f32.mrb[0].mxu0
      %1546 = vmatprep.mubr.bf16.mxu0 %v678
      %1547 = vmatmul.mubr.bf16.gmra.mrb[0].mxu0 %v677
      %v1548 = vpop.f32.mrb[0].mxu0
      %v1549 = vadd.f32 %v1444, %v1548
      %v1550 = vpop.f32.mrb[0].mxu0
      %v1551 = vpop.f32.mrb[0].mxu0
      %v1552 = vadd.f32 %v1447, %v1551
      %v1553 = vpop.f32.mrb[0].mxu0
      %1554 = vmatprep.mubr.bf16.mxu0 %v686
      %1555 = vmatmul.mubr.bf16.gmra.mrb[0].mxu0 %v685
      %v1556 = vpop.f32.mrb[0].mxu0
      %v1557 = vadd.f32 %v1452, %v1556
      %v1558 = vpop.f32.mrb[0].mxu0
      %v1559 = vpop.f32.mrb[0].mxu0
      %v1560 = vadd.f32 %v1455, %v1559
      %v1561 = vpop.f32.mrb[0].mxu0
      %1562 = vdwg.mxu0
      %v1563 = vld [vmem:[%s3] sm:$0xff]
      %v1564 = vld [vmem:[%s3 + $0x8] sm:$0xff]
      %v1565 = vld [vmem:[%s3 + $0x10] sm:$0xff]
      %v1566 = vld [vmem:[%s3 + $0x18] sm:$0xff]
      %v1567 = vld [vmem:[%s3 + $0x20] sm:$0xff]
      %v1568 = vld [vmem:[%s3 + $0x28] sm:$0xff]
      %v1569 = vld [vmem:[%s3 + $0x30] sm:$0xff]
      %v1570 = vld [vmem:[%s3 + $0x38] sm:$0xff]
      %v1571 = vld [vmem:[%s3 + $0x40] sm:$0xff]
      %v1572 = vld [vmem:[%s3 + $0x48] sm:$0xff]
      %v1573 = vld [vmem:[%s3 + $0x50] sm:$0xff]
      %v1574 = vld [vmem:[%s3 + $0x58] sm:$0xff]
      %v1575 = vld [vmem:[%s3 + $0x60] sm:$0xff]
      %v1576 = vld [vmem:[%s3 + $0x68] sm:$0xff]
      %v1577 = vld [vmem:[%s3 + $0x70] sm:$0xff]
      %v1578 = vld [vmem:[%s3 + $0x78] sm:$0xff]
      %v1579 = vld [vmem:[%s3 + $0x80] sm:$0xff]
      %v1580 = vld [vmem:[%s3 + $0x88] sm:$0xff]
      %1582 = vset.pattern.permute.xlu0 0
      %1583 = vperm.xlu0 %1582, %v1563
      %v1584 = vpop.permute.xlu0 %1583
      %1587 = vset.pattern.permute.xlu0 0
      %1588 = vperm.xlu0 %1587, %v1564
      %v1589 = vpop.permute.xlu0 %1588
      %1592 = vset.pattern.permute.xlu0 0
      %1593 = vperm.xlu0 %1592, %v1565
      %v1594 = vpop.permute.xlu0 %1593
      %1597 = vset.pattern.permute.xlu0 0
      %1598 = vperm.xlu0 %1597, %v1566
      %v1599 = vpop.permute.xlu0 %1598
      %1602 = vset.pattern.permute.xlu0 0
      %1603 = vperm.xlu0 %1602, %v1567
      %v1604 = vpop.permute.xlu0 %1603
      %1607 = vset.pattern.permute.xlu0 0
      %1608 = vperm.xlu0 %1607, %v1568
      %v1609 = vpop.permute.xlu0 %1608
      %1612 = vset.pattern.permute.xlu0 0
      %1613 = vperm.xlu0 %1612, %v1569
      %v1614 = vpop.permute.xlu0 %1613
      %1617 = vset.pattern.permute.xlu0 0
      %1618 = vperm.xlu0 %1617, %v1570
      %v1619 = vpop.permute.xlu0 %1618
      %1622 = vset.pattern.permute.xlu0 0
      %1623 = vperm.xlu0 %1622, %v1571
      %v1624 = vpop.permute.xlu0 %1623
      %1627 = vset.pattern.permute.xlu0 0
      %1628 = vperm.xlu0 %1627, %v1572
      %v1629 = vpop.permute.xlu0 %1628
      %1632 = vset.pattern.permute.xlu0 0
      %1633 = vperm.xlu0 %1632, %v1573
      %v1634 = vpop.permute.xlu0 %1633
      %1637 = vset.pattern.permute.xlu0 0
      %1638 = vperm.xlu0 %1637, %v1574
      %v1639 = vpop.permute.xlu0 %1638
      %1642 = vset.pattern.permute.xlu0 0
      %1643 = vperm.xlu0 %1642, %v1575
      %v1644 = vpop.permute.xlu0 %1643
      %1647 = vset.pattern.permute.xlu0 0
      %1648 = vperm.xlu0 %1647, %v1576
      %v1649 = vpop.permute.xlu0 %1648
      %1652 = vset.pattern.permute.xlu0 0
      %1653 = vperm.xlu0 %1652, %v1577
      %v1654 = vpop.permute.xlu0 %1653
      %1657 = vset.pattern.permute.xlu0 0
      %1658 = vperm.xlu0 %1657, %v1578
      %v1659 = vpop.permute.xlu0 %1658
      %1662 = vset.pattern.permute.xlu0 0
      %1663 = vperm.xlu0 %1662, %v1579
      %v1664 = vpop.permute.xlu0 %1663
      %1667 = vset.pattern.permute.xlu0 0
      %1668 = vperm.xlu0 %1667, %v1580
      %v1669 = vpop.permute.xlu0 %1668
      %v1671 = vmul.f32 %v1493, %v1584
      %v1672 = vmul.f32 %v1496, %v1589
      %v1673 = vmul.f32 %v1501, %v1594
      %v1674 = vmul.f32 %v1504, %v1599
      %v1675 = vmul.f32 %v1509, %v1604
      %v1676 = vmul.f32 %v1512, %v1609
      %v1677 = vmul.f32 %v1517, %v1614
      %v1678 = vmul.f32 %v1520, %v1619
      %v1679 = vmul.f32 %v1525, %v1624
      %v1680 = vmul.f32 %v1528, %v1629
      %v1681 = vmul.f32 %v1533, %v1634
      %v1682 = vmul.f32 %v1536, %v1639
      %v1683 = vmul.f32 %v1541, %v1644
      %v1684 = vmul.f32 %v1544, %v1649
      %v1685 = vmul.f32 %v1549, %v1654
      %v1686 = vmul.f32 %v1552, %v1659
      %v1687 = vmul.f32 %v1557, %v1664
      %v1688 = vmul.f32 %v1560, %v1669
      %v1689 = vld [vmem:[%s2] sm:$0xff]
      %v1690 = vld [vmem:[%s2 + $0x8] sm:$0xff]
      %v1691 = vld [vmem:[%s2 + $0x10] sm:$0xff]
      %v1692 = vld [vmem:[%s2 + $0x18] sm:$0xff]
      %v1693 = vld [vmem:[%s2 + $0x20] sm:$0xff]
      %v1694 = vld [vmem:[%s2 + $0x28] sm:$0xff]
      %v1695 = vld [vmem:[%s2 + $0x30] sm:$0xff]
      %v1696 = vld [vmem:[%s2 + $0x38] sm:$0xff]
      %v1697 = vld [vmem:[%s2 + $0x40] sm:$0xff]
      %v1698 = vld [vmem:[%s2 + $0x48] sm:$0xff]
      %v1699 = vld [vmem:[%s2 + $0x50] sm:$0xff]
      %v1700 = vld [vmem:[%s2 + $0x58] sm:$0xff]
      %v1701 = vld [vmem:[%s2 + $0x60] sm:$0xff]
      %v1702 = vld [vmem:[%s2 + $0x68] sm:$0xff]
      %v1703 = vld [vmem:[%s2 + $0x70] sm:$0xff]
      %v1704 = vld [vmem:[%s2 + $0x78] sm:$0xff]
      %v1705 = vld [vmem:[%s2 + $0x80] sm:$0xff]
      %v1706 = vld [vmem:[%s2 + $0x88] sm:$0xff]
      %v1707 = vld [vmem:[%s2 + $0x90] sm:$0xff]
      %v1708 = vld [vmem:[%s2 + $0x98] sm:$0xff]
      %v1709 = vld [vmem:[%s2 + $0xa0] sm:$0xff]
      %v1710 = vld [vmem:[%s2 + $0xa8] sm:$0xff]
      %v1711 = vld [vmem:[%s2 + $0xb0] sm:$0xff]
      %v1712 = vld [vmem:[%s2 + $0xb8] sm:$0xff]
      %v1713 = vld [vmem:[%s2 + $0xc0] sm:$0xff]
      %v1714 = vld [vmem:[%s2 + $0xc8] sm:$0xff]
      %v1715 = vld [vmem:[%s2 + $0xd0] sm:$0xff]
      %v1716 = vld [vmem:[%s2 + $0xd8] sm:$0xff]
      %v1717 = vld [vmem:[%s2 + $0xe0] sm:$0xff]
      %v1718 = vld [vmem:[%s2 + $0xe8] sm:$0xff]
      %v1719 = vld [vmem:[%s2 + $0xf0] sm:$0xff]
      %v1720 = vld [vmem:[%s2 + $0xf8] sm:$0xff]
      %v1721 = vld [vmem:[%s2 + $0x100] sm:$0xff]
      %v1722 = vld [vmem:[%s2 + $0x108] sm:$0xff]
      %v1723 = vld [vmem:[%s2 + $0x110] sm:$0xff]
      %v1724 = vld [vmem:[%s2 + $0x118] sm:$0xff]
      %v1725 = vld [vmem:[%s2 + $0x120] sm:$0xff]
      %v1726 = vld [vmem:[%s2 + $0x128] sm:$0xff]
      %v1727 = vld [vmem:[%s2 + $0x130] sm:$0xff]
      %v1728 = vld [vmem:[%s2 + $0x138] sm:$0xff]
      %v1729 = vld [vmem:[%s2 + $0x140] sm:$0xff]
      %v1730 = vld [vmem:[%s2 + $0x148] sm:$0xff]
      %v1731 = vld [vmem:[%s2 + $0x150] sm:$0xff]
      %v1732 = vld [vmem:[%s2 + $0x158] sm:$0xff]
      %v1733 = vld [vmem:[%s2 + $0x160] sm:$0xff]
      %v1734 = vld [vmem:[%s2 + $0x168] sm:$0xff]
      %v1735 = vld [vmem:[%s2 + $0x170] sm:$0xff]
      %v1736 = vld [vmem:[%s2 + $0x178] sm:$0xff]
      %v1737 = vld [vmem:[%s2 + $0x180] sm:$0xff]
      %v1738 = vld [vmem:[%s2 + $0x188] sm:$0xff]
      %v1739 = vld [vmem:[%s2 + $0x190] sm:$0xff]
      %v1740 = vld [vmem:[%s2 + $0x198] sm:$0xff]
      %v1741 = vld [vmem:[%s2 + $0x1a0] sm:$0xff]
      %v1742 = vld [vmem:[%s2 + $0x1a8] sm:$0xff]
      %v1743 = vld [vmem:[%s2 + $0x1b0] sm:$0xff]
      %v1744 = vld [vmem:[%s2 + $0x1b8] sm:$0xff]
      %v1745 = vld [vmem:[%s2 + $0x1c0] sm:$0xff]
      %v1746 = vld [vmem:[%s2 + $0x1c8] sm:$0xff]
      %v1747 = vld [vmem:[%s2 + $0x1d0] sm:$0xff]
      %v1748 = vld [vmem:[%s2 + $0x1d8] sm:$0xff]
      %v1749 = vld [vmem:[%s2 + $0x1e0] sm:$0xff]
      %v1750 = vld [vmem:[%s2 + $0x1e8] sm:$0xff]
      %v1751 = vld [vmem:[%s2 + $0x1f0] sm:$0xff]
      %v1752 = vld [vmem:[%s2 + $0x1f8] sm:$0xff]
      %v1753 = vld [vmem:[%s2 + $0x200] sm:$0xff]
      %v1754 = vld [vmem:[%s2 + $0x208] sm:$0xff]
      %v1755 = vld [vmem:[%s2 + $0x210] sm:$0xff]
      %v1756 = vld [vmem:[%s2 + $0x218] sm:$0xff]
      %v1757 = vld [vmem:[%s2 + $0x220] sm:$0xff]
      %v1758 = vld [vmem:[%s2 + $0x228] sm:$0xff]
      %v1759 = vld [vmem:[%s2 + $0x230] sm:$0xff]
      %v1760 = vld [vmem:[%s2 + $0x238] sm:$0xff]
      %v1761 = vld [vmem:[%s2 + $0x240] sm:$0xff]
      %v1762 = vld [vmem:[%s2 + $0x248] sm:$0xff]
      %v1763 = vld [vmem:[%s2 + $0x250] sm:$0xff]
      %v1764 = vld [vmem:[%s2 + $0x258] sm:$0xff]
      %v1765 = vld [vmem:[%s2 + $0x260] sm:$0xff]
      %v1766 = vld [vmem:[%s2 + $0x268] sm:$0xff]
      %v1767 = vld [vmem:[%s2 + $0x270] sm:$0xff]
      %v1768 = vld [vmem:[%s2 + $0x278] sm:$0xff]
      %v1769 = vld [vmem:[%s2 + $0x280] sm:$0xff]
      %v1770 = vld [vmem:[%s2 + $0x288] sm:$0xff]
      %v1771 = vld [vmem:[%s2 + $0x290] sm:$0xff]
      %v1772 = vld [vmem:[%s2 + $0x298] sm:$0xff]
      %v1773 = vld [vmem:[%s2 + $0x2a0] sm:$0xff]
      %v1774 = vld [vmem:[%s2 + $0x2a8] sm:$0xff]
      %v1775 = vld [vmem:[%s2 + $0x2b0] sm:$0xff]
      %v1776 = vld [vmem:[%s2 + $0x2b8] sm:$0xff]
      %v1777 = vld [vmem:[%s2 + $0x2c0] sm:$0xff]
      %v1778 = vld [vmem:[%s2 + $0x2c8] sm:$0xff]
      %v1779 = vld [vmem:[%s2 + $0x2d0] sm:$0xff]
      %v1780 = vld [vmem:[%s2 + $0x2d8] sm:$0xff]
      %v1781 = vld [vmem:[%s2 + $0x2e0] sm:$0xff]
      %v1782 = vld [vmem:[%s2 + $0x2e8] sm:$0xff]
      %v1783 = vld [vmem:[%s2 + $0x2f0] sm:$0xff]
      %v1784 = vld [vmem:[%s2 + $0x2f8] sm:$0xff]
      %v1785 = vld [vmem:[%s2 + $0x300] sm:$0xff]
      %v1786 = vld [vmem:[%s2 + $0x308] sm:$0xff]
      %v1787 = vld [vmem:[%s2 + $0x310] sm:$0xff]
      %v1788 = vld [vmem:[%s2 + $0x318] sm:$0xff]
      %v1789 = vld [vmem:[%s2 + $0x320] sm:$0xff]
      %v1790 = vld [vmem:[%s2 + $0x328] sm:$0xff]
      %v1791 = vld [vmem:[%s2 + $0x330] sm:$0xff]
      %v1792 = vld [vmem:[%s2 + $0x338] sm:$0xff]
      %v1793 = vld [vmem:[%s2 + $0x340] sm:$0xff]
      %v1794 = vld [vmem:[%s2 + $0x348] sm:$0xff]
      %v1795 = vld [vmem:[%s2 + $0x350] sm:$0xff]
      %v1796 = vld [vmem:[%s2 + $0x358] sm:$0xff]
      %v1797 = vld [vmem:[%s2 + $0x360] sm:$0xff]
      %v1798 = vld [vmem:[%s2 + $0x368] sm:$0xff]
      %v1799 = vld [vmem:[%s2 + $0x370] sm:$0xff]
      %v1800 = vld [vmem:[%s2 + $0x378] sm:$0xff]
      %v1801 = vld [vmem:[%s2 + $0x380] sm:$0xff]
      %v1802 = vld [vmem:[%s2 + $0x388] sm:$0xff]
      %v1803 = vld [vmem:[%s2 + $0x390] sm:$0xff]
      %v1804 = vld [vmem:[%s2 + $0x398] sm:$0xff]
      %v1805 = vld [vmem:[%s2 + $0x3a0] sm:$0xff]
      %v1806 = vld [vmem:[%s2 + $0x3a8] sm:$0xff]
      %v1807 = vld [vmem:[%s2 + $0x3b0] sm:$0xff]
      %v1808 = vld [vmem:[%s2 + $0x3b8] sm:$0xff]
      %v1809 = vld [vmem:[%s2 + $0x3c0] sm:$0xff]
      %v1810 = vld [vmem:[%s2 + $0x3c8] sm:$0xff]
      %v1811 = vld [vmem:[%s2 + $0x3d0] sm:$0xff]
      %v1812 = vld [vmem:[%s2 + $0x3d8] sm:$0xff]
      %v1813 = vld [vmem:[%s2 + $0x3e0] sm:$0xff]
      %v1814 = vld [vmem:[%s2 + $0x3e8] sm:$0xff]
      %v1815 = vld [vmem:[%s2 + $0x3f0] sm:$0xff]
      %v1816 = vld [vmem:[%s2 + $0x3f8] sm:$0xff]
      %v1817 = vpack.c.bf16 %v1672, %v1671
      %v1818 = vpack.c.bf16 %v1674, %v1673
      %v1819 = vpack.c.bf16 %v1676, %v1675
      %v1820 = vpack.c.bf16 %v1678, %v1677
      %v1821 = vpack.c.bf16 %v1680, %v1679
      %v1822 = vpack.c.bf16 %v1682, %v1681
      %v1823 = vpack.c.bf16 %v1684, %v1683
      %v1824 = vpack.c.bf16 %v1686, %v1685
      %v1825 = vpack.c.bf16 %v1688, %v1687
      %v1954 = vunpack.c.l.b16 %v1689
      %v1955 = vunpack.c.h.b16 %v1689
      %v1956 = vunpack.c.l.b16 %v1690
      %v1957 = vunpack.c.h.b16 %v1690
      %v1958 = vunpack.c.l.b16 %v1691
      %v1959 = vunpack.c.h.b16 %v1691
      %v1960 = vunpack.c.l.b16 %v1692
      %v1961 = vunpack.c.h.b16 %v1692
      %v1962 = vunpack.c.l.b16 %v1693
      %v1963 = vunpack.c.h.b16 %v1693
      %v1964 = vunpack.c.l.b16 %v1694
      %v1965 = vunpack.c.h.b16 %v1694
      %v1966 = vunpack.c.l.b16 %v1695
      %v1967 = vunpack.c.h.b16 %v1695
      %v1968 = vunpack.c.l.b16 %v1696
      %v1969 = vunpack.c.h.b16 %v1696
      %v1970 = vunpack.c.l.b16 %v1697
      %v1971 = vunpack.c.h.b16 %v1697
      %v1972 = vunpack.c.l.b16 %v1698
      %v1973 = vunpack.c.h.b16 %v1698
      %v1974 = vunpack.c.l.b16 %v1699
      %v1975 = vunpack.c.h.b16 %v1699
      %v1976 = vunpack.c.l.b16 %v1700
      %v1977 = vunpack.c.h.b16 %v1700
      %v1978 = vunpack.c.l.b16 %v1701
      %v1979 = vunpack.c.h.b16 %v1701
      %v1980 = vunpack.c.l.b16 %v1702
      %v1981 = vunpack.c.h.b16 %v1702
      %v1982 = vunpack.c.l.b16 %v1703
      %v1983 = vunpack.c.h.b16 %v1703
      %v1984 = vunpack.c.l.b16 %v1704
      %v1985 = vunpack.c.h.b16 %v1704
      %v1986 = vunpack.c.l.b16 %v1705
      %v1987 = vunpack.c.h.b16 %v1705
      %v1988 = vunpack.c.l.b16 %v1706
      %v1989 = vunpack.c.h.b16 %v1706
      %v1990 = vunpack.c.l.b16 %v1707
      %v1991 = vunpack.c.h.b16 %v1707
      %v1992 = vunpack.c.l.b16 %v1708
      %v1993 = vunpack.c.h.b16 %v1708
      %v1994 = vunpack.c.l.b16 %v1709
      %v1995 = vunpack.c.h.b16 %v1709
      %v1996 = vunpack.c.l.b16 %v1710
      %v1997 = vunpack.c.h.b16 %v1710
      %v1998 = vunpack.c.l.b16 %v1711
      %v1999 = vunpack.c.h.b16 %v1711
      %v2000 = vunpack.c.l.b16 %v1712
      %v2001 = vunpack.c.h.b16 %v1712
      %v2002 = vunpack.c.l.b16 %v1713
      %v2003 = vunpack.c.h.b16 %v1713
      %v2004 = vunpack.c.l.b16 %v1714
      %v2005 = vunpack.c.h.b16 %v1714
      %v2006 = vunpack.c.l.b16 %v1715
      %v2007 = vunpack.c.h.b16 %v1715
      %v2008 = vunpack.c.l.b16 %v1716
      %v2009 = vunpack.c.h.b16 %v1716
      %v2010 = vunpack.c.l.b16 %v1717
      %v2011 = vunpack.c.h.b16 %v1717
      %v2012 = vunpack.c.l.b16 %v1718
      %v2013 = vunpack.c.h.b16 %v1718
      %v2014 = vunpack.c.l.b16 %v1719
      %v2015 = vunpack.c.h.b16 %v1719
      %v2016 = vunpack.c.l.b16 %v1720
      %v2017 = vunpack.c.h.b16 %v1720
      %v2018 = vunpack.c.l.b16 %v1721
      %v2019 = vunpack.c.h.b16 %v1721
      %v2020 = vunpack.c.l.b16 %v1722
      %v2021 = vunpack.c.h.b16 %v1722
      %v2022 = vunpack.c.l.b16 %v1723
      %v2023 = vunpack.c.h.b16 %v1723
      %v2024 = vunpack.c.l.b16 %v1724
      %v2025 = vunpack.c.h.b16 %v1724
      %v2026 = vunpack.c.l.b16 %v1725
      %v2027 = vunpack.c.h.b16 %v1725
      %v2028 = vunpack.c.l.b16 %v1726
      %v2029 = vunpack.c.h.b16 %v1726
      %v2030 = vunpack.c.l.b16 %v1727
      %v2031 = vunpack.c.h.b16 %v1727
      %v2032 = vunpack.c.l.b16 %v1728
      %v2033 = vunpack.c.h.b16 %v1728
      %v2034 = vunpack.c.l.b16 %v1729
      %v2035 = vunpack.c.h.b16 %v1729
      %v2036 = vunpack.c.l.b16 %v1730
      %v2037 = vunpack.c.h.b16 %v1730
      %v2038 = vunpack.c.l.b16 %v1731
      %v2039 = vunpack.c.h.b16 %v1731
      %v2040 = vunpack.c.l.b16 %v1732
      %v2041 = vunpack.c.h.b16 %v1732
      %v2042 = vunpack.c.l.b16 %v1733
      %v2043 = vunpack.c.h.b16 %v1733
      %v2044 = vunpack.c.l.b16 %v1734
      %v2045 = vunpack.c.h.b16 %v1734
      %v2046 = vunpack.c.l.b16 %v1735
      %v2047 = vunpack.c.h.b16 %v1735
      %v2048 = vunpack.c.l.b16 %v1736
      %v2049 = vunpack.c.h.b16 %v1736
      %v2050 = vunpack.c.l.b16 %v1737
      %v2051 = vunpack.c.h.b16 %v1737
      %v2052 = vunpack.c.l.b16 %v1738
      %v2053 = vunpack.c.h.b16 %v1738
      %v2054 = vunpack.c.l.b16 %v1739
      %v2055 = vunpack.c.h.b16 %v1739
      %v2056 = vunpack.c.l.b16 %v1740
      %v2057 = vunpack.c.h.b16 %v1740
      %v2058 = vunpack.c.l.b16 %v1741
      %v2059 = vunpack.c.h.b16 %v1741
      %v2060 = vunpack.c.l.b16 %v1742
      %v2061 = vunpack.c.h.b16 %v1742
      %v2062 = vunpack.c.l.b16 %v1743
      %v2063 = vunpack.c.h.b16 %v1743
      %v2064 = vunpack.c.l.b16 %v1744
      %v2065 = vunpack.c.h.b16 %v1744
      %v2066 = vunpack.c.l.b16 %v1745
      %v2067 = vunpack.c.h.b16 %v1745
      %v2068 = vunpack.c.l.b16 %v1746
      %v2069 = vunpack.c.h.b16 %v1746
      %v2070 = vunpack.c.l.b16 %v1747
      %v2071 = vunpack.c.h.b16 %v1747
      %v2072 = vunpack.c.l.b16 %v1748
      %v2073 = vunpack.c.h.b16 %v1748
      %v2074 = vunpack.c.l.b16 %v1749
      %v2075 = vunpack.c.h.b16 %v1749
      %v2076 = vunpack.c.l.b16 %v1750
      %v2077 = vunpack.c.h.b16 %v1750
      %v2078 = vunpack.c.l.b16 %v1751
      %v2079 = vunpack.c.h.b16 %v1751
      %v2080 = vunpack.c.l.b16 %v1752
      %v2081 = vunpack.c.h.b16 %v1752
      %v2082 = vunpack.c.l.b16 %v1753
      %v2083 = vunpack.c.h.b16 %v1753
      %v2084 = vunpack.c.l.b16 %v1754
      %v2085 = vunpack.c.h.b16 %v1754
      %v2086 = vunpack.c.l.b16 %v1755
      %v2087 = vunpack.c.h.b16 %v1755
      %v2088 = vunpack.c.l.b16 %v1756
      %v2089 = vunpack.c.h.b16 %v1756
      %v2090 = vunpack.c.l.b16 %v1757
      %v2091 = vunpack.c.h.b16 %v1757
      %v2092 = vunpack.c.l.b16 %v1758
      %v2093 = vunpack.c.h.b16 %v1758
      %v2094 = vunpack.c.l.b16 %v1759
      %v2095 = vunpack.c.h.b16 %v1759
      %v2096 = vunpack.c.l.b16 %v1760
      %v2097 = vunpack.c.h.b16 %v1760
      %v2098 = vunpack.c.l.b16 %v1761
      %v2099 = vunpack.c.h.b16 %v1761
      %v2100 = vunpack.c.l.b16 %v1762
      %v2101 = vunpack.c.h.b16 %v1762
      %v2102 = vunpack.c.l.b16 %v1763
      %v2103 = vunpack.c.h.b16 %v1763
      %v2104 = vunpack.c.l.b16 %v1764
      %v2105 = vunpack.c.h.b16 %v1764
      %v2106 = vunpack.c.l.b16 %v1765
      %v2107 = vunpack.c.h.b16 %v1765
      %v2108 = vunpack.c.l.b16 %v1766
      %v2109 = vunpack.c.h.b16 %v1766
      %v2110 = vunpack.c.l.b16 %v1767
      %v2111 = vunpack.c.h.b16 %v1767
      %v2112 = vunpack.c.l.b16 %v1768
      %v2113 = vunpack.c.h.b16 %v1768
      %v2114 = vunpack.c.l.b16 %v1769
      %v2115 = vunpack.c.h.b16 %v1769
      %v2116 = vunpack.c.l.b16 %v1770
      %v2117 = vunpack.c.h.b16 %v1770
      %v2118 = vunpack.c.l.b16 %v1771
      %v2119 = vunpack.c.h.b16 %v1771
      %v2120 = vunpack.c.l.b16 %v1772
      %v2121 = vunpack.c.h.b16 %v1772
      %v2122 = vunpack.c.l.b16 %v1773
      %v2123 = vunpack.c.h.b16 %v1773
      %v2124 = vunpack.c.l.b16 %v1774
      %v2125 = vunpack.c.h.b16 %v1774
      %v2126 = vunpack.c.l.b16 %v1775
      %v2127 = vunpack.c.h.b16 %v1775
      %v2128 = vunpack.c.l.b16 %v1776
      %v2129 = vunpack.c.h.b16 %v1776
      %v2130 = vunpack.c.l.b16 %v1777
      %v2131 = vunpack.c.h.b16 %v1777
      %v2132 = vunpack.c.l.b16 %v1778
      %v2133 = vunpack.c.h.b16 %v1778
      %v2134 = vunpack.c.l.b16 %v1779
      %v2135 = vunpack.c.h.b16 %v1779
      %v2136 = vunpack.c.l.b16 %v1780
      %v2137 = vunpack.c.h.b16 %v1780
      %v2138 = vunpack.c.l.b16 %v1781
      %v2139 = vunpack.c.h.b16 %v1781
      %v2140 = vunpack.c.l.b16 %v1782
      %v2141 = vunpack.c.h.b16 %v1782
      %v2142 = vunpack.c.l.b16 %v1783
      %v2143 = vunpack.c.h.b16 %v1783
      %v2144 = vunpack.c.l.b16 %v1784
      %v2145 = vunpack.c.h.b16 %v1784
      %v2146 = vunpack.c.l.b16 %v1785
      %v2147 = vunpack.c.h.b16 %v1785
      %v2148 = vunpack.c.l.b16 %v1786
      %v2149 = vunpack.c.h.b16 %v1786
      %v2150 = vunpack.c.l.b16 %v1787
      %v2151 = vunpack.c.h.b16 %v1787
      %v2152 = vunpack.c.l.b16 %v1788
      %v2153 = vunpack.c.h.b16 %v1788
      %v2154 = vunpack.c.l.b16 %v1789
      %v2155 = vunpack.c.h.b16 %v1789
      %v2156 = vunpack.c.l.b16 %v1790
      %v2157 = vunpack.c.h.b16 %v1790
      %v2158 = vunpack.c.l.b16 %v1791
      %v2159 = vunpack.c.h.b16 %v1791
      %v2160 = vunpack.c.l.b16 %v1792
      %v2161 = vunpack.c.h.b16 %v1792
      %v2162 = vunpack.c.l.b16 %v1793
      %v2163 = vunpack.c.h.b16 %v1793
      %v2164 = vunpack.c.l.b16 %v1794
      %v2165 = vunpack.c.h.b16 %v1794
      %v2166 = vunpack.c.l.b16 %v1795
      %v2167 = vunpack.c.h.b16 %v1795
      %v2168 = vunpack.c.l.b16 %v1796
      %v2169 = vunpack.c.h.b16 %v1796
      %v2170 = vunpack.c.l.b16 %v1797
      %v2171 = vunpack.c.h.b16 %v1797
      %v2172 = vunpack.c.l.b16 %v1798
      %v2173 = vunpack.c.h.b16 %v1798
      %v2174 = vunpack.c.l.b16 %v1799
      %v2175 = vunpack.c.h.b16 %v1799
      %v2176 = vunpack.c.l.b16 %v1800
      %v2177 = vunpack.c.h.b16 %v1800
      %v2178 = vunpack.c.l.b16 %v1801
      %v2179 = vunpack.c.h.b16 %v1801
      %v2180 = vunpack.c.l.b16 %v1802
      %v2181 = vunpack.c.h.b16 %v1802
      %v2182 = vunpack.c.l.b16 %v1803
      %v2183 = vunpack.c.h.b16 %v1803
      %v2184 = vunpack.c.l.b16 %v1804
      %v2185 = vunpack.c.h.b16 %v1804
      %v2186 = vunpack.c.l.b16 %v1805
      %v2187 = vunpack.c.h.b16 %v1805
      %v2188 = vunpack.c.l.b16 %v1806
      %v2189 = vunpack.c.h.b16 %v1806
      %v2190 = vunpack.c.l.b16 %v1807
      %v2191 = vunpack.c.h.b16 %v1807
      %v2192 = vunpack.c.l.b16 %v1808
      %v2193 = vunpack.c.h.b16 %v1808
      %v2194 = vunpack.c.l.b16 %v1809
      %v2195 = vunpack.c.h.b16 %v1809
      %v2196 = vunpack.c.l.b16 %v1810
      %v2197 = vunpack.c.h.b16 %v1810
      %v2198 = vunpack.c.l.b16 %v1811
      %v2199 = vunpack.c.h.b16 %v1811
      %v2200 = vunpack.c.l.b16 %v1812
      %v2201 = vunpack.c.h.b16 %v1812
      %v2202 = vunpack.c.l.b16 %v1813
      %v2203 = vunpack.c.h.b16 %v1813
      %v2204 = vunpack.c.l.b16 %v1814
      %v2205 = vunpack.c.h.b16 %v1814
      %v2206 = vunpack.c.l.b16 %v1815
      %v2207 = vunpack.c.h.b16 %v1815
      %v2208 = vunpack.c.l.b16 %v1816
      %v2209 = vunpack.c.h.b16 %v1816
      %v2210 = vpack.c.b16 %v1956, %v1954
      %v2211 = vpack.c.b16 %v1957, %v1955
      %v2212 = vpack.c.b16 %v1960, %v1958
      %v2213 = vpack.c.b16 %v1961, %v1959
      %v2214 = vpack.c.b16 %v1964, %v1962
      %v2215 = vpack.c.b16 %v1965, %v1963
      %v2216 = vpack.c.b16 %v1968, %v1966
      %v2217 = vpack.c.b16 %v1969, %v1967
      %v2218 = vpack.c.b16 %v1972, %v1970
      %v2219 = vpack.c.b16 %v1973, %v1971
      %v2220 = vpack.c.b16 %v1976, %v1974
      %v2221 = vpack.c.b16 %v1977, %v1975
      %v2222 = vpack.c.b16 %v1980, %v1978
      %v2223 = vpack.c.b16 %v1981, %v1979
      %v2224 = vpack.c.b16 %v1984, %v1982
      %v2225 = vpack.c.b16 %v1985, %v1983
      %v2226 = vpack.c.b16 %v1988, %v1986
      %v2227 = vpack.c.b16 %v1989, %v1987
      %v2228 = vpack.c.b16 %v1992, %v1990
      %v2229 = vpack.c.b16 %v1993, %v1991
      %v2230 = vpack.c.b16 %v1996, %v1994
      %v2231 = vpack.c.b16 %v1997, %v1995
      %v2232 = vpack.c.b16 %v2000, %v1998
      %v2233 = vpack.c.b16 %v2001, %v1999
      %v2234 = vpack.c.b16 %v2004, %v2002
      %v2235 = vpack.c.b16 %v2005, %v2003
      %v2236 = vpack.c.b16 %v2008, %v2006
      %v2237 = vpack.c.b16 %v2009, %v2007
      %v2238 = vpack.c.b16 %v2012, %v2010
      %v2239 = vpack.c.b16 %v2013, %v2011
      %v2240 = vpack.c.b16 %v2016, %v2014
      %v2241 = vpack.c.b16 %v2017, %v2015
      %v2242 = vpack.c.b16 %v2020, %v2018
      %v2243 = vpack.c.b16 %v2021, %v2019
      %v2244 = vpack.c.b16 %v2024, %v2022
      %v2245 = vpack.c.b16 %v2025, %v2023
      %v2246 = vpack.c.b16 %v2028, %v2026
      %v2247 = vpack.c.b16 %v2029, %v2027
      %v2248 = vpack.c.b16 %v2032, %v2030
      %v2249 = vpack.c.b16 %v2033, %v2031
      %v2250 = vpack.c.b16 %v2036, %v2034
      %v2251 = vpack.c.b16 %v2037, %v2035
      %v2252 = vpack.c.b16 %v2040, %v2038
      %v2253 = vpack.c.b16 %v2041, %v2039
      %v2254 = vpack.c.b16 %v2044, %v2042
      %v2255 = vpack.c.b16 %v2045, %v2043
      %v2256 = vpack.c.b16 %v2048, %v2046
      %v2257 = vpack.c.b16 %v2049, %v2047
      %v2258 = vpack.c.b16 %v2052, %v2050
      %v2259 = vpack.c.b16 %v2053, %v2051
      %v2260 = vpack.c.b16 %v2056, %v2054
      %v2261 = vpack.c.b16 %v2057, %v2055
      %v2262 = vpack.c.b16 %v2060, %v2058
      %v2263 = vpack.c.b16 %v2061, %v2059
      %v2264 = vpack.c.b16 %v2064, %v2062
      %v2265 = vpack.c.b16 %v2065, %v2063
      %v2266 = vpack.c.b16 %v2068, %v2066
      %v2267 = vpack.c.b16 %v2069, %v2067
      %v2268 = vpack.c.b16 %v2072, %v2070
      %v2269 = vpack.c.b16 %v2073, %v2071
      %v2270 = vpack.c.b16 %v2076, %v2074
      %v2271 = vpack.c.b16 %v2077, %v2075
      %v2272 = vpack.c.b16 %v2080, %v2078
      %v2273 = vpack.c.b16 %v2081, %v2079
      %v2274 = vpack.c.b16 %v2084, %v2082
      %v2275 = vpack.c.b16 %v2085, %v2083
      %v2276 = vpack.c.b16 %v2088, %v2086
      %v2277 = vpack.c.b16 %v2089, %v2087
      %v2278 = vpack.c.b16 %v2092, %v2090
      %v2279 = vpack.c.b16 %v2093, %v2091
      %v2280 = vpack.c.b16 %v2096, %v2094
      %v2281 = vpack.c.b16 %v2097, %v2095
      %v2282 = vpack.c.b16 %v2100, %v2098
      %v2283 = vpack.c.b16 %v2101, %v2099
      %v2284 = vpack.c.b16 %v2104, %v2102
      %v2285 = vpack.c.b16 %v2105, %v2103
      %v2286 = vpack.c.b16 %v2108, %v2106
      %v2287 = vpack.c.b16 %v2109, %v2107
      %v2288 = vpack.c.b16 %v2112, %v2110
      %v2289 = vpack.c.b16 %v2113, %v2111
      %v2290 = vpack.c.b16 %v2116, %v2114
      %v2291 = vpack.c.b16 %v2117, %v2115
      %v2292 = vpack.c.b16 %v2120, %v2118
      %v2293 = vpack.c.b16 %v2121, %v2119
      %v2294 = vpack.c.b16 %v2124, %v2122
      %v2295 = vpack.c.b16 %v2125, %v2123
      %v2296 = vpack.c.b16 %v2128, %v2126
      %v2297 = vpack.c.b16 %v2129, %v2127
      %v2298 = vpack.c.b16 %v2132, %v2130
      %v2299 = vpack.c.b16 %v2133, %v2131
      %v2300 = vpack.c.b16 %v2136, %v2134
      %v2301 = vpack.c.b16 %v2137, %v2135
      %v2302 = vpack.c.b16 %v2140, %v2138
      %v2303 = vpack.c.b16 %v2141, %v2139
      %v2304 = vpack.c.b16 %v2144, %v2142
      %v2305 = vpack.c.b16 %v2145, %v2143
      %v2306 = vpack.c.b16 %v2148, %v2146
      %v2307 = vpack.c.b16 %v2149, %v2147
      %v2308 = vpack.c.b16 %v2152, %v2150
      %v2309 = vpack.c.b16 %v2153, %v2151
      %v2310 = vpack.c.b16 %v2156, %v2154
      %v2311 = vpack.c.b16 %v2157, %v2155
      %v2312 = vpack.c.b16 %v2160, %v2158
      %v2313 = vpack.c.b16 %v2161, %v2159
      %v2314 = vpack.c.b16 %v2164, %v2162
      %v2315 = vpack.c.b16 %v2165, %v2163
      %v2316 = vpack.c.b16 %v2168, %v2166
      %v2317 = vpack.c.b16 %v2169, %v2167
      %v2318 = vpack.c.b16 %v2172, %v2170
      %v2319 = vpack.c.b16 %v2173, %v2171
      %v2320 = vpack.c.b16 %v2176, %v2174
      %v2321 = vpack.c.b16 %v2177, %v2175
      %v2322 = vpack.c.b16 %v2180, %v2178
      %v2323 = vpack.c.b16 %v2181, %v2179
      %v2324 = vpack.c.b16 %v2184, %v2182
      %v2325 = vpack.c.b16 %v2185, %v2183
      %v2326 = vpack.c.b16 %v2188, %v2186
      %v2327 = vpack.c.b16 %v2189, %v2187
      %v2328 = vpack.c.b16 %v2192, %v2190
      %v2329 = vpack.c.b16 %v2193, %v2191
      %v2330 = vpack.c.b16 %v2196, %v2194
      %v2331 = vpack.c.b16 %v2197, %v2195
      %v2332 = vpack.c.b16 %v2200, %v2198
      %v2333 = vpack.c.b16 %v2201, %v2199
      %v2334 = vpack.c.b16 %v2204, %v2202
      %v2335 = vpack.c.b16 %v2205, %v2203
      %v2336 = vpack.c.b16 %v2208, %v2206
      %v2337 = vpack.c.b16 %v2209, %v2207
      %vm2402 = vcmask 130048
      %v2404 = vsel %vm2402, %v2211, 0
      %v2407 = vsel %vm2402, %v2213, 0
      %v2410 = vsel %vm2402, %v2215, 0
      %v2413 = vsel %vm2402, %v2217, 0
      %v2416 = vsel %vm2402, %v2219, 0
      %v2419 = vsel %vm2402, %v2221, 0
      %v2422 = vsel %vm2402, %v2223, 0
      %v2425 = vsel %vm2402, %v2225, 0
      %v2428 = vsel %vm2402, %v2227, 0
      %v2431 = vsel %vm2402, %v2229, 0
      %v2434 = vsel %vm2402, %v2231, 0
      %v2437 = vsel %vm2402, %v2233, 0
      %v2440 = vsel %vm2402, %v2235, 0
      %v2443 = vsel %vm2402, %v2237, 0
      %v2446 = vsel %vm2402, %v2239, 0
      %v2449 = vsel %vm2402, %v2241, 0
      %v2452 = vsel %vm2402, %v2243, 0
      %v2455 = vsel %vm2402, %v2245, 0
      %v2458 = vsel %vm2402, %v2247, 0
      %v2461 = vsel %vm2402, %v2249, 0
      %v2464 = vsel %vm2402, %v2251, 0
      %v2467 = vsel %vm2402, %v2253, 0
      %v2470 = vsel %vm2402, %v2255, 0
      %v2473 = vsel %vm2402, %v2257, 0
      %v2476 = vsel %vm2402, %v2259, 0
      %v2479 = vsel %vm2402, %v2261, 0
      %v2482 = vsel %vm2402, %v2263, 0
      %v2485 = vsel %vm2402, %v2265, 0
      %v2488 = vsel %vm2402, %v2267, 0
      %v2491 = vsel %vm2402, %v2269, 0
      %v2494 = vsel %vm2402, %v2271, 0
      %v2497 = vsel %vm2402, %v2273, 0
      %v2500 = vsel %vm2402, %v2275, 0
      %v2503 = vsel %vm2402, %v2277, 0
      %v2506 = vsel %vm2402, %v2279, 0
      %v2509 = vsel %vm2402, %v2281, 0
      %v2512 = vsel %vm2402, %v2283, 0
      %v2515 = vsel %vm2402, %v2285, 0
      %v2518 = vsel %vm2402, %v2287, 0
      %v2521 = vsel %vm2402, %v2289, 0
      %v2524 = vsel %vm2402, %v2291, 0
      %v2527 = vsel %vm2402, %v2293, 0
      %v2530 = vsel %vm2402, %v2295, 0
      %v2533 = vsel %vm2402, %v2297, 0
      %v2536 = vsel %vm2402, %v2299, 0
      %v2539 = vsel %vm2402, %v2301, 0
      %v2542 = vsel %vm2402, %v2303, 0
      %v2545 = vsel %vm2402, %v2305, 0
      %v2548 = vsel %vm2402, %v2307, 0
      %v2551 = vsel %vm2402, %v2309, 0
      %v2554 = vsel %vm2402, %v2311, 0
      %v2557 = vsel %vm2402, %v2313, 0
      %v2560 = vsel %vm2402, %v2315, 0
      %v2563 = vsel %vm2402, %v2317, 0
      %v2566 = vsel %vm2402, %v2319, 0
      %v2569 = vsel %vm2402, %v2321, 0
      %v2572 = vsel %vm2402, %v2323, 0
      %v2575 = vsel %vm2402, %v2325, 0
      %v2578 = vsel %vm2402, %v2327, 0
      %v2581 = vsel %vm2402, %v2329, 0
      %v2584 = vsel %vm2402, %v2331, 0
      %v2587 = vsel %vm2402, %v2333, 0
      %v2590 = vsel %vm2402, %v2335, 0
      %v2593 = vsel %vm2402, %v2337, 0
      %2595 = vmatprep.subr.bf16.mxu0 0
      %2596 = vmatpush1.bf16.msra.mxu0 %v1817
      %2597 = vmatprep.subr.bf16.mxu0 0
      %2598 = vmatpush1.bf16.msra.mxu0 %v1818
      %2599 = vmatprep.subr.bf16.mxu0 0
      %2600 = vmatpush1.bf16.msra.mxu0 %v1819
      %2601 = vmatprep.subr.bf16.mxu0 0
      %2602 = vmatpush1.bf16.msra.mxu0 %v1820
      %2603 = vmatprep.subr.bf16.mxu0 0
      %2604 = vmatpush1.bf16.msra.mxu0 %v1821
      %2605 = vmatprep.subr.bf16.mxu0 0
      %2606 = vmatpush1.bf16.msra.mxu0 %v1822
      %2607 = vmatprep.subr.bf16.mxu0 0
      %2608 = vmatpush1.bf16.msra.mxu0 %v1823
      %2609 = vmatprep.subr.bf16.mxu0 0
      %2610 = vmatpush1.bf16.msra.mxu0 %v1824
      %2611 = vmatprep.subr.bf16.mxu0 0
      %2612 = vmatpush1.bf16.msra.mxu0 %v1825
      %2613 = vmatprep.subr.bf16.mxu0 0
      %2614 = vmatpush1.bf16.msra.mxu0 0
      %2615 = vmatprep.subr.bf16.mxu0 0
      %2616 = vmatpush1.bf16.msra.mxu0 0
      %2617 = vmatprep.subr.bf16.mxu0 0
      %2618 = vmatpush1.bf16.msra.mxu0 0
      %2619 = vmatprep.subr.bf16.mxu0 0
      %2620 = vmatpush1.bf16.msra.mxu0 0
      %2621 = vmatprep.subr.bf16.mxu0 0
      %2622 = vmatpush1.bf16.msra.mxu0 0
      %2623 = vmatprep.subr.bf16.mxu0 0
      %2624 = vmatpush1.bf16.msra.mxu0 0
      %2625 = vmatprep.subr.bf16.mxu0 0
      %2626 = vmatpush1.bf16.msra.mxu0 0
      %2627 = vmatprep.mubr.bf16.mxu0 %v2404
      %2628 = vmatmul.mubr.bf16.gmra.mrb[0].mxu0 %v2210
      %v2629 = vpop.f32.mrb[0].mxu0
      %v2630 = vadd.f32 0.0, %v2629
      %v2631 = vpop.f32.mrb[0].mxu0
      %v2632 = vpop.f32.mrb[0].mxu0
      %v2633 = vadd.f32 0.0, %v2632
      %v2634 = vpop.f32.mrb[0].mxu0
      %2635 = vmatprep.mubr.bf16.mxu0 %v2407
      %2636 = vmatmul.mubr.bf16.gmra.mrb[0].mxu0 %v2212
      %v2637 = vpop.f32.mrb[0].mxu0
      %v2638 = vadd.f32 0.0, %v2637
      %v2639 = vpop.f32.mrb[0].mxu0
      %v2640 = vpop.f32.mrb[0].mxu0
      %v2641 = vadd.f32 0.0, %v2640
      %v2642 = vpop.f32.mrb[0].mxu0
      %2643 = vmatprep.mubr.bf16.mxu0 %v2410
      %2644 = vmatmul.mubr.bf16.gmra.mrb[0].mxu0 %v2214
      %v2645 = vpop.f32.mrb[0].mxu0
      %v2646 = vadd.f32 0.0, %v2645
      %v2647 = vpop.f32.mrb[0].mxu0
      %v2648 = vpop.f32.mrb[0].mxu0
      %v2649 = vadd.f32 0.0, %v2648
      %v2650 = vpop.f32.mrb[0].mxu0
      %2651 = vmatprep.mubr.bf16.mxu0 %v2413
      %2652 = vmatmul.mubr.bf16.gmra.mrb[0].mxu0 %v2216
      %v2653 = vpop.f32.mrb[0].mxu0
      %v2654 = vadd.f32 0.0, %v2653
      %v2655 = vpop.f32.mrb[0].mxu0
      %v2656 = vpop.f32.mrb[0].mxu0
      %v2657 = vadd.f32 0.0, %v2656
      %v2658 = vpop.f32.mrb[0].mxu0
      %2659 = vmatprep.mubr.bf16.mxu0 %v2416
      %2660 = vmatmul.mubr.bf16.gmra.mrb[0].mxu0 %v2218
      %v2661 = vpop.f32.mrb[0].mxu0
      %v2662 = vadd.f32 0.0, %v2661
      %v2663 = vpop.f32.mrb[0].mxu0
      %v2664 = vpop.f32.mrb[0].mxu0
      %v2665 = vadd.f32 0.0, %v2664
      %v2666 = vpop.f32.mrb[0].mxu0
      %2667 = vmatprep.mubr.bf16.mxu0 %v2419
      %2668 = vmatmul.mubr.bf16.gmra.mrb[0].mxu0 %v2220
      %v2669 = vpop.f32.mrb[0].mxu0
      %v2670 = vadd.f32 0.0, %v2669
      %v2671 = vpop.f32.mrb[0].mxu0
      %v2672 = vpop.f32.mrb[0].mxu0
      %v2673 = vadd.f32 0.0, %v2672
      %v2674 = vpop.f32.mrb[0].mxu0
      %2675 = vmatprep.mubr.bf16.mxu0 %v2422
      %2676 = vmatmul.mubr.bf16.gmra.mrb[0].mxu0 %v2222
      %v2677 = vpop.f32.mrb[0].mxu0
      %v2678 = vadd.f32 0.0, %v2677
      %v2679 = vpop.f32.mrb[0].mxu0
      %v2680 = vpop.f32.mrb[0].mxu0
      %v2681 = vadd.f32 0.0, %v2680
      %v2682 = vpop.f32.mrb[0].mxu0
      %2683 = vmatprep.mubr.bf16.mxu0 %v2425
      %2684 = vmatmul.mubr.bf16.gmra.mrb[0].mxu0 %v2224
      %v2685 = vpop.f32.mrb[0].mxu0
      %v2686 = vadd.f32 0.0, %v2685
      %v2687 = vpop.f32.mrb[0].mxu0
      %v2688 = vpop.f32.mrb[0].mxu0
      %v2689 = vadd.f32 0.0, %v2688
      %v2690 = vpop.f32.mrb[0].mxu0
      %2691 = vmatprep.mubr.bf16.mxu0 %v2428
      %2692 = vmatmul.mubr.bf16.gmra.mrb[0].mxu0 %v2226
      %v2693 = vpop.f32.mrb[0].mxu0
      %v2694 = vadd.f32 0.0, %v2693
      %v2695 = vpop.f32.mrb[0].mxu0
      %v2696 = vpop.f32.mrb[0].mxu0
      %v2697 = vadd.f32 0.0, %v2696
      %v2698 = vpop.f32.mrb[0].mxu0
      %2699 = vmatprep.mubr.bf16.mxu0 %v2431
      %2700 = vmatmul.mubr.bf16.gmra.mrb[0].mxu0 %v2228
      %v2701 = vpop.f32.mrb[0].mxu0
      %v2702 = vadd.f32 0.0, %v2701
      %v2703 = vpop.f32.mrb[0].mxu0
      %v2704 = vpop.f32.mrb[0].mxu0
      %v2705 = vadd.f32 0.0, %v2704
      %v2706 = vpop.f32.mrb[0].mxu0
      %2707 = vmatprep.mubr.bf16.mxu0 %v2434
      %2708 = vmatmul.mubr.bf16.gmra.mrb[0].mxu0 %v2230
      %v2709 = vpop.f32.mrb[0].mxu0
      %v2710 = vadd.f32 0.0, %v2709
      %v2711 = vpop.f32.mrb[0].mxu0
      %v2712 = vpop.f32.mrb[0].mxu0
      %v2713 = vadd.f32 0.0, %v2712
      %v2714 = vpop.f32.mrb[0].mxu0
      %2715 = vmatprep.mubr.bf16.mxu0 %v2437
      %2716 = vmatmul.mubr.bf16.gmra.mrb[0].mxu0 %v2232
      %v2717 = vpop.f32.mrb[0].mxu0
      %v2718 = vadd.f32 0.0, %v2717
      %v2719 = vpop.f32.mrb[0].mxu0
      %v2720 = vpop.f32.mrb[0].mxu0
      %v2721 = vadd.f32 0.0, %v2720
      %v2722 = vpop.f32.mrb[0].mxu0
      %2723 = vmatprep.mubr.bf16.mxu0 %v2440
      %2724 = vmatmul.mubr.bf16.gmra.mrb[0].mxu0 %v2234
      %v2725 = vpop.f32.mrb[0].mxu0
      %v2726 = vadd.f32 0.0, %v2725
      %v2727 = vpop.f32.mrb[0].mxu0
      %v2728 = vpop.f32.mrb[0].mxu0
      %v2729 = vadd.f32 0.0, %v2728
      %v2730 = vpop.f32.mrb[0].mxu0
      %2731 = vmatprep.mubr.bf16.mxu0 %v2443
      %2732 = vmatmul.mubr.bf16.gmra.mrb[0].mxu0 %v2236
      %v2733 = vpop.f32.mrb[0].mxu0
      %v2734 = vadd.f32 0.0, %v2733
      %v2735 = vpop.f32.mrb[0].mxu0
      %v2736 = vpop.f32.mrb[0].mxu0
      %v2737 = vadd.f32 0.0, %v2736
      %v2738 = vpop.f32.mrb[0].mxu0
      %2739 = vmatprep.mubr.bf16.mxu0 %v2446
      %2740 = vmatmul.mubr.bf16.gmra.mrb[0].mxu0 %v2238
      %v2741 = vpop.f32.mrb[0].mxu0
      %v2742 = vadd.f32 0.0, %v2741
      %v2743 = vpop.f32.mrb[0].mxu0
      %v2744 = vpop.f32.mrb[0].mxu0
      %v2745 = vadd.f32 0.0, %v2744
      %v2746 = vpop.f32.mrb[0].mxu0
      %2747 = vmatprep.mubr.bf16.mxu0 %v2449
      %2748 = vmatmul.mubr.bf16.gmra.mrb[0].mxu0 %v2240
      %v2749 = vpop.f32.mrb[0].mxu0
      %v2750 = vadd.f32 0.0, %v2749
      %v2751 = vpop.f32.mrb[0].mxu0
      %v2752 = vpop.f32.mrb[0].mxu0
      %v2753 = vadd.f32 0.0, %v2752
      %v2754 = vpop.f32.mrb[0].mxu0
      %2755 = vmatprep.mubr.bf16.mxu0 %v2452
      %2756 = vmatmul.mubr.bf16.gmra.mrb[0].mxu0 %v2242
      %v2757 = vpop.f32.mrb[0].mxu0
      %v2758 = vadd.f32 0.0, %v2757
      %v2759 = vpop.f32.mrb[0].mxu0
      %v2760 = vpop.f32.mrb[0].mxu0
      %v2761 = vadd.f32 0.0, %v2760
      %v2762 = vpop.f32.mrb[0].mxu0
      %2763 = vmatprep.mubr.bf16.mxu0 %v2455
      %2764 = vmatmul.mubr.bf16.gmra.mrb[0].mxu0 %v2244
      %v2765 = vpop.f32.mrb[0].mxu0
      %v2766 = vadd.f32 0.0, %v2765
      %v2767 = vpop.f32.mrb[0].mxu0
      %v2768 = vpop.f32.mrb[0].mxu0
      %v2769 = vadd.f32 0.0, %v2768
      %v2770 = vpop.f32.mrb[0].mxu0
      %2771 = vmatprep.mubr.bf16.mxu0 %v2458
      %2772 = vmatmul.mubr.bf16.gmra.mrb[0].mxu0 %v2246
      %v2773 = vpop.f32.mrb[0].mxu0
      %v2774 = vadd.f32 0.0, %v2773
      %v2775 = vpop.f32.mrb[0].mxu0
      %v2776 = vpop.f32.mrb[0].mxu0
      %v2777 = vadd.f32 0.0, %v2776
      %v2778 = vpop.f32.mrb[0].mxu0
      %2779 = vmatprep.mubr.bf16.mxu0 %v2461
      %2780 = vmatmul.mubr.bf16.gmra.mrb[0].mxu0 %v2248
      %v2781 = vpop.f32.mrb[0].mxu0
      %v2782 = vadd.f32 0.0, %v2781
      %v2783 = vpop.f32.mrb[0].mxu0
      %v2784 = vpop.f32.mrb[0].mxu0
      %v2785 = vadd.f32 0.0, %v2784
      %v2786 = vpop.f32.mrb[0].mxu0
      %2787 = vmatprep.mubr.bf16.mxu0 %v2464
      %2788 = vmatmul.mubr.bf16.gmra.mrb[0].mxu0 %v2250
      %v2789 = vpop.f32.mrb[0].mxu0
      %v2790 = vadd.f32 0.0, %v2789
      %v2791 = vpop.f32.mrb[0].mxu0
      %v2792 = vpop.f32.mrb[0].mxu0
      %v2793 = vadd.f32 0.0, %v2792
      %v2794 = vpop.f32.mrb[0].mxu0
      %2795 = vmatprep.mubr.bf16.mxu0 %v2467
      %2796 = vmatmul.mubr.bf16.gmra.mrb[0].mxu0 %v2252
      %v2797 = vpop.f32.mrb[0].mxu0
      %v2798 = vadd.f32 0.0, %v2797
      %v2799 = vpop.f32.mrb[0].mxu0
      %v2800 = vpop.f32.mrb[0].mxu0
      %v2801 = vadd.f32 0.0, %v2800
      %v2802 = vpop.f32.mrb[0].mxu0
      %2803 = vmatprep.mubr.bf16.mxu0 %v2470
      %2804 = vmatmul.mubr.bf16.gmra.mrb[0].mxu0 %v2254
      %v2805 = vpop.f32.mrb[0].mxu0
      %v2806 = vadd.f32 0.0, %v2805
      %v2807 = vpop.f32.mrb[0].mxu0
      %v2808 = vpop.f32.mrb[0].mxu0
      %v2809 = vadd.f32 0.0, %v2808
      %v2810 = vpop.f32.mrb[0].mxu0
      %2811 = vmatprep.mubr.bf16.mxu0 %v2473
      %2812 = vmatmul.mubr.bf16.gmra.mrb[0].mxu0 %v2256
      %v2813 = vpop.f32.mrb[0].mxu0
      %v2814 = vadd.f32 0.0, %v2813
      %v2815 = vpop.f32.mrb[0].mxu0
      %v2816 = vpop.f32.mrb[0].mxu0
      %v2817 = vadd.f32 0.0, %v2816
      %v2818 = vpop.f32.mrb[0].mxu0
      %2819 = vmatprep.mubr.bf16.mxu0 %v2476
      %2820 = vmatmul.mubr.bf16.gmra.mrb[0].mxu0 %v2258
      %v2821 = vpop.f32.mrb[0].mxu0
      %v2822 = vadd.f32 0.0, %v2821
      %v2823 = vpop.f32.mrb[0].mxu0
      %v2824 = vpop.f32.mrb[0].mxu0
      %v2825 = vadd.f32 0.0, %v2824
      %v2826 = vpop.f32.mrb[0].mxu0
      %2827 = vmatprep.mubr.bf16.mxu0 %v2479
      %2828 = vmatmul.mubr.bf16.gmra.mrb[0].mxu0 %v2260
      %v2829 = vpop.f32.mrb[0].mxu0
      %v2830 = vadd.f32 0.0, %v2829
      %v2831 = vpop.f32.mrb[0].mxu0
      %v2832 = vpop.f32.mrb[0].mxu0
      %v2833 = vadd.f32 0.0, %v2832
      %v2834 = vpop.f32.mrb[0].mxu0
      %2835 = vmatprep.mubr.bf16.mxu0 %v2482
      %2836 = vmatmul.mubr.bf16.gmra.mrb[0].mxu0 %v2262
      %v2837 = vpop.f32.mrb[0].mxu0
      %v2838 = vadd.f32 0.0, %v2837
      %v2839 = vpop.f32.mrb[0].mxu0
      %v2840 = vpop.f32.mrb[0].mxu0
      %v2841 = vadd.f32 0.0, %v2840
      %v2842 = vpop.f32.mrb[0].mxu0
      %2843 = vmatprep.mubr.bf16.mxu0 %v2485
      %2844 = vmatmul.mubr.bf16.gmra.mrb[0].mxu0 %v2264
      %v2845 = vpop.f32.mrb[0].mxu0
      %v2846 = vadd.f32 0.0, %v2845
      %v2847 = vpop.f32.mrb[0].mxu0
      %v2848 = vpop.f32.mrb[0].mxu0
      %v2849 = vadd.f32 0.0, %v2848
      %v2850 = vpop.f32.mrb[0].mxu0
      %2851 = vmatprep.mubr.bf16.mxu0 %v2488
      %2852 = vmatmul.mubr.bf16.gmra.mrb[0].mxu0 %v2266
      %v2853 = vpop.f32.mrb[0].mxu0
      %v2854 = vadd.f32 0.0, %v2853
      %v2855 = vpop.f32.mrb[0].mxu0
      %v2856 = vpop.f32.mrb[0].mxu0
      %v2857 = vadd.f32 0.0, %v2856
      %v2858 = vpop.f32.mrb[0].mxu0
      %2859 = vmatprep.mubr.bf16.mxu0 %v2491
      %2860 = vmatmul.mubr.bf16.gmra.mrb[0].mxu0 %v2268
      %v2861 = vpop.f32.mrb[0].mxu0
      %v2862 = vadd.f32 0.0, %v2861
      %v2863 = vpop.f32.mrb[0].mxu0
      %v2864 = vpop.f32.mrb[0].mxu0
      %v2865 = vadd.f32 0.0, %v2864
      %v2866 = vpop.f32.mrb[0].mxu0
      %2867 = vmatprep.mubr.bf16.mxu0 %v2494
      %2868 = vmatmul.mubr.bf16.gmra.mrb[0].mxu0 %v2270
      %v2869 = vpop.f32.mrb[0].mxu0
      %v2870 = vadd.f32 0.0, %v2869
      %v2871 = vpop.f32.mrb[0].mxu0
      %v2872 = vpop.f32.mrb[0].mxu0
      %v2873 = vadd.f32 0.0, %v2872
      %v2874 = vpop.f32.mrb[0].mxu0
      %2875 = vmatprep.mubr.bf16.mxu0 %v2497
      %2876 = vmatmul.mubr.bf16.gmra.mrb[0].mxu0 %v2272
      %v2877 = vpop.f32.mrb[0].mxu0
      %v2878 = vadd.f32 0.0, %v2877
      %v2879 = vpop.f32.mrb[0].mxu0
      %v2880 = vpop.f32.mrb[0].mxu0
      %v2881 = vadd.f32 0.0, %v2880
      %v2882 = vpop.f32.mrb[0].mxu0
      %2883 = vmatprep.mubr.bf16.mxu0 %v2500
      %2884 = vmatmul.mubr.bf16.gmra.mrb[0].mxu0 %v2274
      %v2885 = vpop.f32.mrb[0].mxu0
      %v2886 = vadd.f32 0.0, %v2885
      %v2887 = vpop.f32.mrb[0].mxu0
      %v2888 = vpop.f32.mrb[0].mxu0
      %v2889 = vadd.f32 0.0, %v2888
      %v2890 = vpop.f32.mrb[0].mxu0
      %2891 = vmatprep.mubr.bf16.mxu0 %v2503
      %2892 = vmatmul.mubr.bf16.gmra.mrb[0].mxu0 %v2276
      %v2893 = vpop.f32.mrb[0].mxu0
      %v2894 = vadd.f32 0.0, %v2893
      %v2895 = vpop.f32.mrb[0].mxu0
      %v2896 = vpop.f32.mrb[0].mxu0
      %v2897 = vadd.f32 0.0, %v2896
      %v2898 = vpop.f32.mrb[0].mxu0
      %2899 = vmatprep.mubr.bf16.mxu0 %v2506
      %2900 = vmatmul.mubr.bf16.gmra.mrb[0].mxu0 %v2278
      %v2901 = vpop.f32.mrb[0].mxu0
      %v2902 = vadd.f32 0.0, %v2901
      %v2903 = vpop.f32.mrb[0].mxu0
      %v2904 = vpop.f32.mrb[0].mxu0
      %v2905 = vadd.f32 0.0, %v2904
      %v2906 = vpop.f32.mrb[0].mxu0
      %2907 = vmatprep.mubr.bf16.mxu0 %v2509
      %2908 = vmatmul.mubr.bf16.gmra.mrb[0].mxu0 %v2280
      %v2909 = vpop.f32.mrb[0].mxu0
      %v2910 = vadd.f32 0.0, %v2909
      %v2911 = vpop.f32.mrb[0].mxu0
      %v2912 = vpop.f32.mrb[0].mxu0
      %v2913 = vadd.f32 0.0, %v2912
      %v2914 = vpop.f32.mrb[0].mxu0
      %2915 = vmatprep.mubr.bf16.mxu0 %v2512
      %2916 = vmatmul.mubr.bf16.gmra.mrb[0].mxu0 %v2282
      %v2917 = vpop.f32.mrb[0].mxu0
      %v2918 = vadd.f32 0.0, %v2917
      %v2919 = vpop.f32.mrb[0].mxu0
      %v2920 = vpop.f32.mrb[0].mxu0
      %v2921 = vadd.f32 0.0, %v2920
      %v2922 = vpop.f32.mrb[0].mxu0
      %2923 = vmatprep.mubr.bf16.mxu0 %v2515
      %2924 = vmatmul.mubr.bf16.gmra.mrb[0].mxu0 %v2284
      %v2925 = vpop.f32.mrb[0].mxu0
      %v2926 = vadd.f32 0.0, %v2925
      %v2927 = vpop.f32.mrb[0].mxu0
      %v2928 = vpop.f32.mrb[0].mxu0
      %v2929 = vadd.f32 0.0, %v2928
      %v2930 = vpop.f32.mrb[0].mxu0
      %2931 = vmatprep.mubr.bf16.mxu0 %v2518
      %2932 = vmatmul.mubr.bf16.gmra.mrb[0].mxu0 %v2286
      %v2933 = vpop.f32.mrb[0].mxu0
      %v2934 = vadd.f32 0.0, %v2933
      %v2935 = vpop.f32.mrb[0].mxu0
      %v2936 = vpop.f32.mrb[0].mxu0
      %v2937 = vadd.f32 0.0, %v2936
      %v2938 = vpop.f32.mrb[0].mxu0
      %2939 = vmatprep.mubr.bf16.mxu0 %v2521
      %2940 = vmatmul.mubr.bf16.gmra.mrb[0].mxu0 %v2288
      %v2941 = vpop.f32.mrb[0].mxu0
      %v2942 = vadd.f32 0.0, %v2941
      %v2943 = vpop.f32.mrb[0].mxu0
      %v2944 = vpop.f32.mrb[0].mxu0
      %v2945 = vadd.f32 0.0, %v2944
      %v2946 = vpop.f32.mrb[0].mxu0
      %2947 = vmatprep.mubr.bf16.mxu0 %v2524
      %2948 = vmatmul.mubr.bf16.gmra.mrb[0].mxu0 %v2290
      %v2949 = vpop.f32.mrb[0].mxu0
      %v2950 = vadd.f32 0.0, %v2949
      %v2951 = vpop.f32.mrb[0].mxu0
      %v2952 = vpop.f32.mrb[0].mxu0
      %v2953 = vadd.f32 0.0, %v2952
      %v2954 = vpop.f32.mrb[0].mxu0
      %2955 = vmatprep.mubr.bf16.mxu0 %v2527
      %2956 = vmatmul.mubr.bf16.gmra.mrb[0].mxu0 %v2292
      %v2957 = vpop.f32.mrb[0].mxu0
      %v2958 = vadd.f32 0.0, %v2957
      %v2959 = vpop.f32.mrb[0].mxu0
      %v2960 = vpop.f32.mrb[0].mxu0
      %v2961 = vadd.f32 0.0, %v2960
      %v2962 = vpop.f32.mrb[0].mxu0
      %2963 = vmatprep.mubr.bf16.mxu0 %v2530
      %2964 = vmatmul.mubr.bf16.gmra.mrb[0].mxu0 %v2294
      %v2965 = vpop.f32.mrb[0].mxu0
      %v2966 = vadd.f32 0.0, %v2965
      %v2967 = vpop.f32.mrb[0].mxu0
      %v2968 = vpop.f32.mrb[0].mxu0
      %v2969 = vadd.f32 0.0, %v2968
      %v2970 = vpop.f32.mrb[0].mxu0
      %2971 = vmatprep.mubr.bf16.mxu0 %v2533
      %2972 = vmatmul.mubr.bf16.gmra.mrb[0].mxu0 %v2296
      %v2973 = vpop.f32.mrb[0].mxu0
      %v2974 = vadd.f32 0.0, %v2973
      %v2975 = vpop.f32.mrb[0].mxu0
      %v2976 = vpop.f32.mrb[0].mxu0
      %v2977 = vadd.f32 0.0, %v2976
      %v2978 = vpop.f32.mrb[0].mxu0
      %2979 = vmatprep.mubr.bf16.mxu0 %v2536
      %2980 = vmatmul.mubr.bf16.gmra.mrb[0].mxu0 %v2298
      %v2981 = vpop.f32.mrb[0].mxu0
      %v2982 = vadd.f32 0.0, %v2981
      %v2983 = vpop.f32.mrb[0].mxu0
      %v2984 = vpop.f32.mrb[0].mxu0
      %v2985 = vadd.f32 0.0, %v2984
      %v2986 = vpop.f32.mrb[0].mxu0
      %2987 = vmatprep.mubr.bf16.mxu0 %v2539
      %2988 = vmatmul.mubr.bf16.gmra.mrb[0].mxu0 %v2300
      %v2989 = vpop.f32.mrb[0].mxu0
      %v2990 = vadd.f32 0.0, %v2989
      %v2991 = vpop.f32.mrb[0].mxu0
      %v2992 = vpop.f32.mrb[0].mxu0
      %v2993 = vadd.f32 0.0, %v2992
      %v2994 = vpop.f32.mrb[0].mxu0
      %2995 = vmatprep.mubr.bf16.mxu0 %v2542
      %2996 = vmatmul.mubr.bf16.gmra.mrb[0].mxu0 %v2302
      %v2997 = vpop.f32.mrb[0].mxu0
      %v2998 = vadd.f32 0.0, %v2997
      %v2999 = vpop.f32.mrb[0].mxu0
      %v3000 = vpop.f32.mrb[0].mxu0
      %v3001 = vadd.f32 0.0, %v3000
      %v3002 = vpop.f32.mrb[0].mxu0
      %3003 = vmatprep.mubr.bf16.mxu0 %v2545
      %3004 = vmatmul.mubr.bf16.gmra.mrb[0].mxu0 %v2304
      %v3005 = vpop.f32.mrb[0].mxu0
      %v3006 = vadd.f32 0.0, %v3005
      %v3007 = vpop.f32.mrb[0].mxu0
      %v3008 = vpop.f32.mrb[0].mxu0
      %v3009 = vadd.f32 0.0, %v3008
      %v3010 = vpop.f32.mrb[0].mxu0
      %3011 = vmatprep.mubr.bf16.mxu0 %v2548
      %3012 = vmatmul.mubr.bf16.gmra.mrb[0].mxu0 %v2306
      %v3013 = vpop.f32.mrb[0].mxu0
      %v3014 = vadd.f32 0.0, %v3013
      %v3015 = vpop.f32.mrb[0].mxu0
      %v3016 = vpop.f32.mrb[0].mxu0
      %v3017 = vadd.f32 0.0, %v3016
      %v3018 = vpop.f32.mrb[0].mxu0
      %3019 = vmatprep.mubr.bf16.mxu0 %v2551
      %3020 = vmatmul.mubr.bf16.gmra.mrb[0].mxu0 %v2308
      %v3021 = vpop.f32.mrb[0].mxu0
      %v3022 = vadd.f32 0.0, %v3021
      %v3023 = vpop.f32.mrb[0].mxu0
      %v3024 = vpop.f32.mrb[0].mxu0
      %v3025 = vadd.f32 0.0, %v3024
      %v3026 = vpop.f32.mrb[0].mxu0
      %3027 = vmatprep.mubr.bf16.mxu0 %v2554
      %3028 = vmatmul.mubr.bf16.gmra.mrb[0].mxu0 %v2310
      %v3029 = vpop.f32.mrb[0].mxu0
      %v3030 = vadd.f32 0.0, %v3029
      %v3031 = vpop.f32.mrb[0].mxu0
      %v3032 = vpop.f32.mrb[0].mxu0
      %v3033 = vadd.f32 0.0, %v3032
      %v3034 = vpop.f32.mrb[0].mxu0
      %3035 = vmatprep.mubr.bf16.mxu0 %v2557
      %3036 = vmatmul.mubr.bf16.gmra.mrb[0].mxu0 %v2312
      %v3037 = vpop.f32.mrb[0].mxu0
      %v3038 = vadd.f32 0.0, %v3037
      %v3039 = vpop.f32.mrb[0].mxu0
      %v3040 = vpop.f32.mrb[0].mxu0
      %v3041 = vadd.f32 0.0, %v3040
      %v3042 = vpop.f32.mrb[0].mxu0
      %3043 = vmatprep.mubr.bf16.mxu0 %v2560
      %3044 = vmatmul.mubr.bf16.gmra.mrb[0].mxu0 %v2314
      %v3045 = vpop.f32.mrb[0].mxu0
      %v3046 = vadd.f32 0.0, %v3045
      %v3047 = vpop.f32.mrb[0].mxu0
      %v3048 = vpop.f32.mrb[0].mxu0
      %v3049 = vadd.f32 0.0, %v3048
      %v3050 = vpop.f32.mrb[0].mxu0
      %3051 = vmatprep.mubr.bf16.mxu0 %v2563
      %3052 = vmatmul.mubr.bf16.gmra.mrb[0].mxu0 %v2316
      %v3053 = vpop.f32.mrb[0].mxu0
      %v3054 = vadd.f32 0.0, %v3053
      %v3055 = vpop.f32.mrb[0].mxu0
      %v3056 = vpop.f32.mrb[0].mxu0
      %v3057 = vadd.f32 0.0, %v3056
      %v3058 = vpop.f32.mrb[0].mxu0
      %3059 = vmatprep.mubr.bf16.mxu0 %v2566
      %3060 = vmatmul.mubr.bf16.gmra.mrb[0].mxu0 %v2318
      %v3061 = vpop.f32.mrb[0].mxu0
      %v3062 = vadd.f32 0.0, %v3061
      %v3063 = vpop.f32.mrb[0].mxu0
      %v3064 = vpop.f32.mrb[0].mxu0
      %v3065 = vadd.f32 0.0, %v3064
      %v3066 = vpop.f32.mrb[0].mxu0
      %3067 = vmatprep.mubr.bf16.mxu0 %v2569
      %3068 = vmatmul.mubr.bf16.gmra.mrb[0].mxu0 %v2320
      %v3069 = vpop.f32.mrb[0].mxu0
      %v3070 = vadd.f32 0.0, %v3069
      %v3071 = vpop.f32.mrb[0].mxu0
      %v3072 = vpop.f32.mrb[0].mxu0
      %v3073 = vadd.f32 0.0, %v3072
      %v3074 = vpop.f32.mrb[0].mxu0
      %3075 = vmatprep.mubr.bf16.mxu0 %v2572
      %3076 = vmatmul.mubr.bf16.gmra.mrb[0].mxu0 %v2322
      %v3077 = vpop.f32.mrb[0].mxu0
      %v3078 = vadd.f32 0.0, %v3077
      %v3079 = vpop.f32.mrb[0].mxu0
      %v3080 = vpop.f32.mrb[0].mxu0
      %v3081 = vadd.f32 0.0, %v3080
      %v3082 = vpop.f32.mrb[0].mxu0
      %3083 = vmatprep.mubr.bf16.mxu0 %v2575
      %3084 = vmatmul.mubr.bf16.gmra.mrb[0].mxu0 %v2324
      %v3085 = vpop.f32.mrb[0].mxu0
      %v3086 = vadd.f32 0.0, %v3085
      %v3087 = vpop.f32.mrb[0].mxu0
      %v3088 = vpop.f32.mrb[0].mxu0
      %v3089 = vadd.f32 0.0, %v3088
      %v3090 = vpop.f32.mrb[0].mxu0
      %3091 = vmatprep.mubr.bf16.mxu0 %v2578
      %3092 = vmatmul.mubr.bf16.gmra.mrb[0].mxu0 %v2326
      %v3093 = vpop.f32.mrb[0].mxu0
      %v3094 = vadd.f32 0.0, %v3093
      %v3095 = vpop.f32.mrb[0].mxu0
      %v3096 = vpop.f32.mrb[0].mxu0
      %v3097 = vadd.f32 0.0, %v3096
      %v3098 = vpop.f32.mrb[0].mxu0
      %3099 = vmatprep.mubr.bf16.mxu0 %v2581
      %3100 = vmatmul.mubr.bf16.gmra.mrb[0].mxu0 %v2328
      %v3101 = vpop.f32.mrb[0].mxu0
      %v3102 = vadd.f32 0.0, %v3101
      %v3103 = vpop.f32.mrb[0].mxu0
      %v3104 = vpop.f32.mrb[0].mxu0
      %v3105 = vadd.f32 0.0, %v3104
      %v3106 = vpop.f32.mrb[0].mxu0
      %3107 = vmatprep.mubr.bf16.mxu0 %v2584
      %3108 = vmatmul.mubr.bf16.gmra.mrb[0].mxu0 %v2330
      %v3109 = vpop.f32.mrb[0].mxu0
      %v3110 = vadd.f32 0.0, %v3109
      %v3111 = vpop.f32.mrb[0].mxu0
      %v3112 = vpop.f32.mrb[0].mxu0
      %v3113 = vadd.f32 0.0, %v3112
      %v3114 = vpop.f32.mrb[0].mxu0
      %3115 = vmatprep.mubr.bf16.mxu0 %v2587
      %3116 = vmatmul.mubr.bf16.gmra.mrb[0].mxu0 %v2332
      %v3117 = vpop.f32.mrb[0].mxu0
      %v3118 = vadd.f32 0.0, %v3117
      %v3119 = vpop.f32.mrb[0].mxu0
      %v3120 = vpop.f32.mrb[0].mxu0
      %v3121 = vadd.f32 0.0, %v3120
      %v3122 = vpop.f32.mrb[0].mxu0
      %3123 = vmatprep.mubr.bf16.mxu0 %v2590
      %3124 = vmatmul.mubr.bf16.gmra.mrb[0].mxu0 %v2334
      %v3125 = vpop.f32.mrb[0].mxu0
      %v3126 = vadd.f32 0.0, %v3125
      %v3127 = vpop.f32.mrb[0].mxu0
      %v3128 = vpop.f32.mrb[0].mxu0
      %v3129 = vadd.f32 0.0, %v3128
      %v3130 = vpop.f32.mrb[0].mxu0
      %3131 = vmatprep.mubr.bf16.mxu0 %v2593
      %3132 = vmatmul.mubr.bf16.gmra.mrb[0].mxu0 %v2336
      %v3133 = vpop.f32.mrb[0].mxu0
      %v3134 = vadd.f32 0.0, %v3133
      %v3135 = vpop.f32.mrb[0].mxu0
      %v3136 = vpop.f32.mrb[0].mxu0
      %v3137 = vadd.f32 0.0, %v3136
      %v3138 = vpop.f32.mrb[0].mxu0
      %3139 = vdwg.mxu0
      %v3140 = vmax.f32 %v2630, 0.0
      %v3141 = vmax.f32 %v2633, 0.0
      %v3142 = vmax.f32 %v2638, 0.0
      %v3143 = vmax.f32 %v2641, 0.0
      %v3144 = vmax.f32 %v2646, 0.0
      %v3145 = vmax.f32 %v2649, 0.0
      %v3146 = vmax.f32 %v2654, 0.0
      %v3147 = vmax.f32 %v2657, 0.0
      %v3148 = vmax.f32 %v2662, 0.0
      %v3149 = vmax.f32 %v2665, 0.0
      %v3150 = vmax.f32 %v2670, 0.0
      %v3151 = vmax.f32 %v2673, 0.0
      %v3152 = vmax.f32 %v2678, 0.0
      %v3153 = vmax.f32 %v2681, 0.0
      %v3154 = vmax.f32 %v2686, 0.0
      %v3155 = vmax.f32 %v2689, 0.0
      %v3156 = vmax.f32 %v2694, 0.0
      %v3157 = vmax.f32 %v2697, 0.0
      %v3158 = vmax.f32 %v2702, 0.0
      %v3159 = vmax.f32 %v2705, 0.0
      %v3160 = vmax.f32 %v2710, 0.0
      %v3161 = vmax.f32 %v2713, 0.0
      %v3162 = vmax.f32 %v2718, 0.0
      %v3163 = vmax.f32 %v2721, 0.0
      %v3164 = vmax.f32 %v2726, 0.0
      %v3165 = vmax.f32 %v2729, 0.0
      %v3166 = vmax.f32 %v2734, 0.0
      %v3167 = vmax.f32 %v2737, 0.0
      %v3168 = vmax.f32 %v2742, 0.0
      %v3169 = vmax.f32 %v2745, 0.0
      %v3170 = vmax.f32 %v2750, 0.0
      %v3171 = vmax.f32 %v2753, 0.0
      %v3172 = vmax.f32 %v2758, 0.0
      %v3173 = vmax.f32 %v2761, 0.0
      %v3174 = vmax.f32 %v2766, 0.0
      %v3175 = vmax.f32 %v2769, 0.0
      %v3176 = vmax.f32 %v2774, 0.0
      %v3177 = vmax.f32 %v2777, 0.0
      %v3178 = vmax.f32 %v2782, 0.0
      %v3179 = vmax.f32 %v2785, 0.0
      %v3180 = vmax.f32 %v2790, 0.0
      %v3181 = vmax.f32 %v2793, 0.0
      %v3182 = vmax.f32 %v2798, 0.0
      %v3183 = vmax.f32 %v2801, 0.0
      %v3184 = vmax.f32 %v2806, 0.0
      %v3185 = vmax.f32 %v2809, 0.0
      %v3186 = vmax.f32 %v2814, 0.0
      %v3187 = vmax.f32 %v2817, 0.0
      %v3188 = vmax.f32 %v2822, 0.0
      %v3189 = vmax.f32 %v2825, 0.0
      %v3190 = vmax.f32 %v2830, 0.0
      %v3191 = vmax.f32 %v2833, 0.0
      %v3192 = vmax.f32 %v2838, 0.0
      %v3193 = vmax.f32 %v2841, 0.0
      %v3194 = vmax.f32 %v2846, 0.0
      %v3195 = vmax.f32 %v2849, 0.0
      %v3196 = vmax.f32 %v2854, 0.0
      %v3197 = vmax.f32 %v2857, 0.0
      %v3198 = vmax.f32 %v2862, 0.0
      %v3199 = vmax.f32 %v2865, 0.0
      %v3200 = vmax.f32 %v2870, 0.0
      %v3201 = vmax.f32 %v2873, 0.0
      %v3202 = vmax.f32 %v2878, 0.0
      %v3203 = vmax.f32 %v2881, 0.0
      %v3204 = vmax.f32 %v2886, 0.0
      %v3205 = vmax.f32 %v2889, 0.0
      %v3206 = vmax.f32 %v2894, 0.0
      %v3207 = vmax.f32 %v2897, 0.0
      %v3208 = vmax.f32 %v2902, 0.0
      %v3209 = vmax.f32 %v2905, 0.0
      %v3210 = vmax.f32 %v2910, 0.0
      %v3211 = vmax.f32 %v2913, 0.0
      %v3212 = vmax.f32 %v2918, 0.0
      %v3213 = vmax.f32 %v2921, 0.0
      %v3214 = vmax.f32 %v2926, 0.0
      %v3215 = vmax.f32 %v2929, 0.0
      %v3216 = vmax.f32 %v2934, 0.0
      %v3217 = vmax.f32 %v2937, 0.0
      %v3218 = vmax.f32 %v2942, 0.0
      %v3219 = vmax.f32 %v2945, 0.0
      %v3220 = vmax.f32 %v2950, 0.0
      %v3221 = vmax.f32 %v2953, 0.0
      %v3222 = vmax.f32 %v2958, 0.0
      %v3223 = vmax.f32 %v2961, 0.0
      %v3224 = vmax.f32 %v2966, 0.0
      %v3225 = vmax.f32 %v2969, 0.0
      %v3226 = vmax.f32 %v2974, 0.0
      %v3227 = vmax.f32 %v2977, 0.0
      %v3228 = vmax.f32 %v2982, 0.0
      %v3229 = vmax.f32 %v2985, 0.0
      %v3230 = vmax.f32 %v2990, 0.0
      %v3231 = vmax.f32 %v2993, 0.0
      %v3232 = vmax.f32 %v2998, 0.0
      %v3233 = vmax.f32 %v3001, 0.0
      %v3234 = vmax.f32 %v3006, 0.0
      %v3235 = vmax.f32 %v3009, 0.0
      %v3236 = vmax.f32 %v3014, 0.0
      %v3237 = vmax.f32 %v3017, 0.0
      %v3238 = vmax.f32 %v3022, 0.0
      %v3239 = vmax.f32 %v3025, 0.0
      %v3240 = vmax.f32 %v3030, 0.0
      %v3241 = vmax.f32 %v3033, 0.0
      %v3242 = vmax.f32 %v3038, 0.0
      %v3243 = vmax.f32 %v3041, 0.0
      %v3244 = vmax.f32 %v3046, 0.0
      %v3245 = vmax.f32 %v3049, 0.0
      %v3246 = vmax.f32 %v3054, 0.0
      %v3247 = vmax.f32 %v3057, 0.0
      %v3248 = vmax.f32 %v3062, 0.0
      %v3249 = vmax.f32 %v3065, 0.0
      %v3250 = vmax.f32 %v3070, 0.0
      %v3251 = vmax.f32 %v3073, 0.0
      %v3252 = vmax.f32 %v3078, 0.0
      %v3253 = vmax.f32 %v3081, 0.0
      %v3254 = vmax.f32 %v3086, 0.0
      %v3255 = vmax.f32 %v3089, 0.0
      %v3256 = vmax.f32 %v3094, 0.0
      %v3257 = vmax.f32 %v3097, 0.0
      %v3258 = vmax.f32 %v3102, 0.0
      %v3259 = vmax.f32 %v3105, 0.0
      %v3260 = vmax.f32 %v3110, 0.0
      %v3261 = vmax.f32 %v3113, 0.0
      %v3262 = vmax.f32 %v3118, 0.0
      %v3263 = vmax.f32 %v3121, 0.0
      %v3264 = vmax.f32 %v3126, 0.0
      %v3265 = vmax.f32 %v3129, 0.0
      %v3266 = vmax.f32 %v3134, 0.0
      %v3267 = vmax.f32 %v3137, 0.0
      %v3268 = vpack.c.bf16 %v3141, %v3140
      %v3269 = vpack.c.bf16 %v3143, %v3142
      %v3270 = vpack.c.bf16 %v3145, %v3144
      %v3271 = vpack.c.bf16 %v3147, %v3146
      %v3272 = vpack.c.bf16 %v3149, %v3148
      %v3273 = vpack.c.bf16 %v3151, %v3150
      %v3274 = vpack.c.bf16 %v3153, %v3152
      %v3275 = vpack.c.bf16 %v3155, %v3154
      %v3276 = vpack.c.bf16 %v3157, %v3156
      %v3277 = vpack.c.bf16 %v3159, %v3158
      %v3278 = vpack.c.bf16 %v3161, %v3160
      %v3279 = vpack.c.bf16 %v3163, %v3162
      %v3280 = vpack.c.bf16 %v3165, %v3164
      %v3281 = vpack.c.bf16 %v3167, %v3166
      %v3282 = vpack.c.bf16 %v3169, %v3168
      %v3283 = vpack.c.bf16 %v3171, %v3170
      %v3284 = vpack.c.bf16 %v3173, %v3172
      %v3285 = vpack.c.bf16 %v3175, %v3174
      %v3286 = vpack.c.bf16 %v3177, %v3176
      %v3287 = vpack.c.bf16 %v3179, %v3178
      %v3288 = vpack.c.bf16 %v3181, %v3180
      %v3289 = vpack.c.bf16 %v3183, %v3182
      %v3290 = vpack.c.bf16 %v3185, %v3184
      %v3291 = vpack.c.bf16 %v3187, %v3186
      %v3292 = vpack.c.bf16 %v3189, %v3188
      %v3293 = vpack.c.bf16 %v3191, %v3190
      %v3294 = vpack.c.bf16 %v3193, %v3192
      %v3295 = vpack.c.bf16 %v3195, %v3194
      %v3296 = vpack.c.bf16 %v3197, %v3196
      %v3297 = vpack.c.bf16 %v3199, %v3198
      %v3298 = vpack.c.bf16 %v3201, %v3200
      %v3299 = vpack.c.bf16 %v3203, %v3202
      %v3300 = vpack.c.bf16 %v3205, %v3204
      %v3301 = vpack.c.bf16 %v3207, %v3206
      %v3302 = vpack.c.bf16 %v3209, %v3208
      %v3303 = vpack.c.bf16 %v3211, %v3210
      %v3304 = vpack.c.bf16 %v3213, %v3212
      %v3305 = vpack.c.bf16 %v3215, %v3214
      %v3306 = vpack.c.bf16 %v3217, %v3216
      %v3307 = vpack.c.bf16 %v3219, %v3218
      %v3308 = vpack.c.bf16 %v3221, %v3220
      %v3309 = vpack.c.bf16 %v3223, %v3222
      %v3310 = vpack.c.bf16 %v3225, %v3224
      %v3311 = vpack.c.bf16 %v3227, %v3226
      %v3312 = vpack.c.bf16 %v3229, %v3228
      %v3313 = vpack.c.bf16 %v3231, %v3230
      %v3314 = vpack.c.bf16 %v3233, %v3232
      %v3315 = vpack.c.bf16 %v3235, %v3234
      %v3316 = vpack.c.bf16 %v3237, %v3236
      %v3317 = vpack.c.bf16 %v3239, %v3238
      %v3318 = vpack.c.bf16 %v3241, %v3240
      %v3319 = vpack.c.bf16 %v3243, %v3242
      %v3320 = vpack.c.bf16 %v3245, %v3244
      %v3321 = vpack.c.bf16 %v3247, %v3246
      %v3322 = vpack.c.bf16 %v3249, %v3248
      %v3323 = vpack.c.bf16 %v3251, %v3250
      %v3324 = vpack.c.bf16 %v3253, %v3252
      %v3325 = vpack.c.bf16 %v3255, %v3254
      %v3326 = vpack.c.bf16 %v3257, %v3256
      %v3327 = vpack.c.bf16 %v3259, %v3258
      %v3328 = vpack.c.bf16 %v3261, %v3260
      %v3329 = vpack.c.bf16 %v3263, %v3262
      %v3330 = vpack.c.bf16 %v3265, %v3264
      %v3331 = vpack.c.bf16 %v3267, %v3266
      %v3396 = vunpack.c.l.b16 %v3268
      %v3397 = vunpack.c.h.b16 %v3268
      %v3398 = vunpack.c.l.b16 %v3269
      %v3399 = vunpack.c.h.b16 %v3269
      %v3400 = vunpack.c.l.b16 %v3270
      %v3401 = vunpack.c.h.b16 %v3270
      %v3402 = vunpack.c.l.b16 %v3271
      %v3403 = vunpack.c.h.b16 %v3271
      %v3404 = vunpack.c.l.b16 %v3272
      %v3405 = vunpack.c.h.b16 %v3272
      %v3406 = vunpack.c.l.b16 %v3273
      %v3407 = vunpack.c.h.b16 %v3273
      %v3408 = vunpack.c.l.b16 %v3274
      %v3409 = vunpack.c.h.b16 %v3274
      %v3410 = vunpack.c.l.b16 %v3275
      %v3411 = vunpack.c.h.b16 %v3275
      %v3412 = vunpack.c.l.b16 %v3276
      %v3413 = vunpack.c.h.b16 %v3276
      %v3414 = vunpack.c.l.b16 %v3277
      %v3415 = vunpack.c.h.b16 %v3277
      %v3416 = vunpack.c.l.b16 %v3278
      %v3417 = vunpack.c.h.b16 %v3278
      %v3418 = vunpack.c.l.b16 %v3279
      %v3419 = vunpack.c.h.b16 %v3279
      %v3420 = vunpack.c.l.b16 %v3280
      %v3421 = vunpack.c.h.b16 %v3280
      %v3422 = vunpack.c.l.b16 %v3281
      %v3423 = vunpack.c.h.b16 %v3281
      %v3424 = vunpack.c.l.b16 %v3282
      %v3425 = vunpack.c.h.b16 %v3282
      %v3426 = vunpack.c.l.b16 %v3283
      %v3427 = vunpack.c.h.b16 %v3283
      %v3428 = vunpack.c.l.b16 %v3284
      %v3429 = vunpack.c.h.b16 %v3284
      %v3430 = vunpack.c.l.b16 %v3285
      %v3431 = vunpack.c.h.b16 %v3285
      %v3432 = vunpack.c.l.b16 %v3286
      %v3433 = vunpack.c.h.b16 %v3286
      %v3434 = vunpack.c.l.b16 %v3287
      %v3435 = vunpack.c.h.b16 %v3287
      %v3436 = vunpack.c.l.b16 %v3288
      %v3437 = vunpack.c.h.b16 %v3288
      %v3438 = vunpack.c.l.b16 %v3289
      %v3439 = vunpack.c.h.b16 %v3289
      %v3440 = vunpack.c.l.b16 %v3290
      %v3441 = vunpack.c.h.b16 %v3290
      %v3442 = vunpack.c.l.b16 %v3291
      %v3443 = vunpack.c.h.b16 %v3291
      %v3444 = vunpack.c.l.b16 %v3292
      %v3445 = vunpack.c.h.b16 %v3292
      %v3446 = vunpack.c.l.b16 %v3293
      %v3447 = vunpack.c.h.b16 %v3293
      %v3448 = vunpack.c.l.b16 %v3294
      %v3449 = vunpack.c.h.b16 %v3294
      %v3450 = vunpack.c.l.b16 %v3295
      %v3451 = vunpack.c.h.b16 %v3295
      %v3452 = vunpack.c.l.b16 %v3296
      %v3453 = vunpack.c.h.b16 %v3296
      %v3454 = vunpack.c.l.b16 %v3297
      %v3455 = vunpack.c.h.b16 %v3297
      %v3456 = vunpack.c.l.b16 %v3298
      %v3457 = vunpack.c.h.b16 %v3298
      %v3458 = vunpack.c.l.b16 %v3299
      %v3459 = vunpack.c.h.b16 %v3299
      %v3460 = vunpack.c.l.b16 %v3300
      %v3461 = vunpack.c.h.b16 %v3300
      %v3462 = vunpack.c.l.b16 %v3301
      %v3463 = vunpack.c.h.b16 %v3301
      %v3464 = vunpack.c.l.b16 %v3302
      %v3465 = vunpack.c.h.b16 %v3302
      %v3466 = vunpack.c.l.b16 %v3303
      %v3467 = vunpack.c.h.b16 %v3303
      %v3468 = vunpack.c.l.b16 %v3304
      %v3469 = vunpack.c.h.b16 %v3304
      %v3470 = vunpack.c.l.b16 %v3305
      %v3471 = vunpack.c.h.b16 %v3305
      %v3472 = vunpack.c.l.b16 %v3306
      %v3473 = vunpack.c.h.b16 %v3306
      %v3474 = vunpack.c.l.b16 %v3307
      %v3475 = vunpack.c.h.b16 %v3307
      %v3476 = vunpack.c.l.b16 %v3308
      %v3477 = vunpack.c.h.b16 %v3308
      %v3478 = vunpack.c.l.b16 %v3309
      %v3479 = vunpack.c.h.b16 %v3309
      %v3480 = vunpack.c.l.b16 %v3310
      %v3481 = vunpack.c.h.b16 %v3310
      %v3482 = vunpack.c.l.b16 %v3311
      %v3483 = vunpack.c.h.b16 %v3311
      %v3484 = vunpack.c.l.b16 %v3312
      %v3485 = vunpack.c.h.b16 %v3312
      %v3486 = vunpack.c.l.b16 %v3313
      %v3487 = vunpack.c.h.b16 %v3313
      %v3488 = vunpack.c.l.b16 %v3314
      %v3489 = vunpack.c.h.b16 %v3314
      %v3490 = vunpack.c.l.b16 %v3315
      %v3491 = vunpack.c.h.b16 %v3315
      %v3492 = vunpack.c.l.b16 %v3316
      %v3493 = vunpack.c.h.b16 %v3316
      %v3494 = vunpack.c.l.b16 %v3317
      %v3495 = vunpack.c.h.b16 %v3317
      %v3496 = vunpack.c.l.b16 %v3318
      %v3497 = vunpack.c.h.b16 %v3318
      %v3498 = vunpack.c.l.b16 %v3319
      %v3499 = vunpack.c.h.b16 %v3319
      %v3500 = vunpack.c.l.b16 %v3320
      %v3501 = vunpack.c.h.b16 %v3320
      %v3502 = vunpack.c.l.b16 %v3321
      %v3503 = vunpack.c.h.b16 %v3321
      %v3504 = vunpack.c.l.b16 %v3322
      %v3505 = vunpack.c.h.b16 %v3322
      %v3506 = vunpack.c.l.b16 %v3323
      %v3507 = vunpack.c.h.b16 %v3323
      %v3508 = vunpack.c.l.b16 %v3324
      %v3509 = vunpack.c.h.b16 %v3324
      %v3510 = vunpack.c.l.b16 %v3325
      %v3511 = vunpack.c.h.b16 %v3325
      %v3512 = vunpack.c.l.b16 %v3326
      %v3513 = vunpack.c.h.b16 %v3326
      %v3514 = vunpack.c.l.b16 %v3327
      %v3515 = vunpack.c.h.b16 %v3327
      %v3516 = vunpack.c.l.b16 %v3328
      %v3517 = vunpack.c.h.b16 %v3328
      %v3518 = vunpack.c.l.b16 %v3329
      %v3519 = vunpack.c.h.b16 %v3329
      %v3520 = vunpack.c.l.b16 %v3330
      %v3521 = vunpack.c.h.b16 %v3330
      %v3522 = vunpack.c.l.b16 %v3331
      %v3523 = vunpack.c.h.b16 %v3331
      %v3524 = vpack.c.b16 %v3396, %v3396
      %v3525 = vpack.c.b16 %v3397, %v3397
      %v3526 = vpack.c.b16 %v3398, %v3398
      %v3527 = vpack.c.b16 %v3399, %v3399
      %v3528 = vpack.c.b16 %v3400, %v3400
      %v3529 = vpack.c.b16 %v3401, %v3401
      %v3530 = vpack.c.b16 %v3402, %v3402
      %v3531 = vpack.c.b16 %v3403, %v3403
      %v3532 = vpack.c.b16 %v3404, %v3404
      %v3533 = vpack.c.b16 %v3405, %v3405
      %v3534 = vpack.c.b16 %v3406, %v3406
      %v3535 = vpack.c.b16 %v3407, %v3407
      %v3536 = vpack.c.b16 %v3408, %v3408
      %v3537 = vpack.c.b16 %v3409, %v3409
      %v3538 = vpack.c.b16 %v3410, %v3410
      %v3539 = vpack.c.b16 %v3411, %v3411
      %v3540 = vpack.c.b16 %v3412, %v3412
      %v3541 = vpack.c.b16 %v3413, %v3413
      %v3542 = vpack.c.b16 %v3414, %v3414
      %v3543 = vpack.c.b16 %v3415, %v3415
      %v3544 = vpack.c.b16 %v3416, %v3416
      %v3545 = vpack.c.b16 %v3417, %v3417
      %v3546 = vpack.c.b16 %v3418, %v3418
      %v3547 = vpack.c.b16 %v3419, %v3419
      %v3548 = vpack.c.b16 %v3420, %v3420
      %v3549 = vpack.c.b16 %v3421, %v3421
      %v3550 = vpack.c.b16 %v3422, %v3422
      %v3551 = vpack.c.b16 %v3423, %v3423
      %v3552 = vpack.c.b16 %v3424, %v3424
      %v3553 = vpack.c.b16 %v3425, %v3425
      %v3554 = vpack.c.b16 %v3426, %v3426
      %v3555 = vpack.c.b16 %v3427, %v3427
      %v3556 = vpack.c.b16 %v3428, %v3428
      %v3557 = vpack.c.b16 %v3429, %v3429
      %v3558 = vpack.c.b16 %v3430, %v3430
      %v3559 = vpack.c.b16 %v3431, %v3431
      %v3560 = vpack.c.b16 %v3432, %v3432
      %v3561 = vpack.c.b16 %v3433, %v3433
      %v3562 = vpack.c.b16 %v3434, %v3434
      %v3563 = vpack.c.b16 %v3435, %v3435
      %v3564 = vpack.c.b16 %v3436, %v3436
      %v3565 = vpack.c.b16 %v3437, %v3437
      %v3566 = vpack.c.b16 %v3438, %v3438
      %v3567 = vpack.c.b16 %v3439, %v3439
      %v3568 = vpack.c.b16 %v3440, %v3440
      %v3569 = vpack.c.b16 %v3441, %v3441
      %v3570 = vpack.c.b16 %v3442, %v3442
      %v3571 = vpack.c.b16 %v3443, %v3443
      %v3572 = vpack.c.b16 %v3444, %v3444
      %v3573 = vpack.c.b16 %v3445, %v3445
      %v3574 = vpack.c.b16 %v3446, %v3446
      %v3575 = vpack.c.b16 %v3447, %v3447
      %v3576 = vpack.c.b16 %v3448, %v3448
      %v3577 = vpack.c.b16 %v3449, %v3449
      %v3578 = vpack.c.b16 %v3450, %v3450
      %v3579 = vpack.c.b16 %v3451, %v3451
      %v3580 = vpack.c.b16 %v3452, %v3452
      %v3581 = vpack.c.b16 %v3453, %v3453
      %v3582 = vpack.c.b16 %v3454, %v3454
      %v3583 = vpack.c.b16 %v3455, %v3455
      %v3584 = vpack.c.b16 %v3456, %v3456
      %v3585 = vpack.c.b16 %v3457, %v3457
      %v3586 = vpack.c.b16 %v3458, %v3458
      %v3587 = vpack.c.b16 %v3459, %v3459
      %v3588 = vpack.c.b16 %v3460, %v3460
      %v3589 = vpack.c.b16 %v3461, %v3461
      %v3590 = vpack.c.b16 %v3462, %v3462
      %v3591 = vpack.c.b16 %v3463, %v3463
      %v3592 = vpack.c.b16 %v3464, %v3464
      %v3593 = vpack.c.b16 %v3465, %v3465
      %v3594 = vpack.c.b16 %v3466, %v3466
      %v3595 = vpack.c.b16 %v3467, %v3467
      %v3596 = vpack.c.b16 %v3468, %v3468
      %v3597 = vpack.c.b16 %v3469, %v3469
      %v3598 = vpack.c.b16 %v3470, %v3470
      %v3599 = vpack.c.b16 %v3471, %v3471
      %v3600 = vpack.c.b16 %v3472, %v3472
      %v3601 = vpack.c.b16 %v3473, %v3473
      %v3602 = vpack.c.b16 %v3474, %v3474
      %v3603 = vpack.c.b16 %v3475, %v3475
      %v3604 = vpack.c.b16 %v3476, %v3476
      %v3605 = vpack.c.b16 %v3477, %v3477
      %v3606 = vpack.c.b16 %v3478, %v3478
      %v3607 = vpack.c.b16 %v3479, %v3479
      %v3608 = vpack.c.b16 %v3480, %v3480
      %v3609 = vpack.c.b16 %v3481, %v3481
      %v3610 = vpack.c.b16 %v3482, %v3482
      %v3611 = vpack.c.b16 %v3483, %v3483
      %v3612 = vpack.c.b16 %v3484, %v3484
      %v3613 = vpack.c.b16 %v3485, %v3485
      %v3614 = vpack.c.b16 %v3486, %v3486
      %v3615 = vpack.c.b16 %v3487, %v3487
      %v3616 = vpack.c.b16 %v3488, %v3488
      %v3617 = vpack.c.b16 %v3489, %v3489
      %v3618 = vpack.c.b16 %v3490, %v3490
      %v3619 = vpack.c.b16 %v3491, %v3491
      %v3620 = vpack.c.b16 %v3492, %v3492
      %v3621 = vpack.c.b16 %v3493, %v3493
      %v3622 = vpack.c.b16 %v3494, %v3494
      %v3623 = vpack.c.b16 %v3495, %v3495
      %v3624 = vpack.c.b16 %v3496, %v3496
      %v3625 = vpack.c.b16 %v3497, %v3497
      %v3626 = vpack.c.b16 %v3498, %v3498
      %v3627 = vpack.c.b16 %v3499, %v3499
      %v3628 = vpack.c.b16 %v3500, %v3500
      %v3629 = vpack.c.b16 %v3501, %v3501
      %v3630 = vpack.c.b16 %v3502, %v3502
      %v3631 = vpack.c.b16 %v3503, %v3503
      %v3632 = vpack.c.b16 %v3504, %v3504
      %v3633 = vpack.c.b16 %v3505, %v3505
      %v3634 = vpack.c.b16 %v3506, %v3506
      %v3635 = vpack.c.b16 %v3507, %v3507
      %v3636 = vpack.c.b16 %v3508, %v3508
      %v3637 = vpack.c.b16 %v3509, %v3509
      %v3638 = vpack.c.b16 %v3510, %v3510
      %v3639 = vpack.c.b16 %v3511, %v3511
      %v3640 = vpack.c.b16 %v3512, %v3512
      %v3641 = vpack.c.b16 %v3513, %v3513
      %v3642 = vpack.c.b16 %v3514, %v3514
      %v3643 = vpack.c.b16 %v3515, %v3515
      %v3644 = vpack.c.b16 %v3516, %v3516
      %v3645 = vpack.c.b16 %v3517, %v3517
      %v3646 = vpack.c.b16 %v3518, %v3518
      %v3647 = vpack.c.b16 %v3519, %v3519
      %v3648 = vpack.c.b16 %v3520, %v3520
      %v3649 = vpack.c.b16 %v3521, %v3521
      %v3650 = vpack.c.b16 %v3522, %v3522
      %v3651 = vpack.c.b16 %v3523, %v3523
      %vm3780 = vcmask 322560
      %3781 = vst.msk [vmem:[%s197] sm:$0xf] %vm3780, %v3524
      %3782 = vst.msk [vmem:[%s197 + $0x4] sm:$0xf] %vm3780, %v3525
      %3783 = vst.msk [vmem:[%s197 + $0x8] sm:$0xf] %vm3780, %v3526
      %3784 = vst.msk [vmem:[%s197 + $0xc] sm:$0xf] %vm3780, %v3527
      %3785 = vst.msk [vmem:[%s197 + $0x10] sm:$0xf] %vm3780, %v3528
      %3786 = vst.msk [vmem:[%s197 + $0x14] sm:$0xf] %vm3780, %v3529
      %3787 = vst.msk [vmem:[%s197 + $0x18] sm:$0xf] %vm3780, %v3530
      %3788 = vst.msk [vmem:[%s197 + $0x1c] sm:$0xf] %vm3780, %v3531
      %3789 = vst.msk [vmem:[%s197 + $0x20] sm:$0xf] %vm3780, %v3532
      %3790 = vst.msk [vmem:[%s197 + $0x24] sm:$0xf] %vm3780, %v3533
      %3791 = vst.msk [vmem:[%s197 + $0x28] sm:$0xf] %vm3780, %v3534
      %3792 = vst.msk [vmem:[%s197 + $0x2c] sm:$0xf] %vm3780, %v3535
      %3793 = vst.msk [vmem:[%s197 + $0x30] sm:$0xf] %vm3780, %v3536
      %3794 = vst.msk [vmem:[%s197 + $0x34] sm:$0xf] %vm3780, %v3537
      %3795 = vst.msk [vmem:[%s197 + $0x38] sm:$0xf] %vm3780, %v3538
      %3796 = vst.msk [vmem:[%s197 + $0x3c] sm:$0xf] %vm3780, %v3539
      %3797 = vst.msk [vmem:[%s197 + $0x40] sm:$0xf] %vm3780, %v3540
      %3798 = vst.msk [vmem:[%s197 + $0x44] sm:$0xf] %vm3780, %v3541
      %3799 = vst.msk [vmem:[%s197 + $0x48] sm:$0xf] %vm3780, %v3542
      %3800 = vst.msk [vmem:[%s197 + $0x4c] sm:$0xf] %vm3780, %v3543
      %3801 = vst.msk [vmem:[%s197 + $0x50] sm:$0xf] %vm3780, %v3544
      %3802 = vst.msk [vmem:[%s197 + $0x54] sm:$0xf] %vm3780, %v3545
      %3803 = vst.msk [vmem:[%s197 + $0x58] sm:$0xf] %vm3780, %v3546
      %3804 = vst.msk [vmem:[%s197 + $0x5c] sm:$0xf] %vm3780, %v3547
      %3805 = vst.msk [vmem:[%s197 + $0x60] sm:$0xf] %vm3780, %v3548
      %3806 = vst.msk [vmem:[%s197 + $0x64] sm:$0xf] %vm3780, %v3549
      %3807 = vst.msk [vmem:[%s197 + $0x68] sm:$0xf] %vm3780, %v3550
      %3808 = vst.msk [vmem:[%s197 + $0x6c] sm:$0xf] %vm3780, %v3551
      %3809 = vst.msk [vmem:[%s197 + $0x70] sm:$0xf] %vm3780, %v3552
      %3810 = vst.msk [vmem:[%s197 + $0x74] sm:$0xf] %vm3780, %v3553
      %3811 = vst.msk [vmem:[%s197 + $0x78] sm:$0xf] %vm3780, %v3554
      %3812 = vst.msk [vmem:[%s197 + $0x7c] sm:$0xf] %vm3780, %v3555
      %3813 = vst.msk [vmem:[%s197 + $0x80] sm:$0xf] %vm3780, %v3556
      %3814 = vst.msk [vmem:[%s197 + $0x84] sm:$0xf] %vm3780, %v3557
      %3815 = vst.msk [vmem:[%s197 + $0x88] sm:$0xf] %vm3780, %v3558
      %3816 = vst.msk [vmem:[%s197 + $0x8c] sm:$0xf] %vm3780, %v3559
      %3817 = vst.msk [vmem:[%s197 + $0x90] sm:$0xf] %vm3780, %v3560
      %3818 = vst.msk [vmem:[%s197 + $0x94] sm:$0xf] %vm3780, %v3561
      %3819 = vst.msk [vmem:[%s197 + $0x98] sm:$0xf] %vm3780, %v3562
      %3820 = vst.msk [vmem:[%s197 + $0x9c] sm:$0xf] %vm3780, %v3563
      %3821 = vst.msk [vmem:[%s197 + $0xa0] sm:$0xf] %vm3780, %v3564
      %3822 = vst.msk [vmem:[%s197 + $0xa4] sm:$0xf] %vm3780, %v3565
      %3823 = vst.msk [vmem:[%s197 + $0xa8] sm:$0xf] %vm3780, %v3566
      %3824 = vst.msk [vmem:[%s197 + $0xac] sm:$0xf] %vm3780, %v3567
      %3825 = vst.msk [vmem:[%s197 + $0xb0] sm:$0xf] %vm3780, %v3568
      %3826 = vst.msk [vmem:[%s197 + $0xb4] sm:$0xf] %vm3780, %v3569
      %3827 = vst.msk [vmem:[%s197 + $0xb8] sm:$0xf] %vm3780, %v3570
      %3828 = vst.msk [vmem:[%s197 + $0xbc] sm:$0xf] %vm3780, %v3571
      %3829 = vst.msk [vmem:[%s197 + $0xc0] sm:$0xf] %vm3780, %v3572
      %3830 = vst.msk [vmem:[%s197 + $0xc4] sm:$0xf] %vm3780, %v3573
      %3831 = vst.msk [vmem:[%s197 + $0xc8] sm:$0xf] %vm3780, %v3574
      %3832 = vst.msk [vmem:[%s197 + $0xcc] sm:$0xf] %vm3780, %v3575
      %3833 = vst.msk [vmem:[%s197 + $0xd0] sm:$0xf] %vm3780, %v3576
      %3834 = vst.msk [vmem:[%s197 + $0xd4] sm:$0xf] %vm3780, %v3577
      %3835 = vst.msk [vmem:[%s197 + $0xd8] sm:$0xf] %vm3780, %v3578
      %3836 = vst.msk [vmem:[%s197 + $0xdc] sm:$0xf] %vm3780, %v3579
      %3837 = vst.msk [vmem:[%s197 + $0xe0] sm:$0xf] %vm3780, %v3580
      %3838 = vst.msk [vmem:[%s197 + $0xe4] sm:$0xf] %vm3780, %v3581
      %3839 = vst.msk [vmem:[%s197 + $0xe8] sm:$0xf] %vm3780, %v3582
      %3840 = vst.msk [vmem:[%s197 + $0xec] sm:$0xf] %vm3780, %v3583
      %3841 = vst.msk [vmem:[%s197 + $0xf0] sm:$0xf] %vm3780, %v3584
      %3842 = vst.msk [vmem:[%s197 + $0xf4] sm:$0xf] %vm3780, %v3585
      %3843 = vst.msk [vmem:[%s197 + $0xf8] sm:$0xf] %vm3780, %v3586
      %3844 = vst.msk [vmem:[%s197 + $0xfc] sm:$0xf] %vm3780, %v3587
      %3845 = vst.msk [vmem:[%s197 + $0x100] sm:$0xf] %vm3780, %v3588
      %3846 = vst.msk [vmem:[%s197 + $0x104] sm:$0xf] %vm3780, %v3589
      %3847 = vst.msk [vmem:[%s197 + $0x108] sm:$0xf] %vm3780, %v3590
      %3848 = vst.msk [vmem:[%s197 + $0x10c] sm:$0xf] %vm3780, %v3591
      %3849 = vst.msk [vmem:[%s197 + $0x110] sm:$0xf] %vm3780, %v3592
      %3850 = vst.msk [vmem:[%s197 + $0x114] sm:$0xf] %vm3780, %v3593
      %3851 = vst.msk [vmem:[%s197 + $0x118] sm:$0xf] %vm3780, %v3594
      %3852 = vst.msk [vmem:[%s197 + $0x11c] sm:$0xf] %vm3780, %v3595
      %3853 = vst.msk [vmem:[%s197 + $0x120] sm:$0xf] %vm3780, %v3596
      %3854 = vst.msk [vmem:[%s197 + $0x124] sm:$0xf] %vm3780, %v3597
      %3855 = vst.msk [vmem:[%s197 + $0x128] sm:$0xf] %vm3780, %v3598
      %3856 = vst.msk [vmem:[%s197 + $0x12c] sm:$0xf] %vm3780, %v3599
      %3857 = vst.msk [vmem:[%s197 + $0x130] sm:$0xf] %vm3780, %v3600
      %3858 = vst.msk [vmem:[%s197 + $0x134] sm:$0xf] %vm3780, %v3601
      %3859 = vst.msk [vmem:[%s197 + $0x138] sm:$0xf] %vm3780, %v3602
      %3860 = vst.msk [vmem:[%s197 + $0x13c] sm:$0xf] %vm3780, %v3603
      %3861 = vst.msk [vmem:[%s197 + $0x140] sm:$0xf] %vm3780, %v3604
      %3862 = vst.msk [vmem:[%s197 + $0x144] sm:$0xf] %vm3780, %v3605
      %3863 = vst.msk [vmem:[%s197 + $0x148] sm:$0xf] %vm3780, %v3606
      %3864 = vst.msk [vmem:[%s197 + $0x14c] sm:$0xf] %vm3780, %v3607
      %3865 = vst.msk [vmem:[%s197 + $0x150] sm:$0xf] %vm3780, %v3608
      %3866 = vst.msk [vmem:[%s197 + $0x154] sm:$0xf] %vm3780, %v3609
      %3867 = vst.msk [vmem:[%s197 + $0x158] sm:$0xf] %vm3780, %v3610
      %3868 = vst.msk [vmem:[%s197 + $0x15c] sm:$0xf] %vm3780, %v3611
      %3869 = vst.msk [vmem:[%s197 + $0x160] sm:$0xf] %vm3780, %v3612
      %3870 = vst.msk [vmem:[%s197 + $0x164] sm:$0xf] %vm3780, %v3613
      %3871 = vst.msk [vmem:[%s197 + $0x168] sm:$0xf] %vm3780, %v3614
      %3872 = vst.msk [vmem:[%s197 + $0x16c] sm:$0xf] %vm3780, %v3615
      %3873 = vst.msk [vmem:[%s197 + $0x170] sm:$0xf] %vm3780, %v3616
      %3874 = vst.msk [vmem:[%s197 + $0x174] sm:$0xf] %vm3780, %v3617
      %3875 = vst.msk [vmem:[%s197 + $0x178] sm:$0xf] %vm3780, %v3618
      %3876 = vst.msk [vmem:[%s197 + $0x17c] sm:$0xf] %vm3780, %v3619
      %3877 = vst.msk [vmem:[%s197 + $0x180] sm:$0xf] %vm3780, %v3620
      %3878 = vst.msk [vmem:[%s197 + $0x184] sm:$0xf] %vm3780, %v3621
      %3879 = vst.msk [vmem:[%s197 + $0x188] sm:$0xf] %vm3780, %v3622
      %3880 = vst.msk [vmem:[%s197 + $0x18c] sm:$0xf] %vm3780, %v3623
      %3881 = vst.msk [vmem:[%s197 + $0x190] sm:$0xf] %vm3780, %v3624
      %3882 = vst.msk [vmem:[%s197 + $0x194] sm:$0xf] %vm3780, %v3625
      %3883 = vst.msk [vmem:[%s197 + $0x198] sm:$0xf] %vm3780, %v3626
      %3884 = vst.msk [vmem:[%s197 + $0x19c] sm:$0xf] %vm3780, %v3627
      %3885 = vst.msk [vmem:[%s197 + $0x1a0] sm:$0xf] %vm3780, %v3628
      %3886 = vst.msk [vmem:[%s197 + $0x1a4] sm:$0xf] %vm3780, %v3629
      %3887 = vst.msk [vmem:[%s197 + $0x1a8] sm:$0xf] %vm3780, %v3630
      %3888 = vst.msk [vmem:[%s197 + $0x1ac] sm:$0xf] %vm3780, %v3631
      %3889 = vst.msk [vmem:[%s197 + $0x1b0] sm:$0xf] %vm3780, %v3632
      %3890 = vst.msk [vmem:[%s197 + $0x1b4] sm:$0xf] %vm3780, %v3633
      %3891 = vst.msk [vmem:[%s197 + $0x1b8] sm:$0xf] %vm3780, %v3634
      %3892 = vst.msk [vmem:[%s197 + $0x1bc] sm:$0xf] %vm3780, %v3635
      %3893 = vst.msk [vmem:[%s197 + $0x1c0] sm:$0xf] %vm3780, %v3636
      %3894 = vst.msk [vmem:[%s197 + $0x1c4] sm:$0xf] %vm3780, %v3637
      %3895 = vst.msk [vmem:[%s197 + $0x1c8] sm:$0xf] %vm3780, %v3638
      %3896 = vst.msk [vmem:[%s197 + $0x1cc] sm:$0xf] %vm3780, %v3639
      %3897 = vst.msk [vmem:[%s197 + $0x1d0] sm:$0xf] %vm3780, %v3640
      %3898 = vst.msk [vmem:[%s197 + $0x1d4] sm:$0xf] %vm3780, %v3641
      %3899 = vst.msk [vmem:[%s197 + $0x1d8] sm:$0xf] %vm3780, %v3642
      %3900 = vst.msk [vmem:[%s197 + $0x1dc] sm:$0xf] %vm3780, %v3643
      %3901 = vst.msk [vmem:[%s197 + $0x1e0] sm:$0xf] %vm3780, %v3644
      %3902 = vst.msk [vmem:[%s197 + $0x1e4] sm:$0xf] %vm3780, %v3645
      %3903 = vst.msk [vmem:[%s197 + $0x1e8] sm:$0xf] %vm3780, %v3646
      %3904 = vst.msk [vmem:[%s197 + $0x1ec] sm:$0xf] %vm3780, %v3647
      %3905 = vst.msk [vmem:[%s197 + $0x1f0] sm:$0xf] %vm3780, %v3648
      %3906 = vst.msk [vmem:[%s197 + $0x1f4] sm:$0xf] %vm3780, %v3649
      %3907 = vst.msk [vmem:[%s197 + $0x1f8] sm:$0xf] %vm3780, %v3650
      %3908 = vst.msk [vmem:[%s197 + $0x1fc] sm:$0xf] %vm3780, %v3651
      %p3909 = scmp.lt.s32.totalorder %s15, 3
      %s3910 = scalar_select %p3909, %s15, 3
      %s3911 = smul.addr %s3910, 128
      %s3912 = smul.addr %s3911, 4
      %s3913 = scalar_lea.vmem %s4, %s3912
      // Predicated region
      $region37: #{transformer_block.4} parent=35 // pred_check
        %p3914 = pneg %p122
      $region38: #{transformer_block.4} parent=35 // pred_check_branch
        %3916 = sbr.rel (%p3914) target = $region40
      $region39: #{transformer_block.4} parent=35 // pred_region
        _
      $region40: #{transformer_block.4} parent=35 // pred_fallthru
        _
    $region36: #{transformer_block.4} parent=5 // pred_fallthru
      _
    %p3917 = scmp.le.s32.totalorder 2, %s10
    // Predicated region
    $region41: #{transformer_block.4} parent=5 // pred_check
      %p3918 = pneg %p3917
    $region42: #{transformer_block.4} parent=5 // pred_check_branch
      %3920 = sbr.rel (%p3918) target = $region44
    $region43: #{transformer_block.4} parent=5 // pred_region
      %s3921 = ssub.s32 %s10, 2
      // Predicated region
      $region45: #{transformer_block.4} parent=43 // pred_check
        %p3922 = pneg %p128
      $region46: #{transformer_block.4} parent=43 // pred_check_branch
        %3924 = sbr.rel (%p3922) target = $region48
      $region47: #{transformer_block.4} parent=43 // pred_region
        %p3925 = scmp.lt.s32.totalorder %s16, 3
        %s3926 = scalar_select %p3925, %s16, 3
        %s3927 = smul.addr %s3926, 128
        %s3928 = smul.addr %s3927, 4
        %s3929 = scalar_lea.vmem %s4, %s3928
      $region48: #{transformer_block.4} parent=43 // pred_fallthru
        _
    $region44: #{transformer_block.4} parent=5 // pred_fallthru
      _
  $region6: #{transformer_block.4} parent=0 // loop_footer
    %s14 = sadd.s32 1, %s10
  $region7: #{transformer_block.4} parent=0 // loop_footer_branch
    %9 = sbr.rel target = $region3
  $region8: #{transformer_block.4} parent=0 // loop_exit
    _

// kernel: transformer_block.3
$region0: #{transformer_block.3}
  #allocation0 [shape = 'u32[]', space=smem, size = 0x4, offset = 0x4, fixed_abs, tag = 'smem constant byte address 0x4 - core index']
  #allocation1 [shape = 'u32[144,128]{1,0:T(1,128)}', space=vmem, size = 0x12000, scoped, tag = 'internal scratch']
  %s0 = inlined_call_operand.vmem [shape: f32[2,32,128], index: 0, kind: input, shape index: {}]
  %s1 = inlined_call_operand.vmem [shape: f32[1,128], index: 1, kind: input, shape index: {}]
  %s2 = inlined_call_operand.vmem [shape: f32[1,128], index: 2, kind: input, shape index: {}]
  %s3 = inlined_call_operand.hbm [shape: bf16[4,128,384], index: 3, kind: input, shape index: {}]
  %s4 = inlined_call_operand.vmem [shape: f32[4,1,384], index: 4, kind: input, shape index: {}]
  %s5 = inlined_call_operand.hbm [shape: bf16[4,128,128], index: 5, kind: input, shape index: {}]
  %s6 = inlined_call_operand.vmem [shape: f32[1,128], index: 6, kind: input, shape index: {}]
  %s7 = inlined_call_operand.vmem [shape: f32[1,128], index: 7, kind: input, shape index: {}]
  %s8 = inlined_call_operand.vmem [shape: f32[1,128], index: 8, kind: input, shape index: {}]
  %s9 = inlined_call_operand.hbm [shape: bf16[128,2560], index: 9, kind: input, shape index: {}]
  %s10 = inlined_call_operand.vmem [shape: f32[1,2560], index: 10, kind: input, shape index: {}]
  %s11 = inlined_call_operand.vmem [shape: f32[2,32,128], index: 11, kind: output, shape index: {0}]
  %s12 = inlined_call_operand.vmem [shape: bf16[2,32,2560], index: 12, kind: output, shape index: {1}]
  %13 = xla_tuple %s11, %s12
  %s14 = sld [smem:[#allocation0]]
  $region97: #{transformer_block.3} parent=0
    _
  %s16 = ssub.s32 1, %s14
  %s17 = scalar_select 0, %s16, %s14
  $region1: #{transformer_block.3} parent=0
    #allocation2 [shape = 'u8[393216]{0}', space=vmem, size = 0x60000, scoped, tag = 'input window, operand 3, single buffered']
    #allocation3 [shape = 's32[2]{0}', space=sflag, size = 0x8, scoped, tag = 'scoped memory for transformer_block.3']
    #allocation4 [shape = 'u8[131072]{0}', space=vmem, size = 0x20000, scoped, tag = 'input window, operand 5, single buffered']
    #allocation5 [shape = 's32[1]{0}', space=sflag, size = 0x4, scoped, tag = 'scoped memory for transformer_block.3']
    #allocation6 [shape = 'u8[655360]{0}', space=vmem, size = 0xa0000, scoped, tag = 'input window, operand 9, single buffered']
    %18 = vsyncpa [#allocation3], 0
    %19 = vsyncpa [#allocation5], 0
    loop: start=0, step=1, limit=4
    $region2: #{transformer_block.3} parent=1 // loop_pre_header
      _
    $region3: #{transformer_block.3} parent=1 // loop_header
      %s21 = sphi 0, %s25
      %p22 = scmp.ge.s32.totalorder %s21, 4
      %s31 = sphi 0, %s33
      %s34 = sphi 0, %s31
      %s35 = sphi 0, %s34
      %s51 = sphi 0, %s35
      %s55 = sphi 0, %s55
      %s57 = sphi 0, %s55
      %s58 = sphi 0, %s57
      %s72 = sphi 0, %s58
      %s76 = sphi 0, %s76
      %s78 = sphi 0, %s76
      %s79 = sphi 0, %s78
      %s93 = sphi 0, %s79
      %s97 = sphi 0, %s97
      %s99 = sphi 0, %s97
      %s100 = sphi 0, %s99
      %s114 = sphi 0, %s100
      %s118 = sphi 0, %s118
      %s120 = sphi 0, %s118
      %s121 = sphi 0, %s120
      %s135 = sphi 0, %s121
      %s139 = sphi 0, %s139
      %s141 = sphi 0, %s139
      %s142 = sphi 0, %s141
      %s156 = sphi 0, %s142
      %s160 = sphi 0, %s160
      %s162 = sphi 0, %s160
      %s163 = sphi 0, %s162
      %s177 = sphi 0, %s163
      %s181 = sphi 0, %s181
      %s183 = sphi 0, %s181
      %s184 = sphi 0, %s183
      %s198 = sphi 0, %s184
      %s202 = sphi 0, %s202
      %s204 = sphi 0, %s202
      %s205 = sphi 0, %s204
      %s219 = sphi 0, %s205
      %s223 = sphi 0, %s223
      %s225 = sphi 0, %s223
      %s226 = sphi 0, %s225
      %s240 = sphi 0, %s226
      %s244 = sphi 0, %s244
      %s246 = sphi 0, %s244
      %s247 = sphi 0, %s246
      %s261 = sphi 0, %s247
      %s267 = sphi 0, %s269
      %s270 = sphi 0, %s267
      %s271 = sphi 0, %s270
      %s287 = sphi 0, %s271
      %s293 = sphi 0, %s295
      %s296 = sphi 0, %s293
      %s297 = sphi 0, %s296
      %s313 = sphi 0, %s297
    $region4: #{transformer_block.3} parent=1 // loop_header_branch
      %24 = sbr.rel (%p22) target = $region8
    $region5: #{transformer_block.3} parent=1 // loop_body
      %s26 = ssub.s32 %s21, 1
      %s27 = ssub.s32 %s21, 2
      %s28 = sadd.s32 %s21, 1
      %s29 = ssub.s32 %s21, %s28
      %p30 = scmp.eq.s32.totalorder %s29, 0
      %s32 = sadd.s32 %s31, 1
      %s33 = scalar_select %p30, %s31, %s32
      %p36 = pneg %p30
      %p37 = scmp.eq.s32.totalorder %s21, 1
      %p38 = por %p36, %p37
      %p39 = scmp.ne.s32.totalorder %s31, %s34
      %p40 = scmp.eq.s32.totalorder %s21, 0
      %p41 = por %p39, %p40
      %p42 = scmp.ne.s32.totalorder %s31, %s34
      %p43 = scmp.eq.s32.totalorder %s26, 1
      %p44 = por %p42, %p43
      %p45 = scmp.ne.s32.totalorder %s34, %s35
      %p46 = scmp.eq.s32.totalorder %s26, 0
      %p47 = por %p45, %p46
      %p48 = scmp.ne.s32.totalorder %s34, %s35
      %p49 = scmp.eq.s32.totalorder %s27, 1
      %p50 = por %p48, %p49
      %p52 = scmp.ne.s32.totalorder %s35, %s51
      %p53 = scmp.eq.s32.totalorder %s27, 0
      %p54 = por %p52, %p53
      %s56 = sadd.s32 %s55, 1
      %p59 = scmp.eq.s32.totalorder %s21, 1
      %p60 = scmp.ne.s32.totalorder %s55, %s57
      %p61 = scmp.eq.s32.totalorder %s21, 0
      %p62 = por %p60, %p61
      %p63 = scmp.ne.s32.totalorder %s55, %s57
      %p64 = scmp.eq.s32.totalorder %s26, 1
      %p65 = por %p63, %p64
      %p66 = scmp.ne.s32.totalorder %s57, %s58
      %p67 = scmp.eq.s32.totalorder %s26, 0
      %p68 = por %p66, %p67
      %p69 = scmp.ne.s32.totalorder %s57, %s58
      %p70 = scmp.eq.s32.totalorder %s27, 1
      %p71 = por %p69, %p70
      %p73 = scmp.ne.s32.totalorder %s58, %s72
      %p74 = scmp.eq.s32.totalorder %s27, 0
      %p75 = por %p73, %p74
      %s77 = sadd.s32 %s76, 1
      %p80 = scmp.eq.s32.totalorder %s21, 1
      %p81 = scmp.ne.s32.totalorder %s76, %s78
      %p82 = scmp.eq.s32.totalorder %s21, 0
      %p83 = por %p81, %p82
      %p84 = scmp.ne.s32.totalorder %s76, %s78
      %p85 = scmp.eq.s32.totalorder %s26, 1
      %p86 = por %p84, %p85
      %p87 = scmp.ne.s32.totalorder %s78, %s79
      %p88 = scmp.eq.s32.totalorder %s26, 0
      %p89 = por %p87, %p88
      %p90 = scmp.ne.s32.totalorder %s78, %s79
      %p91 = scmp.eq.s32.totalorder %s27, 1
      %p92 = por %p90, %p91
      %p94 = scmp.ne.s32.totalorder %s79, %s93
      %p95 = scmp.eq.s32.totalorder %s27, 0
      %p96 = por %p94, %p95
      %s98 = sadd.s32 %s97, 1
      %p101 = scmp.eq.s32.totalorder %s21, 1
      %p102 = scmp.ne.s32.totalorder %s97, %s99
      %p103 = scmp.eq.s32.totalorder %s21, 0
      %p104 = por %p102, %p103
      %p105 = scmp.ne.s32.totalorder %s97, %s99
      %p106 = scmp.eq.s32.totalorder %s26, 1
      %p107 = por %p105, %p106
      %p108 = scmp.ne.s32.totalorder %s99, %s100
      %p109 = scmp.eq.s32.totalorder %s26, 0
      %p110 = por %p108, %p109
      %p111 = scmp.ne.s32.totalorder %s99, %s100
      %p112 = scmp.eq.s32.totalorder %s27, 1
      %p113 = por %p111, %p112
      %p115 = scmp.ne.s32.totalorder %s100, %s114
      %p116 = scmp.eq.s32.totalorder %s27, 0
      %p117 = por %p115, %p116
      %s119 = sadd.s32 %s118, 1
      %p122 = scmp.eq.s32.totalorder %s21, 1
      %p123 = scmp.ne.s32.totalorder %s118, %s120
      %p124 = scmp.eq.s32.totalorder %s21, 0
      %p125 = por %p123, %p124
      %p126 = scmp.ne.s32.totalorder %s118, %s120
      %p127 = scmp.eq.s32.totalorder %s26, 1
      %p128 = por %p126, %p127
      %p129 = scmp.ne.s32.totalorder %s120, %s121
      %p130 = scmp.eq.s32.totalorder %s26, 0
      %p131 = por %p129, %p130
      %p132 = scmp.ne.s32.totalorder %s120, %s121
      %p133 = scmp.eq.s32.totalorder %s27, 1
      %p134 = por %p132, %p133
      %p136 = scmp.ne.s32.totalorder %s121, %s135
      %p137 = scmp.eq.s32.totalorder %s27, 0
      %p138 = por %p136, %p137
      %s140 = sadd.s32 %s139, 1
      %p143 = scmp.eq.s32.totalorder %s21, 1
      %p144 = scmp.ne.s32.totalorder %s139, %s141
      %p145 = scmp.eq.s32.totalorder %s21, 0
      %p146 = por %p144, %p145
      %p147 = scmp.ne.s32.totalorder %s139, %s141
      %p148 = scmp.eq.s32.totalorder %s26, 1
      %p149 = por %p147, %p148
      %p150 = scmp.ne.s32.totalorder %s141, %s142
      %p151 = scmp.eq.s32.totalorder %s26, 0
      %p152 = por %p150, %p151
      %p153 = scmp.ne.s32.totalorder %s141, %s142
      %p154 = scmp.eq.s32.totalorder %s27, 1
      %p155 = por %p153, %p154
      %p157 = scmp.ne.s32.totalorder %s142, %s156
      %p158 = scmp.eq.s32.totalorder %s27, 0
      %p159 = por %p157, %p158
      %s161 = sadd.s32 %s160, 1
      %p164 = scmp.eq.s32.totalorder %s21, 1
      %p165 = scmp.ne.s32.totalorder %s160, %s162
      %p166 = scmp.eq.s32.totalorder %s21, 0
      %p167 = por %p165, %p166
      %p168 = scmp.ne.s32.totalorder %s160, %s162
      %p169 = scmp.eq.s32.totalorder %s26, 1
      %p170 = por %p168, %p169
      %p171 = scmp.ne.s32.totalorder %s162, %s163
      %p172 = scmp.eq.s32.totalorder %s26, 0
      %p173 = por %p171, %p172
      %p174 = scmp.ne.s32.totalorder %s162, %s163
      %p175 = scmp.eq.s32.totalorder %s27, 1
      %p176 = por %p174, %p175
      %p178 = scmp.ne.s32.totalorder %s163, %s177
      %p179 = scmp.eq.s32.totalorder %s27, 0
      %p180 = por %p178, %p179
      %s182 = sadd.s32 %s181, 1
      %p185 = scmp.eq.s32.totalorder %s21, 1
      %p186 = scmp.ne.s32.totalorder %s181, %s183
      %p187 = scmp.eq.s32.totalorder %s21, 0
      %p188 = por %p186, %p187
      %p189 = scmp.ne.s32.totalorder %s181, %s183
      %p190 = scmp.eq.s32.totalorder %s26, 1
      %p191 = por %p189, %p190
      %p192 = scmp.ne.s32.totalorder %s183, %s184
      %p193 = scmp.eq.s32.totalorder %s26, 0
      %p194 = por %p192, %p193
      %p195 = scmp.ne.s32.totalorder %s183, %s184
      %p196 = scmp.eq.s32.totalorder %s27, 1
      %p197 = por %p195, %p196
      %p199 = scmp.ne.s32.totalorder %s184, %s198
      %p200 = scmp.eq.s32.totalorder %s27, 0
      %p201 = por %p199, %p200
      %s203 = sadd.s32 %s202, 1
      %p206 = scmp.eq.s32.totalorder %s21, 1
      %p207 = scmp.ne.s32.totalorder %s202, %s204
      %p208 = scmp.eq.s32.totalorder %s21, 0
      %p209 = por %p207, %p208
      %p210 = scmp.ne.s32.totalorder %s202, %s204
      %p211 = scmp.eq.s32.totalorder %s26, 1
      %p212 = por %p210, %p211
      %p213 = scmp.ne.s32.totalorder %s204, %s205
      %p214 = scmp.eq.s32.totalorder %s26, 0
      %p215 = por %p213, %p214
      %p216 = scmp.ne.s32.totalorder %s204, %s205
      %p217 = scmp.eq.s32.totalorder %s27, 1
      %p218 = por %p216, %p217
      %p220 = scmp.ne.s32.totalorder %s205, %s219
      %p221 = scmp.eq.s32.totalorder %s27, 0
      %p222 = por %p220, %p221
      %s224 = sadd.s32 %s223, 1
      %p227 = scmp.eq.s32.totalorder %s21, 1
      %p228 = scmp.ne.s32.totalorder %s223, %s225
      %p229 = scmp.eq.s32.totalorder %s21, 0
      %p230 = por %p228, %p229
      %p231 = scmp.ne.s32.totalorder %s223, %s225
      %p232 = scmp.eq.s32.totalorder %s26, 1
      %p233 = por %p231, %p232
      %p234 = scmp.ne.s32.totalorder %s225, %s226
      %p235 = scmp.eq.s32.totalorder %s26, 0
      %p236 = por %p234, %p235
      %p237 = scmp.ne.s32.totalorder %s225, %s226
      %p238 = scmp.eq.s32.totalorder %s27, 1
      %p239 = por %p237, %p238
      %p241 = scmp.ne.s32.totalorder %s226, %s240
      %p242 = scmp.eq.s32.totalorder %s27, 0
      %p243 = por %p241, %p242
      %s245 = sadd.s32 %s244, 1
      %p248 = scmp.eq.s32.totalorder %s21, 1
      %p249 = scmp.ne.s32.totalorder %s244, %s246
      %p250 = scmp.eq.s32.totalorder %s21, 0
      %p251 = por %p249, %p250
      %p252 = scmp.ne.s32.totalorder %s244, %s246
      %p253 = scmp.eq.s32.totalorder %s26, 1
      %p254 = por %p252, %p253
      %p255 = scmp.ne.s32.totalorder %s246, %s247
      %p256 = scmp.eq.s32.totalorder %s26, 0
      %p257 = por %p255, %p256
      %p258 = scmp.ne.s32.totalorder %s246, %s247
      %p259 = scmp.eq.s32.totalorder %s27, 1
      %p260 = por %p258, %p259
      %p262 = scmp.ne.s32.totalorder %s247, %s261
      %p263 = scmp.eq.s32.totalorder %s27, 0
      %p264 = por %p262, %p263
      %s265 = ssub.s32 %s21, %s28
      %p266 = scmp.eq.s32.totalorder %s265, 0
      %s268 = sadd.s32 %s267, 1
      %s269 = scalar_select %p266, %s267, %s268
      %p272 = pneg %p266
      %p273 = scmp.eq.s32.totalorder %s21, 1
      %p274 = por %p272, %p273
      %p275 = scmp.ne.s32.totalorder %s267, %s270
      %p276 = scmp.eq.s32.totalorder %s21, 0
      %p277 = por %p275, %p276
      %p278 = scmp.ne.s32.totalorder %s267, %s270
      %p279 = scmp.eq.s32.totalorder %s26, 1
      %p280 = por %p278, %p279
      %p281 = scmp.ne.s32.totalorder %s270, %s271
      %p282 = scmp.eq.s32.totalorder %s26, 0
      %p283 = por %p281, %p282
      %p284 = scmp.ne.s32.totalorder %s270, %s271
      %p285 = scmp.eq.s32.totalorder %s27, 1
      %p286 = por %p284, %p285
      %p288 = scmp.ne.s32.totalorder %s271, %s287
      %p289 = scmp.eq.s32.totalorder %s27, 0
      %p290 = por %p288, %p289
      %s291 = ssub.s32 %s21, %s28
      %p292 = scmp.eq.s32.totalorder %s291, 0
      %s294 = sadd.s32 %s293, 1
      %s295 = scalar_select %p292, %s293, %s294
      %p298 = pneg %p292
      %p299 = scmp.eq.s32.totalorder %s21, 1
      %p300 = por %p298, %p299
      %p301 = scmp.ne.s32.totalorder %s293, %s296
      %p302 = scmp.eq.s32.totalorder %s21, 0
      %p303 = por %p301, %p302
      %p304 = scmp.ne.s32.totalorder %s293, %s296
      %p305 = scmp.eq.s32.totalorder %s26, 1
      %p306 = por %p304, %p305
      %p307 = scmp.ne.s32.totalorder %s296, %s297
      %p308 = scmp.eq.s32.totalorder %s26, 0
      %p309 = por %p307, %p308
      %p310 = scmp.ne.s32.totalorder %s296, %s297
      %p311 = scmp.eq.s32.totalorder %s27, 1
      %p312 = por %p310, %p311
      %p314 = scmp.ne.s32.totalorder %s297, %s313
      %p315 = scmp.eq.s32.totalorder %s27, 0
      %p316 = por %p314, %p315
      %p317 = scmp.le.s32.totalorder 1, %s21
      %p318 = scmp.lt.s32.totalorder %s21, 3
      %p319 = pnand %p317, %p318
      %p320 = pneg %p319
      // Predicated region
      $region9: #{transformer_block.3} parent=5 // pred_check
        _
      $region10: #{transformer_block.3} parent=5 // pred_check_branch
        %322 = sbr.rel (%p319) target = $region12
      $region11: #{transformer_block.3} parent=5 // pred_region
        %s323 = ssub.s32 %s21, 1
        // Predicated region
        $region13: #{transformer_block.3} parent=11 // pred_check
          %p324 = pneg %p68
        $region14: #{transformer_block.3} parent=11 // pred_check_branch
          %326 = sbr.rel (%p324) target = $region16
        $region15: #{transformer_block.3} parent=11 // pred_region
          _
        $region16: #{transformer_block.3} parent=11 // pred_fallthru
          _
        // Predicated region
        $region17: #{transformer_block.3} parent=11 // pred_check
          %p327 = pneg %p89
        $region18: #{transformer_block.3} parent=11 // pred_check_branch
          %329 = sbr.rel (%p327) target = $region20
        $region19: #{transformer_block.3} parent=11 // pred_region
          _
        $region20: #{transformer_block.3} parent=11 // pred_fallthru
          _
        // Predicated region
        $region21: #{transformer_block.3} parent=11 // pred_check
          %p330 = pneg %p110
        $region22: #{transformer_block.3} parent=11 // pred_check_branch
          %332 = sbr.rel (%p330) target = $region24
        $region23: #{transformer_block.3} parent=11 // pred_region
          %s334 = ssub.s32 12288, 12288
          %335 = vsyncadd [#allocation3], %s334
          %s336 = sshll.u32 [#allocation2], 4
          %s337 = int_to_ptr.vmem [resolvable:$true] %s336
          %342 = dma.hbm_to_vmem [thread:$0]  %s3, 12288, %s337, [#allocation3], 192, 192, 12
        $region24: #{transformer_block.3} parent=11 // pred_fallthru
          _
        // Predicated region
        $region25: #{transformer_block.3} parent=11 // pred_check
          %p343 = pneg %p131
        $region26: #{transformer_block.3} parent=11 // pred_check_branch
          %345 = sbr.rel (%p343) target = $region28
        $region27: #{transformer_block.3} parent=11 // pred_region
          _
        $region28: #{transformer_block.3} parent=11 // pred_fallthru
          _
        // Predicated region
        $region29: #{transformer_block.3} parent=11 // pred_check
          %p346 = pneg %p152
        $region30: #{transformer_block.3} parent=11 // pred_check_branch
          %348 = sbr.rel (%p346) target = $region32
        $region31: #{transformer_block.3} parent=11 // pred_region
          %s350 = ssub.s32 4096, 4096
          %351 = vsyncadd [#allocation5], %s350
          %s352 = sshll.u32 [#allocation4], 4
          %s353 = int_to_ptr.vmem [resolvable:$true] %s352
          %358 = dma.hbm_to_vmem [thread:$0]  %s5, 4096, %s353, [#allocation5], 64, 64, 4
        $region32: #{transformer_block.3} parent=11 // pred_fallthru
          _
        // Predicated region
        $region33: #{transformer_block.3} parent=11 // pred_check
          %p359 = pneg %p173
        $region34: #{transformer_block.3} parent=11 // pred_check_branch
          %361 = sbr.rel (%p359) target = $region36
        $region35: #{transformer_block.3} parent=11 // pred_region
          _
        $region36: #{transformer_block.3} parent=11 // pred_fallthru
          _
        // Predicated region
        $region37: #{transformer_block.3} parent=11 // pred_check
          %p362 = pneg %p194
        $region38: #{transformer_block.3} parent=11 // pred_check_branch
          %364 = sbr.rel (%p362) target = $region40
        $region39: #{transformer_block.3} parent=11 // pred_region
          _
        $region40: #{transformer_block.3} parent=11 // pred_fallthru
          _
        // Predicated region
        $region41: #{transformer_block.3} parent=11 // pred_check
          %p365 = pneg %p215
        $region42: #{transformer_block.3} parent=11 // pred_check_branch
          %367 = sbr.rel (%p365) target = $region44
        $region43: #{transformer_block.3} parent=11 // pred_region
          _
        $region44: #{transformer_block.3} parent=11 // pred_fallthru
          _
        // Predicated region
        $region45: #{transformer_block.3} parent=11 // pred_check
          %p368 = pneg %p236
        $region46: #{transformer_block.3} parent=11 // pred_check_branch
          %370 = sbr.rel (%p368) target = $region48
        $region47: #{transformer_block.3} parent=11 // pred_region
          %s372 = ssub.s32 20480, 20480
          %373 = vsyncadd [#allocation5], %s372
          %s374 = sshll.u32 [#allocation6], 4
          %s375 = int_to_ptr.vmem [resolvable:$true] %s374
          %380 = dma.hbm_to_vmem [thread:$0]  %s9, 20480, %s375, [#allocation5], 1280, 1280, 80
        $region48: #{transformer_block.3} parent=11 // pred_fallthru
          _
        // Predicated region
        $region49: #{transformer_block.3} parent=11 // pred_check
          %p381 = pneg %p257
        $region50: #{transformer_block.3} parent=11 // pred_check_branch
          %383 = sbr.rel (%p381) target = $region52
        $region51: #{transformer_block.3} parent=11 // pred_region
          _
        $region52: #{transformer_block.3} parent=11 // pred_fallthru
          _
      $region12: #{transformer_block.3} parent=5 // pred_fallthru
        _
      %p384 = scmp.lt.s32.totalorder %s21, 2
      // Predicated region
      $region53: #{transformer_block.3} parent=5 // pred_check
        %p385 = pneg %p384
      $region54: #{transformer_block.3} parent=5 // pred_check_branch
        %387 = sbr.rel (%p385) target = $region56
      $region55: #{transformer_block.3} parent=5 // pred_region
        // Predicated region
        $region57: #{transformer_block.3} parent=55 // pred_check
          %p388 = pneg %p41
        $region58: #{transformer_block.3} parent=55 // pred_check_branch
          %390 = sbr.rel (%p388) target = $region60
        $region59: #{transformer_block.3} parent=55 // pred_region
          %p391 = scmp.lt.s32.totalorder %s21, 1
          %s392 = scalar_select %p391, %s21, 1
          %s393 = smul.addr %s392, 4
          %s394 = smul.addr %s393, 8
          %s395 = scalar_lea.vmem %s0, %s394
        $region60: #{transformer_block.3} parent=55 // pred_fallthru
          _
      $region56: #{transformer_block.3} parent=5 // pred_fallthru
        _
      %p396 = scmp.le.s32.totalorder 1, %s21
      %p397 = scmp.lt.s32.totalorder %s21, 3
      %p398 = pnand %p396, %p397
      %p399 = pneg %p398
      // Predicated region
      $region61: #{transformer_block.3} parent=5 // pred_check
        _
      $region62: #{transformer_block.3} parent=5 // pred_check_branch
        %401 = sbr.rel (%p398) target = $region64
      $region63: #{transformer_block.3} parent=5 // pred_region
        %s402 = ssub.s32 %s21, 1
        // Predicated region
        $region65: #{transformer_block.3} parent=63 // pred_check
          %p403 = pneg %p110
        $region66: #{transformer_block.3} parent=63 // pred_check_branch
          %405 = sbr.rel (%p403) target = $region68
        $region67: #{transformer_block.3} parent=63 // pred_region
          %406 = dma.done [#allocation3], 12288
        $region68: #{transformer_block.3} parent=63 // pred_fallthru
          _
        // Predicated region
        $region69: #{transformer_block.3} parent=63 // pred_check
          %p407 = pneg %p152
        $region70: #{transformer_block.3} parent=63 // pred_check_branch
          %409 = sbr.rel (%p407) target = $region72
        $region71: #{transformer_block.3} parent=63 // pred_region
          %410 = dma.done [#allocation5], 4096
        $region72: #{transformer_block.3} parent=63 // pred_fallthru
          _
        // Predicated region
        $region73: #{transformer_block.3} parent=63 // pred_check
          %p411 = pneg %p236
        $region74: #{transformer_block.3} parent=63 // pred_check_branch
          %413 = sbr.rel (%p411) target = $region76
        $region75: #{transformer_block.3} parent=63 // pred_region
          %414 = dma.done [#allocation5], 20480
        $region76: #{transformer_block.3} parent=63 // pred_fallthru
          _
        %p415 = scmp.lt.s32.totalorder %s26, 1
        %s416 = scalar_select %p415, %s26, 1
        %s417 = smul.addr %s416, 4
        %s418 = smul.addr %s417, 8
        %s419 = scalar_lea.vmem %s0, %s418
        %p420 = pneg %p47
        %p421 = pneg %p44
        %p422 = pneg %p68
        %p423 = pneg %p65
        %p424 = pneg %p89
        %p425 = pneg %p86
        %p426 = pneg %p110
        %p427 = pneg %p107
        %p428 = pneg %p131
        %p429 = pneg %p128
        %p430 = pneg %p152
        %p431 = pneg %p149
        %p432 = pneg %p173
        %p433 = pneg %p170
        %p434 = pneg %p194
        %p435 = pneg %p191
        %p436 = pneg %p215
        %p437 = pneg %p212
        %p438 = pneg %p236
        %p439 = pneg %p233
        %p440 = pneg %p257
        %p441 = pneg %p254
        %p442 = pneg %p283
        %p443 = pneg %p280
        %p444 = scmp.lt.s32.totalorder %s26, 1
        %s445 = scalar_select %p444, %s26, 1
        %s446 = smul.addr %s445, 4
        %s447 = smul.addr %s446, 8
        %s448 = scalar_lea.vmem %s11, %s447
        %p449 = pneg %p309
        %p450 = pneg %p306
        %p451 = scmp.lt.s32.totalorder %s26, 1
        %s452 = scalar_select %p451, %s26, 1
        %s453 = smul.addr %s452, 80
        %s454 = smul.addr %s453, 4
        %s455 = scalar_lea.vmem %s12, %s454
        %p456 = scmp.lt.s32.totalorder %s26, 1
        %s457 = scalar_select %p456, %s26, 1
        %s458 = smul.addr %s457, 4
        %s459 = smul.addr %s458, 8
        %s460 = scalar_lea.vmem %s0, %s459
        %p461 = scmp.lt.s32.totalorder %s26, 1
        %s462 = scalar_select %p461, %s26, 1
        %s463 = smul.addr %s462, 4
        %s464 = smul.addr %s463, 8
        %s465 = scalar_lea.vmem %s11, %s464
        %p466 = scmp.lt.s32.totalorder %s26, 1
        %s467 = scalar_select %p466, %s26, 1
        %s468 = smul.addr %s467, 80
        %s469 = smul.addr %s468, 4
        %s470 = scalar_lea.vmem %s12, %s469
        %v472 = vld [vmem:[%s460] sm:$0xff]
        %v473 = vld [vmem:[%s460 + $0x8] sm:$0xff]
        %v474 = vld [vmem:[%s460 + $0x10] sm:$0xff]
        %v475 = vld [vmem:[%s460 + $0x18] sm:$0xff]
        %476 = vadd.xlane.f32.xlu0 %v472
        %v477 = vpop.xlane.xlu0 %476
        %478 = vadd.xlane.f32.xlu0 %v473
        %v479 = vpop.xlane.xlu0 %478
        %480 = vadd.xlane.f32.xlu0 %v474
        %v481 = vpop.xlane.xlu0 %480
        %482 = vadd.xlane.f32.xlu0 %v475
        %v483 = vpop.xlane.xlu0 %482
        %v484 = vrcp.pop 128.0
        %v485 = vmul.f32 %v477, %v484
        %v486 = vmul.f32 %v479, %v484
        %v487 = vmul.f32 %v481, %v484
        %v488 = vmul.f32 %v483, %v484
        %v489 = vsub.f32 %v472, %v485
        %v490 = vsub.f32 %v473, %v486
        %v491 = vsub.f32 %v474, %v487
        %v492 = vsub.f32 %v475, %v488
        %v493 = vmul.f32 %v489, %v489
        %v494 = vmul.f32 %v490, %v490
        %v495 = vmul.f32 %v491, %v491
        %v496 = vmul.f32 %v492, %v492
        %497 = vadd.xlane.f32.xlu0 %v493
        %v498 = vpop.xlane.xlu0 %497
        %499 = vadd.xlane.f32.xlu0 %v494
        %v500 = vpop.xlane.xlu0 %499
        %501 = vadd.xlane.f32.xlu0 %v495
        %v502 = vpop.xlane.xlu0 %501
        %503 = vadd.xlane.f32.xlu0 %v496
        %v504 = vpop.xlane.xlu0 %503
        %v505 = vmul.f32 %v498, %v484
        %v506 = vmul.f32 %v500, %v484
        %v507 = vmul.f32 %v502, %v484
        %v508 = vmul.f32 %v504, %v484
        %v509 = vadd.f32 %v505, 1e-05
        %v510 = vadd.f32 %v506, 1e-05
        %v511 = vadd.f32 %v507, 1e-05
        %v512 = vadd.f32 %v508, 1e-05
        %v513 = vrsqrt.pop %v509
        %v514 = vrsqrt.pop %v510
        %v515 = vrsqrt.pop %v511
        %v516 = vrsqrt.pop %v512
        %v517 = vmul.f32 %v489, %v513
        %v518 = vmul.f32 %v490, %v514
        %v519 = vmul.f32 %v491, %v515
        %v520 = vmul.f32 %v492, %v516
        %v521 = vld [vmem:[%s1] sm:$0x1]
        %v523 = vlaneseq
        %v524 = vshrl.u32 %v523, 7
        %v525 = vsub.s32 0, %v524
        %v526 = vrot.slane %v521, %v525
        %v528 = vmul.f32 %v517, %v526
        %v529 = vmul.f32 %v518, %v526
        %v530 = vmul.f32 %v519, %v526
        %v531 = vmul.f32 %v520, %v526
        %v532 = vld [vmem:[%s2] sm:$0x1]
        %v534 = vlaneseq
        %v535 = vshrl.u32 %v534, 7
        %v536 = vsub.s32 0, %v535
        %v537 = vrot.slane %v532, %v536
        %v539 = vadd.f32 %v528, %v537
        %v540 = vadd.f32 %v529, %v537
        %v541 = vadd.f32 %v530, %v537
        %v542 = vadd.f32 %v531, %v537
        %v543 = vpack.c.bf16 %v540, %v539
        %v544 = vpack.c.bf16 %v542, %v541
        %v545 = vld [vmem:[#allocation2] sm:$0xff]
        %v546 = vld [vmem:[#allocation2 + $0x8] sm:$0xf]
        %v547 = vld [vmem:[#allocation2 + $0xc] sm:$0xff]
        %v548 = vld [vmem:[#allocation2 + $0x14] sm:$0xf]
        %v549 = vld [vmem:[#allocation2 + $0x18] sm:$0xff]
        %v550 = vld [vmem:[#allocation2 + $0x20] sm:$0xf]
        %v551 = vld [vmem:[#allocation2 + $0x24] sm:$0xff]
        %v552 = vld [vmem:[#allocation2 + $0x2c] sm:$0xf]
        %v553 = vld [vmem:[#allocation2 + $0x30] sm:$0xff]
        %v554 = vld [vmem:[#allocation2 + $0x38] sm:$0xf]
        %v555 = vld [vmem:[#allocation2 + $0x3c] sm:$0xff]
        %v556 = vld [vmem:[#allocation2 + $0x44] sm:$0xf]
        %v557 = vld [vmem:[#allocation2 + $0x48] sm:$0xff]
        %v558 = vld [vmem:[#allocation2 + $0x50] sm:$0xf]
        %v559 = vld [vmem:[#allocation2 + $0x54] sm:$0xff]
        %v560 = vld [vmem:[#allocation2 + $0x5c] sm:$0xf]
        %v561 = vld [vmem:[#allocation2 + $0x60] sm:$0xff]
        %v562 = vld [vmem:[#allocation2 + $0x68] sm:$0xf]
        %v563 = vld [vmem:[#allocation2 + $0x6c] sm:$0xff]
        %v564 = vld [vmem:[#allocation2 + $0x74] sm:$0xf]
        %v565 = vld [vmem:[#allocation2 + $0x78] sm:$0xff]
        %v566 = vld [vmem:[#allocation2 + $0x80] sm:$0xf]
        %v567 = vld [vmem:[#allocation2 + $0x84] sm:$0xff]
        %v568 = vld [vmem:[#allocation2 + $0x8c] sm:$0xf]
        %v569 = vld [vmem:[#allocation2 + $0x90] sm:$0xff]
        %v570 = vld [vmem:[#allocation2 + $0x98] sm:$0xf]
        %v571 = vld [vmem:[#allocation2 + $0x9c] sm:$0xff]
        %v572 = vld [vmem:[#allocation2 + $0xa4] sm:$0xf]
        %v573 = vld [vmem:[#allocation2 + $0xa8] sm:$0xff]
        %v574 = vld [vmem:[#allocation2 + $0xb0] sm:$0xf]
        %v575 = vld [vmem:[#allocation2 + $0xb4] sm:$0xff]
        %v576 = vld [vmem:[#allocation2 + $0xbc] sm:$0xf]
        %v577 = vld [vmem:[%s4] sm:$0x7]
        %v579 = vlaneseq
        %v580 = vshrl.u32 %v579, 7
        %v581 = vsub.s32 0, %v580
        %v582 = vrot.slane %v577, %v581
        %v583 = vlaneseq
        %v584 = vshrl.u32 %v583, 7
        %v585 = vsub.s32 1, %v584
        %v586 = vrot.slane %v577, %v585
        %v587 = vlaneseq
        %v588 = vshrl.u32 %v587, 7
        %v589 = vsub.s32 2, %v588
        %v590 = vrot.slane %v577, %v589
        %v626 = vunpack.c.l.b16 %v545
        %v627 = vunpack.c.h.b16 %v545
        %v628 = vunpack.c.l.b16 %v546
        %v629 = vunpack.c.l.b16 %v547
        %v630 = vunpack.c.h.b16 %v547
        %v631 = vunpack.c.l.b16 %v548
        %v632 = vunpack.c.l.b16 %v549
        %v633 = vunpack.c.h.b16 %v549
        %v634 = vunpack.c.l.b16 %v550
        %v635 = vunpack.c.l.b16 %v551
        %v636 = vunpack.c.h.b16 %v551
        %v637 = vunpack.c.l.b16 %v552
        %v638 = vunpack.c.l.b16 %v553
        %v639 = vunpack.c.h.b16 %v553
        %v640 = vunpack.c.l.b16 %v554
        %v641 = vunpack.c.l.b16 %v555
        %v642 = vunpack.c.h.b16 %v555
        %v643 = vunpack.c.l.b16 %v556
        %v644 = vunpack.c.l.b16 %v557
        %v645 = vunpack.c.h.b16 %v557
        %v646 = vunpack.c.l.b16 %v558
        %v647 = vunpack.c.l.b16 %v559
        %v648 = vunpack.c.h.b16 %v559
        %v649 = vunpack.c.l.b16 %v560
        %v650 = vunpack.c.l.b16 %v561
        %v651 = vunpack.c.h.b16 %v561
        %v652 = vunpack.c.l.b16 %v562
        %v653 = vunpack.c.l.b16 %v563
        %v654 = vunpack.c.h.b16 %v563
        %v655 = vunpack.c.l.b16 %v564
        %v656 = vunpack.c.l.b16 %v565
        %v657 = vunpack.c.h.b16 %v565
        %v658 = vunpack.c.l.b16 %v566
        %v659 = vunpack.c.l.b16 %v567
        %v660 = vunpack.c.h.b16 %v567
        %v661 = vunpack.c.l.b16 %v568
        %v662 = vunpack.c.l.b16 %v569
        %v663 = vunpack.c.h.b16 %v569
        %v664 = vunpack.c.l.b16 %v570
        %v665 = vunpack.c.l.b16 %v571
        %v666 = vunpack.c.h.b16 %v571
        %v667 = vunpack.c.l.b16 %v572
        %v668 = vunpack.c.l.b16 %v573
        %v669 = vunpack.c.h.b16 %v573
        %v670 = vunpack.c.l.b16 %v574
        %v671 = vunpack.c.l.b16 %v575
        %v672 = vunpack.c.h.b16 %v575
        %v673 = vunpack.c.l.b16 %v576
        %v674 = vpack.c.b16 %v629, %v626
        %v675 = vpack.c.b16 %v630, %v627
        %v676 = vpack.c.b16 %v631, %v628
        %v677 = vpack.c.b16 %v635, %v632
        %v678 = vpack.c.b16 %v636, %v633
        %v679 = vpack.c.b16 %v637, %v634
        %v680 = vpack.c.b16 %v641, %v638
        %v681 = vpack.c.b16 %v642, %v639
        %v682 = vpack.c.b16 %v643, %v640
        %v683 = vpack.c.b16 %v647, %v644
        %v684 = vpack.c.b16 %v648, %v645
        %v685 = vpack.c.b16 %v649, %v646
        %v686 = vpack.c.b16 %v653, %v650
        %v687 = vpack.c.b16 %v654, %v651
        %v688 = vpack.c.b16 %v655, %v652
        %v689 = vpack.c.b16 %v659, %v656
        %v690 = vpack.c.b16 %v660, %v657
        %v691 = vpack.c.b16 %v661, %v658
        %v692 = vpack.c.b16 %v665, %v662
        %v693 = vpack.c.b16 %v666, %v663
        %v694 = vpack.c.b16 %v667, %v664
        %v695 = vpack.c.b16 %v671, %v668
        %v696 = vpack.c.b16 %v672, %v669
        %v697 = vpack.c.b16 %v673, %v670
        %722 = vmatprep.subr.bf16.mxu0 %v675
        %723 = vmatpush1.bf16.msra.mxu0 %v674
        %724 = vmatprep.subr.bf16.mxu0 %v678
        %725 = vmatpush1.bf16.msra.mxu0 %v677
        %726 = vmatprep.subr.bf16.mxu0 %v681
        %727 = vmatpush1.bf16.msra.mxu0 %v680
        %728 = vmatprep.subr.bf16.mxu0 %v684
        %729 = vmatpush1.bf16.msra.mxu0 %v683
        %730 = vmatprep.subr.bf16.mxu0 %v687
        %731 = vmatpush1.bf16.msra.mxu0 %v686
        %732 = vmatprep.subr.bf16.mxu0 %v690
        %733 = vmatpush1.bf16.msra.mxu0 %v689
        %734 = vmatprep.subr.bf16.mxu0 %v693
        %735 = vmatpush1.bf16.msra.mxu0 %v692
        %736 = vmatprep.subr.bf16.mxu0 %v696
        %737 = vmatpush1.bf16.msra.mxu0 %v695
        %738 = vmatprep.subr.bf16.mxu0 0
        %739 = vmatpush1.bf16.msra.mxu0 0
        %740 = vmatprep.subr.bf16.mxu0 0
        %741 = vmatpush1.bf16.msra.mxu0 0
        %742 = vmatprep.subr.bf16.mxu0 0
        %743 = vmatpush1.bf16.msra.mxu0 0
        %744 = vmatprep.subr.bf16.mxu0 0
        %745 = vmatpush1.bf16.msra.mxu0 0
        %746 = vmatprep.subr.bf16.mxu0 0
        %747 = vmatpush1.bf16.msra.mxu0 0
        %748 = vmatprep.subr.bf16.mxu0 0
        %749 = vmatpush1.bf16.msra.mxu0 0
        %750 = vmatprep.subr.bf16.mxu0 0
        %751 = vmatpush1.bf16.msra.mxu0 0
        %752 = vmatprep.subr.bf16.mxu0 0
        %753 = vmatpush1.bf16.msra.mxu0 0
        %754 = vmatprep.mubr.bf16.mxu0 0
        %755 = vmatmul.mubr.bf16.gmra.mrb[0].mxu0 %v543
        %v756 = vpop.f32.mrb[0].mxu0
        %v757 = vadd.f32 %v582, %v756
        %v758 = vpop.f32.mrb[0].mxu0
        %v759 = vadd.f32 %v586, %v758
        %v760 = vpop.f32.mrb[0].mxu0
        %v761 = vadd.f32 %v582, %v760
        %v762 = vpop.f32.mrb[0].mxu0
        %v763 = vadd.f32 %v586, %v762
        %764 = vmatprep.mubr.bf16.mxu0 0
        %765 = vmatmul.mubr.bf16.gmra.mrb[0].mxu0 %v544
        %v766 = vpop.f32.mrb[0].mxu0
        %v767 = vadd.f32 %v582, %v766
        %v768 = vpop.f32.mrb[0].mxu0
        %v769 = vadd.f32 %v586, %v768
        %v770 = vpop.f32.mrb[0].mxu0
        %v771 = vadd.f32 %v582, %v770
        %v772 = vpop.f32.mrb[0].mxu0
        %v773 = vadd.f32 %v586, %v772
        %774 = vdwg.mxu0
        %775 = vmatprep.subr.bf16.mxu0 0
        %776 = vmatpush1.bf16.msra.mxu0 %v676
        %777 = vmatprep.subr.bf16.mxu0 0
        %778 = vmatpush1.bf16.msra.mxu0 %v679
        %779 = vmatprep.subr.bf16.mxu0 0
        %780 = vmatpush1.bf16.msra.mxu0 %v682
        %781 = vmatprep.subr.bf16.mxu0 0
        %782 = vmatpush1.bf16.msra.mxu0 %v685
        %783 = vmatprep.subr.bf16.mxu0 0
        %784 = vmatpush1.bf16.msra.mxu0 %v688
        %785 = vmatprep.subr.bf16.mxu0 0
        %786 = vmatpush1.bf16.msra.mxu0 %v691
        %787 = vmatprep.subr.bf16.mxu0 0
        %788 = vmatpush1.bf16.msra.mxu0 %v694
        %789 = vmatprep.subr.bf16.mxu0 0
        %790 = vmatpush1.bf16.msra.mxu0 %v697
        %791 = vmatprep.subr.bf16.mxu0 0
        %792 = vmatpush1.bf16.msra.mxu0 0
        %793 = vmatprep.subr.bf16.mxu0 0
        %794 = vmatpush1.bf16.msra.mxu0 0
        %795 = vmatprep.subr.bf16.mxu0 0
        %796 = vmatpush1.bf16.msra.mxu0 0
        %797 = vmatprep.subr.bf16.mxu0 0
        %798 = vmatpush1.bf16.msra.mxu0 0
        %799 = vmatprep.subr.bf16.mxu0 0
        %800 = vmatpush1.bf16.msra.mxu0 0
        %801 = vmatprep.subr.bf16.mxu0 0
        %802 = vmatpush1.bf16.msra.mxu0 0
        %803 = vmatprep.subr.bf16.mxu0 0
        %804 = vmatpush1.bf16.msra.mxu0 0
        %805 = vmatprep.subr.bf16.mxu0 0
        %806 = vmatpush1.bf16.msra.mxu0 0
        %807 = vmatprep.mubr.bf16.mxu0 0
        %808 = vmatmul.mubr.bf16.gmra.mrb[0].mxu0 %v543
        %v809 = vpop.f32.mrb[0].mxu0
        %v810 = vadd.f32 %v590, %v809
        %v811 = vpop.f32.mrb[0].mxu0
        %v812 = vpop.f32.mrb[0].mxu0
        %v813 = vadd.f32 %v590, %v812
        %v814 = vpop.f32.mrb[0].mxu0
        %815 = vmatprep.mubr.bf16.mxu0 0
        %816 = vmatmul.mubr.bf16.gmra.mrb[0].mxu0 %v544
        %v817 = vpop.f32.mrb[0].mxu0
        %v818 = vadd.f32 %v590, %v817
        %v819 = vpop.f32.mrb[0].mxu0
        %v820 = vpop.f32.mrb[0].mxu0
        %v821 = vadd.f32 %v590, %v820
        %v822 = vpop.f32.mrb[0].mxu0
        %823 = vdwg.mxu0
        %v824 = vpack.c.bf16 %v761, %v757
        %v825 = vpack.c.bf16 %v771, %v767
        %v826 = vpack.c.bf16 %v763, %v759
        %v827 = vpack.c.bf16 %v773, %v769
        %828 = vmatprep.subr.bf16.mxu0 0
        %829 = vmatpush1.bf16.xpose.msra.mxu0 %v826
        %830 = vmatprep.subr.bf16.mxu0 0
        %831 = vmatpush1.bf16.xpose.msra.mxu0 %v827
        %832 = vmatprep.subr.bf16.mxu0 0
        %833 = vmatpush1.bf16.xpose.msra.mxu0 0
        %834 = vmatprep.subr.bf16.mxu0 0
        %835 = vmatpush1.bf16.xpose.msra.mxu0 0
        %836 = vmatprep.subr.bf16.mxu0 0
        %837 = vmatpush1.bf16.xpose.msra.mxu0 0
        %838 = vmatprep.subr.bf16.mxu0 0
        %839 = vmatpush1.bf16.xpose.msra.mxu0 0
        %840 = vmatprep.subr.bf16.mxu0 0
        %841 = vmatpush1.bf16.xpose.msra.mxu0 0
        %842 = vmatprep.subr.bf16.mxu0 0
        %843 = vmatpush1.bf16.xpose.msra.mxu0 0
        %844 = vmatprep.subr.bf16.mxu0 0
        %845 = vmatpush1.bf16.xpose.msra.mxu0 0
        %846 = vmatprep.subr.bf16.mxu0 0
        %847 = vmatpush1.bf16.xpose.msra.mxu0 0
        %848 = vmatprep.subr.bf16.mxu0 0
        %849 = vmatpush1.bf16.xpose.msra.mxu0 0
        %850 = vmatprep.subr.bf16.mxu0 0
        %851 = vmatpush1.bf16.xpose.msra.mxu0 0
        %852 = vmatprep.subr.bf16.mxu0 0
        %853 = vmatpush1.bf16.xpose.msra.mxu0 0
        %854 = vmatprep.subr.bf16.mxu0 0
        %855 = vmatpush1.bf16.xpose.msra.mxu0 0
        %856 = vmatprep.subr.bf16.mxu0 0
        %857 = vmatpush1.bf16.xpose.msra.mxu0 0
        %858 = vmatprep.subr.bf16.mxu0 0
        %859 = vmatpush1.bf16.xpose.msra.mxu0 0
        %860 = vmatprep.mubr.bf16.mxu0 0
        %861 = vmatmul.mubr.bf16.gmra.mrb[0].mxu0 %v824
        %v862 = vpop.f32.mrb[0].mxu0
        %v863 = vadd.f32 0.0, %v862
        %v864 = vpop.f32.mrb[0].mxu0
        %v865 = vpop.f32.mrb[0].mxu0
        %v866 = vadd.f32 0.0, %v865
        %v867 = vpop.f32.mrb[0].mxu0
        %868 = vmatprep.mubr.bf16.mxu0 0
        %869 = vmatmul.mubr.bf16.gmra.mrb[0].mxu0 %v825
        %v870 = vpop.f32.mrb[0].mxu0
        %v871 = vadd.f32 0.0, %v870
        %v872 = vpop.f32.mrb[0].mxu0
        %v873 = vpop.f32.mrb[0].mxu0
        %v874 = vadd.f32 0.0, %v873
        %v875 = vpop.f32.mrb[0].mxu0
        %876 = vdwg.mxu0
        %v877 = vmul.f32 %v863, 0.17677669
        %v878 = vmul.f32 %v866, 0.17677669
        %v879 = vmul.f32 %v871, 0.17677669
        %v880 = vmul.f32 %v874, 0.17677669
        %vm881 = vcmask 261120
        %v882 = vsel %vm881, %v877, -inf
        %883 = vmax.xlane.f32.xlu0 %v882
        %v884 = vpop.xlane.xlu0 %883
        %v885 = vsel %vm881, %v878, -inf
        %886 = vmax.xlane.f32.xlu0 %v885
        %v887 = vpop.xlane.xlu0 %886
        %v888 = vsel %vm881, %v879, -inf
        %889 = vmax.xlane.f32.xlu0 %v888
        %v890 = vpop.xlane.xlu0 %889
        %v891 = vsel %vm881, %v880, -inf
        %892 = vmax.xlane.f32.xlu0 %v891
        %v893 = vpop.xlane.xlu0 %892
        %v894 = vsub.f32 %v877, %v884
        %v895 = vsub.f32 %v878, %v887
        %v896 = vsub.f32 %v879, %v890
        %v897 = vsub.f32 %v880, %v893
        %v898 = vmul.f32 %v894, 1.442695
        %v899 = vpow.pop %v898
        %v900 = vmul.f32 %v895, 1.442695
        %v901 = vpow.pop %v900
        %v902 = vmul.f32 %v896, 1.442695
        %v903 = vpow.pop %v902
        %v904 = vmul.f32 %v897, 1.442695
        %v905 = vpow.pop %v904
        %v906 = vsel %vm881, %v899, 0.0
        %907 = vadd.xlane.f32.xlu0 %v906
        %v908 = vpop.xlane.xlu0 %907
        %v909 = vsel %vm881, %v901, 0.0
        %910 = vadd.xlane.f32.xlu0 %v909
        %v911 = vpop.xlane.xlu0 %910
        %v912 = vsel %vm881, %v903, 0.0
        %913 = vadd.xlane.f32.xlu0 %v912
        %v914 = vpop.xlane.xlu0 %913
        %v915 = vsel %vm881, %v905, 0.0
        %916 = vadd.xlane.f32.xlu0 %v915
        %v917 = vpop.xlane.xlu0 %916
        %v918 = vrcp.pop %v908
        %v919 = vrcp.pop %v911
        %v920 = vrcp.pop %v914
        %v921 = vrcp.pop %v917
        %v922 = vmul.f32 %v899, %v918
        %v923 = vmul.f32 %v901, %v919
        %v924 = vmul.f32 %v903, %v920
        %v925 = vmul.f32 %v905, %v921
        %v926 = vpack.c.bf16 %v923, %v922
        %v927 = vpack.c.bf16 %v925, %v924
        %v928 = vpack.c.bf16 %v813, %v810
        %v929 = vpack.c.bf16 %v821, %v818
        %v931 = vsel %vm881, %v926, 0
        %v934 = vsel %vm881, %v927, 0
        %936 = vmatprep.subr.bf16.mxu0 0
        %937 = vmatpush1.bf16.msra.mxu0 %v928
        %938 = vmatprep.subr.bf16.mxu0 0
        %939 = vmatpush1.bf16.msra.mxu0 %v929
        %940 = vmatprep.subr.bf16.mxu0 0
        %941 = vmatpush1.bf16.msra.mxu0 0
        %942 = vmatprep.subr.bf16.mxu0 0
        %943 = vmatpush1.bf16.msra.mxu0 0
        %944 = vmatprep.subr.bf16.mxu0 0
        %945 = vmatpush1.bf16.msra.mxu0 0
        %946 = vmatprep.subr.bf16.mxu0 0
        %947 = vmatpush1.bf16.msra.mxu0 0
        %948 = vmatprep.subr.bf16.mxu0 0
        %949 = vmatpush1.bf16.msra.mxu0 0
        %950 = vmatprep.subr.bf16.mxu0 0
        %951 = vmatpush1.bf16.msra.mxu0 0
        %952 = vmatprep.subr.bf16.mxu0 0
        %953 = vmatpush1.bf16.msra.mxu0 0
        %954 = vmatprep.subr.bf16.mxu0 0
        %955 = vmatpush1.bf16.msra.mxu0 0
        %956 = vmatprep.subr.bf16.mxu0 0
        %957 = vmatpush1.bf16.msra.mxu0 0
        %958 = vmatprep.subr.bf16.mxu0 0
        %959 = vmatpush1.bf16.msra.mxu0 0
        %960 = vmatprep.subr.bf16.mxu0 0
        %961 = vmatpush1.bf16.msra.mxu0 0
        %962 = vmatprep.subr.bf16.mxu0 0
        %963 = vmatpush1.bf16.msra.mxu0 0
        %964 = vmatprep.subr.bf16.mxu0 0
        %965 = vmatpush1.bf16.msra.mxu0 0
        %966 = vmatprep.subr.bf16.mxu0 0
        %967 = vmatpush1.bf16.msra.mxu0 0
        %968 = vmatprep.mubr.bf16.mxu0 0
        %969 = vmatmul.mubr.bf16.gmra.mrb[0].mxu0 %v931
        %v970 = vpop.f32.mrb[0].mxu0
        %v971 = vadd.f32 0.0, %v970
        %v972 = vpop.f32.mrb[0].mxu0
        %v973 = vpop.f32.mrb[0].mxu0
        %v974 = vadd.f32 0.0, %v973
        %v975 = vpop.f32.mrb[0].mxu0
        %976 = vmatprep.mubr.bf16.mxu0 0
        %977 = vmatmul.mubr.bf16.gmra.mrb[0].mxu0 %v934
        %v978 = vpop.f32.mrb[0].mxu0
        %v979 = vadd.f32 0.0, %v978
        %v980 = vpop.f32.mrb[0].mxu0
        %v981 = vpop.f32.mrb[0].mxu0
        %v982 = vadd.f32 0.0, %v981
        %v983 = vpop.f32.mrb[0].mxu0
        %984 = vdwg.mxu0
        %v985 = vpack.c.bf16 %v974, %v971
        %v986 = vpack.c.bf16 %v982, %v979
        %v987 = vld [vmem:[#allocation4] sm:$0xf]
        %v988 = vld [vmem:[#allocation4 + $0x4] sm:$0xf]
        %v989 = vld [vmem:[#allocation4 + $0x8] sm:$0xf]
        %v990 = vld [vmem:[#allocation4 + $0xc] sm:$0xf]
        %v991 = vld [vmem:[#allocation4 + $0x10] sm:$0xf]
        %v992 = vld [vmem:[#allocation4 + $0x14] sm:$0xf]
        %v993 = vld [vmem:[#allocation4 + $0x18] sm:$0xf]
        %v994 = vld [vmem:[#allocation4 + $0x1c] sm:$0xf]
        %v995 = vld [vmem:[#allocation4 + $0x20] sm:$0xf]
        %v996 = vld [vmem:[#allocation4 + $0x24] sm:$0xf]
        %v997 = vld [vmem:[#allocation4 + $0x28] sm:$0xf]
        %v998 = vld [vmem:[#allocation4 + $0x2c] sm:$0xf]
        %v999 = vld [vmem:[#allocation4 + $0x30] sm:$0xf]
        %v1000 = vld [vmem:[#allocation4 + $0x34] sm:$0xf]
        %v1001 = vld [vmem:[#allocation4 + $0x38] sm:$0xf]
        %v1002 = vld [vmem:[#allocation4 + $0x3c] sm:$0xf]
        %s1003 = scalar_lea.vmem [#allocation2], 192
        %v1004 = vld [vmem:[%s1003] sm:$0xff]
        %v1005 = vld [vmem:[%s1003 + $0x8] sm:$0xf]
        %v1006 = vld [vmem:[%s1003 + $0xc] sm:$0xff]
        %v1007 = vld [vmem:[%s1003 + $0x14] sm:$0xf]
        %v1008 = vld [vmem:[%s1003 + $0x18] sm:$0xff]
        %v1009 = vld [vmem:[%s1003 + $0x20] sm:$0xf]
        %v1010 = vld [vmem:[%s1003 + $0x24] sm:$0xff]
        %v1011 = vld [vmem:[%s1003 + $0x2c] sm:$0xf]
        %v1012 = vld [vmem:[%s1003 + $0x30] sm:$0xff]
        %v1013 = vld [vmem:[%s1003 + $0x38] sm:$0xf]
        %v1014 = vld [vmem:[%s1003 + $0x3c] sm:$0xff]
        %v1015 = vld [vmem:[%s1003 + $0x44] sm:$0xf]
        %v1016 = vld [vmem:[%s1003 + $0x48] sm:$0xff]
        %v1017 = vld [vmem:[%s1003 + $0x50] sm:$0xf]
        %v1018 = vld [vmem:[%s1003 + $0x54] sm:$0xff]
        %v1019 = vld [vmem:[%s1003 + $0x5c] sm:$0xf]
        %v1020 = vld [vmem:[%s1003 + $0x60] sm:$0xff]
        %v1021 = vld [vmem:[%s1003 + $0x68] sm:$0xf]
        %v1022 = vld [vmem:[%s1003 + $0x6c] sm:$0xff]
        %v1023 = vld [vmem:[%s1003 + $0x74] sm:$0xf]
        %v1024 = vld [vmem:[%s1003 + $0x78] sm:$0xff]
        %v1025 = vld [vmem:[%s1003 + $0x80] sm:$0xf]
        %v1026 = vld [vmem:[%s1003 + $0x84] sm:$0xff]
        %v1027 = vld [vmem:[%s1003 + $0x8c] sm:$0xf]
        %v1028 = vld [vmem:[%s1003 + $0x90] sm:$0xff]
        %v1029 = vld [vmem:[%s1003 + $0x98] sm:$0xf]
        %v1030 = vld [vmem:[%s1003 + $0x9c] sm:$0xff]
        %v1031 = vld [vmem:[%s1003 + $0xa4] sm:$0xf]
        %v1032 = vld [vmem:[%s1003 + $0xa8] sm:$0xff]
        %v1033 = vld [vmem:[%s1003 + $0xb0] sm:$0xf]
        %v1034 = vld [vmem:[%s1003 + $0xb4] sm:$0xff]
        %v1035 = vld [vmem:[%s1003 + $0xbc] sm:$0xf]
        %s1036 = scalar_lea.vmem %s4, 3
        %v1037 = vld [vmem:[%s1036] sm:$0x7]
        %v1039 = vlaneseq
        %v1040 = vshrl.u32 %v1039, 7
        %v1041 = vsub.s32 0, %v1040
        %v1042 = vrot.slane %v1037, %v1041
        %v1043 = vlaneseq
        %v1044 = vshrl.u32 %v1043, 7
        %v1045 = vsub.s32 1, %v1044
        %v1046 = vrot.slane %v1037, %v1045
        %v1047 = vlaneseq
        %v1048 = vshrl.u32 %v1047, 7
        %v1049 = vsub.s32 2, %v1048
        %v1050 = vrot.slane %v1037, %v1049
        %v1086 = vunpack.c.l.b16 %v1004
        %v1087 = vunpack.c.h.b16 %v1004
        %v1088 = vunpack.c.l.b16 %v1005
        %v1089 = vunpack.c.l.b16 %v1006
        %v1090 = vunpack.c.h.b16 %v1006
        %v1091 = vunpack.c.l.b16 %v1007
        %v1092 = vunpack.c.l.b16 %v1008
        %v1093 = vunpack.c.h.b16 %v1008
        %v1094 = vunpack.c.l.b16 %v1009
        %v1095 = vunpack.c.l.b16 %v1010
        %v1096 = vunpack.c.h.b16 %v1010
        %v1097 = vunpack.c.l.b16 %v1011
        %v1098 = vunpack.c.l.b16 %v1012
        %v1099 = vunpack.c.h.b16 %v1012
        %v1100 = vunpack.c.l.b16 %v1013
        %v1101 = vunpack.c.l.b16 %v1014
        %v1102 = vunpack.c.h.b16 %v1014
        %v1103 = vunpack.c.l.b16 %v1015
        %v1104 = vunpack.c.l.b16 %v1016
        %v1105 = vunpack.c.h.b16 %v1016
        %v1106 = vunpack.c.l.b16 %v1017
        %v1107 = vunpack.c.l.b16 %v1018
        %v1108 = vunpack.c.h.b16 %v1018
        %v1109 = vunpack.c.l.b16 %v1019
        %v1110 = vunpack.c.l.b16 %v1020
        %v1111 = vunpack.c.h.b16 %v1020
        %v1112 = vunpack.c.l.b16 %v1021
        %v1113 = vunpack.c.l.b16 %v1022
        %v1114 = vunpack.c.h.b16 %v1022
        %v1115 = vunpack.c.l.b16 %v1023
        %v1116 = vunpack.c.l.b16 %v1024
        %v1117 = vunpack.c.h.b16 %v1024
        %v1118 = vunpack.c.l.b16 %v1025
        %v1119 = vunpack.c.l.b16 %v1026
        %v1120 = vunpack.c.h.b16 %v1026
        %v1121 = vunpack.c.l.b16 %v1027
        %v1122 = vunpack.c.l.b16 %v1028
        %v1123 = vunpack.c.h.b16 %v1028
        %v1124 = vunpack.c.l.b16 %v1029
        %v1125 = vunpack.c.l.b16 %v1030
        %v1126 = vunpack.c.h.b16 %v1030
        %v1127 = vunpack.c.l.b16 %v1031
        %v1128 = vunpack.c.l.b16 %v1032
        %v1129 = vunpack.c.h.b16 %v1032
        %v1130 = vunpack.c.l.b16 %v1033
        %v1131 = vunpack.c.l.b16 %v1034
        %v1132 = vunpack.c.h.b16 %v1034
        %v1133 = vunpack.c.l.b16 %v1035
        %v1134 = vpack.c.b16 %v1089, %v1086
        %v1135 = vpack.c.b16 %v1090, %v1087
        %v1136 = vpack.c.b16 %v1091, %v1088
        %v1137 = vpack.c.b16 %v1095, %v1092
        %v1138 = vpack.c.b16 %v1096, %v1093
        %v1139 = vpack.c.b16 %v1097, %v1094
        %v1140 = vpack.c.b16 %v1101, %v1098
        %v1141 = vpack.c.b16 %v1102, %v1099
        %v1142 = vpack.c.b16 %v1103, %v1100
        %v1143 = vpack.c.b16 %v1107, %v1104
        %v1144 = vpack.c.b16 %v1108, %v1105
        %v1145 = vpack.c.b16 %v1109, %v1106
        %v1146 = vpack.c.b16 %v1113, %v1110
        %v1147 = vpack.c.b16 %v1114, %v1111
        %v1148 = vpack.c.b16 %v1115, %v1112
        %v1149 = vpack.c.b16 %v1119, %v1116
        %v1150 = vpack.c.b16 %v1120, %v1117
        %v1151 = vpack.c.b16 %v1121, %v1118
        %v1152 = vpack.c.b16 %v1125, %v1122
        %v1153 = vpack.c.b16 %v1126, %v1123
        %v1154 = vpack.c.b16 %v1127, %v1124
        %v1155 = vpack.c.b16 %v1131, %v1128
        %v1156 = vpack.c.b16 %v1132, %v1129
        %v1157 = vpack.c.b16 %v1133, %v1130
        %1182 = vmatprep.subr.bf16.mxu0 %v1135
        %1183 = vmatpush1.bf16.msra.mxu0 %v1134
        %1184 = vmatprep.subr.bf16.mxu0 %v1138
        %1185 = vmatpush1.bf16.msra.mxu0 %v1137
        %1186 = vmatprep.subr.bf16.mxu0 %v1141
        %1187 = vmatpush1.bf16.msra.mxu0 %v1140
        %1188 = vmatprep.subr.bf16.mxu0 %v1144
        %1189 = vmatpush1.bf16.msra.mxu0 %v1143
        %1190 = vmatprep.subr.bf16.mxu0 %v1147
        %1191 = vmatpush1.bf16.msra.mxu0 %v1146
        %1192 = vmatprep.subr.bf16.mxu0 %v1150
        %1193 = vmatpush1.bf16.msra.mxu0 %v1149
        %1194 = vmatprep.subr.bf16.mxu0 %v1153
        %1195 = vmatpush1.bf16.msra.mxu0 %v1152
        %1196 = vmatprep.subr.bf16.mxu0 %v1156
        %1197 = vmatpush1.bf16.msra.mxu0 %v1155
        %1198 = vmatprep.subr.bf16.mxu0 0
        %1199 = vmatpush1.bf16.msra.mxu0 0
        %1200 = vmatprep.subr.bf16.mxu0 0
        %1201 = vmatpush1.bf16.msra.mxu0 0
        %1202 = vmatprep.subr.bf16.mxu0 0
        %1203 = vmatpush1.bf16.msra.mxu0 0
        %1204 = vmatprep.subr.bf16.mxu0 0
        %1205 = vmatpush1.bf16.msra.mxu0 0
        %1206 = vmatprep.subr.bf16.mxu0 0
        %1207 = vmatpush1.bf16.msra.mxu0 0
        %1208 = vmatprep.subr.bf16.mxu0 0
        %1209 = vmatpush1.bf16.msra.mxu0 0
        %1210 = vmatprep.subr.bf16.mxu0 0
        %1211 = vmatpush1.bf16.msra.mxu0 0
        %1212 = vmatprep.subr.bf16.mxu0 0
        %1213 = vmatpush1.bf16.msra.mxu0 0
        %1214 = vmatprep.mubr.bf16.mxu0 0
        %1215 = vmatmul.mubr.bf16.gmra.mrb[0].mxu0 %v543
        %v1216 = vpop.f32.mrb[0].mxu0
        %v1217 = vadd.f32 %v1042, %v1216
        %v1218 = vpop.f32.mrb[0].mxu0
        %v1219 = vadd.f32 %v1046, %v1218
        %v1220 = vpop.f32.mrb[0].mxu0
        %v1221 = vadd.f32 %v1042, %v1220
        %v1222 = vpop.f32.mrb[0].mxu0
        %v1223 = vadd.f32 %v1046, %v1222
        %1224 = vmatprep.mubr.bf16.mxu0 0
        %1225 = vmatmul.mubr.bf16.gmra.mrb[0].mxu0 %v544
        %v1226 = vpop.f32.mrb[0].mxu0
        %v1227 = vadd.f32 %v1042, %v1226
        %v1228 = vpop.f32.mrb[0].mxu0
        %v1229 = vadd.f32 %v1046, %v1228
        %v1230 = vpop.f32.mrb[0].mxu0
        %v1231 = vadd.f32 %v1042, %v1230
        %v1232 = vpop.f32.mrb[0].mxu0
        %v1233 = vadd.f32 %v1046, %v1232
        %1234 = vdwg.mxu0
        %1235 = vmatprep.subr.bf16.mxu0 0
        %1236 = vmatpush1.bf16.msra.mxu0 %v1136
        %1237 = vmatprep.subr.bf16.mxu0 0
        %1238 = vmatpush1.bf16.msra.mxu0 %v1139
        %1239 = vmatprep.subr.bf16.mxu0 0
        %1240 = vmatpush1.bf16.msra.mxu0 %v1142
        %1241 = vmatprep.subr.bf16.mxu0 0
        %1242 = vmatpush1.bf16.msra.mxu0 %v1145
        %1243 = vmatprep.subr.bf16.mxu0 0
        %1244 = vmatpush1.bf16.msra.mxu0 %v1148
        %1245 = vmatprep.subr.bf16.mxu0 0
        %1246 = vmatpush1.bf16.msra.mxu0 %v1151
        %1247 = vmatprep.subr.bf16.mxu0 0
        %1248 = vmatpush1.bf16.msra.mxu0 %v1154
        %1249 = vmatprep.subr.bf16.mxu0 0
        %1250 = vmatpush1.bf16.msra.mxu0 %v1157
        %1251 = vmatprep.subr.bf16.mxu0 0
        %1252 = vmatpush1.bf16.msra.mxu0 0
        %1253 = vmatprep.subr.bf16.mxu0 0
        %1254 = vmatpush1.bf16.msra.mxu0 0
        %1255 = vmatprep.subr.bf16.mxu0 0
        %1256 = vmatpush1.bf16.msra.mxu0 0
        %1257 = vmatprep.subr.bf16.mxu0 0
        %1258 = vmatpush1.bf16.msra.mxu0 0
        %1259 = vmatprep.subr.bf16.mxu0 0
        %1260 = vmatpush1.bf16.msra.mxu0 0
        %1261 = vmatprep.subr.bf16.mxu0 0
        %1262 = vmatpush1.bf16.msra.mxu0 0
        %1263 = vmatprep.subr.bf16.mxu0 0
        %1264 = vmatpush1.bf16.msra.mxu0 0
        %1265 = vmatprep.subr.bf16.mxu0 0
        %1266 = vmatpush1.bf16.msra.mxu0 0
        %1267 = vmatprep.mubr.bf16.mxu0 0
        %1268 = vmatmul.mubr.bf16.gmra.mrb[0].mxu0 %v543
        %v1269 = vpop.f32.mrb[0].mxu0
        %v1270 = vadd.f32 %v1050, %v1269
        %v1271 = vpop.f32.mrb[0].mxu0
        %v1272 = vpop.f32.mrb[0].mxu0
        %v1273 = vadd.f32 %v1050, %v1272
        %v1274 = vpop.f32.mrb[0].mxu0
        %1275 = vmatprep.mubr.bf16.mxu0 0
        %1276 = vmatmul.mubr.bf16.gmra.mrb[0].mxu0 %v544
        %v1277 = vpop.f32.mrb[0].mxu0
        %v1278 = vadd.f32 %v1050, %v1277
        %v1279 = vpop.f32.mrb[0].mxu0
        %v1280 = vpop.f32.mrb[0].mxu0
        %v1281 = vadd.f32 %v1050, %v1280
        %v1282 = vpop.f32.mrb[0].mxu0
        %1283 = vdwg.mxu0
        %v1284 = vpack.c.bf16 %v1221, %v1217
        %v1285 = vpack.c.bf16 %v1231, %v1227
        %v1286 = vpack.c.bf16 %v1223, %v1219
        %v1287 = vpack.c.bf16 %v1233, %v1229
        %1288 = vmatprep.subr.bf16.mxu0 0
        %1289 = vmatpush1.bf16.xpose.msra.mxu0 %v1286
        %1290 = vmatprep.subr.bf16.mxu0 0
        %1291 = vmatpush1.bf16.xpose.msra.mxu0 %v1287
        %1292 = vmatprep.subr.bf16.mxu0 0
        %1293 = vmatpush1.bf16.xpose.msra.mxu0 0
        %1294 = vmatprep.subr.bf16.mxu0 0
        %1295 = vmatpush1.bf16.xpose.msra.mxu0 0
        %1296 = vmatprep.subr.bf16.mxu0 0
        %1297 = vmatpush1.bf16.xpose.msra.mxu0 0
        %1298 = vmatprep.subr.bf16.mxu0 0
        %1299 = vmatpush1.bf16.xpose.msra.mxu0 0
        %1300 = vmatprep.subr.bf16.mxu0 0
        %1301 = vmatpush1.bf16.xpose.msra.mxu0 0
        %1302 = vmatprep.subr.bf16.mxu0 0
        %1303 = vmatpush1.bf16.xpose.msra.mxu0 0
        %1304 = vmatprep.subr.bf16.mxu0 0
        %1305 = vmatpush1.bf16.xpose.msra.mxu0 0
        %1306 = vmatprep.subr.bf16.mxu0 0
        %1307 = vmatpush1.bf16.xpose.msra.mxu0 0
        %1308 = vmatprep.subr.bf16.mxu0 0
        %1309 = vmatpush1.bf16.xpose.msra.mxu0 0
        %1310 = vmatprep.subr.bf16.mxu0 0
        %1311 = vmatpush1.bf16.xpose.msra.mxu0 0
        %1312 = vmatprep.subr.bf16.mxu0 0
        %1313 = vmatpush1.bf16.xpose.msra.mxu0 0
        %1314 = vmatprep.subr.bf16.mxu0 0
        %1315 = vmatpush1.bf16.xpose.msra.mxu0 0
        %1316 = vmatprep.subr.bf16.mxu0 0
        %1317 = vmatpush1.bf16.xpose.msra.mxu0 0
        %1318 = vmatprep.subr.bf16.mxu0 0
        %1319 = vmatpush1.bf16.xpose.msra.mxu0 0
        %1320 = vmatprep.mubr.bf16.mxu0 0
        %1321 = vmatmul.mubr.bf16.gmra.mrb[0].mxu0 %v1284
        %v1322 = vpop.f32.mrb[0].mxu0
        %v1323 = vadd.f32 0.0, %v1322
        %v1324 = vpop.f32.mrb[0].mxu0
        %v1325 = vpop.f32.mrb[0].mxu0
        %v1326 = vadd.f32 0.0, %v1325
        %v1327 = vpop.f32.mrb[0].mxu0
        %1328 = vmatprep.mubr.bf16.mxu0 0
        %1329 = vmatmul.mubr.bf16.gmra.mrb[0].mxu0 %v1285
        %v1330 = vpop.f32.mrb[0].mxu0
        %v1331 = vadd.f32 0.0, %v1330
        %v1332 = vpop.f32.mrb[0].mxu0
        %v1333 = vpop.f32.mrb[0].mxu0
        %v1334 = vadd.f32 0.0, %v1333
        %v1335 = vpop.f32.mrb[0].mxu0
        %1336 = vdwg.mxu0
        %v1337 = vmul.f32 %v1323, 0.17677669
        %v1338 = vmul.f32 %v1326, 0.17677669
        %v1339 = vmul.f32 %v1331, 0.17677669
        %v1340 = vmul.f32 %v1334, 0.17677669
        %v1341 = vsel %vm881, %v1337, -inf
        %1342 = vmax.xlane.f32.xlu0 %v1341
        %v1343 = vpop.xlane.xlu0 %1342
        %v1344 = vsel %vm881, %v1338, -inf
        %1345 = vmax.xlane.f32.xlu0 %v1344
        %v1346 = vpop.xlane.xlu0 %1345
        %v1347 = vsel %vm881, %v1339, -inf
        %1348 = vmax.xlane.f32.xlu0 %v1347
        %v1349 = vpop.xlane.xlu0 %1348
        %v1350 = vsel %vm881, %v1340, -inf
        %1351 = vmax.xlane.f32.xlu0 %v1350
        %v1352 = vpop.xlane.xlu0 %1351
        %v1353 = vsub.f32 %v1337, %v1343
        %v1354 = vsub.f32 %v1338, %v1346
        %v1355 = vsub.f32 %v1339, %v1349
        %v1356 = vsub.f32 %v1340, %v1352
        %v1357 = vmul.f32 %v1353, 1.442695
        %v1358 = vpow.pop %v1357
        %v1359 = vmul.f32 %v1354, 1.442695
        %v1360 = vpow.pop %v1359
        %v1361 = vmul.f32 %v1355, 1.442695
        %v1362 = vpow.pop %v1361
        %v1363 = vmul.f32 %v1356, 1.442695
        %v1364 = vpow.pop %v1363
        %v1365 = vsel %vm881, %v1358, 0.0
        %1366 = vadd.xlane.f32.xlu0 %v1365
        %v1367 = vpop.xlane.xlu0 %1366
        %v1368 = vsel %vm881, %v1360, 0.0
        %1369 = vadd.xlane.f32.xlu0 %v1368
        %v1370 = vpop.xlane.xlu0 %1369
        %v1371 = vsel %vm881, %v1362, 0.0
        %1372 = vadd.xlane.f32.xlu0 %v1371
        %v1373 = vpop.xlane.xlu0 %1372
        %v1374 = vsel %vm881, %v1364, 0.0
        %1375 = vadd.xlane.f32.xlu0 %v1374
        %v1376 = vpop.xlane.xlu0 %1375
        %v1377 = vrcp.pop %v1367
        %v1378 = vrcp.pop %v1370
        %v1379 = vrcp.pop %v1373
        %v1380 = vrcp.pop %v1376
        %v1381 = vmul.f32 %v1358, %v1377
        %v1382 = vmul.f32 %v1360, %v1378
        %v1383 = vmul.f32 %v1362, %v1379
        %v1384 = vmul.f32 %v1364, %v1380
        %v1385 = vpack.c.bf16 %v1382, %v1381
        %v1386 = vpack.c.bf16 %v1384, %v1383
        %v1387 = vpack.c.bf16 %v1273, %v1270
        %v1388 = vpack.c.bf16 %v1281, %v1278
        %v1390 = vsel %vm881, %v1385, 0
        %v1393 = vsel %vm881, %v1386, 0
        %1395 = vmatprep.subr.bf16.mxu0 0
        %1396 = vmatpush1.bf16.msra.mxu0 %v1387
        %1397 = vmatprep.subr.bf16.mxu0 0
        %1398 = vmatpush1.bf16.msra.mxu0 %v1388
        %1399 = vmatprep.subr.bf16.mxu0 0
        %1400 = vmatpush1.bf16.msra.mxu0 0
        %1401 = vmatprep.subr.bf16.mxu0 0
        %1402 = vmatpush1.bf16.msra.mxu0 0
        %1403 = vmatprep.subr.bf16.mxu0 0
        %1404 = vmatpush1.bf16.msra.mxu0 0
        %1405 = vmatprep.subr.bf16.mxu0 0
        %1406 = vmatpush1.bf16.msra.mxu0 0
        %1407 = vmatprep.subr.bf16.mxu0 0
        %1408 = vmatpush1.bf16.msra.mxu0 0
        %1409 = vmatprep.subr.bf16.mxu0 0
        %1410 = vmatpush1.bf16.msra.mxu0 0
        %1411 = vmatprep.subr.bf16.mxu0 0
        %1412 = vmatpush1.bf16.msra.mxu0 0
        %1413 = vmatprep.subr.bf16.mxu0 0
        %1414 = vmatpush1.bf16.msra.mxu0 0
        %1415 = vmatprep.subr.bf16.mxu0 0
        %1416 = vmatpush1.bf16.msra.mxu0 0
        %1417 = vmatprep.subr.bf16.mxu0 0
        %1418 = vmatpush1.bf16.msra.mxu0 0
        %1419 = vmatprep.subr.bf16.mxu0 0
        %1420 = vmatpush1.bf16.msra.mxu0 0
        %1421 = vmatprep.subr.bf16.mxu0 0
        %1422 = vmatpush1.bf16.msra.mxu0 0
        %1423 = vmatprep.subr.bf16.mxu0 0
        %1424 = vmatpush1.bf16.msra.mxu0 0
        %1425 = vmatprep.subr.bf16.mxu0 0
        %1426 = vmatpush1.bf16.msra.mxu0 0
        %1427 = vmatprep.mubr.bf16.mxu0 0
        %1428 = vmatmul.mubr.bf16.gmra.mrb[0].mxu0 %v1390
        %v1429 = vpop.f32.mrb[0].mxu0
        %v1430 = vadd.f32 0.0, %v1429
        %v1431 = vpop.f32.mrb[0].mxu0
        %v1432 = vpop.f32.mrb[0].mxu0
        %v1433 = vadd.f32 0.0, %v1432
        %v1434 = vpop.f32.mrb[0].mxu0
        %1435 = vmatprep.mubr.bf16.mxu0 0
        %1436 = vmatmul.mubr.bf16.gmra.mrb[0].mxu0 %v1393
        %v1437 = vpop.f32.mrb[0].mxu0
        %v1438 = vadd.f32 0.0, %v1437
        %v1439 = vpop.f32.mrb[0].mxu0
        %v1440 = vpop.f32.mrb[0].mxu0
        %v1441 = vadd.f32 0.0, %v1440
        %v1442 = vpop.f32.mrb[0].mxu0
        %1443 = vdwg.mxu0
        %v1444 = vpack.c.bf16 %v1433, %v1430
        %v1445 = vpack.c.bf16 %v1441, %v1438
        %s1446 = scalar_lea.vmem [#allocation4], 64
        %v1447 = vld [vmem:[%s1446] sm:$0xf]
        %v1448 = vld [vmem:[%s1446 + $0x4] sm:$0xf]
        %v1449 = vld [vmem:[%s1446 + $0x8] sm:$0xf]
        %v1450 = vld [vmem:[%s1446 + $0xc] sm:$0xf]
        %v1451 = vld [vmem:[%s1446 + $0x10] sm:$0xf]
        %v1452 = vld [vmem:[%s1446 + $0x14] sm:$0xf]
        %v1453 = vld [vmem:[%s1446 + $0x18] sm:$0xf]
        %v1454 = vld [vmem:[%s1446 + $0x1c] sm:$0xf]
        %v1455 = vld [vmem:[%s1446 + $0x20] sm:$0xf]
        %v1456 = vld [vmem:[%s1446 + $0x24] sm:$0xf]
        %v1457 = vld [vmem:[%s1446 + $0x28] sm:$0xf]
        %v1458 = vld [vmem:[%s1446 + $0x2c] sm:$0xf]
        %v1459 = vld [vmem:[%s1446 + $0x30] sm:$0xf]
        %v1460 = vld [vmem:[%s1446 + $0x34] sm:$0xf]
        %v1461 = vld [vmem:[%s1446 + $0x38] sm:$0xf]
        %v1462 = vld [vmem:[%s1446 + $0x3c] sm:$0xf]
        %v1479 = vunpack.c.l.b16 %v1447
        %v1480 = vunpack.c.l.b16 %v1448
        %v1481 = vunpack.c.l.b16 %v1449
        %v1482 = vunpack.c.l.b16 %v1450
        %v1483 = vunpack.c.l.b16 %v1451
        %v1484 = vunpack.c.l.b16 %v1452
        %v1485 = vunpack.c.l.b16 %v1453
        %v1486 = vunpack.c.l.b16 %v1454
        %v1487 = vunpack.c.l.b16 %v1455
        %v1488 = vunpack.c.l.b16 %v1456
        %v1489 = vunpack.c.l.b16 %v1457
        %v1490 = vunpack.c.l.b16 %v1458
        %v1491 = vunpack.c.l.b16 %v1459
        %v1492 = vunpack.c.l.b16 %v1460
        %v1493 = vunpack.c.l.b16 %v1461
        %v1494 = vunpack.c.l.b16 %v1462
        %v1495 = vpack.c.b16 %v1480, %v1479
        %v1496 = vpack.c.b16 %v1482, %v1481
        %v1497 = vpack.c.b16 %v1484, %v1483
        %v1498 = vpack.c.b16 %v1486, %v1485
        %v1499 = vpack.c.b16 %v1488, %v1487
        %v1500 = vpack.c.b16 %v1490, %v1489
        %v1501 = vpack.c.b16 %v1492, %v1491
        %v1502 = vpack.c.b16 %v1494, %v1493
        %1511 = vmatprep.subr.bf16.mxu0 0
        %1512 = vmatpush1.bf16.msra.mxu0 %v1495
        %1513 = vmatprep.subr.bf16.mxu0 0
        %1514 = vmatpush1.bf16.msra.mxu0 %v1496
        %1515 = vmatprep.subr.bf16.mxu0 0
        %1516 = vmatpush1.bf16.msra.mxu0 %v1497
        %1517 = vmatprep.subr.bf16.mxu0 0
        %1518 = vmatpush1.bf16.msra.mxu0 %v1498
        %1519 = vmatprep.subr.bf16.mxu0 0
        %1520 = vmatpush1.bf16.msra.mxu0 %v1499
        %1521 = vmatprep.subr.bf16.mxu0 0
        %1522 = vmatpush1.bf16.msra.mxu0 %v1500
        %1523 = vmatprep.subr.bf16.mxu0 0
        %1524 = vmatpush1.bf16.msra.mxu0 %v1501
        %1525 = vmatprep.subr.bf16.mxu0 0
        %1526 = vmatpush1.bf16.msra.mxu0 %v1502
        %1527 = vmatprep.subr.bf16.mxu0 0
        %1528 = vmatpush1.bf16.msra.mxu0 0
        %1529 = vmatprep.subr.bf16.mxu0 0
        %1530 = vmatpush1.bf16.msra.mxu0 0
        %1531 = vmatprep.subr.bf16.mxu0 0
        %1532 = vmatpush1.bf16.msra.mxu0 0
        %1533 = vmatprep.subr.bf16.mxu0 0
        %1534 = vmatpush1.bf16.msra.mxu0 0
        %1535 = vmatprep.subr.bf16.mxu0 0
        %1536 = vmatpush1.bf16.msra.mxu0 0
        %1537 = vmatprep.subr.bf16.mxu0 0
        %1538 = vmatpush1.bf16.msra.mxu0 0
        %1539 = vmatprep.subr.bf16.mxu0 0
        %1540 = vmatpush1.bf16.msra.mxu0 0
        %1541 = vmatprep.subr.bf16.mxu0 0
        %1542 = vmatpush1.bf16.msra.mxu0 0
        %1543 = vmatprep.mubr.bf16.mxu0 0
        %1544 = vmatmul.mubr.bf16.gmra.mrb[0].mxu0 %v1444
        %v1545 = vpop.f32.mrb[0].mxu0
        %v1546 = vadd.f32 0.0, %v1545
        %v1547 = vpop.f32.mrb[0].mxu0
        %v1548 = vpop.f32.mrb[0].mxu0
        %v1549 = vadd.f32 0.0, %v1548
        %v1550 = vpop.f32.mrb[0].mxu0
        %1551 = vmatprep.mubr.bf16.mxu0 0
        %1552 = vmatmul.mubr.bf16.gmra.mrb[0].mxu0 %v1445
        %v1553 = vpop.f32.mrb[0].mxu0
        %v1554 = vadd.f32 0.0, %v1553
        %v1555 = vpop.f32.mrb[0].mxu0
        %v1556 = vpop.f32.mrb[0].mxu0
        %v1557 = vadd.f32 0.0, %v1556
        %v1558 = vpop.f32.mrb[0].mxu0
        %1559 = vdwg.mxu0
        %v1576 = vunpack.c.l.b16 %v987
        %v1577 = vunpack.c.l.b16 %v988
        %v1578 = vunpack.c.l.b16 %v989
        %v1579 = vunpack.c.l.b16 %v990
        %v1580 = vunpack.c.l.b16 %v991
        %v1581 = vunpack.c.l.b16 %v992
        %v1582 = vunpack.c.l.b16 %v993
        %v1583 = vunpack.c.l.b16 %v994
        %v1584 = vunpack.c.l.b16 %v995
        %v1585 = vunpack.c.l.b16 %v996
        %v1586 = vunpack.c.l.b16 %v997
        %v1587 = vunpack.c.l.b16 %v998
        %v1588 = vunpack.c.l.b16 %v999
        %v1589 = vunpack.c.l.b16 %v1000
        %v1590 = vunpack.c.l.b16 %v1001
        %v1591 = vunpack.c.l.b16 %v1002
        %v1592 = vpack.c.b16 %v1577, %v1576
        %v1593 = vpack.c.b16 %v1579, %v1578
        %v1594 = vpack.c.b16 %v1581, %v1580
        %v1595 = vpack.c.b16 %v1583, %v1582
        %v1596 = vpack.c.b16 %v1585, %v1584
        %v1597 = vpack.c.b16 %v1587, %v1586
        %v1598 = vpack.c.b16 %v1589, %v1588
        %v1599 = vpack.c.b16 %v1591, %v1590
        %1608 = vmatprep.subr.bf16.mxu0 0
        %1609 = vmatpush1.bf16.msra.mxu0 %v1592
        %1610 = vmatprep.subr.bf16.mxu0 0
        %1611 = vmatpush1.bf16.msra.mxu0 %v1593
        %1612 = vmatprep.subr.bf16.mxu0 0
        %1613 = vmatpush1.bf16.msra.mxu0 %v1594
        %1614 = vmatprep.subr.bf16.mxu0 0
        %1615 = vmatpush1.bf16.msra.mxu0 %v1595
        %1616 = vmatprep.subr.bf16.mxu0 0
        %1617 = vmatpush1.bf16.msra.mxu0 %v1596
        %1618 = vmatprep.subr.bf16.mxu0 0
        %1619 = vmatpush1.bf16.msra.mxu0 %v1597
        %1620 = vmatprep.subr.bf16.mxu0 0
        %1621 = vmatpush1.bf16.msra.mxu0 %v1598
        %1622 = vmatprep.subr.bf16.mxu0 0
        %1623 = vmatpush1.bf16.msra.mxu0 %v1599
        %1624 = vmatprep.subr.bf16.mxu0 0
        %1625 = vmatpush1.bf16.msra.mxu0 0
        %1626 = vmatprep.subr.bf16.mxu0 0
        %1627 = vmatpush1.bf16.msra.mxu0 0
        %1628 = vmatprep.subr.bf16.mxu0 0
        %1629 = vmatpush1.bf16.msra.mxu0 0
        %1630 = vmatprep.subr.bf16.mxu0 0
        %1631 = vmatpush1.bf16.msra.mxu0 0
        %1632 = vmatprep.subr.bf16.mxu0 0
        %1633 = vmatpush1.bf16.msra.mxu0 0
        %1634 = vmatprep.subr.bf16.mxu0 0
        %1635 = vmatpush1.bf16.msra.mxu0 0
        %1636 = vmatprep.subr.bf16.mxu0 0
        %1637 = vmatpush1.bf16.msra.mxu0 0
        %1638 = vmatprep.subr.bf16.mxu0 0
        %1639 = vmatpush1.bf16.msra.mxu0 0
        %1640 = vmatprep.mubr.bf16.mxu0 0
        %1641 = vmatmul.mubr.bf16.gmra.mrb[0].mxu0 %v985
        %v1642 = vpop.f32.mrb[0].mxu0
        %v1643 = vadd.f32 %v1546, %v1642
        %v1644 = vpop.f32.mrb[0].mxu0
        %v1645 = vpop.f32.mrb[0].mxu0
        %v1646 = vadd.f32 %v1549, %v1645
        %v1647 = vpop.f32.mrb[0].mxu0
        %1648 = vmatprep.mubr.bf16.mxu0 0
        %1649 = vmatmul.mubr.bf16.gmra.mrb[0].mxu0 %v986
        %v1650 = vpop.f32.mrb[0].mxu0
        %v1651 = vadd.f32 %v1554, %v1650
        %v1652 = vpop.f32.mrb[0].mxu0
        %v1653 = vpop.f32.mrb[0].mxu0
        %v1654 = vadd.f32 %v1557, %v1653
        %v1655 = vpop.f32.mrb[0].mxu0
        %1656 = vdwg.mxu0
        %s1657 = scalar_lea.vmem [#allocation2], 384
        %v1658 = vld [vmem:[%s1657] sm:$0xff]
        %v1659 = vld [vmem:[%s1657 + $0x8] sm:$0xf]
        %v1660 = vld [vmem:[%s1657 + $0xc] sm:$0xff]
        %v1661 = vld [vmem:[%s1657 + $0x14] sm:$0xf]
        %v1662 = vld [vmem:[%s1657 + $0x18] sm:$0xff]
        %v1663 = vld [vmem:[%s1657 + $0x20] sm:$0xf]
        %v1664 = vld [vmem:[%s1657 + $0x24] sm:$0xff]
        %v1665 = vld [vmem:[%s1657 + $0x2c] sm:$0xf]
        %v1666 = vld [vmem:[%s1657 + $0x30] sm:$0xff]
        %v1667 = vld [vmem:[%s1657 + $0x38] sm:$0xf]
        %v1668 = vld [vmem:[%s1657 + $0x3c] sm:$0xff]
        %v1669 = vld [vmem:[%s1657 + $0x44] sm:$0xf]
        %v1670 = vld [vmem:[%s1657 + $0x48] sm:$0xff]
        %v1671 = vld [vmem:[%s1657 + $0x50] sm:$0xf]
        %v1672 = vld [vmem:[%s1657 + $0x54] sm:$0xff]
        %v1673 = vld [vmem:[%s1657 + $0x5c] sm:$0xf]
        %v1674 = vld [vmem:[%s1657 + $0x60] sm:$0xff]
        %v1675 = vld [vmem:[%s1657 + $0x68] sm:$0xf]
        %v1676 = vld [vmem:[%s1657 + $0x6c] sm:$0xff]
        %v1677 = vld [vmem:[%s1657 + $0x74] sm:$0xf]
        %v1678 = vld [vmem:[%s1657 + $0x78] sm:$0xff]
        %v1679 = vld [vmem:[%s1657 + $0x80] sm:$0xf]
        %v1680 = vld [vmem:[%s1657 + $0x84] sm:$0xff]
        %v1681 = vld [vmem:[%s1657 + $0x8c] sm:$0xf]
        %v1682 = vld [vmem:[%s1657 + $0x90] sm:$0xff]
        %v1683 = vld [vmem:[%s1657 + $0x98] sm:$0xf]
        %v1684 = vld [vmem:[%s1657 + $0x9c] sm:$0xff]
        %v1685 = vld [vmem:[%s1657 + $0xa4] sm:$0xf]
        %v1686 = vld [vmem:[%s1657 + $0xa8] sm:$0xff]
        %v1687 = vld [vmem:[%s1657 + $0xb0] sm:$0xf]
        %v1688 = vld [vmem:[%s1657 + $0xb4] sm:$0xff]
        %v1689 = vld [vmem:[%s1657 + $0xbc] sm:$0xf]
        %s1690 = scalar_lea.vmem %s4, 6
        %v1691 = vld [vmem:[%s1690] sm:$0x7]
        %v1693 = vlaneseq
        %v1694 = vshrl.u32 %v1693, 7
        %v1695 = vsub.s32 0, %v1694
        %v1696 = vrot.slane %v1691, %v1695
        %v1697 = vlaneseq
        %v1698 = vshrl.u32 %v1697, 7
        %v1699 = vsub.s32 1, %v1698
        %v1700 = vrot.slane %v1691, %v1699
        %v1701 = vlaneseq
        %v1702 = vshrl.u32 %v1701, 7
        %v1703 = vsub.s32 2, %v1702
        %v1704 = vrot.slane %v1691, %v1703
        %v1740 = vunpack.c.l.b16 %v1658
        %v1741 = vunpack.c.h.b16 %v1658
        %v1742 = vunpack.c.l.b16 %v1659
        %v1743 = vunpack.c.l.b16 %v1660
        %v1744 = vunpack.c.h.b16 %v1660
        %v1745 = vunpack.c.l.b16 %v1661
        %v1746 = vunpack.c.l.b16 %v1662
        %v1747 = vunpack.c.h.b16 %v1662
        %v1748 = vunpack.c.l.b16 %v1663
        %v1749 = vunpack.c.l.b16 %v1664
        %v1750 = vunpack.c.h.b16 %v1664
        %v1751 = vunpack.c.l.b16 %v1665
        %v1752 = vunpack.c.l.b16 %v1666
        %v1753 = vunpack.c.h.b16 %v1666
        %v1754 = vunpack.c.l.b16 %v1667
        %v1755 = vunpack.c.l.b16 %v1668
        %v1756 = vunpack.c.h.b16 %v1668
        %v1757 = vunpack.c.l.b16 %v1669
        %v1758 = vunpack.c.l.b16 %v1670
        %v1759 = vunpack.c.h.b16 %v1670
        %v1760 = vunpack.c.l.b16 %v1671
        %v1761 = vunpack.c.l.b16 %v1672
        %v1762 = vunpack.c.h.b16 %v1672
        %v1763 = vunpack.c.l.b16 %v1673
        %v1764 = vunpack.c.l.b16 %v1674
        %v1765 = vunpack.c.h.b16 %v1674
        %v1766 = vunpack.c.l.b16 %v1675
        %v1767 = vunpack.c.l.b16 %v1676
        %v1768 = vunpack.c.h.b16 %v1676
        %v1769 = vunpack.c.l.b16 %v1677
        %v1770 = vunpack.c.l.b16 %v1678
        %v1771 = vunpack.c.h.b16 %v1678
        %v1772 = vunpack.c.l.b16 %v1679
        %v1773 = vunpack.c.l.b16 %v1680
        %v1774 = vunpack.c.h.b16 %v1680
        %v1775 = vunpack.c.l.b16 %v1681
        %v1776 = vunpack.c.l.b16 %v1682
        %v1777 = vunpack.c.h.b16 %v1682
        %v1778 = vunpack.c.l.b16 %v1683
        %v1779 = vunpack.c.l.b16 %v1684
        %v1780 = vunpack.c.h.b16 %v1684
        %v1781 = vunpack.c.l.b16 %v1685
        %v1782 = vunpack.c.l.b16 %v1686
        %v1783 = vunpack.c.h.b16 %v1686
        %v1784 = vunpack.c.l.b16 %v1687
        %v1785 = vunpack.c.l.b16 %v1688
        %v1786 = vunpack.c.h.b16 %v1688
        %v1787 = vunpack.c.l.b16 %v1689
        %v1788 = vpack.c.b16 %v1743, %v1740
        %v1789 = vpack.c.b16 %v1744, %v1741
        %v1790 = vpack.c.b16 %v1745, %v1742
        %v1791 = vpack.c.b16 %v1749, %v1746
        %v1792 = vpack.c.b16 %v1750, %v1747
        %v1793 = vpack.c.b16 %v1751, %v1748
        %v1794 = vpack.c.b16 %v1755, %v1752
        %v1795 = vpack.c.b16 %v1756, %v1753
        %v1796 = vpack.c.b16 %v1757, %v1754
        %v1797 = vpack.c.b16 %v1761, %v1758
        %v1798 = vpack.c.b16 %v1762, %v1759
        %v1799 = vpack.c.b16 %v1763, %v1760
        %v1800 = vpack.c.b16 %v1767, %v1764
        %v1801 = vpack.c.b16 %v1768, %v1765
        %v1802 = vpack.c.b16 %v1769, %v1766
        %v1803 = vpack.c.b16 %v1773, %v1770
        %v1804 = vpack.c.b16 %v1774, %v1771
        %v1805 = vpack.c.b16 %v1775, %v1772
        %v1806 = vpack.c.b16 %v1779, %v1776
        %v1807 = vpack.c.b16 %v1780, %v1777
        %v1808 = vpack.c.b16 %v1781, %v1778
        %v1809 = vpack.c.b16 %v1785, %v1782
        %v1810 = vpack.c.b16 %v1786, %v1783
        %v1811 = vpack.c.b16 %v1787, %v1784
        %1836 = vmatprep.subr.bf16.mxu0 %v1789
        %1837 = vmatpush1.bf16.msra.mxu0 %v1788
        %1838 = vmatprep.subr.bf16.mxu0 %v1792
        %1839 = vmatpush1.bf16.msra.mxu0 %v1791
        %1840 = vmatprep.subr.bf16.mxu0 %v1795
        %1841 = vmatpush1.bf16.msra.mxu0 %v1794
        %1842 = vmatprep.subr.bf16.mxu0 %v1798
        %1843 = vmatpush1.bf16.msra.mxu0 %v1797
        %1844 = vmatprep.subr.bf16.mxu0 %v1801
        %1845 = vmatpush1.bf16.msra.mxu0 %v1800
        %1846 = vmatprep.subr.bf16.mxu0 %v1804
        %1847 = vmatpush1.bf16.msra.mxu0 %v1803
        %1848 = vmatprep.subr.bf16.mxu0 %v1807
        %1849 = vmatpush1.bf16.msra.mxu0 %v1806
        %1850 = vmatprep.subr.bf16.mxu0 %v1810
        %1851 = vmatpush1.bf16.msra.mxu0 %v1809
        %1852 = vmatprep.subr.bf16.mxu0 0
        %1853 = vmatpush1.bf16.msra.mxu0 0
        %1854 = vmatprep.subr.bf16.mxu0 0
        %1855 = vmatpush1.bf16.msra.mxu0 0
        %1856 = vmatprep.subr.bf16.mxu0 0
        %1857 = vmatpush1.bf16.msra.mxu0 0
        %1858 = vmatprep.subr.bf16.mxu0 0
        %1859 = vmatpush1.bf16.msra.mxu0 0
        %1860 = vmatprep.subr.bf16.mxu0 0
        %1861 = vmatpush1.bf16.msra.mxu0 0
        %1862 = vmatprep.subr.bf16.mxu0 0
        %1863 = vmatpush1.bf16.msra.mxu0 0
        %1864 = vmatprep.subr.bf16.mxu0 0
        %1865 = vmatpush1.bf16.msra.mxu0 0
        %1866 = vmatprep.subr.bf16.mxu0 0
        %1867 = vmatpush1.bf16.msra.mxu0 0
        %1868 = vmatprep.mubr.bf16.mxu0 0
        %1869 = vmatmul.mubr.bf16.gmra.mrb[0].mxu0 %v543
        %v1870 = vpop.f32.mrb[0].mxu0
        %v1871 = vadd.f32 %v1696, %v1870
        %v1872 = vpop.f32.mrb[0].mxu0
        %v1873 = vadd.f32 %v1700, %v1872
        %v1874 = vpop.f32.mrb[0].mxu0
        %v1875 = vadd.f32 %v1696, %v1874
        %v1876 = vpop.f32.mrb[0].mxu0
        %v1877 = vadd.f32 %v1700, %v1876
        %1878 = vmatprep.mubr.bf16.mxu0 0
        %1879 = vmatmul.mubr.bf16.gmra.mrb[0].mxu0 %v544
        %v1880 = vpop.f32.mrb[0].mxu0
        %v1881 = vadd.f32 %v1696, %v1880
        %v1882 = vpop.f32.mrb[0].mxu0
        %v1883 = vadd.f32 %v1700, %v1882
        %v1884 = vpop.f32.mrb[0].mxu0
        %v1885 = vadd.f32 %v1696, %v1884
        %v1886 = vpop.f32.mrb[0].mxu0
        %v1887 = vadd.f32 %v1700, %v1886
        %1888 = vdwg.mxu0
        %1889 = vmatprep.subr.bf16.mxu0 0
        %1890 = vmatpush1.bf16.msra.mxu0 %v1790
        %1891 = vmatprep.subr.bf16.mxu0 0
        %1892 = vmatpush1.bf16.msra.mxu0 %v1793
        %1893 = vmatprep.subr.bf16.mxu0 0
        %1894 = vmatpush1.bf16.msra.mxu0 %v1796
        %1895 = vmatprep.subr.bf16.mxu0 0
        %1896 = vmatpush1.bf16.msra.mxu0 %v1799
        %1897 = vmatprep.subr.bf16.mxu0 0
        %1898 = vmatpush1.bf16.msra.mxu0 %v1802
        %1899 = vmatprep.subr.bf16.mxu0 0
        %1900 = vmatpush1.bf16.msra.mxu0 %v1805
        %1901 = vmatprep.subr.bf16.mxu0 0
        %1902 = vmatpush1.bf16.msra.mxu0 %v1808
        %1903 = vmatprep.subr.bf16.mxu0 0
        %1904 = vmatpush1.bf16.msra.mxu0 %v1811
        %1905 = vmatprep.subr.bf16.mxu0 0
        %1906 = vmatpush1.bf16.msra.mxu0 0
        %1907 = vmatprep.subr.bf16.mxu0 0
        %1908 = vmatpush1.bf16.msra.mxu0 0
        %1909 = vmatprep.subr.bf16.mxu0 0
        %1910 = vmatpush1.bf16.msra.mxu0 0
        %1911 = vmatprep.subr.bf16.mxu0 0
        %1912 = vmatpush1.bf16.msra.mxu0 0
        %1913 = vmatprep.subr.bf16.mxu0 0
        %1914 = vmatpush1.bf16.msra.mxu0 0
        %1915 = vmatprep.subr.bf16.mxu0 0
        %1916 = vmatpush1.bf16.msra.mxu0 0
        %1917 = vmatprep.subr.bf16.mxu0 0
        %1918 = vmatpush1.bf16.msra.mxu0 0
        %1919 = vmatprep.subr.bf16.mxu0 0
        %1920 = vmatpush1.bf16.msra.mxu0 0
        %1921 = vmatprep.mubr.bf16.mxu0 0
        %1922 = vmatmul.mubr.bf16.gmra.mrb[0].mxu0 %v543
        %v1923 = vpop.f32.mrb[0].mxu0
        %v1924 = vadd.f32 %v1704, %v1923
        %v1925 = vpop.f32.mrb[0].mxu0
        %v1926 = vpop.f32.mrb[0].mxu0
        %v1927 = vadd.f32 %v1704, %v1926
        %v1928 = vpop.f32.mrb[0].mxu0
        %1929 = vmatprep.mubr.bf16.mxu0 0
        %1930 = vmatmul.mubr.bf16.gmra.mrb[0].mxu0 %v544
        %v1931 = vpop.f32.mrb[0].mxu0
        %v1932 = vadd.f32 %v1704, %v1931
        %v1933 = vpop.f32.mrb[0].mxu0
        %v1934 = vpop.f32.mrb[0].mxu0
        %v1935 = vadd.f32 %v1704, %v1934
        %v1936 = vpop.f32.mrb[0].mxu0
        %1937 = vdwg.mxu0
        %v1938 = vpack.c.bf16 %v1875, %v1871
        %v1939 = vpack.c.bf16 %v1885, %v1881
        %v1940 = vpack.c.bf16 %v1877, %v1873
        %v1941 = vpack.c.bf16 %v1887, %v1883
        %1942 = vmatprep.subr.bf16.mxu0 0
        %1943 = vmatpush1.bf16.xpose.msra.mxu0 %v1940
        %1944 = vmatprep.subr.bf16.mxu0 0
        %1945 = vmatpush1.bf16.xpose.msra.mxu0 %v1941
        %1946 = vmatprep.subr.bf16.mxu0 0
        %1947 = vmatpush1.bf16.xpose.msra.mxu0 0
        %1948 = vmatprep.subr.bf16.mxu0 0
        %1949 = vmatpush1.bf16.xpose.msra.mxu0 0
        %1950 = vmatprep.subr.bf16.mxu0 0
        %1951 = vmatpush1.bf16.xpose.msra.mxu0 0
        %1952 = vmatprep.subr.bf16.mxu0 0
        %1953 = vmatpush1.bf16.xpose.msra.mxu0 0
        %1954 = vmatprep.subr.bf16.mxu0 0
        %1955 = vmatpush1.bf16.xpose.msra.mxu0 0
        %1956 = vmatprep.subr.bf16.mxu0 0
        %1957 = vmatpush1.bf16.xpose.msra.mxu0 0
        %1958 = vmatprep.subr.bf16.mxu0 0
        %1959 = vmatpush1.bf16.xpose.msra.mxu0 0
        %1960 = vmatprep.subr.bf16.mxu0 0
        %1961 = vmatpush1.bf16.xpose.msra.mxu0 0
        %1962 = vmatprep.subr.bf16.mxu0 0
        %1963 = vmatpush1.bf16.xpose.msra.mxu0 0
        %1964 = vmatprep.subr.bf16.mxu0 0
        %1965 = vmatpush1.bf16.xpose.msra.mxu0 0
        %1966 = vmatprep.subr.bf16.mxu0 0
        %1967 = vmatpush1.bf16.xpose.msra.mxu0 0
        %1968 = vmatprep.subr.bf16.mxu0 0
        %1969 = vmatpush1.bf16.xpose.msra.mxu0 0
        %1970 = vmatprep.subr.bf16.mxu0 0
        %1971 = vmatpush1.bf16.xpose.msra.mxu0 0
        %1972 = vmatprep.subr.bf16.mxu0 0
        %1973 = vmatpush1.bf16.xpose.msra.mxu0 0
        %1974 = vmatprep.mubr.bf16.mxu0 0
        %1975 = vmatmul.mubr.bf16.gmra.mrb[0].mxu0 %v1938
        %v1976 = vpop.f32.mrb[0].mxu0
        %v1977 = vadd.f32 0.0, %v1976
        %v1978 = vpop.f32.mrb[0].mxu0
        %v1979 = vpop.f32.mrb[0].mxu0
        %v1980 = vadd.f32 0.0, %v1979
        %v1981 = vpop.f32.mrb[0].mxu0
        %1982 = vmatprep.mubr.bf16.mxu0 0
        %1983 = vmatmul.mubr.bf16.gmra.mrb[0].mxu0 %v1939
        %v1984 = vpop.f32.mrb[0].mxu0
        %v1985 = vadd.f32 0.0, %v1984
        %v1986 = vpop.f32.mrb[0].mxu0
        %v1987 = vpop.f32.mrb[0].mxu0
        %v1988 = vadd.f32 0.0, %v1987
        %v1989 = vpop.f32.mrb[0].mxu0
        %1990 = vdwg.mxu0
        %v1991 = vmul.f32 %v1977, 0.17677669
        %v1992 = vmul.f32 %v1980, 0.17677669
        %v1993 = vmul.f32 %v1985, 0.17677669
        %v1994 = vmul.f32 %v1988, 0.17677669
        %v1995 = vsel %vm881, %v1991, -inf
        %1996 = vmax.xlane.f32.xlu0 %v1995
        %v1997 = vpop.xlane.xlu0 %1996
        %v1998 = vsel %vm881, %v1992, -inf
        %1999 = vmax.xlane.f32.xlu0 %v1998
        %v2000 = vpop.xlane.xlu0 %1999
        %v2001 = vsel %vm881, %v1993, -inf
        %2002 = vmax.xlane.f32.xlu0 %v2001
        %v2003 = vpop.xlane.xlu0 %2002
        %v2004 = vsel %vm881, %v1994, -inf
        %2005 = vmax.xlane.f32.xlu0 %v2004
        %v2006 = vpop.xlane.xlu0 %2005
        %v2007 = vsub.f32 %v1991, %v1997
        %v2008 = vsub.f32 %v1992, %v2000
        %v2009 = vsub.f32 %v1993, %v2003
        %v2010 = vsub.f32 %v1994, %v2006
        %v2011 = vmul.f32 %v2007, 1.442695
        %v2012 = vpow.pop %v2011
        %v2013 = vmul.f32 %v2008, 1.442695
        %v2014 = vpow.pop %v2013
        %v2015 = vmul.f32 %v2009, 1.442695
        %v2016 = vpow.pop %v2015
        %v2017 = vmul.f32 %v2010, 1.442695
        %v2018 = vpow.pop %v2017
        %v2019 = vsel %vm881, %v2012, 0.0
        %2020 = vadd.xlane.f32.xlu0 %v2019
        %v2021 = vpop.xlane.xlu0 %2020
        %v2022 = vsel %vm881, %v2014, 0.0
        %2023 = vadd.xlane.f32.xlu0 %v2022
        %v2024 = vpop.xlane.xlu0 %2023
        %v2025 = vsel %vm881, %v2016, 0.0
        %2026 = vadd.xlane.f32.xlu0 %v2025
        %v2027 = vpop.xlane.xlu0 %2026
        %v2028 = vsel %vm881, %v2018, 0.0
        %2029 = vadd.xlane.f32.xlu0 %v2028
        %v2030 = vpop.xlane.xlu0 %2029
        %v2031 = vrcp.pop %v2021
        %v2032 = vrcp.pop %v2024
        %v2033 = vrcp.pop %v2027
        %v2034 = vrcp.pop %v2030
        %v2035 = vmul.f32 %v2012, %v2031
        %v2036 = vmul.f32 %v2014, %v2032
        %v2037 = vmul.f32 %v2016, %v2033
        %v2038 = vmul.f32 %v2018, %v2034
        %v2039 = vpack.c.bf16 %v2036, %v2035
        %v2040 = vpack.c.bf16 %v2038, %v2037
        %v2041 = vpack.c.bf16 %v1927, %v1924
        %v2042 = vpack.c.bf16 %v1935, %v1932
        %v2044 = vsel %vm881, %v2039, 0
        %v2047 = vsel %vm881, %v2040, 0
        %2049 = vmatprep.subr.bf16.mxu0 0
        %2050 = vmatpush1.bf16.msra.mxu0 %v2041
        %2051 = vmatprep.subr.bf16.mxu0 0
        %2052 = vmatpush1.bf16.msra.mxu0 %v2042
        %2053 = vmatprep.subr.bf16.mxu0 0
        %2054 = vmatpush1.bf16.msra.mxu0 0
        %2055 = vmatprep.subr.bf16.mxu0 0
        %2056 = vmatpush1.bf16.msra.mxu0 0
        %2057 = vmatprep.subr.bf16.mxu0 0
        %2058 = vmatpush1.bf16.msra.mxu0 0
        %2059 = vmatprep.subr.bf16.mxu0 0
        %2060 = vmatpush1.bf16.msra.mxu0 0
        %2061 = vmatprep.subr.bf16.mxu0 0
        %2062 = vmatpush1.bf16.msra.mxu0 0
        %2063 = vmatprep.subr.bf16.mxu0 0
        %2064 = vmatpush1.bf16.msra.mxu0 0
        %2065 = vmatprep.subr.bf16.mxu0 0
        %2066 = vmatpush1.bf16.msra.mxu0 0
        %2067 = vmatprep.subr.bf16.mxu0 0
        %2068 = vmatpush1.bf16.msra.mxu0 0
        %2069 = vmatprep.subr.bf16.mxu0 0
        %2070 = vmatpush1.bf16.msra.mxu0 0
        %2071 = vmatprep.subr.bf16.mxu0 0
        %2072 = vmatpush1.bf16.msra.mxu0 0
        %2073 = vmatprep.subr.bf16.mxu0 0
        %2074 = vmatpush1.bf16.msra.mxu0 0
        %2075 = vmatprep.subr.bf16.mxu0 0
        %2076 = vmatpush1.bf16.msra.mxu0 0
        %2077 = vmatprep.subr.bf16.mxu0 0
        %2078 = vmatpush1.bf16.msra.mxu0 0
        %2079 = vmatprep.subr.bf16.mxu0 0
        %2080 = vmatpush1.bf16.msra.mxu0 0
        %2081 = vmatprep.mubr.bf16.mxu0 0
        %2082 = vmatmul.mubr.bf16.gmra.mrb[0].mxu0 %v2044
        %v2083 = vpop.f32.mrb[0].mxu0
        %v2084 = vadd.f32 0.0, %v2083
        %v2085 = vpop.f32.mrb[0].mxu0
        %v2086 = vpop.f32.mrb[0].mxu0
        %v2087 = vadd.f32 0.0, %v2086
        %v2088 = vpop.f32.mrb[0].mxu0
        %2089 = vmatprep.mubr.bf16.mxu0 0
        %2090 = vmatmul.mubr.bf16.gmra.mrb[0].mxu0 %v2047
        %v2091 = vpop.f32.mrb[0].mxu0
        %v2092 = vadd.f32 0.0, %v2091
        %v2093 = vpop.f32.mrb[0].mxu0
        %v2094 = vpop.f32.mrb[0].mxu0
        %v2095 = vadd.f32 0.0, %v2094
        %v2096 = vpop.f32.mrb[0].mxu0
        %2097 = vdwg.mxu0
        %v2098 = vpack.c.bf16 %v2087, %v2084
        %v2099 = vpack.c.bf16 %v2095, %v2092
        %s2100 = scalar_lea.vmem [#allocation4], 128
        %v2101 = vld [vmem:[%s2100] sm:$0xf]
        %v2102 = vld [vmem:[%s2100 + $0x4] sm:$0xf]
        %v2103 = vld [vmem:[%s2100 + $0x8] sm:$0xf]
        %v2104 = vld [vmem:[%s2100 + $0xc] sm:$0xf]
        %v2105 = vld [vmem:[%s2100 + $0x10] sm:$0xf]
        %v2106 = vld [vmem:[%s2100 + $0x14] sm:$0xf]
        %v2107 = vld [vmem:[%s2100 + $0x18] sm:$0xf]
        %v2108 = vld [vmem:[%s2100 + $0x1c] sm:$0xf]
        %v2109 = vld [vmem:[%s2100 + $0x20] sm:$0xf]
        %v2110 = vld [vmem:[%s2100 + $0x24] sm:$0xf]
        %v2111 = vld [vmem:[%s2100 + $0x28] sm:$0xf]
        %v2112 = vld [vmem:[%s2100 + $0x2c] sm:$0xf]
        %v2113 = vld [vmem:[%s2100 + $0x30] sm:$0xf]
        %v2114 = vld [vmem:[%s2100 + $0x34] sm:$0xf]
        %v2115 = vld [vmem:[%s2100 + $0x38] sm:$0xf]
        %v2116 = vld [vmem:[%s2100 + $0x3c] sm:$0xf]
        %v2133 = vunpack.c.l.b16 %v2101
        %v2134 = vunpack.c.l.b16 %v2102
        %v2135 = vunpack.c.l.b16 %v2103
        %v2136 = vunpack.c.l.b16 %v2104
        %v2137 = vunpack.c.l.b16 %v2105
        %v2138 = vunpack.c.l.b16 %v2106
        %v2139 = vunpack.c.l.b16 %v2107
        %v2140 = vunpack.c.l.b16 %v2108
        %v2141 = vunpack.c.l.b16 %v2109
        %v2142 = vunpack.c.l.b16 %v2110
        %v2143 = vunpack.c.l.b16 %v2111
        %v2144 = vunpack.c.l.b16 %v2112
        %v2145 = vunpack.c.l.b16 %v2113
        %v2146 = vunpack.c.l.b16 %v2114
        %v2147 = vunpack.c.l.b16 %v2115
        %v2148 = vunpack.c.l.b16 %v2116
        %v2149 = vpack.c.b16 %v2134, %v2133
        %v2150 = vpack.c.b16 %v2136, %v2135
        %v2151 = vpack.c.b16 %v2138, %v2137
        %v2152 = vpack.c.b16 %v2140, %v2139
        %v2153 = vpack.c.b16 %v2142, %v2141
        %v2154 = vpack.c.b16 %v2144, %v2143
        %v2155 = vpack.c.b16 %v2146, %v2145
        %v2156 = vpack.c.b16 %v2148, %v2147
        %2165 = vmatprep.subr.bf16.mxu0 0
        %2166 = vmatpush1.bf16.msra.mxu0 %v2149
        %2167 = vmatprep.subr.bf16.mxu0 0
        %2168 = vmatpush1.bf16.msra.mxu0 %v2150
        %2169 = vmatprep.subr.bf16.mxu0 0
        %2170 = vmatpush1.bf16.msra.mxu0 %v2151
        %2171 = vmatprep.subr.bf16.mxu0 0
        %2172 = vmatpush1.bf16.msra.mxu0 %v2152
        %2173 = vmatprep.subr.bf16.mxu0 0
        %2174 = vmatpush1.bf16.msra.mxu0 %v2153
        %2175 = vmatprep.subr.bf16.mxu0 0
        %2176 = vmatpush1.bf16.msra.mxu0 %v2154
        %2177 = vmatprep.subr.bf16.mxu0 0
        %2178 = vmatpush1.bf16.msra.mxu0 %v2155
        %2179 = vmatprep.subr.bf16.mxu0 0
        %2180 = vmatpush1.bf16.msra.mxu0 %v2156
        %2181 = vmatprep.subr.bf16.mxu0 0
        %2182 = vmatpush1.bf16.msra.mxu0 0
        %2183 = vmatprep.subr.bf16.mxu0 0
        %2184 = vmatpush1.bf16.msra.mxu0 0
        %2185 = vmatprep.subr.bf16.mxu0 0
        %2186 = vmatpush1.bf16.msra.mxu0 0
        %2187 = vmatprep.subr.bf16.mxu0 0
        %2188 = vmatpush1.bf16.msra.mxu0 0
        %2189 = vmatprep.subr.bf16.mxu0 0
        %2190 = vmatpush1.bf16.msra.mxu0 0
        %2191 = vmatprep.subr.bf16.mxu0 0
        %2192 = vmatpush1.bf16.msra.mxu0 0
        %2193 = vmatprep.subr.bf16.mxu0 0
        %2194 = vmatpush1.bf16.msra.mxu0 0
        %2195 = vmatprep.subr.bf16.mxu0 0
        %2196 = vmatpush1.bf16.msra.mxu0 0
        %2197 = vmatprep.mubr.bf16.mxu0 0
        %2198 = vmatmul.mubr.bf16.gmra.mrb[0].mxu0 %v2098
        %v2199 = vpop.f32.mrb[0].mxu0
        %v2200 = vadd.f32 0.0, %v2199
        %v2201 = vpop.f32.mrb[0].mxu0
        %v2202 = vpop.f32.mrb[0].mxu0
        %v2203 = vadd.f32 0.0, %v2202
        %v2204 = vpop.f32.mrb[0].mxu0
        %2205 = vmatprep.mubr.bf16.mxu0 0
        %2206 = vmatmul.mubr.bf16.gmra.mrb[0].mxu0 %v2099
        %v2207 = vpop.f32.mrb[0].mxu0
        %v2208 = vadd.f32 0.0, %v2207
        %v2209 = vpop.f32.mrb[0].mxu0
        %v2210 = vpop.f32.mrb[0].mxu0
        %v2211 = vadd.f32 0.0, %v2210
        %v2212 = vpop.f32.mrb[0].mxu0
        %2213 = vdwg.mxu0
        %v2214 = vadd.f32 %v1643, %v2200
        %v2215 = vadd.f32 %v1646, %v2203
        %v2216 = vadd.f32 %v1651, %v2208
        %v2217 = vadd.f32 %v1654, %v2211
        %s2218 = scalar_lea.vmem [#allocation2], 576
        %v2219 = vld [vmem:[%s2218] sm:$0xff]
        %v2220 = vld [vmem:[%s2218 + $0x8] sm:$0xf]
        %v2221 = vld [vmem:[%s2218 + $0xc] sm:$0xff]
        %v2222 = vld [vmem:[%s2218 + $0x14] sm:$0xf]
        %v2223 = vld [vmem:[%s2218 + $0x18] sm:$0xff]
        %v2224 = vld [vmem:[%s2218 + $0x20] sm:$0xf]
        %v2225 = vld [vmem:[%s2218 + $0x24] sm:$0xff]
        %v2226 = vld [vmem:[%s2218 + $0x2c] sm:$0xf]
        %v2227 = vld [vmem:[%s2218 + $0x30] sm:$0xff]
        %v2228 = vld [vmem:[%s2218 + $0x38] sm:$0xf]
        %v2229 = vld [vmem:[%s2218 + $0x3c] sm:$0xff]
        %v2230 = vld [vmem:[%s2218 + $0x44] sm:$0xf]
        %v2231 = vld [vmem:[%s2218 + $0x48] sm:$0xff]
        %v2232 = vld [vmem:[%s2218 + $0x50] sm:$0xf]
        %v2233 = vld [vmem:[%s2218 + $0x54] sm:$0xff]
        %v2234 = vld [vmem:[%s2218 + $0x5c] sm:$0xf]
        %v2235 = vld [vmem:[%s2218 + $0x60] sm:$0xff]
        %v2236 = vld [vmem:[%s2218 + $0x68] sm:$0xf]
        %v2237 = vld [vmem:[%s2218 + $0x6c] sm:$0xff]
        %v2238 = vld [vmem:[%s2218 + $0x74] sm:$0xf]
        %v2239 = vld [vmem:[%s2218 + $0x78] sm:$0xff]
        %v2240 = vld [vmem:[%s2218 + $0x80] sm:$0xf]
        %v2241 = vld [vmem:[%s2218 + $0x84] sm:$0xff]
        %v2242 = vld [vmem:[%s2218 + $0x8c] sm:$0xf]
        %v2243 = vld [vmem:[%s2218 + $0x90] sm:$0xff]
        %v2244 = vld [vmem:[%s2218 + $0x98] sm:$0xf]
        %v2245 = vld [vmem:[%s2218 + $0x9c] sm:$0xff]
        %v2246 = vld [vmem:[%s2218 + $0xa4] sm:$0xf]
        %v2247 = vld [vmem:[%s2218 + $0xa8] sm:$0xff]
        %v2248 = vld [vmem:[%s2218 + $0xb0] sm:$0xf]
        %v2249 = vld [vmem:[%s2218 + $0xb4] sm:$0xff]
        %v2250 = vld [vmem:[%s2218 + $0xbc] sm:$0xf]
        %s2251 = scalar_lea.vmem %s4, 9
        %v2252 = vld [vmem:[%s2251] sm:$0x7]
        %v2254 = vlaneseq
        %v2255 = vshrl.u32 %v2254, 7
        %v2256 = vsub.s32 0, %v2255
        %v2257 = vrot.slane %v2252, %v2256
        %v2258 = vlaneseq
        %v2259 = vshrl.u32 %v2258, 7
        %v2260 = vsub.s32 1, %v2259
        %v2261 = vrot.slane %v2252, %v2260
        %v2262 = vlaneseq
        %v2263 = vshrl.u32 %v2262, 7
        %v2264 = vsub.s32 2, %v2263
        %v2265 = vrot.slane %v2252, %v2264
        %v2301 = vunpack.c.l.b16 %v2219
        %v2302 = vunpack.c.h.b16 %v2219
        %v2303 = vunpack.c.l.b16 %v2220
        %v2304 = vunpack.c.l.b16 %v2221
        %v2305 = vunpack.c.h.b16 %v2221
        %v2306 = vunpack.c.l.b16 %v2222
        %v2307 = vunpack.c.l.b16 %v2223
        %v2308 = vunpack.c.h.b16 %v2223
        %v2309 = vunpack.c.l.b16 %v2224
        %v2310 = vunpack.c.l.b16 %v2225
        %v2311 = vunpack.c.h.b16 %v2225
        %v2312 = vunpack.c.l.b16 %v2226
        %v2313 = vunpack.c.l.b16 %v2227
        %v2314 = vunpack.c.h.b16 %v2227
        %v2315 = vunpack.c.l.b16 %v2228
        %v2316 = vunpack.c.l.b16 %v2229
        %v2317 = vunpack.c.h.b16 %v2229
        %v2318 = vunpack.c.l.b16 %v2230
        %v2319 = vunpack.c.l.b16 %v2231
        %v2320 = vunpack.c.h.b16 %v2231
        %v2321 = vunpack.c.l.b16 %v2232
        %v2322 = vunpack.c.l.b16 %v2233
        %v2323 = vunpack.c.h.b16 %v2233
        %v2324 = vunpack.c.l.b16 %v2234
        %v2325 = vunpack.c.l.b16 %v2235
        %v2326 = vunpack.c.h.b16 %v2235
        %v2327 = vunpack.c.l.b16 %v2236
        %v2328 = vunpack.c.l.b16 %v2237
        %v2329 = vunpack.c.h.b16 %v2237
        %v2330 = vunpack.c.l.b16 %v2238
        %v2331 = vunpack.c.l.b16 %v2239
        %v2332 = vunpack.c.h.b16 %v2239
        %v2333 = vunpack.c.l.b16 %v2240
        %v2334 = vunpack.c.l.b16 %v2241
        %v2335 = vunpack.c.h.b16 %v2241
        %v2336 = vunpack.c.l.b16 %v2242
        %v2337 = vunpack.c.l.b16 %v2243
        %v2338 = vunpack.c.h.b16 %v2243
        %v2339 = vunpack.c.l.b16 %v2244
        %v2340 = vunpack.c.l.b16 %v2245
        %v2341 = vunpack.c.h.b16 %v2245
        %v2342 = vunpack.c.l.b16 %v2246
        %v2343 = vunpack.c.l.b16 %v2247
        %v2344 = vunpack.c.h.b16 %v2247
        %v2345 = vunpack.c.l.b16 %v2248
        %v2346 = vunpack.c.l.b16 %v2249
        %v2347 = vunpack.c.h.b16 %v2249
        %v2348 = vunpack.c.l.b16 %v2250
        %v2349 = vpack.c.b16 %v2304, %v2301
        %v2350 = vpack.c.b16 %v2305, %v2302
        %v2351 = vpack.c.b16 %v2306, %v2303
        %v2352 = vpack.c.b16 %v2310, %v2307
        %v2353 = vpack.c.b16 %v2311, %v2308
        %v2354 = vpack.c.b16 %v2312, %v2309
        %v2355 = vpack.c.b16 %v2316, %v2313
        %v2356 = vpack.c.b16 %v2317, %v2314
        %v2357 = vpack.c.b16 %v2318, %v2315
        %v2358 = vpack.c.b16 %v2322, %v2319
        %v2359 = vpack.c.b16 %v2323, %v2320
        %v2360 = vpack.c.b16 %v2324, %v2321
        %v2361 = vpack.c.b16 %v2328, %v2325
        %v2362 = vpack.c.b16 %v2329, %v2326
        %v2363 = vpack.c.b16 %v2330, %v2327
        %v2364 = vpack.c.b16 %v2334, %v2331
        %v2365 = vpack.c.b16 %v2335, %v2332
        %v2366 = vpack.c.b16 %v2336, %v2333
        %v2367 = vpack.c.b16 %v2340, %v2337
        %v2368 = vpack.c.b16 %v2341, %v2338
        %v2369 = vpack.c.b16 %v2342, %v2339
        %v2370 = vpack.c.b16 %v2346, %v2343
        %v2371 = vpack.c.b16 %v2347, %v2344
        %v2372 = vpack.c.b16 %v2348, %v2345
        %2397 = vmatprep.subr.bf16.mxu0 %v2350
        %2398 = vmatpush1.bf16.msra.mxu0 %v2349
        %2399 = vmatprep.subr.bf16.mxu0 %v2353
        %2400 = vmatpush1.bf16.msra.mxu0 %v2352
        %2401 = vmatprep.subr.bf16.mxu0 %v2356
        %2402 = vmatpush1.bf16.msra.mxu0 %v2355
        %2403 = vmatprep.subr.bf16.mxu0 %v2359
        %2404 = vmatpush1.bf16.msra.mxu0 %v2358
        %2405 = vmatprep.subr.bf16.mxu0 %v2362
        %2406 = vmatpush1.bf16.msra.mxu0 %v2361
        %2407 = vmatprep.subr.bf16.mxu0 %v2365
        %2408 = vmatpush1.bf16.msra.mxu0 %v2364
        %2409 = vmatprep.subr.bf16.mxu0 %v2368
        %2410 = vmatpush1.bf16.msra.mxu0 %v2367
        %2411 = vmatprep.subr.bf16.mxu0 %v2371
        %2412 = vmatpush1.bf16.msra.mxu0 %v2370
        %2413 = vmatprep.subr.bf16.mxu0 0
        %2414 = vmatpush1.bf16.msra.mxu0 0
        %2415 = vmatprep.subr.bf16.mxu0 0
        %2416 = vmatpush1.bf16.msra.mxu0 0
        %2417 = vmatprep.subr.bf16.mxu0 0
        %2418 = vmatpush1.bf16.msra.mxu0 0
        %2419 = vmatprep.subr.bf16.mxu0 0
        %2420 = vmatpush1.bf16.msra.mxu0 0
        %2421 = vmatprep.subr.bf16.mxu0 0
        %2422 = vmatpush1.bf16.msra.mxu0 0
        %2423 = vmatprep.subr.bf16.mxu0 0
        %2424 = vmatpush1.bf16.msra.mxu0 0
        %2425 = vmatprep.subr.bf16.mxu0 0
        %2426 = vmatpush1.bf16.msra.mxu0 0
        %2427 = vmatprep.subr.bf16.mxu0 0
        %2428 = vmatpush1.bf16.msra.mxu0 0
        %2429 = vmatprep.mubr.bf16.mxu0 0
        %2430 = vmatmul.mubr.bf16.gmra.mrb[0].mxu0 %v543
        %v2431 = vpop.f32.mrb[0].mxu0
        %v2432 = vadd.f32 %v2257, %v2431
        %v2433 = vpop.f32.mrb[0].mxu0
        %v2434 = vadd.f32 %v2261, %v2433
        %v2435 = vpop.f32.mrb[0].mxu0
        %v2436 = vadd.f32 %v2257, %v2435
        %v2437 = vpop.f32.mrb[0].mxu0
        %v2438 = vadd.f32 %v2261, %v2437
        %2439 = vmatprep.mubr.bf16.mxu0 0
        %2440 = vmatmul.mubr.bf16.gmra.mrb[0].mxu0 %v544
        %v2441 = vpop.f32.mrb[0].mxu0
        %v2442 = vadd.f32 %v2257, %v2441
        %v2443 = vpop.f32.mrb[0].mxu0
        %v2444 = vadd.f32 %v2261, %v2443
        %v2445 = vpop.f32.mrb[0].mxu0
        %v2446 = vadd.f32 %v2257, %v2445
        %v2447 = vpop.f32.mrb[0].mxu0
        %v2448 = vadd.f32 %v2261, %v2447
        %2449 = vdwg.mxu0
        %2450 = vmatprep.subr.bf16.mxu0 0
        %2451 = vmatpush1.bf16.msra.mxu0 %v2351
        %2452 = vmatprep.subr.bf16.mxu0 0
        %2453 = vmatpush1.bf16.msra.mxu0 %v2354
        %2454 = vmatprep.subr.bf16.mxu0 0
        %2455 = vmatpush1.bf16.msra.mxu0 %v2357
        %2456 = vmatprep.subr.bf16.mxu0 0
        %2457 = vmatpush1.bf16.msra.mxu0 %v2360
        %2458 = vmatprep.subr.bf16.mxu0 0
        %2459 = vmatpush1.bf16.msra.mxu0 %v2363
        %2460 = vmatprep.subr.bf16.mxu0 0
        %2461 = vmatpush1.bf16.msra.mxu0 %v2366
        %2462 = vmatprep.subr.bf16.mxu0 0
        %2463 = vmatpush1.bf16.msra.mxu0 %v2369
        %2464 = vmatprep.subr.bf16.mxu0 0
        %2465 = vmatpush1.bf16.msra.mxu0 %v2372
        %2466 = vmatprep.subr.bf16.mxu0 0
        %2467 = vmatpush1.bf16.msra.mxu0 0
        %2468 = vmatprep.subr.bf16.mxu0 0
        %2469 = vmatpush1.bf16.msra.mxu0 0
        %2470 = vmatprep.subr.bf16.mxu0 0
        %2471 = vmatpush1.bf16.msra.mxu0 0
        %2472 = vmatprep.subr.bf16.mxu0 0
        %2473 = vmatpush1.bf16.msra.mxu0 0
        %2474 = vmatprep.subr.bf16.mxu0 0
        %2475 = vmatpush1.bf16.msra.mxu0 0
        %2476 = vmatprep.subr.bf16.mxu0 0
        %2477 = vmatpush1.bf16.msra.mxu0 0
        %2478 = vmatprep.subr.bf16.mxu0 0
        %2479 = vmatpush1.bf16.msra.mxu0 0
        %2480 = vmatprep.subr.bf16.mxu0 0
        %2481 = vmatpush1.bf16.msra.mxu0 0
        %2482 = vmatprep.mubr.bf16.mxu0 0
        %2483 = vmatmul.mubr.bf16.gmra.mrb[0].mxu0 %v543
        %v2484 = vpop.f32.mrb[0].mxu0
        %v2485 = vadd.f32 %v2265, %v2484
        %v2486 = vpop.f32.mrb[0].mxu0
        %v2487 = vpop.f32.mrb[0].mxu0
        %v2488 = vadd.f32 %v2265, %v2487
        %v2489 = vpop.f32.mrb[0].mxu0
        %2490 = vmatprep.mubr.bf16.mxu0 0
        %2491 = vmatmul.mubr.bf16.gmra.mrb[0].mxu0 %v544
        %v2492 = vpop.f32.mrb[0].mxu0
        %v2493 = vadd.f32 %v2265, %v2492
        %v2494 = vpop.f32.mrb[0].mxu0
        %v2495 = vpop.f32.mrb[0].mxu0
        %v2496 = vadd.f32 %v2265, %v2495
        %v2497 = vpop.f32.mrb[0].mxu0
        %2498 = vdwg.mxu0
        %v2499 = vpack.c.bf16 %v2436, %v2432
        %v2500 = vpack.c.bf16 %v2446, %v2442
        %v2501 = vpack.c.bf16 %v2438, %v2434
        %v2502 = vpack.c.bf16 %v2448, %v2444
        %2503 = vmatprep.subr.bf16.mxu0 0
        %2504 = vmatpush1.bf16.xpose.msra.mxu0 %v2501
        %2505 = vmatprep.subr.bf16.mxu0 0
        %2506 = vmatpush1.bf16.xpose.msra.mxu0 %v2502
        %2507 = vmatprep.subr.bf16.mxu0 0
        %2508 = vmatpush1.bf16.xpose.msra.mxu0 0
        %2509 = vmatprep.subr.bf16.mxu0 0
        %2510 = vmatpush1.bf16.xpose.msra.mxu0 0
        %2511 = vmatprep.subr.bf16.mxu0 0
        %2512 = vmatpush1.bf16.xpose.msra.mxu0 0
        %2513 = vmatprep.subr.bf16.mxu0 0
        %2514 = vmatpush1.bf16.xpose.msra.mxu0 0
        %2515 = vmatprep.subr.bf16.mxu0 0
        %2516 = vmatpush1.bf16.xpose.msra.mxu0 0
        %2517 = vmatprep.subr.bf16.mxu0 0
        %2518 = vmatpush1.bf16.xpose.msra.mxu0 0
        %2519 = vmatprep.subr.bf16.mxu0 0
        %2520 = vmatpush1.bf16.xpose.msra.mxu0 0
        %2521 = vmatprep.subr.bf16.mxu0 0
        %2522 = vmatpush1.bf16.xpose.msra.mxu0 0
        %2523 = vmatprep.subr.bf16.mxu0 0
        %2524 = vmatpush1.bf16.xpose.msra.mxu0 0
        %2525 = vmatprep.subr.bf16.mxu0 0
        %2526 = vmatpush1.bf16.xpose.msra.mxu0 0
        %2527 = vmatprep.subr.bf16.mxu0 0
        %2528 = vmatpush1.bf16.xpose.msra.mxu0 0
        %2529 = vmatprep.subr.bf16.mxu0 0
        %2530 = vmatpush1.bf16.xpose.msra.mxu0 0
        %2531 = vmatprep.subr.bf16.mxu0 0
        %2532 = vmatpush1.bf16.xpose.msra.mxu0 0
        %2533 = vmatprep.subr.bf16.mxu0 0
        %2534 = vmatpush1.bf16.xpose.msra.mxu0 0
        %2535 = vmatprep.mubr.bf16.mxu0 0
        %2536 = vmatmul.mubr.bf16.gmra.mrb[0].mxu0 %v2499
        %v2537 = vpop.f32.mrb[0].mxu0
        %v2538 = vadd.f32 0.0, %v2537
        %v2539 = vpop.f32.mrb[0].mxu0
        %v2540 = vpop.f32.mrb[0].mxu0
        %v2541 = vadd.f32 0.0, %v2540
        %v2542 = vpop.f32.mrb[0].mxu0
        %2543 = vmatprep.mubr.bf16.mxu0 0
        %2544 = vmatmul.mubr.bf16.gmra.mrb[0].mxu0 %v2500
        %v2545 = vpop.f32.mrb[0].mxu0
        %v2546 = vadd.f32 0.0, %v2545
        %v2547 = vpop.f32.mrb[0].mxu0
        %v2548 = vpop.f32.mrb[0].mxu0
        %v2549 = vadd.f32 0.0, %v2548
        %v2550 = vpop.f32.mrb[0].mxu0
        %2551 = vdwg.mxu0
        %v2552 = vmul.f32 %v2538, 0.17677669
        %v2553 = vmul.f32 %v2541, 0.17677669
        %v2554 = vmul.f32 %v2546, 0.17677669
        %v2555 = vmul.f32 %v2549, 0.17677669
        %v2556 = vsel %vm881, %v2552, -inf
        %2557 = vmax.xlane.f32.xlu0 %v2556
        %v2558 = vpop.xlane.xlu0 %2557
        %v2559 = vsel %vm881, %v2553, -inf
        %2560 = vmax.xlane.f32.xlu0 %v2559
        %v2561 = vpop.xlane.xlu0 %2560
        %v2562 = vsel %vm881, %v2554, -inf
        %2563 = vmax.xlane.f32.xlu0 %v2562
        %v2564 = vpop.xlane.xlu0 %2563
        %v2565 = vsel %vm881, %v2555, -inf
        %2566 = vmax.xlane.f32.xlu0 %v2565
        %v2567 = vpop.xlane.xlu0 %2566
        %v2568 = vsub.f32 %v2552, %v2558
        %v2569 = vsub.f32 %v2553, %v2561
        %v2570 = vsub.f32 %v2554, %v2564
        %v2571 = vsub.f32 %v2555, %v2567
        %v2572 = vmul.f32 %v2568, 1.442695
        %v2573 = vpow.pop %v2572
        %v2574 = vmul.f32 %v2569, 1.442695
        %v2575 = vpow.pop %v2574
        %v2576 = vmul.f32 %v2570, 1.442695
        %v2577 = vpow.pop %v2576
        %v2578 = vmul.f32 %v2571, 1.442695
        %v2579 = vpow.pop %v2578
        %v2580 = vsel %vm881, %v2573, 0.0
        %2581 = vadd.xlane.f32.xlu0 %v2580
        %v2582 = vpop.xlane.xlu0 %2581
        %v2583 = vsel %vm881, %v2575, 0.0
        %2584 = vadd.xlane.f32.xlu0 %v2583
        %v2585 = vpop.xlane.xlu0 %2584
        %v2586 = vsel %vm881, %v2577, 0.0
        %2587 = vadd.xlane.f32.xlu0 %v2586
        %v2588 = vpop.xlane.xlu0 %2587
        %v2589 = vsel %vm881, %v2579, 0.0
        %2590 = vadd.xlane.f32.xlu0 %v2589
        %v2591 = vpop.xlane.xlu0 %2590
        %v2592 = vrcp.pop %v2582
        %v2593 = vrcp.pop %v2585
        %v2594 = vrcp.pop %v2588
        %v2595 = vrcp.pop %v2591
        %v2596 = vmul.f32 %v2573, %v2592
        %v2597 = vmul.f32 %v2575, %v2593
        %v2598 = vmul.f32 %v2577, %v2594
        %v2599 = vmul.f32 %v2579, %v2595
        %v2600 = vpack.c.bf16 %v2597, %v2596
        %v2601 = vpack.c.bf16 %v2599, %v2598
        %v2602 = vpack.c.bf16 %v2488, %v2485
        %v2603 = vpack.c.bf16 %v2496, %v2493
        %v2605 = vsel %vm881, %v2600, 0
        %v2608 = vsel %vm881, %v2601, 0
        %2610 = vmatprep.subr.bf16.mxu0 0
        %2611 = vmatpush1.bf16.msra.mxu0 %v2602
        %2612 = vmatprep.subr.bf16.mxu0 0
        %2613 = vmatpush1.bf16.msra.mxu0 %v2603
        %2614 = vmatprep.subr.bf16.mxu0 0
        %2615 = vmatpush1.bf16.msra.mxu0 0
        %2616 = vmatprep.subr.bf16.mxu0 0
        %2617 = vmatpush1.bf16.msra.mxu0 0
        %2618 = vmatprep.subr.bf16.mxu0 0
        %2619 = vmatpush1.bf16.msra.mxu0 0
        %2620 = vmatprep.subr.bf16.mxu0 0
        %2621 = vmatpush1.bf16.msra.mxu0 0
        %2622 = vmatprep.subr.bf16.mxu0 0
        %2623 = vmatpush1.bf16.msra.mxu0 0
        %2624 = vmatprep.subr.bf16.mxu0 0
        %2625 = vmatpush1.bf16.msra.mxu0 0
        %2626 = vmatprep.subr.bf16.mxu0 0
        %2627 = vmatpush1.bf16.msra.mxu0 0
        %2628 = vmatprep.subr.bf16.mxu0 0
        %2629 = vmatpush1.bf16.msra.mxu0 0
        %2630 = vmatprep.subr.bf16.mxu0 0
        %2631 = vmatpush1.bf16.msra.mxu0 0
        %2632 = vmatprep.subr.bf16.mxu0 0
        %2633 = vmatpush1.bf16.msra.mxu0 0
        %2634 = vmatprep.subr.bf16.mxu0 0
        %2635 = vmatpush1.bf16.msra.mxu0 0
        %2636 = vmatprep.subr.bf16.mxu0 0
        %2637 = vmatpush1.bf16.msra.mxu0 0
        %2638 = vmatprep.subr.bf16.mxu0 0
        %2639 = vmatpush1.bf16.msra.mxu0 0
        %2640 = vmatprep.subr.bf16.mxu0 0
        %2641 = vmatpush1.bf16.msra.mxu0 0
        %2642 = vmatprep.mubr.bf16.mxu0 0
        %2643 = vmatmul.mubr.bf16.gmra.mrb[0].mxu0 %v2605
        %v2644 = vpop.f32.mrb[0].mxu0
        %v2645 = vadd.f32 0.0, %v2644
        %v2646 = vpop.f32.mrb[0].mxu0
        %v2647 = vpop.f32.mrb[0].mxu0
        %v2648 = vadd.f32 0.0, %v2647
        %v2649 = vpop.f32.mrb[0].mxu0
        %2650 = vmatprep.mubr.bf16.mxu0 0
        %2651 = vmatmul.mubr.bf16.gmra.mrb[0].mxu0 %v2608
        %v2652 = vpop.f32.mrb[0].mxu0
        %v2653 = vadd.f32 0.0, %v2652
        %v2654 = vpop.f32.mrb[0].mxu0
        %v2655 = vpop.f32.mrb[0].mxu0
        %v2656 = vadd.f32 0.0, %v2655
        %v2657 = vpop.f32.mrb[0].mxu0
        %2658 = vdwg.mxu0
        %v2659 = vpack.c.bf16 %v2648, %v2645
        %v2660 = vpack.c.bf16 %v2656, %v2653
        %s2661 = scalar_lea.vmem [#allocation4], 192
        %v2662 = vld [vmem:[%s2661] sm:$0xf]
        %v2663 = vld [vmem:[%s2661 + $0x4] sm:$0xf]
        %v2664 = vld [vmem:[%s2661 + $0x8] sm:$0xf]
        %v2665 = vld [vmem:[%s2661 + $0xc] sm:$0xf]
        %v2666 = vld [vmem:[%s2661 + $0x10] sm:$0xf]
        %v2667 = vld [vmem:[%s2661 + $0x14] sm:$0xf]
        %v2668 = vld [vmem:[%s2661 + $0x18] sm:$0xf]
        %v2669 = vld [vmem:[%s2661 + $0x1c] sm:$0xf]
        %v2670 = vld [vmem:[%s2661 + $0x20] sm:$0xf]
        %v2671 = vld [vmem:[%s2661 + $0x24] sm:$0xf]
        %v2672 = vld [vmem:[%s2661 + $0x28] sm:$0xf]
        %v2673 = vld [vmem:[%s2661 + $0x2c] sm:$0xf]
        %v2674 = vld [vmem:[%s2661 + $0x30] sm:$0xf]
        %v2675 = vld [vmem:[%s2661 + $0x34] sm:$0xf]
        %v2676 = vld [vmem:[%s2661 + $0x38] sm:$0xf]
        %v2677 = vld [vmem:[%s2661 + $0x3c] sm:$0xf]
        %v2694 = vunpack.c.l.b16 %v2662
        %v2695 = vunpack.c.l.b16 %v2663
        %v2696 = vunpack.c.l.b16 %v2664
        %v2697 = vunpack.c.l.b16 %v2665
        %v2698 = vunpack.c.l.b16 %v2666
        %v2699 = vunpack.c.l.b16 %v2667
        %v2700 = vunpack.c.l.b16 %v2668
        %v2701 = vunpack.c.l.b16 %v2669
        %v2702 = vunpack.c.l.b16 %v2670
        %v2703 = vunpack.c.l.b16 %v2671
        %v2704 = vunpack.c.l.b16 %v2672
        %v2705 = vunpack.c.l.b16 %v2673
        %v2706 = vunpack.c.l.b16 %v2674
        %v2707 = vunpack.c.l.b16 %v2675
        %v2708 = vunpack.c.l.b16 %v2676
        %v2709 = vunpack.c.l.b16 %v2677
        %v2710 = vpack.c.b16 %v2695, %v2694
        %v2711 = vpack.c.b16 %v2697, %v2696
        %v2712 = vpack.c.b16 %v2699, %v2698
        %v2713 = vpack.c.b16 %v2701, %v2700
        %v2714 = vpack.c.b16 %v2703, %v2702
        %v2715 = vpack.c.b16 %v2705, %v2704
        %v2716 = vpack.c.b16 %v2707, %v2706
        %v2717 = vpack.c.b16 %v2709, %v2708
        %2726 = vmatprep.subr.bf16.mxu0 0
        %2727 = vmatpush1.bf16.msra.mxu0 %v2710
        %2728 = vmatprep.subr.bf16.mxu0 0
        %2729 = vmatpush1.bf16.msra.mxu0 %v2711
        %2730 = vmatprep.subr.bf16.mxu0 0
        %2731 = vmatpush1.bf16.msra.mxu0 %v2712
        %2732 = vmatprep.subr.bf16.mxu0 0
        %2733 = vmatpush1.bf16.msra.mxu0 %v2713
        %2734 = vmatprep.subr.bf16.mxu0 0
        %2735 = vmatpush1.bf16.msra.mxu0 %v2714
        %2736 = vmatprep.subr.bf16.mxu0 0
        %2737 = vmatpush1.bf16.msra.mxu0 %v2715
        %2738 = vmatprep.subr.bf16.mxu0 0
        %2739 = vmatpush1.bf16.msra.mxu0 %v2716
        %2740 = vmatprep.subr.bf16.mxu0 0
        %2741 = vmatpush1.bf16.msra.mxu0 %v2717
        %2742 = vmatprep.subr.bf16.mxu0 0
        %2743 = vmatpush1.bf16.msra.mxu0 0
        %2744 = vmatprep.subr.bf16.mxu0 0
        %2745 = vmatpush1.bf16.msra.mxu0 0
        %2746 = vmatprep.subr.bf16.mxu0 0
        %2747 = vmatpush1.bf16.msra.mxu0 0
        %2748 = vmatprep.subr.bf16.mxu0 0
        %2749 = vmatpush1.bf16.msra.mxu0 0
        %2750 = vmatprep.subr.bf16.mxu0 0
        %2751 = vmatpush1.bf16.msra.mxu0 0
        %2752 = vmatprep.subr.bf16.mxu0 0
        %2753 = vmatpush1.bf16.msra.mxu0 0
        %2754 = vmatprep.subr.bf16.mxu0 0
        %2755 = vmatpush1.bf16.msra.mxu0 0
        %2756 = vmatprep.subr.bf16.mxu0 0
        %2757 = vmatpush1.bf16.msra.mxu0 0
        %2758 = vmatprep.mubr.bf16.mxu0 0
        %2759 = vmatmul.mubr.bf16.gmra.mrb[0].mxu0 %v2659
        %v2760 = vpop.f32.mrb[0].mxu0
        %v2761 = vadd.f32 0.0, %v2760
        %v2762 = vpop.f32.mrb[0].mxu0
        %v2763 = vpop.f32.mrb[0].mxu0
        %v2764 = vadd.f32 0.0, %v2763
        %v2765 = vpop.f32.mrb[0].mxu0
        %2766 = vmatprep.mubr.bf16.mxu0 0
        %2767 = vmatmul.mubr.bf16.gmra.mrb[0].mxu0 %v2660
        %v2768 = vpop.f32.mrb[0].mxu0
        %v2769 = vadd.f32 0.0, %v2768
        %v2770 = vpop.f32.mrb[0].mxu0
        %v2771 = vpop.f32.mrb[0].mxu0
        %v2772 = vadd.f32 0.0, %v2771
        %v2773 = vpop.f32.mrb[0].mxu0
        %2774 = vdwg.mxu0
        %v2775 = vadd.f32 %v2214, %v2761
        %v2776 = vadd.f32 %v2215, %v2764
        %v2777 = vadd.f32 %v2216, %v2769
        %v2778 = vadd.f32 %v2217, %v2772
        %v2779 = vadd.f32 %v472, %v2775
        %v2780 = vadd.f32 %v473, %v2776
        %v2781 = vadd.f32 %v474, %v2777
        %v2782 = vadd.f32 %v475, %v2778
        %v2783 = vld [vmem:[%s6] sm:$0x1]
        %v2785 = vlaneseq
        %v2786 = vshrl.u32 %v2785, 7
        %v2787 = vsub.s32 0, %v2786
        %v2788 = vrot.slane %v2783, %v2787
        %v2790 = vadd.f32 %v2779, %v2788
        %v2791 = vadd.f32 %v2780, %v2788
        %v2792 = vadd.f32 %v2781, %v2788
        %v2793 = vadd.f32 %v2782, %v2788
        %2794 = vst [vmem:[%s465] sm:$0xff] %v2790
        %2795 = vst [vmem:[%s465 + $0x8] sm:$0xff] %v2791
        %2796 = vst [vmem:[%s465 + $0x10] sm:$0xff] %v2792
        %2797 = vst [vmem:[%s465 + $0x18] sm:$0xff] %v2793
        %2798 = vadd.xlane.f32.xlu0 %v2790
        %v2799 = vpop.xlane.xlu0 %2798
        %2800 = vadd.xlane.f32.xlu0 %v2791
        %v2801 = vpop.xlane.xlu0 %2800
        %2802 = vadd.xlane.f32.xlu0 %v2792
        %v2803 = vpop.xlane.xlu0 %2802
        %2804 = vadd.xlane.f32.xlu0 %v2793
        %v2805 = vpop.xlane.xlu0 %2804
        %v2806 = vmul.f32 %v2799, %v484
        %v2807 = vmul.f32 %v2801, %v484
        %v2808 = vmul.f32 %v2803, %v484
        %v2809 = vmul.f32 %v2805, %v484
        %v2810 = vsub.f32 %v2790, %v2806
        %v2811 = vsub.f32 %v2791, %v2807
        %v2812 = vsub.f32 %v2792, %v2808
        %v2813 = vsub.f32 %v2793, %v2809
        %v2814 = vmul.f32 %v2810, %v2810
        %v2815 = vmul.f32 %v2811, %v2811
        %v2816 = vmul.f32 %v2812, %v2812
        %v2817 = vmul.f32 %v2813, %v2813
        %2818 = vadd.xlane.f32.xlu0 %v2814
        %v2819 = vpop.xlane.xlu0 %2818
        %2820 = vadd.xlane.f32.xlu0 %v2815
        %v2821 = vpop.xlane.xlu0 %2820
        %2822 = vadd.xlane.f32.xlu0 %v2816
        %v2823 = vpop.xlane.xlu0 %2822
        %2824 = vadd.xlane.f32.xlu0 %v2817
        %v2825 = vpop.xlane.xlu0 %2824
        %v2826 = vmul.f32 %v2819, %v484
        %v2827 = vmul.f32 %v2821, %v484
        %v2828 = vmul.f32 %v2823, %v484
        %v2829 = vmul.f32 %v2825, %v484
        %v2830 = vadd.f32 %v2826, 1e-05
        %v2831 = vadd.f32 %v2827, 1e-05
        %v2832 = vadd.f32 %v2828, 1e-05
        %v2833 = vadd.f32 %v2829, 1e-05
        %v2834 = vrsqrt.pop %v2830
        %v2835 = vrsqrt.pop %v2831
        %v2836 = vrsqrt.pop %v2832
        %v2837 = vrsqrt.pop %v2833
        %v2838 = vmul.f32 %v2810, %v2834
        %v2839 = vmul.f32 %v2811, %v2835
        %v2840 = vmul.f32 %v2812, %v2836
        %v2841 = vmul.f32 %v2813, %v2837
        %v2842 = vld [vmem:[%s7] sm:$0x1]
        %v2844 = vlaneseq
        %v2845 = vshrl.u32 %v2844, 7
        %v2846 = vsub.s32 0, %v2845
        %v2847 = vrot.slane %v2842, %v2846
        %v2849 = vmul.f32 %v2838, %v2847
        %v2850 = vmul.f32 %v2839, %v2847
        %v2851 = vmul.f32 %v2840, %v2847
        %v2852 = vmul.f32 %v2841, %v2847
        %v2853 = vld [vmem:[%s8] sm:$0x1]
        %v2855 = vlaneseq
        %v2856 = vshrl.u32 %v2855, 7
        %v2857 = vsub.s32 0, %v2856
        %v2858 = vrot.slane %v2853, %v2857
        %v2860 = vadd.f32 %v2849, %v2858
        %v2861 = vadd.f32 %v2850, %v2858
        %v2862 = vadd.f32 %v2851, %v2858
        %v2863 = vadd.f32 %v2852, %v2858
        %v2864 = vpack.c.bf16 %v2861, %v2860
        %v2865 = vpack.c.bf16 %v2863, %v2862
        %v2866 = vld [vmem:[#allocation6] sm:$0xff]
        %v2867 = vld [vmem:[#allocation6 + $0x8] sm:$0xff]
        %v2868 = vld [vmem:[#allocation6 + $0x10] sm:$0xff]
        %v2869 = vld [vmem:[#allocation6 + $0x18] sm:$0xff]
        %v2870 = vld [vmem:[#allocation6 + $0x20] sm:$0xff]
        %v2871 = vld [vmem:[#allocation6 + $0x28] sm:$0xff]
        %v2872 = vld [vmem:[#allocation6 + $0x30] sm:$0xff]
        %v2873 = vld [vmem:[#allocation6 + $0x38] sm:$0xff]
        %v2874 = vld [vmem:[#allocation6 + $0x40] sm:$0xff]
        %v2875 = vld [vmem:[#allocation6 + $0x48] sm:$0xff]
        %v2876 = vld [vmem:[#allocation6 + $0x50] sm:$0xff]
        %v2877 = vld [vmem:[#allocation6 + $0x58] sm:$0xff]
        %v2878 = vld [vmem:[#allocation6 + $0x60] sm:$0xff]
        %v2879 = vld [vmem:[#allocation6 + $0x68] sm:$0xff]
        %v2880 = vld [vmem:[#allocation6 + $0x70] sm:$0xff]
        %v2881 = vld [vmem:[#allocation6 + $0x78] sm:$0xff]
        %v2882 = vld [vmem:[#allocation6 + $0x80] sm:$0xff]
        %v2883 = vld [vmem:[#allocation6 + $0x88] sm:$0xff]
        %v2884 = vld [vmem:[#allocation6 + $0x90] sm:$0xff]
        %v2885 = vld [vmem:[#allocation6 + $0x98] sm:$0xff]
        %v2886 = vld [vmem:[#allocation6 + $0xa0] sm:$0xff]
        %v2887 = vld [vmem:[#allocation6 + $0xa8] sm:$0xff]
        %v2888 = vld [vmem:[#allocation6 + $0xb0] sm:$0xff]
        %v2889 = vld [vmem:[#allocation6 + $0xb8] sm:$0xff]
        %v2890 = vld [vmem:[#allocation6 + $0xc0] sm:$0xff]
        %v2891 = vld [vmem:[#allocation6 + $0xc8] sm:$0xff]
        %v2892 = vld [vmem:[#allocation6 + $0xd0] sm:$0xff]
        %v2893 = vld [vmem:[#allocation6 + $0xd8] sm:$0xff]
        %v2894 = vld [vmem:[#allocation6 + $0xe0] sm:$0xff]
        %v2895 = vld [vmem:[#allocation6 + $0xe8] sm:$0xff]
        %v2896 = vld [vmem:[#allocation6 + $0xf0] sm:$0xff]
        %v2897 = vld [vmem:[#allocation6 + $0xf8] sm:$0xff]
        %v2898 = vld [vmem:[#allocation6 + $0x100] sm:$0xff]
        %v2899 = vld [vmem:[#allocation6 + $0x108] sm:$0xff]
        %v2900 = vld [vmem:[#allocation6 + $0x110] sm:$0xff]
        %v2901 = vld [vmem:[#allocation6 + $0x118] sm:$0xff]
        %v2902 = vld [vmem:[#allocation6 + $0x120] sm:$0xff]
        %v2903 = vld [vmem:[#allocation6 + $0x128] sm:$0xff]
        %v2904 = vld [vmem:[#allocation6 + $0x130] sm:$0xff]
        %v2905 = vld [vmem:[#allocation6 + $0x138] sm:$0xff]
        %v2906 = vld [vmem:[#allocation6 + $0x140] sm:$0xff]
        %v2907 = vld [vmem:[#allocation6 + $0x148] sm:$0xff]
        %v2908 = vld [vmem:[#allocation6 + $0x150] sm:$0xff]
        %v2909 = vld [vmem:[#allocation6 + $0x158] sm:$0xff]
        %v2910 = vld [vmem:[#allocation6 + $0x160] sm:$0xff]
        %v2911 = vld [vmem:[#allocation6 + $0x168] sm:$0xff]
        %v2912 = vld [vmem:[#allocation6 + $0x170] sm:$0xff]
        %v2913 = vld [vmem:[#allocation6 + $0x178] sm:$0xff]
        %v2914 = vld [vmem:[#allocation6 + $0x180] sm:$0xff]
        %v2915 = vld [vmem:[#allocation6 + $0x188] sm:$0xff]
        %v2916 = vld [vmem:[#allocation6 + $0x190] sm:$0xff]
        %v2917 = vld [vmem:[#allocation6 + $0x198] sm:$0xff]
        %v2918 = vld [vmem:[#allocation6 + $0x1a0] sm:$0xff]
        %v2919 = vld [vmem:[#allocation6 + $0x1a8] sm:$0xff]
        %v2920 = vld [vmem:[#allocation6 + $0x1b0] sm:$0xff]
        %v2921 = vld [vmem:[#allocation6 + $0x1b8] sm:$0xff]
        %v2922 = vld [vmem:[#allocation6 + $0x1c0] sm:$0xff]
        %v2923 = vld [vmem:[#allocation6 + $0x1c8] sm:$0xff]
        %v2924 = vld [vmem:[#allocation6 + $0x1d0] sm:$0xff]
        %v2925 = vld [vmem:[#allocation6 + $0x1d8] sm:$0xff]
        %v2926 = vld [vmem:[#allocation6 + $0x1e0] sm:$0xff]
        %v2927 = vld [vmem:[#allocation6 + $0x1e8] sm:$0xff]
        %v2928 = vld [vmem:[#allocation6 + $0x1f0] sm:$0xff]
        %v2929 = vld [vmem:[#allocation6 + $0x1f8] sm:$0xff]
        %v2930 = vld [vmem:[#allocation6 + $0x200] sm:$0xff]
        %v2931 = vld [vmem:[#allocation6 + $0x208] sm:$0xff]
        %v2932 = vld [vmem:[#allocation6 + $0x210] sm:$0xff]
        %v2933 = vld [vmem:[#allocation6 + $0x218] sm:$0xff]
        %v2934 = vld [vmem:[#allocation6 + $0x220] sm:$0xff]
        %v2935 = vld [vmem:[#allocation6 + $0x228] sm:$0xff]
        %v2936 = vld [vmem:[#allocation6 + $0x230] sm:$0xff]
        %v2937 = vld [vmem:[#allocation6 + $0x238] sm:$0xff]
        %v2938 = vld [vmem:[#allocation6 + $0x240] sm:$0xff]
        %v2939 = vld [vmem:[#allocation6 + $0x248] sm:$0xff]
        %v2940 = vld [vmem:[#allocation6 + $0x250] sm:$0xff]
        %v2941 = vld [vmem:[#allocation6 + $0x258] sm:$0xff]
        %v2942 = vld [vmem:[#allocation6 + $0x260] sm:$0xff]
        %v2943 = vld [vmem:[#allocation6 + $0x268] sm:$0xff]
        %v2944 = vld [vmem:[#allocation6 + $0x270] sm:$0xff]
        %v2945 = vld [vmem:[#allocation6 + $0x278] sm:$0xff]
        %v2946 = vld [vmem:[#allocation6 + $0x280] sm:$0xff]
        %v2947 = vld [vmem:[#allocation6 + $0x288] sm:$0xff]
        %v2948 = vld [vmem:[#allocation6 + $0x290] sm:$0xff]
        %v2949 = vld [vmem:[#allocation6 + $0x298] sm:$0xff]
        %v2950 = vld [vmem:[#allocation6 + $0x2a0] sm:$0xff]
        %v2951 = vld [vmem:[#allocation6 + $0x2a8] sm:$0xff]
        %v2952 = vld [vmem:[#allocation6 + $0x2b0] sm:$0xff]
        %v2953 = vld [vmem:[#allocation6 + $0x2b8] sm:$0xff]
        %v2954 = vld [vmem:[#allocation6 + $0x2c0] sm:$0xff]
        %v2955 = vld [vmem:[#allocation6 + $0x2c8] sm:$0xff]
        %v2956 = vld [vmem:[#allocation6 + $0x2d0] sm:$0xff]
        %v2957 = vld [vmem:[#allocation6 + $0x2d8] sm:$0xff]
        %v2958 = vld [vmem:[#allocation6 + $0x2e0] sm:$0xff]
        %v2959 = vld [vmem:[#allocation6 + $0x2e8] sm:$0xff]
        %v2960 = vld [vmem:[#allocation6 + $0x2f0] sm:$0xff]
        %v2961 = vld [vmem:[#allocation6 + $0x2f8] sm:$0xff]
        %v2962 = vld [vmem:[#allocation6 + $0x300] sm:$0xff]
        %v2963 = vld [vmem:[#allocation6 + $0x308] sm:$0xff]
        %v2964 = vld [vmem:[#allocation6 + $0x310] sm:$0xff]
        %v2965 = vld [vmem:[#allocation6 + $0x318] sm:$0xff]
        %v2966 = vld [vmem:[#allocation6 + $0x320] sm:$0xff]
        %v2967 = vld [vmem:[#allocation6 + $0x328] sm:$0xff]
        %v2968 = vld [vmem:[#allocation6 + $0x330] sm:$0xff]
        %v2969 = vld [vmem:[#allocation6 + $0x338] sm:$0xff]
        %v2970 = vld [vmem:[#allocation6 + $0x340] sm:$0xff]
        %v2971 = vld [vmem:[#allocation6 + $0x348] sm:$0xff]
        %v2972 = vld [vmem:[#allocation6 + $0x350] sm:$0xff]
        %v2973 = vld [vmem:[#allocation6 + $0x358] sm:$0xff]
        %v2974 = vld [vmem:[#allocation6 + $0x360] sm:$0xff]
        %v2975 = vld [vmem:[#allocation6 + $0x368] sm:$0xff]
        %v2976 = vld [vmem:[#allocation6 + $0x370] sm:$0xff]
        %v2977 = vld [vmem:[#allocation6 + $0x378] sm:$0xff]
        %v2978 = vld [vmem:[#allocation6 + $0x380] sm:$0xff]
        %v2979 = vld [vmem:[#allocation6 + $0x388] sm:$0xff]
        %v2980 = vld [vmem:[#allocation6 + $0x390] sm:$0xff]
        %v2981 = vld [vmem:[#allocation6 + $0x398] sm:$0xff]
        %v2982 = vld [vmem:[#allocation6 + $0x3a0] sm:$0xff]
        %v2983 = vld [vmem:[#allocation6 + $0x3a8] sm:$0xff]
        %v2984 = vld [vmem:[#allocation6 + $0x3b0] sm:$0xff]
        %v2985 = vld [vmem:[#allocation6 + $0x3b8] sm:$0xff]
        %v2986 = vld [vmem:[#allocation6 + $0x3c0] sm:$0xff]
        %v2987 = vld [vmem:[#allocation6 + $0x3c8] sm:$0xff]
        %v2988 = vld [vmem:[#allocation6 + $0x3d0] sm:$0xff]
        %v2989 = vld [vmem:[#allocation6 + $0x3d8] sm:$0xff]
        %v2990 = vld [vmem:[#allocation6 + $0x3e0] sm:$0xff]
        %v2991 = vld [vmem:[#allocation6 + $0x3e8] sm:$0xff]
        %v2992 = vld [vmem:[#allocation6 + $0x3f0] sm:$0xff]
        %v2993 = vld [vmem:[#allocation6 + $0x3f8] sm:$0xff]
        %v2994 = vld [vmem:[#allocation6 + $0x400] sm:$0xff]
        %v2995 = vld [vmem:[#allocation6 + $0x408] sm:$0xff]
        %v2996 = vld [vmem:[#allocation6 + $0x410] sm:$0xff]
        %v2997 = vld [vmem:[#allocation6 + $0x418] sm:$0xff]
        %v2998 = vld [vmem:[#allocation6 + $0x420] sm:$0xff]
        %v2999 = vld [vmem:[#allocation6 + $0x428] sm:$0xff]
        %v3000 = vld [vmem:[#allocation6 + $0x430] sm:$0xff]
        %v3001 = vld [vmem:[#allocation6 + $0x438] sm:$0xff]
        %v3002 = vld [vmem:[#allocation6 + $0x440] sm:$0xff]
        %v3003 = vld [vmem:[#allocation6 + $0x448] sm:$0xff]
        %v3004 = vld [vmem:[#allocation6 + $0x450] sm:$0xff]
        %v3005 = vld [vmem:[#allocation6 + $0x458] sm:$0xff]
        %v3006 = vld [vmem:[#allocation6 + $0x460] sm:$0xff]
        %v3007 = vld [vmem:[#allocation6 + $0x468] sm:$0xff]
        %v3008 = vld [vmem:[#allocation6 + $0x470] sm:$0xff]
        %v3009 = vld [vmem:[#allocation6 + $0x478] sm:$0xff]
        %v3010 = vld [vmem:[#allocation6 + $0x480] sm:$0xff]
        %v3011 = vld [vmem:[#allocation6 + $0x488] sm:$0xff]
        %v3012 = vld [vmem:[#allocation6 + $0x490] sm:$0xff]
        %v3013 = vld [vmem:[#allocation6 + $0x498] sm:$0xff]
        %v3014 = vld [vmem:[#allocation6 + $0x4a0] sm:$0xff]
        %v3015 = vld [vmem:[#allocation6 + $0x4a8] sm:$0xff]
        %v3016 = vld [vmem:[#allocation6 + $0x4b0] sm:$0xff]
        %v3017 = vld [vmem:[#allocation6 + $0x4b8] sm:$0xff]
        %v3018 = vld [vmem:[#allocation6 + $0x4c0] sm:$0xff]
        %v3019 = vld [vmem:[#allocation6 + $0x4c8] sm:$0xff]
        %v3020 = vld [vmem:[#allocation6 + $0x4d0] sm:$0xff]
        %v3021 = vld [vmem:[#allocation6 + $0x4d8] sm:$0xff]
        %v3022 = vld [vmem:[#allocation6 + $0x4e0] sm:$0xff]
        %v3023 = vld [vmem:[#allocation6 + $0x4e8] sm:$0xff]
        %v3024 = vld [vmem:[#allocation6 + $0x4f0] sm:$0xff]
        %v3025 = vld [vmem:[#allocation6 + $0x4f8] sm:$0xff]
        %v3026 = vld [vmem:[%s10] sm:$0xff]
        %v3027 = vld [vmem:[%s10 + $0x8] sm:$0xff]
        %v3028 = vld [vmem:[%s10 + $0x10] sm:$0xf]
        %v3032 = vlaneseq
        %v3033 = vshrl.u32 %v3032, 7
        %v3034 = vsub.s32 0, %v3033
        %v3035 = vrot.slane %v3026, %v3034
        %v3036 = vlaneseq
        %v3037 = vshrl.u32 %v3036, 7
        %v3038 = vsub.s32 1, %v3037
        %v3039 = vrot.slane %v3026, %v3038
        %v3040 = vlaneseq
        %v3041 = vshrl.u32 %v3040, 7
        %v3042 = vsub.s32 2, %v3041
        %v3043 = vrot.slane %v3026, %v3042
        %v3044 = vlaneseq
        %v3045 = vshrl.u32 %v3044, 7
        %v3046 = vsub.s32 3, %v3045
        %v3047 = vrot.slane %v3026, %v3046
        %v3048 = vlaneseq
        %v3049 = vshrl.u32 %v3048, 7
        %v3050 = vsub.s32 4, %v3049
        %v3051 = vrot.slane %v3026, %v3050
        %v3052 = vlaneseq
        %v3053 = vshrl.u32 %v3052, 7
        %v3054 = vsub.s32 5, %v3053
        %v3055 = vrot.slane %v3026, %v3054
        %v3056 = vlaneseq
        %v3057 = vshrl.u32 %v3056, 7
        %v3058 = vsub.s32 6, %v3057
        %v3059 = vrot.slane %v3026, %v3058
        %v3060 = vlaneseq
        %v3061 = vshrl.u32 %v3060, 7
        %v3062 = vsub.s32 7, %v3061
        %v3063 = vrot.slane %v3026, %v3062
        %v3064 = vlaneseq
        %v3065 = vshrl.u32 %v3064, 7
        %v3066 = vsub.s32 0, %v3065
        %v3067 = vrot.slane %v3027, %v3066
        %v3068 = vlaneseq
        %v3069 = vshrl.u32 %v3068, 7
        %v3070 = vsub.s32 1, %v3069
        %v3071 = vrot.slane %v3027, %v3070
        %v3072 = vlaneseq
        %v3073 = vshrl.u32 %v3072, 7
        %v3074 = vsub.s32 2, %v3073
        %v3075 = vrot.slane %v3027, %v3074
        %v3076 = vlaneseq
        %v3077 = vshrl.u32 %v3076, 7
        %v3078 = vsub.s32 3, %v3077
        %v3079 = vrot.slane %v3027, %v3078
        %v3080 = vlaneseq
        %v3081 = vshrl.u32 %v3080, 7
        %v3082 = vsub.s32 4, %v3081
        %v3083 = vrot.slane %v3027, %v3082
        %v3084 = vlaneseq
        %v3085 = vshrl.u32 %v3084, 7
        %v3086 = vsub.s32 5, %v3085
        %v3087 = vrot.slane %v3027, %v3086
        %v3088 = vlaneseq
        %v3089 = vshrl.u32 %v3088, 7
        %v3090 = vsub.s32 6, %v3089
        %v3091 = vrot.slane %v3027, %v3090
        %v3092 = vlaneseq
        %v3093 = vshrl.u32 %v3092, 7
        %v3094 = vsub.s32 7, %v3093
        %v3095 = vrot.slane %v3027, %v3094
        %v3096 = vlaneseq
        %v3097 = vshrl.u32 %v3096, 7
        %v3098 = vsub.s32 0, %v3097
        %v3099 = vrot.slane %v3028, %v3098
        %v3100 = vlaneseq
        %v3101 = vshrl.u32 %v3100, 7
        %v3102 = vsub.s32 1, %v3101
        %v3103 = vrot.slane %v3028, %v3102
        %v3104 = vlaneseq
        %v3105 = vshrl.u32 %v3104, 7
        %v3106 = vsub.s32 2, %v3105
        %v3107 = vrot.slane %v3028, %v3106
        %v3108 = vlaneseq
        %v3109 = vshrl.u32 %v3108, 7
        %v3110 = vsub.s32 3, %v3109
        %v3111 = vrot.slane %v3028, %v3110
        %v3292 = vunpack.c.l.b16 %v2866
        %v3293 = vunpack.c.h.b16 %v2866
        %v3294 = vunpack.c.l.b16 %v2867
        %v3295 = vunpack.c.h.b16 %v2867
        %v3296 = vunpack.c.l.b16 %v2868
        %v3297 = vunpack.c.h.b16 %v2868
        %v3298 = vunpack.c.l.b16 %v2869
        %v3299 = vunpack.c.h.b16 %v2869
        %v3300 = vunpack.c.l.b16 %v2870
        %v3301 = vunpack.c.h.b16 %v2870
        %v3302 = vunpack.c.l.b16 %v2871
        %v3303 = vunpack.c.h.b16 %v2871
        %v3304 = vunpack.c.l.b16 %v2872
        %v3305 = vunpack.c.h.b16 %v2872
        %v3306 = vunpack.c.l.b16 %v2873
        %v3307 = vunpack.c.h.b16 %v2873
        %v3308 = vunpack.c.l.b16 %v2874
        %v3309 = vunpack.c.h.b16 %v2874
        %v3310 = vunpack.c.l.b16 %v2875
        %v3311 = vunpack.c.h.b16 %v2875
        %v3312 = vunpack.c.l.b16 %v2876
        %v3313 = vunpack.c.h.b16 %v2876
        %v3314 = vunpack.c.l.b16 %v2877
        %v3315 = vunpack.c.h.b16 %v2877
        %v3316 = vunpack.c.l.b16 %v2878
        %v3317 = vunpack.c.h.b16 %v2878
        %v3318 = vunpack.c.l.b16 %v2879
        %v3319 = vunpack.c.h.b16 %v2879
        %v3320 = vunpack.c.l.b16 %v2880
        %v3321 = vunpack.c.h.b16 %v2880
        %v3322 = vunpack.c.l.b16 %v2881
        %v3323 = vunpack.c.h.b16 %v2881
        %v3324 = vunpack.c.l.b16 %v2882
        %v3325 = vunpack.c.h.b16 %v2882
        %v3326 = vunpack.c.l.b16 %v2883
        %v3327 = vunpack.c.h.b16 %v2883
        %v3328 = vunpack.c.l.b16 %v2884
        %v3329 = vunpack.c.h.b16 %v2884
        %v3330 = vunpack.c.l.b16 %v2885
        %v3331 = vunpack.c.h.b16 %v2885
        %v3332 = vunpack.c.l.b16 %v2886
        %v3333 = vunpack.c.h.b16 %v2886
        %v3334 = vunpack.c.l.b16 %v2887
        %v3335 = vunpack.c.h.b16 %v2887
        %v3336 = vunpack.c.l.b16 %v2888
        %v3337 = vunpack.c.h.b16 %v2888
        %v3338 = vunpack.c.l.b16 %v2889
        %v3339 = vunpack.c.h.b16 %v2889
        %v3340 = vunpack.c.l.b16 %v2890
        %v3341 = vunpack.c.h.b16 %v2890
        %v3342 = vunpack.c.l.b16 %v2891
        %v3343 = vunpack.c.h.b16 %v2891
        %v3344 = vunpack.c.l.b16 %v2892
        %v3345 = vunpack.c.h.b16 %v2892
        %v3346 = vunpack.c.l.b16 %v2893
        %v3347 = vunpack.c.h.b16 %v2893
        %v3348 = vunpack.c.l.b16 %v2894
        %v3349 = vunpack.c.h.b16 %v2894
        %v3350 = vunpack.c.l.b16 %v2895
        %v3351 = vunpack.c.h.b16 %v2895
        %v3352 = vunpack.c.l.b16 %v2896
        %v3353 = vunpack.c.h.b16 %v2896
        %v3354 = vunpack.c.l.b16 %v2897
        %v3355 = vunpack.c.h.b16 %v2897
        %v3356 = vunpack.c.l.b16 %v2898
        %v3357 = vunpack.c.h.b16 %v2898
        %v3358 = vunpack.c.l.b16 %v2899
        %v3359 = vunpack.c.h.b16 %v2899
        %v3360 = vunpack.c.l.b16 %v2900
        %v3361 = vunpack.c.h.b16 %v2900
        %v3362 = vunpack.c.l.b16 %v2901
        %v3363 = vunpack.c.h.b16 %v2901
        %v3364 = vunpack.c.l.b16 %v2902
        %v3365 = vunpack.c.h.b16 %v2902
        %v3366 = vunpack.c.l.b16 %v2903
        %v3367 = vunpack.c.h.b16 %v2903
        %v3368 = vunpack.c.l.b16 %v2904
        %v3369 = vunpack.c.h.b16 %v2904
        %v3370 = vunpack.c.l.b16 %v2905
        %v3371 = vunpack.c.h.b16 %v2905
        %v3372 = vunpack.c.l.b16 %v2906
        %v3373 = vunpack.c.h.b16 %v2906
        %v3374 = vunpack.c.l.b16 %v2907
        %v3375 = vunpack.c.h.b16 %v2907
        %v3376 = vunpack.c.l.b16 %v2908
        %v3377 = vunpack.c.h.b16 %v2908
        %v3378 = vunpack.c.l.b16 %v2909
        %v3379 = vunpack.c.h.b16 %v2909
        %v3380 = vunpack.c.l.b16 %v2910
        %v3381 = vunpack.c.h.b16 %v2910
        %v3382 = vunpack.c.l.b16 %v2911
        %v3383 = vunpack.c.h.b16 %v2911
        %v3384 = vunpack.c.l.b16 %v2912
        %v3385 = vunpack.c.h.b16 %v2912
        %v3386 = vunpack.c.l.b16 %v2913
        %v3387 = vunpack.c.h.b16 %v2913
        %v3388 = vunpack.c.l.b16 %v2914
        %v3389 = vunpack.c.h.b16 %v2914
        %v3390 = vunpack.c.l.b16 %v2915
        %v3391 = vunpack.c.h.b16 %v2915
        %v3392 = vunpack.c.l.b16 %v2916
        %v3393 = vunpack.c.h.b16 %v2916
        %v3394 = vunpack.c.l.b16 %v2917
        %v3395 = vunpack.c.h.b16 %v2917
        %v3396 = vunpack.c.l.b16 %v2918
        %v3397 = vunpack.c.h.b16 %v2918
        %v3398 = vunpack.c.l.b16 %v2919
        %v3399 = vunpack.c.h.b16 %v2919
        %v3400 = vunpack.c.l.b16 %v2920
        %v3401 = vunpack.c.h.b16 %v2920
        %v3402 = vunpack.c.l.b16 %v2921
        %v3403 = vunpack.c.h.b16 %v2921
        %v3404 = vunpack.c.l.b16 %v2922
        %v3405 = vunpack.c.h.b16 %v2922
        %v3406 = vunpack.c.l.b16 %v2923
        %v3407 = vunpack.c.h.b16 %v2923
        %v3408 = vunpack.c.l.b16 %v2924
        %v3409 = vunpack.c.h.b16 %v2924
        %v3410 = vunpack.c.l.b16 %v2925
        %v3411 = vunpack.c.h.b16 %v2925
        %v3412 = vunpack.c.l.b16 %v2926
        %v3413 = vunpack.c.h.b16 %v2926
        %v3414 = vunpack.c.l.b16 %v2927
        %v3415 = vunpack.c.h.b16 %v2927
        %v3416 = vunpack.c.l.b16 %v2928
        %v3417 = vunpack.c.h.b16 %v2928
        %v3418 = vunpack.c.l.b16 %v2929
        %v3419 = vunpack.c.h.b16 %v2929
        %v3420 = vunpack.c.l.b16 %v2930
        %v3421 = vunpack.c.h.b16 %v2930
        %v3422 = vunpack.c.l.b16 %v2931
        %v3423 = vunpack.c.h.b16 %v2931
        %v3424 = vunpack.c.l.b16 %v2932
        %v3425 = vunpack.c.h.b16 %v2932
        %v3426 = vunpack.c.l.b16 %v2933
        %v3427 = vunpack.c.h.b16 %v2933
        %v3428 = vunpack.c.l.b16 %v2934
        %v3429 = vunpack.c.h.b16 %v2934
        %v3430 = vunpack.c.l.b16 %v2935
        %v3431 = vunpack.c.h.b16 %v2935
        %v3432 = vunpack.c.l.b16 %v2936
        %v3433 = vunpack.c.h.b16 %v2936
        %v3434 = vunpack.c.l.b16 %v2937
        %v3435 = vunpack.c.h.b16 %v2937
        %v3436 = vunpack.c.l.b16 %v2938
        %v3437 = vunpack.c.h.b16 %v2938
        %v3438 = vunpack.c.l.b16 %v2939
        %v3439 = vunpack.c.h.b16 %v2939
        %v3440 = vunpack.c.l.b16 %v2940
        %v3441 = vunpack.c.h.b16 %v2940
        %v3442 = vunpack.c.l.b16 %v2941
        %v3443 = vunpack.c.h.b16 %v2941
        %v3444 = vunpack.c.l.b16 %v2942
        %v3445 = vunpack.c.h.b16 %v2942
        %v3446 = vunpack.c.l.b16 %v2943
        %v3447 = vunpack.c.h.b16 %v2943
        %v3448 = vunpack.c.l.b16 %v2944
        %v3449 = vunpack.c.h.b16 %v2944
        %v3450 = vunpack.c.l.b16 %v2945
        %v3451 = vunpack.c.h.b16 %v2945
        %v3452 = vunpack.c.l.b16 %v2946
        %v3453 = vunpack.c.h.b16 %v2946
        %v3454 = vunpack.c.l.b16 %v2947
        %v3455 = vunpack.c.h.b16 %v2947
        %v3456 = vunpack.c.l.b16 %v2948
        %v3457 = vunpack.c.h.b16 %v2948
        %v3458 = vunpack.c.l.b16 %v2949
        %v3459 = vunpack.c.h.b16 %v2949
        %v3460 = vunpack.c.l.b16 %v2950
        %v3461 = vunpack.c.h.b16 %v2950
        %v3462 = vunpack.c.l.b16 %v2951
        %v3463 = vunpack.c.h.b16 %v2951
        %v3464 = vunpack.c.l.b16 %v2952
        %v3465 = vunpack.c.h.b16 %v2952
        %v3466 = vunpack.c.l.b16 %v2953
        %v3467 = vunpack.c.h.b16 %v2953
        %v3468 = vunpack.c.l.b16 %v2954
        %v3469 = vunpack.c.h.b16 %v2954
        %v3470 = vunpack.c.l.b16 %v2955
        %v3471 = vunpack.c.h.b16 %v2955
        %v3472 = vunpack.c.l.b16 %v2956
        %v3473 = vunpack.c.h.b16 %v2956
        %v3474 = vunpack.c.l.b16 %v2957
        %v3475 = vunpack.c.h.b16 %v2957
        %v3476 = vunpack.c.l.b16 %v2958
        %v3477 = vunpack.c.h.b16 %v2958
        %v3478 = vunpack.c.l.b16 %v2959
        %v3479 = vunpack.c.h.b16 %v2959
        %v3480 = vunpack.c.l.b16 %v2960
        %v3481 = vunpack.c.h.b16 %v2960
        %v3482 = vunpack.c.l.b16 %v2961
        %v3483 = vunpack.c.h.b16 %v2961
        %v3484 = vunpack.c.l.b16 %v2962
        %v3485 = vunpack.c.h.b16 %v2962
        %v3486 = vunpack.c.l.b16 %v2963
        %v3487 = vunpack.c.h.b16 %v2963
        %v3488 = vunpack.c.l.b16 %v2964
        %v3489 = vunpack.c.h.b16 %v2964
        %v3490 = vunpack.c.l.b16 %v2965
        %v3491 = vunpack.c.h.b16 %v2965
        %v3492 = vunpack.c.l.b16 %v2966
        %v3493 = vunpack.c.h.b16 %v2966
        %v3494 = vunpack.c.l.b16 %v2967
        %v3495 = vunpack.c.h.b16 %v2967
        %v3496 = vunpack.c.l.b16 %v2968
        %v3497 = vunpack.c.h.b16 %v2968
        %v3498 = vunpack.c.l.b16 %v2969
        %v3499 = vunpack.c.h.b16 %v2969
        %v3500 = vunpack.c.l.b16 %v2970
        %v3501 = vunpack.c.h.b16 %v2970
        %v3502 = vunpack.c.l.b16 %v2971
        %v3503 = vunpack.c.h.b16 %v2971
        %v3504 = vunpack.c.l.b16 %v2972
        %v3505 = vunpack.c.h.b16 %v2972
        %v3506 = vunpack.c.l.b16 %v2973
        %v3507 = vunpack.c.h.b16 %v2973
        %v3508 = vunpack.c.l.b16 %v2974
        %v3509 = vunpack.c.h.b16 %v2974
        %v3510 = vunpack.c.l.b16 %v2975
        %v3511 = vunpack.c.h.b16 %v2975
        %v3512 = vunpack.c.l.b16 %v2976
        %v3513 = vunpack.c.h.b16 %v2976
        %v3514 = vunpack.c.l.b16 %v2977
        %v3515 = vunpack.c.h.b16 %v2977
        %v3516 = vunpack.c.l.b16 %v2978
        %v3517 = vunpack.c.h.b16 %v2978
        %v3518 = vunpack.c.l.b16 %v2979
        %v3519 = vunpack.c.h.b16 %v2979
        %v3520 = vunpack.c.l.b16 %v2980
        %v3521 = vunpack.c.h.b16 %v2980
        %v3522 = vunpack.c.l.b16 %v2981
        %v3523 = vunpack.c.h.b16 %v2981
        %v3524 = vunpack.c.l.b16 %v2982
        %v3525 = vunpack.c.h.b16 %v2982
        %v3526 = vunpack.c.l.b16 %v2983
        %v3527 = vunpack.c.h.b16 %v2983
        %v3528 = vunpack.c.l.b16 %v2984
        %v3529 = vunpack.c.h.b16 %v2984
        %v3530 = vunpack.c.l.b16 %v2985
        %v3531 = vunpack.c.h.b16 %v2985
        %v3532 = vunpack.c.l.b16 %v2986
        %v3533 = vunpack.c.h.b16 %v2986
        %v3534 = vunpack.c.l.b16 %v2987
        %v3535 = vunpack.c.h.b16 %v2987
        %v3536 = vunpack.c.l.b16 %v2988
        %v3537 = vunpack.c.h.b16 %v2988
        %v3538 = vunpack.c.l.b16 %v2989
        %v3539 = vunpack.c.h.b16 %v2989
        %v3540 = vunpack.c.l.b16 %v2990
        %v3541 = vunpack.c.h.b16 %v2990
        %v3542 = vunpack.c.l.b16 %v2991
        %v3543 = vunpack.c.h.b16 %v2991
        %v3544 = vunpack.c.l.b16 %v2992
        %v3545 = vunpack.c.h.b16 %v2992
        %v3546 = vunpack.c.l.b16 %v2993
        %v3547 = vunpack.c.h.b16 %v2993
        %v3548 = vunpack.c.l.b16 %v2994
        %v3549 = vunpack.c.h.b16 %v2994
        %v3550 = vunpack.c.l.b16 %v2995
        %v3551 = vunpack.c.h.b16 %v2995
        %v3552 = vunpack.c.l.b16 %v2996
        %v3553 = vunpack.c.h.b16 %v2996
        %v3554 = vunpack.c.l.b16 %v2997
        %v3555 = vunpack.c.h.b16 %v2997
        %v3556 = vunpack.c.l.b16 %v2998
        %v3557 = vunpack.c.h.b16 %v2998
        %v3558 = vunpack.c.l.b16 %v2999
        %v3559 = vunpack.c.h.b16 %v2999
        %v3560 = vunpack.c.l.b16 %v3000
        %v3561 = vunpack.c.h.b16 %v3000
        %v3562 = vunpack.c.l.b16 %v3001
        %v3563 = vunpack.c.h.b16 %v3001
        %v3564 = vunpack.c.l.b16 %v3002
        %v3565 = vunpack.c.h.b16 %v3002
        %v3566 = vunpack.c.l.b16 %v3003
        %v3567 = vunpack.c.h.b16 %v3003
        %v3568 = vunpack.c.l.b16 %v3004
        %v3569 = vunpack.c.h.b16 %v3004
        %v3570 = vunpack.c.l.b16 %v3005
        %v3571 = vunpack.c.h.b16 %v3005
        %v3572 = vunpack.c.l.b16 %v3006
        %v3573 = vunpack.c.h.b16 %v3006
        %v3574 = vunpack.c.l.b16 %v3007
        %v3575 = vunpack.c.h.b16 %v3007
        %v3576 = vunpack.c.l.b16 %v3008
        %v3577 = vunpack.c.h.b16 %v3008
        %v3578 = vunpack.c.l.b16 %v3009
        %v3579 = vunpack.c.h.b16 %v3009
        %v3580 = vunpack.c.l.b16 %v3010
        %v3581 = vunpack.c.h.b16 %v3010
        %v3582 = vunpack.c.l.b16 %v3011
        %v3583 = vunpack.c.h.b16 %v3011
        %v3584 = vunpack.c.l.b16 %v3012
        %v3585 = vunpack.c.h.b16 %v3012
        %v3586 = vunpack.c.l.b16 %v3013
        %v3587 = vunpack.c.h.b16 %v3013
        %v3588 = vunpack.c.l.b16 %v3014
        %v3589 = vunpack.c.h.b16 %v3014
        %v3590 = vunpack.c.l.b16 %v3015
        %v3591 = vunpack.c.h.b16 %v3015
        %v3592 = vunpack.c.l.b16 %v3016
        %v3593 = vunpack.c.h.b16 %v3016
        %v3594 = vunpack.c.l.b16 %v3017
        %v3595 = vunpack.c.h.b16 %v3017
        %v3596 = vunpack.c.l.b16 %v3018
        %v3597 = vunpack.c.h.b16 %v3018
        %v3598 = vunpack.c.l.b16 %v3019
        %v3599 = vunpack.c.h.b16 %v3019
        %v3600 = vunpack.c.l.b16 %v3020
        %v3601 = vunpack.c.h.b16 %v3020
        %v3602 = vunpack.c.l.b16 %v3021
        %v3603 = vunpack.c.h.b16 %v3021
        %v3604 = vunpack.c.l.b16 %v3022
        %v3605 = vunpack.c.h.b16 %v3022
        %v3606 = vunpack.c.l.b16 %v3023
        %v3607 = vunpack.c.h.b16 %v3023
        %v3608 = vunpack.c.l.b16 %v3024
        %v3609 = vunpack.c.h.b16 %v3024
        %v3610 = vunpack.c.l.b16 %v3025
        %v3611 = vunpack.c.h.b16 %v3025
        %v3612 = vpack.c.b16 %v3312, %v3292
        %v3613 = vpack.c.b16 %v3313, %v3293
        %v3614 = vpack.c.b16 %v3314, %v3294
        %v3615 = vpack.c.b16 %v3315, %v3295
        %v3616 = vpack.c.b16 %v3316, %v3296
        %v3617 = vpack.c.b16 %v3317, %v3297
        %v3618 = vpack.c.b16 %v3318, %v3298
        %v3619 = vpack.c.b16 %v3319, %v3299
        %v3620 = vpack.c.b16 %v3320, %v3300
        %v3621 = vpack.c.b16 %v3321, %v3301
        %v3622 = vpack.c.b16 %v3322, %v3302
        %v3623 = vpack.c.b16 %v3323, %v3303
        %v3624 = vpack.c.b16 %v3324, %v3304
        %v3625 = vpack.c.b16 %v3325, %v3305
        %v3626 = vpack.c.b16 %v3326, %v3306
        %v3627 = vpack.c.b16 %v3327, %v3307
        %v3628 = vpack.c.b16 %v3328, %v3308
        %v3629 = vpack.c.b16 %v3329, %v3309
        %v3630 = vpack.c.b16 %v3330, %v3310
        %v3631 = vpack.c.b16 %v3331, %v3311
        %v3632 = vpack.c.b16 %v3352, %v3332
        %v3633 = vpack.c.b16 %v3353, %v3333
        %v3634 = vpack.c.b16 %v3354, %v3334
        %v3635 = vpack.c.b16 %v3355, %v3335
        %v3636 = vpack.c.b16 %v3356, %v3336
        %v3637 = vpack.c.b16 %v3357, %v3337
        %v3638 = vpack.c.b16 %v3358, %v3338
        %v3639 = vpack.c.b16 %v3359, %v3339
        %v3640 = vpack.c.b16 %v3360, %v3340
        %v3641 = vpack.c.b16 %v3361, %v3341
        %v3642 = vpack.c.b16 %v3362, %v3342
        %v3643 = vpack.c.b16 %v3363, %v3343
        %v3644 = vpack.c.b16 %v3364, %v3344
        %v3645 = vpack.c.b16 %v3365, %v3345
        %v3646 = vpack.c.b16 %v3366, %v3346
        %v3647 = vpack.c.b16 %v3367, %v3347
        %v3648 = vpack.c.b16 %v3368, %v3348
        %v3649 = vpack.c.b16 %v3369, %v3349
        %v3650 = vpack.c.b16 %v3370, %v3350
        %v3651 = vpack.c.b16 %v3371, %v3351
        %v3652 = vpack.c.b16 %v3392, %v3372
        %v3653 = vpack.c.b16 %v3393, %v3373
        %v3654 = vpack.c.b16 %v3394, %v3374
        %v3655 = vpack.c.b16 %v3395, %v3375
        %v3656 = vpack.c.b16 %v3396, %v3376
        %v3657 = vpack.c.b16 %v3397, %v3377
        %v3658 = vpack.c.b16 %v3398, %v3378
        %v3659 = vpack.c.b16 %v3399, %v3379
        %v3660 = vpack.c.b16 %v3400, %v3380
        %v3661 = vpack.c.b16 %v3401, %v3381
        %v3662 = vpack.c.b16 %v3402, %v3382
        %v3663 = vpack.c.b16 %v3403, %v3383
        %v3664 = vpack.c.b16 %v3404, %v3384
        %v3665 = vpack.c.b16 %v3405, %v3385
        %v3666 = vpack.c.b16 %v3406, %v3386
        %v3667 = vpack.c.b16 %v3407, %v3387
        %v3668 = vpack.c.b16 %v3408, %v3388
        %v3669 = vpack.c.b16 %v3409, %v3389
        %v3670 = vpack.c.b16 %v3410, %v3390
        %v3671 = vpack.c.b16 %v3411, %v3391
        %v3672 = vpack.c.b16 %v3432, %v3412
        %v3673 = vpack.c.b16 %v3433, %v3413
        %v3674 = vpack.c.b16 %v3434, %v3414
        %v3675 = vpack.c.b16 %v3435, %v3415
        %v3676 = vpack.c.b16 %v3436, %v3416
        %v3677 = vpack.c.b16 %v3437, %v3417
        %v3678 = vpack.c.b16 %v3438, %v3418
        %v3679 = vpack.c.b16 %v3439, %v3419
        %v3680 = vpack.c.b16 %v3440, %v3420
        %v3681 = vpack.c.b16 %v3441, %v3421
        %v3682 = vpack.c.b16 %v3442, %v3422
        %v3683 = vpack.c.b16 %v3443, %v3423
        %v3684 = vpack.c.b16 %v3444, %v3424
        %v3685 = vpack.c.b16 %v3445, %v3425
        %v3686 = vpack.c.b16 %v3446, %v3426
        %v3687 = vpack.c.b16 %v3447, %v3427
        %v3688 = vpack.c.b16 %v3448, %v3428
        %v3689 = vpack.c.b16 %v3449, %v3429
        %v3690 = vpack.c.b16 %v3450, %v3430
        %v3691 = vpack.c.b16 %v3451, %v3431
        %v3692 = vpack.c.b16 %v3472, %v3452
        %v3693 = vpack.c.b16 %v3473, %v3453
        %v3694 = vpack.c.b16 %v3474, %v3454
        %v3695 = vpack.c.b16 %v3475, %v3455
        %v3696 = vpack.c.b16 %v3476, %v3456
        %v3697 = vpack.c.b16 %v3477, %v3457
        %v3698 = vpack.c.b16 %v3478, %v3458
        %v3699 = vpack.c.b16 %v3479, %v3459
        %v3700 = vpack.c.b16 %v3480, %v3460
        %v3701 = vpack.c.b16 %v3481, %v3461
        %v3702 = vpack.c.b16 %v3482, %v3462
        %v3703 = vpack.c.b16 %v3483, %v3463
        %v3704 = vpack.c.b16 %v3484, %v3464
        %v3705 = vpack.c.b16 %v3485, %v3465
        %v3706 = vpack.c.b16 %v3486, %v3466
        %v3707 = vpack.c.b16 %v3487, %v3467
        %v3708 = vpack.c.b16 %v3488, %v3468
        %v3709 = vpack.c.b16 %v3489, %v3469
        %v3710 = vpack.c.b16 %v3490, %v3470
        %v3711 = vpack.c.b16 %v3491, %v3471
        %v3712 = vpack.c.b16 %v3512, %v3492
        %v3713 = vpack.c.b16 %v3513, %v3493
        %v3714 = vpack.c.b16 %v3514, %v3494
        %v3715 = vpack.c.b16 %v3515, %v3495
        %v3716 = vpack.c.b16 %v3516, %v3496
        %v3717 = vpack.c.b16 %v3517, %v3497
        %v3718 = vpack.c.b16 %v3518, %v3498
        %v3719 = vpack.c.b16 %v3519, %v3499
        %v3720 = vpack.c.b16 %v3520, %v3500
        %v3721 = vpack.c.b16 %v3521, %v3501
        %v3722 = vpack.c.b16 %v3522, %v3502
        %v3723 = vpack.c.b16 %v3523, %v3503
        %v3724 = vpack.c.b16 %v3524, %v3504
        %v3725 = vpack.c.b16 %v3525, %v3505
        %v3726 = vpack.c.b16 %v3526, %v3506
        %v3727 = vpack.c.b16 %v3527, %v3507
        %v3728 = vpack.c.b16 %v3528, %v3508
        %v3729 = vpack.c.b16 %v3529, %v3509
        %v3730 = vpack.c.b16 %v3530, %v3510
        %v3731 = vpack.c.b16 %v3531, %v3511
        %v3732 = vpack.c.b16 %v3552, %v3532
        %v3733 = vpack.c.b16 %v3553, %v3533
        %v3734 = vpack.c.b16 %v3554, %v3534
        %v3735 = vpack.c.b16 %v3555, %v3535
        %v3736 = vpack.c.b16 %v3556, %v3536
        %v3737 = vpack.c.b16 %v3557, %v3537
        %v3738 = vpack.c.b16 %v3558, %v3538
        %v3739 = vpack.c.b16 %v3559, %v3539
        %v3740 = vpack.c.b16 %v3560, %v3540
        %v3741 = vpack.c.b16 %v3561, %v3541
        %v3742 = vpack.c.b16 %v3562, %v3542
        %v3743 = vpack.c.b16 %v3563, %v3543
        %v3744 = vpack.c.b16 %v3564, %v3544
        %v3745 = vpack.c.b16 %v3565, %v3545
        %v3746 = vpack.c.b16 %v3566, %v3546
        %v3747 = vpack.c.b16 %v3567, %v3547
        %v3748 = vpack.c.b16 %v3568, %v3548
        %v3749 = vpack.c.b16 %v3569, %v3549
        %v3750 = vpack.c.b16 %v3570, %v3550
        %v3751 = vpack.c.b16 %v3571, %v3551
        %v3752 = vpack.c.b16 %v3592, %v3572
        %v3753 = vpack.c.b16 %v3593, %v3573
        %v3754 = vpack.c.b16 %v3594, %v3574
        %v3755 = vpack.c.b16 %v3595, %v3575
        %v3756 = vpack.c.b16 %v3596, %v3576
        %v3757 = vpack.c.b16 %v3597, %v3577
        %v3758 = vpack.c.b16 %v3598, %v3578
        %v3759 = vpack.c.b16 %v3599, %v3579
        %v3760 = vpack.c.b16 %v3600, %v3580
        %v3761 = vpack.c.b16 %v3601, %v3581
        %v3762 = vpack.c.b16 %v3602, %v3582
        %v3763 = vpack.c.b16 %v3603, %v3583
        %v3764 = vpack.c.b16 %v3604, %v3584
        %v3765 = vpack.c.b16 %v3605, %v3585
        %v3766 = vpack.c.b16 %v3606, %v3586
        %v3767 = vpack.c.b16 %v3607, %v3587
        %v3768 = vpack.c.b16 %v3608, %v3588
        %v3769 = vpack.c.b16 %v3609, %v3589
        %v3770 = vpack.c.b16 %v3610, %v3590
        %v3771 = vpack.c.b16 %v3611, %v3591
        %3932 = vmatprep.subr.bf16.mxu0 %v3613
        %3933 = vmatpush1.bf16.msra.mxu0 %v3612
        %3934 = vmatprep.subr.bf16.mxu0 %v3633
        %3935 = vmatpush1.bf16.msra.mxu0 %v3632
        %3936 = vmatprep.subr.bf16.mxu0 %v3653
        %3937 = vmatpush1.bf16.msra.mxu0 %v3652
        %3938 = vmatprep.subr.bf16.mxu0 %v3673
        %3939 = vmatpush1.bf16.msra.mxu0 %v3672
        %3940 = vmatprep.subr.bf16.mxu0 %v3693
        %3941 = vmatpush1.bf16.msra.mxu0 %v3692
        %3942 = vmatprep.subr.bf16.mxu0 %v3713
        %3943 = vmatpush1.bf16.msra.mxu0 %v3712
        %3944 = vmatprep.subr.bf16.mxu0 %v3733
        %3945 = vmatpush1.bf16.msra.mxu0 %v3732
        %3946 = vmatprep.subr.bf16.mxu0 %v3753
        %3947 = vmatpush1.bf16.msra.mxu0 %v3752
        %3948 = vmatprep.subr.bf16.mxu0 0
        %3949 = vmatpush1.bf16.msra.mxu0 0
        %3950 = vmatprep.subr.bf16.mxu0 0
        %3951 = vmatpush1.bf16.msra.mxu0 0
        %3952 = vmatprep.subr.bf16.mxu0 0
        %3953 = vmatpush1.bf16.msra.mxu0 0
        %3954 = vmatprep.subr.bf16.mxu0 0
        %3955 = vmatpush1.bf16.msra.mxu0 0
        %3956 = vmatprep.subr.bf16.mxu0 0
        %3957 = vmatpush1.bf16.msra.mxu0 0
        %3958 = vmatprep.subr.bf16.mxu0 0
        %3959 = vmatpush1.bf16.msra.mxu0 0
        %3960 = vmatprep.subr.bf16.mxu0 0
        %3961 = vmatpush1.bf16.msra.mxu0 0
        %3962 = vmatprep.subr.bf16.mxu0 0
        %3963 = vmatpush1.bf16.msra.mxu0 0
        %3964 = vmatprep.mubr.bf16.mxu0 0
        %3965 = vmatmul.mubr.bf16.gmra.mrb[0].mxu0 %v2864
        %v3966 = vpop.f32.mrb[0].mxu0
        %v3967 = vadd.f32 %v3035, %v3966
        %v3968 = vpop.f32.mrb[0].mxu0
        %v3969 = vadd.f32 %v3039, %v3968
        %v3970 = vpop.f32.mrb[0].mxu0
        %v3971 = vadd.f32 %v3035, %v3970
        %v3972 = vpop.f32.mrb[0].mxu0
        %v3973 = vadd.f32 %v3039, %v3972
        %3974 = vmatprep.mubr.bf16.mxu0 0
        %3975 = vmatmul.mubr.bf16.gmra.mrb[0].mxu0 %v2865
        %v3976 = vpop.f32.mrb[0].mxu0
        %v3977 = vadd.f32 %v3035, %v3976
        %v3978 = vpop.f32.mrb[0].mxu0
        %v3979 = vadd.f32 %v3039, %v3978
        %v3980 = vpop.f32.mrb[0].mxu0
        %v3981 = vadd.f32 %v3035, %v3980
        %v3982 = vpop.f32.mrb[0].mxu0
        %v3983 = vadd.f32 %v3039, %v3982
        %3984 = vdwg.mxu0
        %3985 = vmatprep.subr.bf16.mxu0 %v3615
        %3986 = vmatpush1.bf16.msra.mxu0 %v3614
        %3987 = vmatprep.subr.bf16.mxu0 %v3635
        %3988 = vmatpush1.bf16.msra.mxu0 %v3634
        %3989 = vmatprep.subr.bf16.mxu0 %v3655
        %3990 = vmatpush1.bf16.msra.mxu0 %v3654
        %3991 = vmatprep.subr.bf16.mxu0 %v3675
        %3992 = vmatpush1.bf16.msra.mxu0 %v3674
        %3993 = vmatprep.subr.bf16.mxu0 %v3695
        %3994 = vmatpush1.bf16.msra.mxu0 %v3694
        %3995 = vmatprep.subr.bf16.mxu0 %v3715
        %3996 = vmatpush1.bf16.msra.mxu0 %v3714
        %3997 = vmatprep.subr.bf16.mxu0 %v3735
        %3998 = vmatpush1.bf16.msra.mxu0 %v3734
        %3999 = vmatprep.subr.bf16.mxu0 %v3755
        %4000 = vmatpush1.bf16.msra.mxu0 %v3754
        %4001 = vmatprep.subr.bf16.mxu0 0
        %4002 = vmatpush1.bf16.msra.mxu0 0
        %4003 = vmatprep.subr.bf16.mxu0 0
        %4004 = vmatpush1.bf16.msra.mxu0 0
        %4005 = vmatprep.subr.bf16.mxu0 0
        %4006 = vmatpush1.bf16.msra.mxu0 0
        %4007 = vmatprep.subr.bf16.mxu0 0
        %4008 = vmatpush1.bf16.msra.mxu0 0
        %4009 = vmatprep.subr.bf16.mxu0 0
        %4010 = vmatpush1.bf16.msra.mxu0 0
        %4011 = vmatprep.subr.bf16.mxu0 0
        %4012 = vmatpush1.bf16.msra.mxu0 0
        %4013 = vmatprep.subr.bf16.mxu0 0
        %4014 = vmatpush1.bf16.msra.mxu0 0
        %4015 = vmatprep.subr.bf16.mxu0 0
        %4016 = vmatpush1.bf16.msra.mxu0 0
        %4017 = vmatprep.mubr.bf16.mxu0 0
        %4018 = vmatmul.mubr.bf16.gmra.mrb[0].mxu0 %v2864
        %v4019 = vpop.f32.mrb[0].mxu0
        %v4020 = vadd.f32 %v3043, %v4019
        %v4021 = vpop.f32.mrb[0].mxu0
        %v4022 = vadd.f32 %v3047, %v4021
        %v4023 = vpop.f32.mrb[0].mxu0
        %v4024 = vadd.f32 %v3043, %v4023
        %v4025 = vpop.f32.mrb[0].mxu0
        %v4026 = vadd.f32 %v3047, %v4025
        %4027 = vmatprep.mubr.bf16.mxu0 0
        %4028 = vmatmul.mubr.bf16.gmra.mrb[0].mxu0 %v2865
        %v4029 = vpop.f32.mrb[0].mxu0
        %v4030 = vadd.f32 %v3043, %v4029
        %v4031 = vpop.f32.mrb[0].mxu0
        %v4032 = vadd.f32 %v3047, %v4031
        %v4033 = vpop.f32.mrb[0].mxu0
        %v4034 = vadd.f32 %v3043, %v4033
        %v4035 = vpop.f32.mrb[0].mxu0
        %v4036 = vadd.f32 %v3047, %v4035
        %4037 = vdwg.mxu0
        %4038 = vmatprep.subr.bf16.mxu0 %v3617
        %4039 = vmatpush1.bf16.msra.mxu0 %v3616
        %4040 = vmatprep.subr.bf16.mxu0 %v3637
        %4041 = vmatpush1.bf16.msra.mxu0 %v3636
        %4042 = vmatprep.subr.bf16.mxu0 %v3657
        %4043 = vmatpush1.bf16.msra.mxu0 %v3656
        %4044 = vmatprep.subr.bf16.mxu0 %v3677
        %4045 = vmatpush1.bf16.msra.mxu0 %v3676
        %4046 = vmatprep.subr.bf16.mxu0 %v3697
        %4047 = vmatpush1.bf16.msra.mxu0 %v3696
        %4048 = vmatprep.subr.bf16.mxu0 %v3717
        %4049 = vmatpush1.bf16.msra.mxu0 %v3716
        %4050 = vmatprep.subr.bf16.mxu0 %v3737
        %4051 = vmatpush1.bf16.msra.mxu0 %v3736
        %4052 = vmatprep.subr.bf16.mxu0 %v3757
        %4053 = vmatpush1.bf16.msra.mxu0 %v3756
        %4054 = vmatprep.subr.bf16.mxu0 0
        %4055 = vmatpush1.bf16.msra.mxu0 0
        %4056 = vmatprep.subr.bf16.mxu0 0
        %4057 = vmatpush1.bf16.msra.mxu0 0
        %4058 = vmatprep.subr.bf16.mxu0 0
        %4059 = vmatpush1.bf16.msra.mxu0 0
        %4060 = vmatprep.subr.bf16.mxu0 0
        %4061 = vmatpush1.bf16.msra.mxu0 0
        %4062 = vmatprep.subr.bf16.mxu0 0
        %4063 = vmatpush1.bf16.msra.mxu0 0
        %4064 = vmatprep.subr.bf16.mxu0 0
        %4065 = vmatpush1.bf16.msra.mxu0 0
        %4066 = vmatprep.subr.bf16.mxu0 0
        %4067 = vmatpush1.bf16.msra.mxu0 0
        %4068 = vmatprep.subr.bf16.mxu0 0
        %4069 = vmatpush1.bf16.msra.mxu0 0
        %4070 = vmatprep.mubr.bf16.mxu0 0
        %4071 = vmatmul.mubr.bf16.gmra.mrb[0].mxu0 %v2864
        %v4072 = vpop.f32.mrb[0].mxu0
        %v4073 = vadd.f32 %v3051, %v4072
        %v4074 = vpop.f32.mrb[0].mxu0
        %v4075 = vadd.f32 %v3055, %v4074
        %v4076 = vpop.f32.mrb[0].mxu0
        %v4077 = vadd.f32 %v3051, %v4076
        %v4078 = vpop.f32.mrb[0].mxu0
        %v4079 = vadd.f32 %v3055, %v4078
        %4080 = vmatprep.mubr.bf16.mxu0 0
        %4081 = vmatmul.mubr.bf16.gmra.mrb[0].mxu0 %v2865
        %v4082 = vpop.f32.mrb[0].mxu0
        %v4083 = vadd.f32 %v3051, %v4082
        %v4084 = vpop.f32.mrb[0].mxu0
        %v4085 = vadd.f32 %v3055, %v4084
        %v4086 = vpop.f32.mrb[0].mxu0
        %v4087 = vadd.f32 %v3051, %v4086
        %v4088 = vpop.f32.mrb[0].mxu0
        %v4089 = vadd.f32 %v3055, %v4088
        %4090 = vdwg.mxu0
        %4091 = vmatprep.subr.bf16.mxu0 %v3619
        %4092 = vmatpush1.bf16.msra.mxu0 %v3618
        %4093 = vmatprep.subr.bf16.mxu0 %v3639
        %4094 = vmatpush1.bf16.msra.mxu0 %v3638
        %4095 = vmatprep.subr.bf16.mxu0 %v3659
        %4096 = vmatpush1.bf16.msra.mxu0 %v3658
        %4097 = vmatprep.subr.bf16.mxu0 %v3679
        %4098 = vmatpush1.bf16.msra.mxu0 %v3678
        %4099 = vmatprep.subr.bf16.mxu0 %v3699
        %4100 = vmatpush1.bf16.msra.mxu0 %v3698
        %4101 = vmatprep.subr.bf16.mxu0 %v3719
        %4102 = vmatpush1.bf16.msra.mxu0 %v3718
        %4103 = vmatprep.subr.bf16.mxu0 %v3739
        %4104 = vmatpush1.bf16.msra.mxu0 %v3738
        %4105 = vmatprep.subr.bf16.mxu0 %v3759
        %4106 = vmatpush1.bf16.msra.mxu0 %v3758
        %4107 = vmatprep.subr.bf16.mxu0 0
        %4108 = vmatpush1.bf16.msra.mxu0 0
        %4109 = vmatprep.subr.bf16.mxu0 0
        %4110 = vmatpush1.bf16.msra.mxu0 0
        %4111 = vmatprep.subr.bf16.mxu0 0
        %4112 = vmatpush1.bf16.msra.mxu0 0
        %4113 = vmatprep.subr.bf16.mxu0 0
        %4114 = vmatpush1.bf16.msra.mxu0 0
        %4115 = vmatprep.subr.bf16.mxu0 0
        %4116 = vmatpush1.bf16.msra.mxu0 0
        %4117 = vmatprep.subr.bf16.mxu0 0
        %4118 = vmatpush1.bf16.msra.mxu0 0
        %4119 = vmatprep.subr.bf16.mxu0 0
        %4120 = vmatpush1.bf16.msra.mxu0 0
        %4121 = vmatprep.subr.bf16.mxu0 0
        %4122 = vmatpush1.bf16.msra.mxu0 0
        %4123 = vmatprep.mubr.bf16.mxu0 0
        %4124 = vmatmul.mubr.bf16.gmra.mrb[0].mxu0 %v2864
        %v4125 = vpop.f32.mrb[0].mxu0
        %v4126 = vadd.f32 %v3059, %v4125
        %v4127 = vpop.f32.mrb[0].mxu0
        %v4128 = vadd.f32 %v3063, %v4127
        %v4129 = vpop.f32.mrb[0].mxu0
        %v4130 = vadd.f32 %v3059, %v4129
        %v4131 = vpop.f32.mrb[0].mxu0
        %v4132 = vadd.f32 %v3063, %v4131
        %4133 = vmatprep.mubr.bf16.mxu0 0
        %4134 = vmatmul.mubr.bf16.gmra.mrb[0].mxu0 %v2865
        %v4135 = vpop.f32.mrb[0].mxu0
        %v4136 = vadd.f32 %v3059, %v4135
        %v4137 = vpop.f32.mrb[0].mxu0
        %v4138 = vadd.f32 %v3063, %v4137
        %v4139 = vpop.f32.mrb[0].mxu0
        %v4140 = vadd.f32 %v3059, %v4139
        %v4141 = vpop.f32.mrb[0].mxu0
        %v4142 = vadd.f32 %v3063, %v4141
        %4143 = vdwg.mxu0
        %4144 = vmatprep.subr.bf16.mxu0 %v3621
        %4145 = vmatpush1.bf16.msra.mxu0 %v3620
        %4146 = vmatprep.subr.bf16.mxu0 %v3641
        %4147 = vmatpush1.bf16.msra.mxu0 %v3640
        %4148 = vmatprep.subr.bf16.mxu0 %v3661
        %4149 = vmatpush1.bf16.msra.mxu0 %v3660
        %4150 = vmatprep.subr.bf16.mxu0 %v3681
        %4151 = vmatpush1.bf16.msra.mxu0 %v3680
        %4152 = vmatprep.subr.bf16.mxu0 %v3701
        %4153 = vmatpush1.bf16.msra.mxu0 %v3700
        %4154 = vmatprep.subr.bf16.mxu0 %v3721
        %4155 = vmatpush1.bf16.msra.mxu0 %v3720
        %4156 = vmatprep.subr.bf16.mxu0 %v3741
        %4157 = vmatpush1.bf16.msra.mxu0 %v3740
        %4158 = vmatprep.subr.bf16.mxu0 %v3761
        %4159 = vmatpush1.bf16.msra.mxu0 %v3760
        %4160 = vmatprep.subr.bf16.mxu0 0
        %4161 = vmatpush1.bf16.msra.mxu0 0
        %4162 = vmatprep.subr.bf16.mxu0 0
        %4163 = vmatpush1.bf16.msra.mxu0 0
        %4164 = vmatprep.subr.bf16.mxu0 0
        %4165 = vmatpush1.bf16.msra.mxu0 0
        %4166 = vmatprep.subr.bf16.mxu0 0
        %4167 = vmatpush1.bf16.msra.mxu0 0
        %4168 = vmatprep.subr.bf16.mxu0 0
        %4169 = vmatpush1.bf16.msra.mxu0 0
        %4170 = vmatprep.subr.bf16.mxu0 0
        %4171 = vmatpush1.bf16.msra.mxu0 0
        %4172 = vmatprep.subr.bf16.mxu0 0
        %4173 = vmatpush1.bf16.msra.mxu0 0
        %4174 = vmatprep.subr.bf16.mxu0 0
        %4175 = vmatpush1.bf16.msra.mxu0 0
        %4176 = vmatprep.mubr.bf16.mxu0 0
        %4177 = vmatmul.mubr.bf16.gmra.mrb[0].mxu0 %v2864
        %v4178 = vpop.f32.mrb[0].mxu0
        %v4179 = vadd.f32 %v3067, %v4178
        %v4180 = vpop.f32.mrb[0].mxu0
        %v4181 = vadd.f32 %v3071, %v4180
        %v4182 = vpop.f32.mrb[0].mxu0
        %v4183 = vadd.f32 %v3067, %v4182
        %v4184 = vpop.f32.mrb[0].mxu0
        %v4185 = vadd.f32 %v3071, %v4184
        %4186 = vmatprep.mubr.bf16.mxu0 0
        %4187 = vmatmul.mubr.bf16.gmra.mrb[0].mxu0 %v2865
        %v4188 = vpop.f32.mrb[0].mxu0
        %v4189 = vadd.f32 %v3067, %v4188
        %v4190 = vpop.f32.mrb[0].mxu0
        %v4191 = vadd.f32 %v3071, %v4190
        %v4192 = vpop.f32.mrb[0].mxu0
        %v4193 = vadd.f32 %v3067, %v4192
        %v4194 = vpop.f32.mrb[0].mxu0
        %v4195 = vadd.f32 %v3071, %v4194
        %4196 = vdwg.mxu0
        %4197 = vmatprep.subr.bf16.mxu0 %v3623
        %4198 = vmatpush1.bf16.msra.mxu0 %v3622
        %4199 = vmatprep.subr.bf16.mxu0 %v3643
        %4200 = vmatpush1.bf16.msra.mxu0 %v3642
        %4201 = vmatprep.subr.bf16.mxu0 %v3663
        %4202 = vmatpush1.bf16.msra.mxu0 %v3662
        %4203 = vmatprep.subr.bf16.mxu0 %v3683
        %4204 = vmatpush1.bf16.msra.mxu0 %v3682
        %4205 = vmatprep.subr.bf16.mxu0 %v3703
        %4206 = vmatpush1.bf16.msra.mxu0 %v3702
        %4207 = vmatprep.subr.bf16.mxu0 %v3723
        %4208 = vmatpush1.bf16.msra.mxu0 %v3722
        %4209 = vmatprep.subr.bf16.mxu0 %v3743
        %4210 = vmatpush1.bf16.msra.mxu0 %v3742
        %4211 = vmatprep.subr.bf16.mxu0 %v3763
        %4212 = vmatpush1.bf16.msra.mxu0 %v3762
        %4213 = vmatprep.subr.bf16.mxu0 0
        %4214 = vmatpush1.bf16.msra.mxu0 0
        %4215 = vmatprep.subr.bf16.mxu0 0
        %4216 = vmatpush1.bf16.msra.mxu0 0
        %4217 = vmatprep.subr.bf16.mxu0 0
        %4218 = vmatpush1.bf16.msra.mxu0 0
        %4219 = vmatprep.subr.bf16.mxu0 0
        %4220 = vmatpush1.bf16.msra.mxu0 0
        %4221 = vmatprep.subr.bf16.mxu0 0
        %4222 = vmatpush1.bf16.msra.mxu0 0
        %4223 = vmatprep.subr.bf16.mxu0 0
        %4224 = vmatpush1.bf16.msra.mxu0 0
        %4225 = vmatprep.subr.bf16.mxu0 0
        %4226 = vmatpush1.bf16.msra.mxu0 0
        %4227 = vmatprep.subr.bf16.mxu0 0
        %4228 = vmatpush1.bf16.msra.mxu0 0
        %4229 = vmatprep.mubr.bf16.mxu0 0
        %4230 = vmatmul.mubr.bf16.gmra.mrb[0].mxu0 %v2864
        %v4231 = vpop.f32.mrb[0].mxu0
        %v4232 = vadd.f32 %v3075, %v4231
        %v4233 = vpop.f32.mrb[0].mxu0
        %v4234 = vadd.f32 %v3079, %v4233
        %v4235 = vpop.f32.mrb[0].mxu0
        %v4236 = vadd.f32 %v3075, %v4235
        %v4237 = vpop.f32.mrb[0].mxu0
        %v4238 = vadd.f32 %v3079, %v4237
        %4239 = vmatprep.mubr.bf16.mxu0 0
        %4240 = vmatmul.mubr.bf16.gmra.mrb[0].mxu0 %v2865
        %v4241 = vpop.f32.mrb[0].mxu0
        %v4242 = vadd.f32 %v3075, %v4241
        %v4243 = vpop.f32.mrb[0].mxu0
        %v4244 = vadd.f32 %v3079, %v4243
        %v4245 = vpop.f32.mrb[0].mxu0
        %v4246 = vadd.f32 %v3075, %v4245
        %v4247 = vpop.f32.mrb[0].mxu0
        %v4248 = vadd.f32 %v3079, %v4247
        %4249 = vdwg.mxu0
        %4250 = vmatprep.subr.bf16.mxu0 %v3625
        %4251 = vmatpush1.bf16.msra.mxu0 %v3624
        %4252 = vmatprep.subr.bf16.mxu0 %v3645
        %4253 = vmatpush1.bf16.msra.mxu0 %v3644
        %4254 = vmatprep.subr.bf16.mxu0 %v3665
        %4255 = vmatpush1.bf16.msra.mxu0 %v3664
        %4256 = vmatprep.subr.bf16.mxu0 %v3685
        %4257 = vmatpush1.bf16.msra.mxu0 %v3684
        %4258 = vmatprep.subr.bf16.mxu0 %v3705
        %4259 = vmatpush1.bf16.msra.mxu0 %v3704
        %4260 = vmatprep.subr.bf16.mxu0 %v3725
        %4261 = vmatpush1.bf16.msra.mxu0 %v3724
        %4262 = vmatprep.subr.bf16.mxu0 %v3745
        %4263 = vmatpush1.bf16.msra.mxu0 %v3744
        %4264 = vmatprep.subr.bf16.mxu0 %v3765
        %4265 = vmatpush1.bf16.msra.mxu0 %v3764
        %4266 = vmatprep.subr.bf16.mxu0 0
        %4267 = vmatpush1.bf16.msra.mxu0 0
        %4268 = vmatprep.subr.bf16.mxu0 0
        %4269 = vmatpush1.bf16.msra.mxu0 0
        %4270 = vmatprep.subr.bf16.mxu0 0
        %4271 = vmatpush1.bf16.msra.mxu0 0
        %4272 = vmatprep.subr.bf16.mxu0 0
        %4273 = vmatpush1.bf16.msra.mxu0 0
        %4274 = vmatprep.subr.bf16.mxu0 0
        %4275 = vmatpush1.bf16.msra.mxu0 0
        %4276 = vmatprep.subr.bf16.mxu0 0
        %4277 = vmatpush1.bf16.msra.mxu0 0
        %4278 = vmatprep.subr.bf16.mxu0 0
        %4279 = vmatpush1.bf16.msra.mxu0 0
        %4280 = vmatprep.subr.bf16.mxu0 0
        %4281 = vmatpush1.bf16.msra.mxu0 0
        %4282 = vmatprep.mubr.bf16.mxu0 0
        %4283 = vmatmul.mubr.bf16.gmra.mrb[0].mxu0 %v2864
        %v4284 = vpop.f32.mrb[0].mxu0
        %v4285 = vadd.f32 %v3083, %v4284
        %v4286 = vpop.f32.mrb[0].mxu0
        %v4287 = vadd.f32 %v3087, %v4286
        %v4288 = vpop.f32.mrb[0].mxu0
        %v4289 = vadd.f32 %v3083, %v4288
        %v4290 = vpop.f32.mrb[0].mxu0
        %v4291 = vadd.f32 %v3087, %v4290
        %4292 = vmatprep.mubr.bf16.mxu0 0
        %4293 = vmatmul.mubr.bf16.gmra.mrb[0].mxu0 %v2865
        %v4294 = vpop.f32.mrb[0].mxu0
        %v4295 = vadd.f32 %v3083, %v4294
        %v4296 = vpop.f32.mrb[0].mxu0
        %v4297 = vadd.f32 %v3087, %v4296
        %v4298 = vpop.f32.mrb[0].mxu0
        %v4299 = vadd.f32 %v3083, %v4298
        %v4300 = vpop.f32.mrb[0].mxu0
        %v4301 = vadd.f32 %v3087, %v4300
        %4302 = vdwg.mxu0
        %4303 = vmatprep.subr.bf16.mxu0 %v3627
        %4304 = vmatpush1.bf16.msra.mxu0 %v3626
        %4305 = vmatprep.subr.bf16.mxu0 %v3647
        %4306 = vmatpush1.bf16.msra.mxu0 %v3646
        %4307 = vmatprep.subr.bf16.mxu0 %v3667
        %4308 = vmatpush1.bf16.msra.mxu0 %v3666
        %4309 = vmatprep.subr.bf16.mxu0 %v3687
        %4310 = vmatpush1.bf16.msra.mxu0 %v3686
        %4311 = vmatprep.subr.bf16.mxu0 %v3707
        %4312 = vmatpush1.bf16.msra.mxu0 %v3706
        %4313 = vmatprep.subr.bf16.mxu0 %v3727
        %4314 = vmatpush1.bf16.msra.mxu0 %v3726
        %4315 = vmatprep.subr.bf16.mxu0 %v3747
        %4316 = vmatpush1.bf16.msra.mxu0 %v3746
        %4317 = vmatprep.subr.bf16.mxu0 %v3767
        %4318 = vmatpush1.bf16.msra.mxu0 %v3766
        %4319 = vmatprep.subr.bf16.mxu0 0
        %4320 = vmatpush1.bf16.msra.mxu0 0
        %4321 = vmatprep.subr.bf16.mxu0 0
        %4322 = vmatpush1.bf16.msra.mxu0 0
        %4323 = vmatprep.subr.bf16.mxu0 0
        %4324 = vmatpush1.bf16.msra.mxu0 0
        %4325 = vmatprep.subr.bf16.mxu0 0
        %4326 = vmatpush1.bf16.msra.mxu0 0
        %4327 = vmatprep.subr.bf16.mxu0 0
        %4328 = vmatpush1.bf16.msra.mxu0 0
        %4329 = vmatprep.subr.bf16.mxu0 0
        %4330 = vmatpush1.bf16.msra.mxu0 0
        %4331 = vmatprep.subr.bf16.mxu0 0
        %4332 = vmatpush1.bf16.msra.mxu0 0
        %4333 = vmatprep.subr.bf16.mxu0 0
        %4334 = vmatpush1.bf16.msra.mxu0 0
        %4335 = vmatprep.mubr.bf16.mxu0 0
        %4336 = vmatmul.mubr.bf16.gmra.mrb[0].mxu0 %v2864
        %v4337 = vpop.f32.mrb[0].mxu0
        %v4338 = vadd.f32 %v3091, %v4337
        %v4339 = vpop.f32.mrb[0].mxu0
        %v4340 = vadd.f32 %v3095, %v4339
        %v4341 = vpop.f32.mrb[0].mxu0
        %v4342 = vadd.f32 %v3091, %v4341
        %v4343 = vpop.f32.mrb[0].mxu0
        %v4344 = vadd.f32 %v3095, %v4343
        %4345 = vmatprep.mubr.bf16.mxu0 0
        %4346 = vmatmul.mubr.bf16.gmra.mrb[0].mxu0 %v2865
        %v4347 = vpop.f32.mrb[0].mxu0
        %v4348 = vadd.f32 %v3091, %v4347
        %v4349 = vpop.f32.mrb[0].mxu0
        %v4350 = vadd.f32 %v3095, %v4349
        %v4351 = vpop.f32.mrb[0].mxu0
        %v4352 = vadd.f32 %v3091, %v4351
        %v4353 = vpop.f32.mrb[0].mxu0
        %v4354 = vadd.f32 %v3095, %v4353
        %4355 = vdwg.mxu0
        %4356 = vmatprep.subr.bf16.mxu0 %v3629
        %4357 = vmatpush1.bf16.msra.mxu0 %v3628
        %4358 = vmatprep.subr.bf16.mxu0 %v3649
        %4359 = vmatpush1.bf16.msra.mxu0 %v3648
        %4360 = vmatprep.subr.bf16.mxu0 %v3669
        %4361 = vmatpush1.bf16.msra.mxu0 %v3668
        %4362 = vmatprep.subr.bf16.mxu0 %v3689
        %4363 = vmatpush1.bf16.msra.mxu0 %v3688
        %4364 = vmatprep.subr.bf16.mxu0 %v3709
        %4365 = vmatpush1.bf16.msra.mxu0 %v3708
        %4366 = vmatprep.subr.bf16.mxu0 %v3729
        %4367 = vmatpush1.bf16.msra.mxu0 %v3728
        %4368 = vmatprep.subr.bf16.mxu0 %v3749
        %4369 = vmatpush1.bf16.msra.mxu0 %v3748
        %4370 = vmatprep.subr.bf16.mxu0 %v3769
        %4371 = vmatpush1.bf16.msra.mxu0 %v3768
        %4372 = vmatprep.subr.bf16.mxu0 0
        %4373 = vmatpush1.bf16.msra.mxu0 0
        %4374 = vmatprep.subr.bf16.mxu0 0
        %4375 = vmatpush1.bf16.msra.mxu0 0
        %4376 = vmatprep.subr.bf16.mxu0 0
        %4377 = vmatpush1.bf16.msra.mxu0 0
        %4378 = vmatprep.subr.bf16.mxu0 0
        %4379 = vmatpush1.bf16.msra.mxu0 0
        %4380 = vmatprep.subr.bf16.mxu0 0
        %4381 = vmatpush1.bf16.msra.mxu0 0
        %4382 = vmatprep.subr.bf16.mxu0 0
        %4383 = vmatpush1.bf16.msra.mxu0 0
        %4384 = vmatprep.subr.bf16.mxu0 0
        %4385 = vmatpush1.bf16.msra.mxu0 0
        %4386 = vmatprep.subr.bf16.mxu0 0
        %4387 = vmatpush1.bf16.msra.mxu0 0
        %4388 = vmatprep.mubr.bf16.mxu0 0
        %4389 = vmatmul.mubr.bf16.gmra.mrb[0].mxu0 %v2864
        %v4390 = vpop.f32.mrb[0].mxu0
        %v4391 = vadd.f32 %v3099, %v4390
        %v4392 = vpop.f32.mrb[0].mxu0
        %v4393 = vadd.f32 %v3103, %v4392
        %v4394 = vpop.f32.mrb[0].mxu0
        %v4395 = vadd.f32 %v3099, %v4394
        %v4396 = vpop.f32.mrb[0].mxu0
        %v4397 = vadd.f32 %v3103, %v4396
        %4398 = vmatprep.mubr.bf16.mxu0 0
        %4399 = vmatmul.mubr.bf16.gmra.mrb[0].mxu0 %v2865
        %v4400 = vpop.f32.mrb[0].mxu0
        %v4401 = vadd.f32 %v3099, %v4400
        %v4402 = vpop.f32.mrb[0].mxu0
        %v4403 = vadd.f32 %v3103, %v4402
        %v4404 = vpop.f32.mrb[0].mxu0
        %v4405 = vadd.f32 %v3099, %v4404
        %v4406 = vpop.f32.mrb[0].mxu0
        %v4407 = vadd.f32 %v3103, %v4406
        %4408 = vdwg.mxu0
        %4409 = vmatprep.subr.bf16.mxu0 %v3631
        %4410 = vmatpush1.bf16.msra.mxu0 %v3630
        %4411 = vmatprep.subr.bf16.mxu0 %v3651
        %4412 = vmatpush1.bf16.msra.mxu0 %v3650
        %4413 = vmatprep.subr.bf16.mxu0 %v3671
        %4414 = vmatpush1.bf16.msra.mxu0 %v3670
        %4415 = vmatprep.subr.bf16.mxu0 %v3691
        %4416 = vmatpush1.bf16.msra.mxu0 %v3690
        %4417 = vmatprep.subr.bf16.mxu0 %v3711
        %4418 = vmatpush1.bf16.msra.mxu0 %v3710
        %4419 = vmatprep.subr.bf16.mxu0 %v3731
        %4420 = vmatpush1.bf16.msra.mxu0 %v3730
        %4421 = vmatprep.subr.bf16.mxu0 %v3751
        %4422 = vmatpush1.bf16.msra.mxu0 %v3750
        %4423 = vmatprep.subr.bf16.mxu0 %v3771
        %4424 = vmatpush1.bf16.msra.mxu0 %v3770
        %4425 = vmatprep.subr.bf16.mxu0 0
        %4426 = vmatpush1.bf16.msra.mxu0 0
        %4427 = vmatprep.subr.bf16.mxu0 0
        %4428 = vmatpush1.bf16.msra.mxu0 0
        %4429 = vmatprep.subr.bf16.mxu0 0
        %4430 = vmatpush1.bf16.msra.mxu0 0
        %4431 = vmatprep.subr.bf16.mxu0 0
        %4432 = vmatpush1.bf16.msra.mxu0 0
        %4433 = vmatprep.subr.bf16.mxu0 0
        %4434 = vmatpush1.bf16.msra.mxu0 0
        %4435 = vmatprep.subr.bf16.mxu0 0
        %4436 = vmatpush1.bf16.msra.mxu0 0
        %4437 = vmatprep.subr.bf16.mxu0 0
        %4438 = vmatpush1.bf16.msra.mxu0 0
        %4439 = vmatprep.subr.bf16.mxu0 0
        %4440 = vmatpush1.bf16.msra.mxu0 0
        %4441 = vmatprep.mubr.bf16.mxu0 0
        %4442 = vmatmul.mubr.bf16.gmra.mrb[0].mxu0 %v2864
        %v4443 = vpop.f32.mrb[0].mxu0
        %v4444 = vadd.f32 %v3107, %v4443
        %v4445 = vpop.f32.mrb[0].mxu0
        %v4446 = vadd.f32 %v3111, %v4445
        %v4447 = vpop.f32.mrb[0].mxu0
        %v4448 = vadd.f32 %v3107, %v4447
        %v4449 = vpop.f32.mrb[0].mxu0
        %v4450 = vadd.f32 %v3111, %v4449
        %4451 = vmatprep.mubr.bf16.mxu0 0
        %4452 = vmatmul.mubr.bf16.gmra.mrb[0].mxu0 %v2865
        %v4453 = vpop.f32.mrb[0].mxu0
        %v4454 = vadd.f32 %v3107, %v4453
        %v4455 = vpop.f32.mrb[0].mxu0
        %v4456 = vadd.f32 %v3111, %v4455
        %v4457 = vpop.f32.mrb[0].mxu0
        %v4458 = vadd.f32 %v3107, %v4457
        %v4459 = vpop.f32.mrb[0].mxu0
        %v4460 = vadd.f32 %v3111, %v4459
        %4461 = vdwg.mxu0
        %v4462 = vpack.c.bf16 %v3971, %v3967
        %v4463 = vpack.c.bf16 %v3973, %v3969
        %v4464 = vpack.c.bf16 %v4024, %v4020
        %v4465 = vpack.c.bf16 %v4026, %v4022
        %v4466 = vpack.c.bf16 %v4077, %v4073
        %v4467 = vpack.c.bf16 %v4079, %v4075
        %v4468 = vpack.c.bf16 %v4130, %v4126
        %v4469 = vpack.c.bf16 %v4132, %v4128
        %v4470 = vpack.c.bf16 %v4183, %v4179
        %v4471 = vpack.c.bf16 %v4185, %v4181
        %v4472 = vpack.c.bf16 %v4236, %v4232
        %v4473 = vpack.c.bf16 %v4238, %v4234
        %v4474 = vpack.c.bf16 %v4289, %v4285
        %v4475 = vpack.c.bf16 %v4291, %v4287
        %v4476 = vpack.c.bf16 %v4342, %v4338
        %v4477 = vpack.c.bf16 %v4344, %v4340
        %v4478 = vpack.c.bf16 %v4395, %v4391
        %v4479 = vpack.c.bf16 %v4397, %v4393
        %v4480 = vpack.c.bf16 %v4448, %v4444
        %v4481 = vpack.c.bf16 %v4450, %v4446
        %v4482 = vpack.c.bf16 %v3981, %v3977
        %v4483 = vpack.c.bf16 %v3983, %v3979
        %v4484 = vpack.c.bf16 %v4034, %v4030
        %v4485 = vpack.c.bf16 %v4036, %v4032
        %v4486 = vpack.c.bf16 %v4087, %v4083
        %v4487 = vpack.c.bf16 %v4089, %v4085
        %v4488 = vpack.c.bf16 %v4140, %v4136
        %v4489 = vpack.c.bf16 %v4142, %v4138
        %v4490 = vpack.c.bf16 %v4193, %v4189
        %v4491 = vpack.c.bf16 %v4195, %v4191
        %v4492 = vpack.c.bf16 %v4246, %v4242
        %v4493 = vpack.c.bf16 %v4248, %v4244
        %v4494 = vpack.c.bf16 %v4299, %v4295
        %v4495 = vpack.c.bf16 %v4301, %v4297
        %v4496 = vpack.c.bf16 %v4352, %v4348
        %v4497 = vpack.c.bf16 %v4354, %v4350
        %v4498 = vpack.c.bf16 %v4405, %v4401
        %v4499 = vpack.c.bf16 %v4407, %v4403
        %v4500 = vpack.c.bf16 %v4458, %v4454
        %v4501 = vpack.c.bf16 %v4460, %v4456
        %v4542 = vunpack.c.l.b16 %v4462
        %v4543 = vunpack.c.l.b16 %v4463
        %v4544 = vunpack.c.l.b16 %v4464
        %v4545 = vunpack.c.l.b16 %v4465
        %v4546 = vunpack.c.l.b16 %v4466
        %v4547 = vunpack.c.l.b16 %v4467
        %v4548 = vunpack.c.l.b16 %v4468
        %v4549 = vunpack.c.l.b16 %v4469
        %v4550 = vunpack.c.l.b16 %v4470
        %v4551 = vunpack.c.l.b16 %v4471
        %v4552 = vunpack.c.l.b16 %v4472
        %v4553 = vunpack.c.l.b16 %v4473
        %v4554 = vunpack.c.l.b16 %v4474
        %v4555 = vunpack.c.l.b16 %v4475
        %v4556 = vunpack.c.l.b16 %v4476
        %v4557 = vunpack.c.l.b16 %v4477
        %v4558 = vunpack.c.l.b16 %v4478
        %v4559 = vunpack.c.l.b16 %v4479
        %v4560 = vunpack.c.l.b16 %v4480
        %v4561 = vunpack.c.l.b16 %v4481
        %v4562 = vunpack.c.h.b16 %v4462
        %v4563 = vunpack.c.h.b16 %v4463
        %v4564 = vunpack.c.h.b16 %v4464
        %v4565 = vunpack.c.h.b16 %v4465
        %v4566 = vunpack.c.h.b16 %v4466
        %v4567 = vunpack.c.h.b16 %v4467
        %v4568 = vunpack.c.h.b16 %v4468
        %v4569 = vunpack.c.h.b16 %v4469
        %v4570 = vunpack.c.h.b16 %v4470
        %v4571 = vunpack.c.h.b16 %v4471
        %v4572 = vunpack.c.h.b16 %v4472
        %v4573 = vunpack.c.h.b16 %v4473
        %v4574 = vunpack.c.h.b16 %v4474
        %v4575 = vunpack.c.h.b16 %v4475
        %v4576 = vunpack.c.h.b16 %v4476
        %v4577 = vunpack.c.h.b16 %v4477
        %v4578 = vunpack.c.h.b16 %v4478
        %v4579 = vunpack.c.h.b16 %v4479
        %v4580 = vunpack.c.h.b16 %v4480
        %v4581 = vunpack.c.h.b16 %v4481
        %v4582 = vunpack.c.l.b16 %v4482
        %v4583 = vunpack.c.l.b16 %v4483
        %v4584 = vunpack.c.l.b16 %v4484
        %v4585 = vunpack.c.l.b16 %v4485
        %v4586 = vunpack.c.l.b16 %v4486
        %v4587 = vunpack.c.l.b16 %v4487
        %v4588 = vunpack.c.l.b16 %v4488
        %v4589 = vunpack.c.l.b16 %v4489
        %v4590 = vunpack.c.l.b16 %v4490
        %v4591 = vunpack.c.l.b16 %v4491
        %v4592 = vunpack.c.l.b16 %v4492
        %v4593 = vunpack.c.l.b16 %v4493
        %v4594 = vunpack.c.l.b16 %v4494
        %v4595 = vunpack.c.l.b16 %v4495
        %v4596 = vunpack.c.l.b16 %v4496
        %v4597 = vunpack.c.l.b16 %v4497
        %v4598 = vunpack.c.l.b16 %v4498
        %v4599 = vunpack.c.l.b16 %v4499
        %v4600 = vunpack.c.l.b16 %v4500
        %v4601 = vunpack.c.l.b16 %v4501
        %v4602 = vunpack.c.h.b16 %v4482
        %v4603 = vunpack.c.h.b16 %v4483
        %v4604 = vunpack.c.h.b16 %v4484
        %v4605 = vunpack.c.h.b16 %v4485
        %v4606 = vunpack.c.h.b16 %v4486
        %v4607 = vunpack.c.h.b16 %v4487
        %v4608 = vunpack.c.h.b16 %v4488
        %v4609 = vunpack.c.h.b16 %v4489
        %v4610 = vunpack.c.h.b16 %v4490
        %v4611 = vunpack.c.h.b16 %v4491
        %v4612 = vunpack.c.h.b16 %v4492
        %v4613 = vunpack.c.h.b16 %v4493
        %v4614 = vunpack.c.h.b16 %v4494
        %v4615 = vunpack.c.h.b16 %v4495
        %v4616 = vunpack.c.h.b16 %v4496
        %v4617 = vunpack.c.h.b16 %v4497
        %v4618 = vunpack.c.h.b16 %v4498
        %v4619 = vunpack.c.h.b16 %v4499
        %v4620 = vunpack.c.h.b16 %v4500
        %v4621 = vunpack.c.h.b16 %v4501
        %v4622 = vpack.c.b16 %v4543, %v4542
        %v4623 = vpack.c.b16 %v4545, %v4544
        %v4624 = vpack.c.b16 %v4547, %v4546
        %v4625 = vpack.c.b16 %v4549, %v4548
        %v4626 = vpack.c.b16 %v4551, %v4550
        %v4627 = vpack.c.b16 %v4553, %v4552
        %v4628 = vpack.c.b16 %v4555, %v4554
        %v4629 = vpack.c.b16 %v4557, %v4556
        %v4630 = vpack.c.b16 %v4559, %v4558
        %v4631 = vpack.c.b16 %v4561, %v4560
        %v4632 = vpack.c.b16 %v4563, %v4562
        %v4633 = vpack.c.b16 %v4565, %v4564
        %v4634 = vpack.c.b16 %v4567, %v4566
        %v4635 = vpack.c.b16 %v4569, %v4568
        %v4636 = vpack.c.b16 %v4571, %v4570
        %v4637 = vpack.c.b16 %v4573, %v4572
        %v4638 = vpack.c.b16 %v4575, %v4574
        %v4639 = vpack.c.b16 %v4577, %v4576
        %v4640 = vpack.c.b16 %v4579, %v4578
        %v4641 = vpack.c.b16 %v4581, %v4580
        %v4642 = vpack.c.b16 %v4583, %v4582
        %v4643 = vpack.c.b16 %v4585, %v4584
        %v4644 = vpack.c.b16 %v4587, %v4586
        %v4645 = vpack.c.b16 %v4589, %v4588
        %v4646 = vpack.c.b16 %v4591, %v4590
        %v4647 = vpack.c.b16 %v4593, %v4592
        %v4648 = vpack.c.b16 %v4595, %v4594
        %v4649 = vpack.c.b16 %v4597, %v4596
        %v4650 = vpack.c.b16 %v4599, %v4598
        %v4651 = vpack.c.b16 %v4601, %v4600
        %v4652 = vpack.c.b16 %v4603, %v4602
        %v4653 = vpack.c.b16 %v4605, %v4604
        %v4654 = vpack.c.b16 %v4607, %v4606
        %v4655 = vpack.c.b16 %v4609, %v4608
        %v4656 = vpack.c.b16 %v4611, %v4610
        %v4657 = vpack.c.b16 %v4613, %v4612
        %v4658 = vpack.c.b16 %v4615, %v4614
        %v4659 = vpack.c.b16 %v4617, %v4616
        %v4660 = vpack.c.b16 %v4619, %v4618
        %v4661 = vpack.c.b16 %v4621, %v4620
        %4702 = vst [vmem:[%s470] sm:$0xff] %v4622
        %4703 = vst [vmem:[%s470 + $0x8] sm:$0xff] %v4623
        %4704 = vst [vmem:[%s470 + $0x10] sm:$0xff] %v4624
        %4705 = vst [vmem:[%s470 + $0x18] sm:$0xff] %v4625
        %4706 = vst [vmem:[%s470 + $0x20] sm:$0xff] %v4626
        %4707 = vst [vmem:[%s470 + $0x28] sm:$0xff] %v4627
        %4708 = vst [vmem:[%s470 + $0x30] sm:$0xff] %v4628
        %4709 = vst [vmem:[%s470 + $0x38] sm:$0xff] %v4629
        %4710 = vst [vmem:[%s470 + $0x40] sm:$0xff] %v4630
        %4711 = vst [vmem:[%s470 + $0x48] sm:$0xff] %v4631
        %4712 = vst [vmem:[%s470 + $0x50] sm:$0xff] %v4632
        %4713 = vst [vmem:[%s470 + $0x58] sm:$0xff] %v4633
        %4714 = vst [vmem:[%s470 + $0x60] sm:$0xff] %v4634
        %4715 = vst [vmem:[%s470 + $0x68] sm:$0xff] %v4635
        %4716 = vst [vmem:[%s470 + $0x70] sm:$0xff] %v4636
        %4717 = vst [vmem:[%s470 + $0x78] sm:$0xff] %v4637
        %4718 = vst [vmem:[%s470 + $0x80] sm:$0xff] %v4638
        %4719 = vst [vmem:[%s470 + $0x88] sm:$0xff] %v4639
        %4720 = vst [vmem:[%s470 + $0x90] sm:$0xff] %v4640
        %4721 = vst [vmem:[%s470 + $0x98] sm:$0xff] %v4641
        %4722 = vst [vmem:[%s470 + $0xa0] sm:$0xff] %v4642
        %4723 = vst [vmem:[%s470 + $0xa8] sm:$0xff] %v4643
        %4724 = vst [vmem:[%s470 + $0xb0] sm:$0xff] %v4644
        %4725 = vst [vmem:[%s470 + $0xb8] sm:$0xff] %v4645
        %4726 = vst [vmem:[%s470 + $0xc0] sm:$0xff] %v4646
        %4727 = vst [vmem:[%s470 + $0xc8] sm:$0xff] %v4647
        %4728 = vst [vmem:[%s470 + $0xd0] sm:$0xff] %v4648
        %4729 = vst [vmem:[%s470 + $0xd8] sm:$0xff] %v4649
        %4730 = vst [vmem:[%s470 + $0xe0] sm:$0xff] %v4650
        %4731 = vst [vmem:[%s470 + $0xe8] sm:$0xff] %v4651
        %4732 = vst [vmem:[%s470 + $0xf0] sm:$0xff] %v4652
        %4733 = vst [vmem:[%s470 + $0xf8] sm:$0xff] %v4653
        %4734 = vst [vmem:[%s470 + $0x100] sm:$0xff] %v4654
        %4735 = vst [vmem:[%s470 + $0x108] sm:$0xff] %v4655
        %4736 = vst [vmem:[%s470 + $0x110] sm:$0xff] %v4656
        %4737 = vst [vmem:[%s470 + $0x118] sm:$0xff] %v4657
        %4738 = vst [vmem:[%s470 + $0x120] sm:$0xff] %v4658
        %4739 = vst [vmem:[%s470 + $0x128] sm:$0xff] %v4659
        %4740 = vst [vmem:[%s470 + $0x130] sm:$0xff] %v4660
        %4741 = vst [vmem:[%s470 + $0x138] sm:$0xff] %v4661
        %p4742 = scmp.lt.s32.totalorder %s26, 1
        %s4743 = scalar_select %p4742, %s26, 1
        %s4744 = smul.addr %s4743, 4
        %s4745 = smul.addr %s4744, 8
        %s4746 = scalar_lea.vmem %s11, %s4745
        %p4747 = scmp.lt.s32.totalorder %s26, 1
        %s4748 = scalar_select %p4747, %s26, 1
        %s4749 = smul.addr %s4748, 80
        %s4750 = smul.addr %s4749, 4
        %s4751 = scalar_lea.vmem %s12, %s4750
        // Predicated region
        $region77: #{transformer_block.3} parent=63 // pred_check
          %p4752 = pneg %p280
        $region78: #{transformer_block.3} parent=63 // pred_check_branch
          %4754 = sbr.rel (%p4752) target = $region80
        $region79: #{transformer_block.3} parent=63 // pred_region
          _
        $region80: #{transformer_block.3} parent=63 // pred_fallthru
          _
        // Predicated region
        $region81: #{transformer_block.3} parent=63 // pred_check
          %p4755 = pneg %p306
        $region82: #{transformer_block.3} parent=63 // pred_check_branch
          %4757 = sbr.rel (%p4755) target = $region84
        $region83: #{transformer_block.3} parent=63 // pred_region
          _
        $region84: #{transformer_block.3} parent=63 // pred_fallthru
          _
      $region64: #{transformer_block.3} parent=5 // pred_fallthru
        _
      %p4758 = scmp.le.s32.totalorder 2, %s21
      // Predicated region
      $region85: #{transformer_block.3} parent=5 // pred_check
        %p4759 = pneg %p4758
      $region86: #{transformer_block.3} parent=5 // pred_check_branch
        %4761 = sbr.rel (%p4759) target = $region88
      $region87: #{transformer_block.3} parent=5 // pred_region
        %s4762 = ssub.s32 %s21, 2
        // Predicated region
        $region89: #{transformer_block.3} parent=87 // pred_check
          %p4763 = pneg %p286
        $region90: #{transformer_block.3} parent=87 // pred_check_branch
          %4765 = sbr.rel (%p4763) target = $region92
        $region91: #{transformer_block.3} parent=87 // pred_region
          %p4766 = scmp.lt.s32.totalorder %s27, 1
          %s4767 = scalar_select %p4766, %s27, 1
          %s4768 = smul.addr %s4767, 4
          %s4769 = smul.addr %s4768, 8
          %s4770 = scalar_lea.vmem %s11, %s4769
        $region92: #{transformer_block.3} parent=87 // pred_fallthru
          _
        // Predicated region
        $region93: #{transformer_block.3} parent=87 // pred_check
          %p4771 = pneg %p312
        $region94: #{transformer_block.3} parent=87 // pred_check_branch
          %4773 = sbr.rel (%p4771) target = $region96
        $region95: #{transformer_block.3} parent=87 // pred_region
          %p4774 = scmp.lt.s32.totalorder %s27, 1
          %s4775 = scalar_select %p4774, %s27, 1
          %s4776 = smul.addr %s4775, 80
          %s4777 = smul.addr %s4776, 4
          %s4778 = scalar_lea.vmem %s12, %s4777
        $region96: #{transformer_block.3} parent=87 // pred_fallthru
          _
      $region88: #{transformer_block.3} parent=5 // pred_fallthru
        _
    $region6: #{transformer_block.3} parent=1 // loop_footer
      %s25 = sadd.s32 1, %s21
    $region7: #{transformer_block.3} parent=1 // loop_footer_branch
      %20 = sbr.rel target = $region3
    $region8: #{transformer_block.3} parent=1 // loop_exit
      _
    %4779 = vsyncpa [#allocation3], 1
    %s4780 = scalar_lea.sflag [#allocation3], 1
    %4781 = vsyncpa %s4780, 1
    %4782 = vsyncpa [#allocation5], 1

// kernel: transformer_block.5
$region0: #{transformer_block.5}
  #allocation0 [shape = 'u32[]', space=smem, size = 0x4, offset = 0x4, fixed_abs, tag = 'smem constant byte address 0x4 - core index']
  #allocation1 [shape = 'u32[144,128]{1,0:T(1,128)}', space=vmem, size = 0x12000, scoped, tag = 'internal scratch']
  %s0 = inlined_call_operand.vmem [shape: bf16[64,2560], index: 0, kind: input, shape index: {}]
  %s1 = inlined_call_operand.vmem [shape: f32[64,128], index: 1, kind: input, shape index: {}]
  %s2 = inlined_call_operand.vmem [shape: bf16[2560,128], index: 2, kind: input, shape index: {}]
  %s3 = inlined_call_operand.vmem [shape: f32[1,128], index: 3, kind: input, shape index: {}]
  %s4 = inlined_call_operand.hbm [shape: f32[64,128], index: 4, kind: output, shape index: {}]
  %s5 = sld [smem:[#allocation0]]
  $region49: #{transformer_block.5} parent=0
    _
  %s7 = ssub.s32 1, %s5
  %s8 = scalar_select 0, %s7, %s5
  $region1: #{transformer_block.5} parent=0
    #allocation2 [shape = 'u8[32768]{0}', space=vmem, size = 0x8000, scoped, tag = 'output window, operand 0']
    #allocation3 [shape = 's32[2]{0}', space=sflag, size = 0x8, scoped, tag = 'scoped memory for transformer_block.5']
    %9 = vsyncpa [#allocation3], 0
    %s10 = scalar_lea.sflag [#allocation3], 1
    %11 = vsyncpa %s10, 0
    loop: start=0, step=1, limit=4
    $region2: #{transformer_block.5} parent=1 // loop_pre_header
      _
    $region3: #{transformer_block.5} parent=1 // loop_header
      %s13 = sphi 0, %s17
      %p14 = scmp.ge.s32.totalorder %s13, 4
      %s23 = sphi 0, %s25
      %s26 = sphi 0, %s23
      %s27 = sphi 0, %s26
      %s43 = sphi 0, %s27
      %s49 = sphi 0, %s51
      %s52 = sphi 0, %s49
      %s53 = sphi 0, %s52
      %s69 = sphi 0, %s53
      %s73 = sphi 0, %s73
      %s75 = sphi 0, %s73
      %s76 = sphi 0, %s75
      %s90 = sphi 0, %s76
      %s94 = sphi 0, %s94
      %s96 = sphi 0, %s94
      %s97 = sphi 0, %s96
      %s111 = sphi 0, %s97
      %s117 = sphi 0, %s119
      %s120 = sphi 0, %s117
      %s121 = sphi 0, %s120
      %s137 = sphi 0, %s121
    $region4: #{transformer_block.5} parent=1 // loop_header_branch
      %16 = sbr.rel (%p14) target = $region8
    $region5: #{transformer_block.5} parent=1 // loop_body
      %s18 = ssub.s32 %s13, 1
      %s19 = ssub.s32 %s13, 2
      %s20 = sadd.s32 %s13, 1
      %s21 = ssub.s32 %s13, %s20
      %p22 = scmp.eq.s32.totalorder %s21, 0
      %s24 = sadd.s32 %s23, 1
      %s25 = scalar_select %p22, %s23, %s24
      %p28 = pneg %p22
      %p29 = scmp.eq.s32.totalorder %s13, 1
      %p30 = por %p28, %p29
      %p31 = scmp.ne.s32.totalorder %s23, %s26
      %p32 = scmp.eq.s32.totalorder %s13, 0
      %p33 = por %p31, %p32
      %p34 = scmp.ne.s32.totalorder %s23, %s26
      %p35 = scmp.eq.s32.totalorder %s18, 1
      %p36 = por %p34, %p35
      %p37 = scmp.ne.s32.totalorder %s26, %s27
      %p38 = scmp.eq.s32.totalorder %s18, 0
      %p39 = por %p37, %p38
      %p40 = scmp.ne.s32.totalorder %s26, %s27
      %p41 = scmp.eq.s32.totalorder %s19, 1
      %p42 = por %p40, %p41
      %p44 = scmp.ne.s32.totalorder %s27, %s43
      %p45 = scmp.eq.s32.totalorder %s19, 0
      %p46 = por %p44, %p45
      %s47 = ssub.s32 %s13, %s20
      %p48 = scmp.eq.s32.totalorder %s47, 0
      %s50 = sadd.s32 %s49, 1
      %s51 = scalar_select %p48, %s49, %s50
      %p54 = pneg %p48
      %p55 = scmp.eq.s32.totalorder %s13, 1
      %p56 = por %p54, %p55
      %p57 = scmp.ne.s32.totalorder %s49, %s52
      %p58 = scmp.eq.s32.totalorder %s13, 0
      %p59 = por %p57, %p58
      %p60 = scmp.ne.s32.totalorder %s49, %s52
      %p61 = scmp.eq.s32.totalorder %s18, 1
      %p62 = por %p60, %p61
      %p63 = scmp.ne.s32.totalorder %s52, %s53
      %p64 = scmp.eq.s32.totalorder %s18, 0
      %p65 = por %p63, %p64
      %p66 = scmp.ne.s32.totalorder %s52, %s53
      %p67 = scmp.eq.s32.totalorder %s19, 1
      %p68 = por %p66, %p67
      %p70 = scmp.ne.s32.totalorder %s53, %s69
      %p71 = scmp.eq.s32.totalorder %s19, 0
      %p72 = por %p70, %p71
      %s74 = sadd.s32 %s73, 1
      %p77 = scmp.eq.s32.totalorder %s13, 1
      %p78 = scmp.ne.s32.totalorder %s73, %s75
      %p79 = scmp.eq.s32.totalorder %s13, 0
      %p80 = por %p78, %p79
      %p81 = scmp.ne.s32.totalorder %s73, %s75
      %p82 = scmp.eq.s32.totalorder %s18, 1
      %p83 = por %p81, %p82
      %p84 = scmp.ne.s32.totalorder %s75, %s76
      %p85 = scmp.eq.s32.totalorder %s18, 0
      %p86 = por %p84, %p85
      %p87 = scmp.ne.s32.totalorder %s75, %s76
      %p88 = scmp.eq.s32.totalorder %s19, 1
      %p89 = por %p87, %p88
      %p91 = scmp.ne.s32.totalorder %s76, %s90
      %p92 = scmp.eq.s32.totalorder %s19, 0
      %p93 = por %p91, %p92
      %s95 = sadd.s32 %s94, 1
      %p98 = scmp.eq.s32.totalorder %s13, 1
      %p99 = scmp.ne.s32.totalorder %s94, %s96
      %p100 = scmp.eq.s32.totalorder %s13, 0
      %p101 = por %p99, %p100
      %p102 = scmp.ne.s32.totalorder %s94, %s96
      %p103 = scmp.eq.s32.totalorder %s18, 1
      %p104 = por %p102, %p103
      %p105 = scmp.ne.s32.totalorder %s96, %s97
      %p106 = scmp.eq.s32.totalorder %s18, 0
      %p107 = por %p105, %p106
      %p108 = scmp.ne.s32.totalorder %s96, %s97
      %p109 = scmp.eq.s32.totalorder %s19, 1
      %p110 = por %p108, %p109
      %p112 = scmp.ne.s32.totalorder %s97, %s111
      %p113 = scmp.eq.s32.totalorder %s19, 0
      %p114 = por %p112, %p113
      %s115 = ssub.s32 %s13, %s20
      %p116 = scmp.eq.s32.totalorder %s115, 0
      %s118 = sadd.s32 %s117, 1
      %s119 = scalar_select %p116, %s117, %s118
      %p122 = pneg %p116
      %p123 = scmp.eq.s32.totalorder %s13, 1
      %p124 = por %p122, %p123
      %p125 = scmp.ne.s32.totalorder %s117, %s120
      %p126 = scmp.eq.s32.totalorder %s13, 0
      %p127 = por %p125, %p126
      %p128 = scmp.ne.s32.totalorder %s117, %s120
      %p129 = scmp.eq.s32.totalorder %s18, 1
      %p130 = por %p128, %p129
      %p131 = scmp.ne.s32.totalorder %s120, %s121
      %p132 = scmp.eq.s32.totalorder %s18, 0
      %p133 = por %p131, %p132
      %p134 = scmp.ne.s32.totalorder %s120, %s121
      %p135 = scmp.eq.s32.totalorder %s19, 1
      %p136 = por %p134, %p135
      %p138 = scmp.ne.s32.totalorder %s121, %s137
      %p139 = scmp.eq.s32.totalorder %s19, 0
      %p140 = por %p138, %p139
      %p141 = scmp.le.s32.totalorder 1, %s13
      %p142 = scmp.lt.s32.totalorder %s13, 3
      %p143 = pnand %p141, %p142
      %p144 = pneg %p143
      // Predicated region
      $region9: #{transformer_block.5} parent=5 // pred_check
        _
      $region10: #{transformer_block.5} parent=5 // pred_check_branch
        %146 = sbr.rel (%p143) target = $region12
      $region11: #{transformer_block.5} parent=5 // pred_region
        %s147 = ssub.s32 %s13, 1
        // Predicated region
        $region13: #{transformer_block.5} parent=11 // pred_check
          %p148 = pneg %p86
        $region14: #{transformer_block.5} parent=11 // pred_check_branch
          %150 = sbr.rel (%p148) target = $region16
        $region15: #{transformer_block.5} parent=11 // pred_region
          _
        $region16: #{transformer_block.5} parent=11 // pred_fallthru
          _
        // Predicated region
        $region17: #{transformer_block.5} parent=11 // pred_check
          %p151 = pneg %p107
        $region18: #{transformer_block.5} parent=11 // pred_check_branch
          %153 = sbr.rel (%p151) target = $region20
        $region19: #{transformer_block.5} parent=11 // pred_region
          _
        $region20: #{transformer_block.5} parent=11 // pred_fallthru
          _
      $region12: #{transformer_block.5} parent=5 // pred_fallthru
        _
      %p154 = scmp.lt.s32.totalorder %s13, 2
      // Predicated region
      $region21: #{transformer_block.5} parent=5 // pred_check
        %p155 = pneg %p154
      $region22: #{transformer_block.5} parent=5 // pred_check_branch
        %157 = sbr.rel (%p155) target = $region24
      $region23: #{transformer_block.5} parent=5 // pred_region
        // Predicated region
        $region25: #{transformer_block.5} parent=23 // pred_check
          %p158 = pneg %p33
        $region26: #{transformer_block.5} parent=23 // pred_check_branch
          %160 = sbr.rel (%p158) target = $region28
        $region27: #{transformer_block.5} parent=23 // pred_region
          %s161 = smul.u32 4, %s13
          %p162 = scmp.lt.s32.totalorder %s161, 7
          %s163 = scalar_select %p162, %s161, 7
          %s164 = smul.addr %s163, 20
          %s165 = smul.addr %s164, 4
          %s166 = scalar_lea.vmem %s0, %s165
          %s167 = smul.u32 4, %s13
        $region28: #{transformer_block.5} parent=23 // pred_fallthru
          _
        // Predicated region
        $region29: #{transformer_block.5} parent=23 // pred_check
          %p168 = pneg %p59
        $region30: #{transformer_block.5} parent=23 // pred_check_branch
          %170 = sbr.rel (%p168) target = $region32
        $region31: #{transformer_block.5} parent=23 // pred_region
          %s171 = smul.u32 4, %s13
          %p172 = scmp.lt.s32.totalorder %s171, 7
          %s173 = scalar_select %p172, %s171, 7
          %s174 = smul.addr %s173, 8
          %s175 = scalar_lea.vmem %s1, %s174
          %s176 = smul.u32 4, %s13
        $region32: #{transformer_block.5} parent=23 // pred_fallthru
          _
      $region24: #{transformer_block.5} parent=5 // pred_fallthru
        _
      %p177 = scmp.le.s32.totalorder 1, %s13
      %p178 = scmp.lt.s32.totalorder %s13, 3
      %p179 = pnand %p177, %p178
      %p180 = pneg %p179
      // Predicated region
      $region33: #{transformer_block.5} parent=5 // pred_check
        _
      $region34: #{transformer_block.5} parent=5 // pred_check_branch
        %182 = sbr.rel (%p179) target = $region36
      $region35: #{transformer_block.5} parent=5 // pred_region
        %s183 = ssub.s32 %s13, 1
        %s184 = smul.u32 4, %s18
        %p185 = scmp.lt.s32.totalorder %s184, 7
        %s186 = scalar_select %p185, %s184, 7
        %s187 = smul.addr %s186, 20
        %s188 = smul.addr %s187, 4
        %s189 = scalar_lea.vmem %s0, %s188
        %p190 = pneg %p39
        %p191 = pneg %p36
        %s192 = smul.u32 4, %s18
        %p193 = scmp.lt.s32.totalorder %s192, 7
        %s194 = scalar_select %p193, %s192, 7
        %s195 = smul.addr %s194, 8
        %s196 = scalar_lea.vmem %s1, %s195
        %p197 = pneg %p65
        %p198 = pneg %p62
        %p199 = pneg %p86
        %p200 = pneg %p83
        %p201 = pneg %p107
        %p202 = pneg %p104
        %p203 = pneg %p133
        %p204 = pneg %p130
        %s205 = sand.u32 %s120, 1
        %s206 = scalar_lea.sflag [#allocation3], %s205
        %s207 = sand.u32 %s120, 1
        %s208 = smul.addr %s207, 32
        %s209 = scalar_lea.vmem [#allocation2], %s208
        %s210 = smul.u32 4, %s18
        %p211 = scmp.lt.s32.totalorder %s210, 7
        %s212 = scalar_select %p211, %s210, 7
        %s213 = smul.addr %s212, 20
        %s214 = smul.addr %s213, 4
        %s215 = scalar_lea.vmem %s0, %s214
        %s216 = smul.u32 4, %s18
        %s217 = smul.u32 4, %s18
        %p218 = scmp.lt.s32.totalorder %s217, 7
        %s219 = scalar_select %p218, %s217, 7
        %s220 = smul.addr %s219, 8
        %s221 = scalar_lea.vmem %s1, %s220
        %s222 = smul.u32 4, %s18
        %s223 = smul.u32 4, %s18
        %v225 = vld [vmem:[%s221] sm:$0xff]
        %v226 = vld [vmem:[%s221 + $0x8] sm:$0xff]
        %v227 = vld [vmem:[%s221 + $0x10] sm:$0xff]
        %v228 = vld [vmem:[%s221 + $0x18] sm:$0xff]
        %v229 = vld [vmem:[%s215] sm:$0xff]
        %v230 = vld [vmem:[%s215 + $0x8] sm:$0xff]
        %v231 = vld [vmem:[%s215 + $0x10] sm:$0xff]
        %v232 = vld [vmem:[%s215 + $0x18] sm:$0xff]
        %v233 = vld [vmem:[%s215 + $0x20] sm:$0xff]
        %v234 = vld [vmem:[%s215 + $0x28] sm:$0xff]
        %v235 = vld [vmem:[%s215 + $0x30] sm:$0xff]
        %v236 = vld [vmem:[%s215 + $0x38] sm:$0xff]
        %v237 = vld [vmem:[%s215 + $0x40] sm:$0xff]
        %v238 = vld [vmem:[%s215 + $0x48] sm:$0xff]
        %v239 = vld [vmem:[%s215 + $0x50] sm:$0xff]
        %v240 = vld [vmem:[%s215 + $0x58] sm:$0xff]
        %v241 = vld [vmem:[%s215 + $0x60] sm:$0xff]
        %v242 = vld [vmem:[%s215 + $0x68] sm:$0xff]
        %v243 = vld [vmem:[%s215 + $0x70] sm:$0xff]
        %v244 = vld [vmem:[%s215 + $0x78] sm:$0xff]
        %v245 = vld [vmem:[%s215 + $0x80] sm:$0xff]
        %v246 = vld [vmem:[%s215 + $0x88] sm:$0xff]
        %v247 = vld [vmem:[%s215 + $0x90] sm:$0xff]
        %v248 = vld [vmem:[%s215 + $0x98] sm:$0xff]
        %v249 = vld [vmem:[%s215 + $0xa0] sm:$0xff]
        %v250 = vld [vmem:[%s215 + $0xa8] sm:$0xff]
        %v251 = vld [vmem:[%s215 + $0xb0] sm:$0xff]
        %v252 = vld [vmem:[%s215 + $0xb8] sm:$0xff]
        %v253 = vld [vmem:[%s215 + $0xc0] sm:$0xff]
        %v254 = vld [vmem:[%s215 + $0xc8] sm:$0xff]
        %v255 = vld [vmem:[%s215 + $0xd0] sm:$0xff]
        %v256 = vld [vmem:[%s215 + $0xd8] sm:$0xff]
        %v257 = vld [vmem:[%s215 + $0xe0] sm:$0xff]
        %v258 = vld [vmem:[%s215 + $0xe8] sm:$0xff]
        %v259 = vld [vmem:[%s215 + $0xf0] sm:$0xff]
        %v260 = vld [vmem:[%s215 + $0xf8] sm:$0xff]
        %v261 = vld [vmem:[%s215 + $0x100] sm:$0xff]
        %v262 = vld [vmem:[%s215 + $0x108] sm:$0xff]
        %v263 = vld [vmem:[%s215 + $0x110] sm:$0xff]
        %v264 = vld [vmem:[%s215 + $0x118] sm:$0xff]
        %v265 = vld [vmem:[%s215 + $0x120] sm:$0xff]
        %v266 = vld [vmem:[%s215 + $0x128] sm:$0xff]
        %v267 = vld [vmem:[%s215 + $0x130] sm:$0xff]
        %v268 = vld [vmem:[%s215 + $0x138] sm:$0xff]
        %v269 = vld [vmem:[%s2] sm:$0xf]
        %v270 = vld [vmem:[%s2 + $0x4] sm:$0xf]
        %v271 = vld [vmem:[%s2 + $0x8] sm:$0xf]
        %v272 = vld [vmem:[%s2 + $0xc] sm:$0xf]
        %v273 = vld [vmem:[%s2 + $0x10] sm:$0xf]
        %v274 = vld [vmem:[%s2 + $0x14] sm:$0xf]
        %v275 = vld [vmem:[%s2 + $0x18] sm:$0xf]
        %v276 = vld [vmem:[%s2 + $0x1c] sm:$0xf]
        %v277 = vld [vmem:[%s2 + $0x20] sm:$0xf]
        %v278 = vld [vmem:[%s2 + $0x24] sm:$0xf]
        %v279 = vld [vmem:[%s2 + $0x28] sm:$0xf]
        %v280 = vld [vmem:[%s2 + $0x2c] sm:$0xf]
        %v281 = vld [vmem:[%s2 + $0x30] sm:$0xf]
        %v282 = vld [vmem:[%s2 + $0x34] sm:$0xf]
        %v283 = vld [vmem:[%s2 + $0x38] sm:$0xf]
        %v284 = vld [vmem:[%s2 + $0x3c] sm:$0xf]
        %v285 = vld [vmem:[%s2 + $0x40] sm:$0xf]
        %v286 = vld [vmem:[%s2 + $0x44] sm:$0xf]
        %v287 = vld [vmem:[%s2 + $0x48] sm:$0xf]
        %v288 = vld [vmem:[%s2 + $0x4c] sm:$0xf]
        %v289 = vld [vmem:[%s2 + $0x50] sm:$0xf]
        %v290 = vld [vmem:[%s2 + $0x54] sm:$0xf]
        %v291 = vld [vmem:[%s2 + $0x58] sm:$0xf]
        %v292 = vld [vmem:[%s2 + $0x5c] sm:$0xf]
        %v293 = vld [vmem:[%s2 + $0x60] sm:$0xf]
        %v294 = vld [vmem:[%s2 + $0x64] sm:$0xf]
        %v295 = vld [vmem:[%s2 + $0x68] sm:$0xf]
        %v296 = vld [vmem:[%s2 + $0x6c] sm:$0xf]
        %v297 = vld [vmem:[%s2 + $0x70] sm:$0xf]
        %v298 = vld [vmem:[%s2 + $0x74] sm:$0xf]
        %v299 = vld [vmem:[%s2 + $0x78] sm:$0xf]
        %v300 = vld [vmem:[%s2 + $0x7c] sm:$0xf]
        %v301 = vld [vmem:[%s2 + $0x80] sm:$0xf]
        %v302 = vld [vmem:[%s2 + $0x84] sm:$0xf]
        %v303 = vld [vmem:[%s2 + $0x88] sm:$0xf]
        %v304 = vld [vmem:[%s2 + $0x8c] sm:$0xf]
        %v305 = vld [vmem:[%s2 + $0x90] sm:$0xf]
        %v306 = vld [vmem:[%s2 + $0x94] sm:$0xf]
        %v307 = vld [vmem:[%s2 + $0x98] sm:$0xf]
        %v308 = vld [vmem:[%s2 + $0x9c] sm:$0xf]
        %v309 = vld [vmem:[%s2 + $0xa0] sm:$0xf]
        %v310 = vld [vmem:[%s2 + $0xa4] sm:$0xf]
        %v311 = vld [vmem:[%s2 + $0xa8] sm:$0xf]
        %v312 = vld [vmem:[%s2 + $0xac] sm:$0xf]
        %v313 = vld [vmem:[%s2 + $0xb0] sm:$0xf]
        %v314 = vld [vmem:[%s2 + $0xb4] sm:$0xf]
        %v315 = vld [vmem:[%s2 + $0xb8] sm:$0xf]
        %v316 = vld [vmem:[%s2 + $0xbc] sm:$0xf]
        %v317 = vld [vmem:[%s2 + $0xc0] sm:$0xf]
        %v318 = vld [vmem:[%s2 + $0xc4] sm:$0xf]
        %v319 = vld [vmem:[%s2 + $0xc8] sm:$0xf]
        %v320 = vld [vmem:[%s2 + $0xcc] sm:$0xf]
        %v321 = vld [vmem:[%s2 + $0xd0] sm:$0xf]
        %v322 = vld [vmem:[%s2 + $0xd4] sm:$0xf]
        %v323 = vld [vmem:[%s2 + $0xd8] sm:$0xf]
        %v324 = vld [vmem:[%s2 + $0xdc] sm:$0xf]
        %v325 = vld [vmem:[%s2 + $0xe0] sm:$0xf]
        %v326 = vld [vmem:[%s2 + $0xe4] sm:$0xf]
        %v327 = vld [vmem:[%s2 + $0xe8] sm:$0xf]
        %v328 = vld [vmem:[%s2 + $0xec] sm:$0xf]
        %v329 = vld [vmem:[%s2 + $0xf0] sm:$0xf]
        %v330 = vld [vmem:[%s2 + $0xf4] sm:$0xf]
        %v331 = vld [vmem:[%s2 + $0xf8] sm:$0xf]
        %v332 = vld [vmem:[%s2 + $0xfc] sm:$0xf]
        %v333 = vld [vmem:[%s2 + $0x100] sm:$0xf]
        %v334 = vld [vmem:[%s2 + $0x104] sm:$0xf]
        %v335 = vld [vmem:[%s2 + $0x108] sm:$0xf]
        %v336 = vld [vmem:[%s2 + $0x10c] sm:$0xf]
        %v337 = vld [vmem:[%s2 + $0x110] sm:$0xf]
        %v338 = vld [vmem:[%s2 + $0x114] sm:$0xf]
        %v339 = vld [vmem:[%s2 + $0x118] sm:$0xf]
        %v340 = vld [vmem:[%s2 + $0x11c] sm:$0xf]
        %v341 = vld [vmem:[%s2 + $0x120] sm:$0xf]
        %v342 = vld [vmem:[%s2 + $0x124] sm:$0xf]
        %v343 = vld [vmem:[%s2 + $0x128] sm:$0xf]
        %v344 = vld [vmem:[%s2 + $0x12c] sm:$0xf]
        %v345 = vld [vmem:[%s2 + $0x130] sm:$0xf]
        %v346 = vld [vmem:[%s2 + $0x134] sm:$0xf]
        %v347 = vld [vmem:[%s2 + $0x138] sm:$0xf]
        %v348 = vld [vmem:[%s2 + $0x13c] sm:$0xf]
        %v349 = vld [vmem:[%s2 + $0x140] sm:$0xf]
        %v350 = vld [vmem:[%s2 + $0x144] sm:$0xf]
        %v351 = vld [vmem:[%s2 + $0x148] sm:$0xf]
        %v352 = vld [vmem:[%s2 + $0x14c] sm:$0xf]
        %v353 = vld [vmem:[%s2 + $0x150] sm:$0xf]
        %v354 = vld [vmem:[%s2 + $0x154] sm:$0xf]
        %v355 = vld [vmem:[%s2 + $0x158] sm:$0xf]
        %v356 = vld [vmem:[%s2 + $0x15c] sm:$0xf]
        %v357 = vld [vmem:[%s2 + $0x160] sm:$0xf]
        %v358 = vld [vmem:[%s2 + $0x164] sm:$0xf]
        %v359 = vld [vmem:[%s2 + $0x168] sm:$0xf]
        %v360 = vld [vmem:[%s2 + $0x16c] sm:$0xf]
        %v361 = vld [vmem:[%s2 + $0x170] sm:$0xf]
        %v362 = vld [vmem:[%s2 + $0x174] sm:$0xf]
        %v363 = vld [vmem:[%s2 + $0x178] sm:$0xf]
        %v364 = vld [vmem:[%s2 + $0x17c] sm:$0xf]
        %v365 = vld [vmem:[%s2 + $0x180] sm:$0xf]
        %v366 = vld [vmem:[%s2 + $0x184] sm:$0xf]
        %v367 = vld [vmem:[%s2 + $0x188] sm:$0xf]
        %v368 = vld [vmem:[%s2 + $0x18c] sm:$0xf]
        %v369 = vld [vmem:[%s2 + $0x190] sm:$0xf]
        %v370 = vld [vmem:[%s2 + $0x194] sm:$0xf]
        %v371 = vld [vmem:[%s2 + $0x198] sm:$0xf]
        %v372 = vld [vmem:[%s2 + $0x19c] sm:$0xf]
        %v373 = vld [vmem:[%s2 + $0x1a0] sm:$0xf]
        %v374 = vld [vmem:[%s2 + $0x1a4] sm:$0xf]
        %v375 = vld [vmem:[%s2 + $0x1a8] sm:$0xf]
        %v376 = vld [vmem:[%s2 + $0x1ac] sm:$0xf]
        %v377 = vld [vmem:[%s2 + $0x1b0] sm:$0xf]
        %v378 = vld [vmem:[%s2 + $0x1b4] sm:$0xf]
        %v379 = vld [vmem:[%s2 + $0x1b8] sm:$0xf]
        %v380 = vld [vmem:[%s2 + $0x1bc] sm:$0xf]
        %v381 = vld [vmem:[%s2 + $0x1c0] sm:$0xf]
        %v382 = vld [vmem:[%s2 + $0x1c4] sm:$0xf]
        %v383 = vld [vmem:[%s2 + $0x1c8] sm:$0xf]
        %v384 = vld [vmem:[%s2 + $0x1cc] sm:$0xf]
        %v385 = vld [vmem:[%s2 + $0x1d0] sm:$0xf]
        %v386 = vld [vmem:[%s2 + $0x1d4] sm:$0xf]
        %v387 = vld [vmem:[%s2 + $0x1d8] sm:$0xf]
        %v388 = vld [vmem:[%s2 + $0x1dc] sm:$0xf]
        %v389 = vld [vmem:[%s2 + $0x1e0] sm:$0xf]
        %v390 = vld [vmem:[%s2 + $0x1e4] sm:$0xf]
        %v391 = vld [vmem:[%s2 + $0x1e8] sm:$0xf]
        %v392 = vld [vmem:[%s2 + $0x1ec] sm:$0xf]
        %v393 = vld [vmem:[%s2 + $0x1f0] sm:$0xf]
        %v394 = vld [vmem:[%s2 + $0x1f4] sm:$0xf]
        %v395 = vld [vmem:[%s2 + $0x1f8] sm:$0xf]
        %v396 = vld [vmem:[%s2 + $0x1fc] sm:$0xf]
        %v397 = vld [vmem:[%s2 + $0x200] sm:$0xf]
        %v398 = vld [vmem:[%s2 + $0x204] sm:$0xf]
        %v399 = vld [vmem:[%s2 + $0x208] sm:$0xf]
        %v400 = vld [vmem:[%s2 + $0x20c] sm:$0xf]
        %v401 = vld [vmem:[%s2 + $0x210] sm:$0xf]
        %v402 = vld [vmem:[%s2 + $0x214] sm:$0xf]
        %v403 = vld [vmem:[%s2 + $0x218] sm:$0xf]
        %v404 = vld [vmem:[%s2 + $0x21c] sm:$0xf]
        %v405 = vld [vmem:[%s2 + $0x220] sm:$0xf]
        %v406 = vld [vmem:[%s2 + $0x224] sm:$0xf]
        %v407 = vld [vmem:[%s2 + $0x228] sm:$0xf]
        %v408 = vld [vmem:[%s2 + $0x22c] sm:$0xf]
        %v409 = vld [vmem:[%s2 + $0x230] sm:$0xf]
        %v410 = vld [vmem:[%s2 + $0x234] sm:$0xf]
        %v411 = vld [vmem:[%s2 + $0x238] sm:$0xf]
        %v412 = vld [vmem:[%s2 + $0x23c] sm:$0xf]
        %v413 = vld [vmem:[%s2 + $0x240] sm:$0xf]
        %v414 = vld [vmem:[%s2 + $0x244] sm:$0xf]
        %v415 = vld [vmem:[%s2 + $0x248] sm:$0xf]
        %v416 = vld [vmem:[%s2 + $0x24c] sm:$0xf]
        %v417 = vld [vmem:[%s2 + $0x250] sm:$0xf]
        %v418 = vld [vmem:[%s2 + $0x254] sm:$0xf]
        %v419 = vld [vmem:[%s2 + $0x258] sm:$0xf]
        %v420 = vld [vmem:[%s2 + $0x25c] sm:$0xf]
        %v421 = vld [vmem:[%s2 + $0x260] sm:$0xf]
        %v422 = vld [vmem:[%s2 + $0x264] sm:$0xf]
        %v423 = vld [vmem:[%s2 + $0x268] sm:$0xf]
        %v424 = vld [vmem:[%s2 + $0x26c] sm:$0xf]
        %v425 = vld [vmem:[%s2 + $0x270] sm:$0xf]
        %v426 = vld [vmem:[%s2 + $0x274] sm:$0xf]
        %v427 = vld [vmem:[%s2 + $0x278] sm:$0xf]
        %v428 = vld [vmem:[%s2 + $0x27c] sm:$0xf]
        %v429 = vld [vmem:[%s2 + $0x280] sm:$0xf]
        %v430 = vld [vmem:[%s2 + $0x284] sm:$0xf]
        %v431 = vld [vmem:[%s2 + $0x288] sm:$0xf]
        %v432 = vld [vmem:[%s2 + $0x28c] sm:$0xf]
        %v433 = vld [vmem:[%s2 + $0x290] sm:$0xf]
        %v434 = vld [vmem:[%s2 + $0x294] sm:$0xf]
        %v435 = vld [vmem:[%s2 + $0x298] sm:$0xf]
        %v436 = vld [vmem:[%s2 + $0x29c] sm:$0xf]
        %v437 = vld [vmem:[%s2 + $0x2a0] sm:$0xf]
        %v438 = vld [vmem:[%s2 + $0x2a4] sm:$0xf]
        %v439 = vld [vmem:[%s2 + $0x2a8] sm:$0xf]
        %v440 = vld [vmem:[%s2 + $0x2ac] sm:$0xf]
        %v441 = vld [vmem:[%s2 + $0x2b0] sm:$0xf]
        %v442 = vld [vmem:[%s2 + $0x2b4] sm:$0xf]
        %v443 = vld [vmem:[%s2 + $0x2b8] sm:$0xf]
        %v444 = vld [vmem:[%s2 + $0x2bc] sm:$0xf]
        %v445 = vld [vmem:[%s2 + $0x2c0] sm:$0xf]
        %v446 = vld [vmem:[%s2 + $0x2c4] sm:$0xf]
        %v447 = vld [vmem:[%s2 + $0x2c8] sm:$0xf]
        %v448 = vld [vmem:[%s2 + $0x2cc] sm:$0xf]
        %v449 = vld [vmem:[%s2 + $0x2d0] sm:$0xf]
        %v450 = vld [vmem:[%s2 + $0x2d4] sm:$0xf]
        %v451 = vld [vmem:[%s2 + $0x2d8] sm:$0xf]
        %v452 = vld [vmem:[%s2 + $0x2dc] sm:$0xf]
        %v453 = vld [vmem:[%s2 + $0x2e0] sm:$0xf]
        %v454 = vld [vmem:[%s2 + $0x2e4] sm:$0xf]
        %v455 = vld [vmem:[%s2 + $0x2e8] sm:$0xf]
        %v456 = vld [vmem:[%s2 + $0x2ec] sm:$0xf]
        %v457 = vld [vmem:[%s2 + $0x2f0] sm:$0xf]
        %v458 = vld [vmem:[%s2 + $0x2f4] sm:$0xf]
        %v459 = vld [vmem:[%s2 + $0x2f8] sm:$0xf]
        %v460 = vld [vmem:[%s2 + $0x2fc] sm:$0xf]
        %v461 = vld [vmem:[%s2 + $0x300] sm:$0xf]
        %v462 = vld [vmem:[%s2 + $0x304] sm:$0xf]
        %v463 = vld [vmem:[%s2 + $0x308] sm:$0xf]
        %v464 = vld [vmem:[%s2 + $0x30c] sm:$0xf]
        %v465 = vld [vmem:[%s2 + $0x310] sm:$0xf]
        %v466 = vld [vmem:[%s2 + $0x314] sm:$0xf]
        %v467 = vld [vmem:[%s2 + $0x318] sm:$0xf]
        %v468 = vld [vmem:[%s2 + $0x31c] sm:$0xf]
        %v469 = vld [vmem:[%s2 + $0x320] sm:$0xf]
        %v470 = vld [vmem:[%s2 + $0x324] sm:$0xf]
        %v471 = vld [vmem:[%s2 + $0x328] sm:$0xf]
        %v472 = vld [vmem:[%s2 + $0x32c] sm:$0xf]
        %v473 = vld [vmem:[%s2 + $0x330] sm:$0xf]
        %v474 = vld [vmem:[%s2 + $0x334] sm:$0xf]
        %v475 = vld [vmem:[%s2 + $0x338] sm:$0xf]
        %v476 = vld [vmem:[%s2 + $0x33c] sm:$0xf]
        %v477 = vld [vmem:[%s2 + $0x340] sm:$0xf]
        %v478 = vld [vmem:[%s2 + $0x344] sm:$0xf]
        %v479 = vld [vmem:[%s2 + $0x348] sm:$0xf]
        %v480 = vld [vmem:[%s2 + $0x34c] sm:$0xf]
        %v481 = vld [vmem:[%s2 + $0x350] sm:$0xf]
        %v482 = vld [vmem:[%s2 + $0x354] sm:$0xf]
        %v483 = vld [vmem:[%s2 + $0x358] sm:$0xf]
        %v484 = vld [vmem:[%s2 + $0x35c] sm:$0xf]
        %v485 = vld [vmem:[%s2 + $0x360] sm:$0xf]
        %v486 = vld [vmem:[%s2 + $0x364] sm:$0xf]
        %v487 = vld [vmem:[%s2 + $0x368] sm:$0xf]
        %v488 = vld [vmem:[%s2 + $0x36c] sm:$0xf]
        %v489 = vld [vmem:[%s2 + $0x370] sm:$0xf]
        %v490 = vld [vmem:[%s2 + $0x374] sm:$0xf]
        %v491 = vld [vmem:[%s2 + $0x378] sm:$0xf]
        %v492 = vld [vmem:[%s2 + $0x37c] sm:$0xf]
        %v493 = vld [vmem:[%s2 + $0x380] sm:$0xf]
        %v494 = vld [vmem:[%s2 + $0x384] sm:$0xf]
        %v495 = vld [vmem:[%s2 + $0x388] sm:$0xf]
        %v496 = vld [vmem:[%s2 + $0x38c] sm:$0xf]
        %v497 = vld [vmem:[%s2 + $0x390] sm:$0xf]
        %v498 = vld [vmem:[%s2 + $0x394] sm:$0xf]
        %v499 = vld [vmem:[%s2 + $0x398] sm:$0xf]
        %v500 = vld [vmem:[%s2 + $0x39c] sm:$0xf]
        %v501 = vld [vmem:[%s2 + $0x3a0] sm:$0xf]
        %v502 = vld [vmem:[%s2 + $0x3a4] sm:$0xf]
        %v503 = vld [vmem:[%s2 + $0x3a8] sm:$0xf]
        %v504 = vld [vmem:[%s2 + $0x3ac] sm:$0xf]
        %v505 = vld [vmem:[%s2 + $0x3b0] sm:$0xf]
        %v506 = vld [vmem:[%s2 + $0x3b4] sm:$0xf]
        %v507 = vld [vmem:[%s2 + $0x3b8] sm:$0xf]
        %v508 = vld [vmem:[%s2 + $0x3bc] sm:$0xf]
        %v509 = vld [vmem:[%s2 + $0x3c0] sm:$0xf]
        %v510 = vld [vmem:[%s2 + $0x3c4] sm:$0xf]
        %v511 = vld [vmem:[%s2 + $0x3c8] sm:$0xf]
        %v512 = vld [vmem:[%s2 + $0x3cc] sm:$0xf]
        %v513 = vld [vmem:[%s2 + $0x3d0] sm:$0xf]
        %v514 = vld [vmem:[%s2 + $0x3d4] sm:$0xf]
        %v515 = vld [vmem:[%s2 + $0x3d8] sm:$0xf]
        %v516 = vld [vmem:[%s2 + $0x3dc] sm:$0xf]
        %v517 = vld [vmem:[%s2 + $0x3e0] sm:$0xf]
        %v518 = vld [vmem:[%s2 + $0x3e4] sm:$0xf]
        %v519 = vld [vmem:[%s2 + $0x3e8] sm:$0xf]
        %v520 = vld [vmem:[%s2 + $0x3ec] sm:$0xf]
        %v521 = vld [vmem:[%s2 + $0x3f0] sm:$0xf]
        %v522 = vld [vmem:[%s2 + $0x3f4] sm:$0xf]
        %v523 = vld [vmem:[%s2 + $0x3f8] sm:$0xf]
        %v524 = vld [vmem:[%s2 + $0x3fc] sm:$0xf]
        %v525 = vld [vmem:[%s2 + $0x400] sm:$0xf]
        %v526 = vld [vmem:[%s2 + $0x404] sm:$0xf]
        %v527 = vld [vmem:[%s2 + $0x408] sm:$0xf]
        %v528 = vld [vmem:[%s2 + $0x40c] sm:$0xf]
        %v529 = vld [vmem:[%s2 + $0x410] sm:$0xf]
        %v530 = vld [vmem:[%s2 + $0x414] sm:$0xf]
        %v531 = vld [vmem:[%s2 + $0x418] sm:$0xf]
        %v532 = vld [vmem:[%s2 + $0x41c] sm:$0xf]
        %v533 = vld [vmem:[%s2 + $0x420] sm:$0xf]
        %v534 = vld [vmem:[%s2 + $0x424] sm:$0xf]
        %v535 = vld [vmem:[%s2 + $0x428] sm:$0xf]
        %v536 = vld [vmem:[%s2 + $0x42c] sm:$0xf]
        %v537 = vld [vmem:[%s2 + $0x430] sm:$0xf]
        %v538 = vld [vmem:[%s2 + $0x434] sm:$0xf]
        %v539 = vld [vmem:[%s2 + $0x438] sm:$0xf]
        %v540 = vld [vmem:[%s2 + $0x43c] sm:$0xf]
        %v541 = vld [vmem:[%s2 + $0x440] sm:$0xf]
        %v542 = vld [vmem:[%s2 + $0x444] sm:$0xf]
        %v543 = vld [vmem:[%s2 + $0x448] sm:$0xf]
        %v544 = vld [vmem:[%s2 + $0x44c] sm:$0xf]
        %v545 = vld [vmem:[%s2 + $0x450] sm:$0xf]
        %v546 = vld [vmem:[%s2 + $0x454] sm:$0xf]
        %v547 = vld [vmem:[%s2 + $0x458] sm:$0xf]
        %v548 = vld [vmem:[%s2 + $0x45c] sm:$0xf]
        %v549 = vld [vmem:[%s2 + $0x460] sm:$0xf]
        %v550 = vld [vmem:[%s2 + $0x464] sm:$0xf]
        %v551 = vld [vmem:[%s2 + $0x468] sm:$0xf]
        %v552 = vld [vmem:[%s2 + $0x46c] sm:$0xf]
        %v553 = vld [vmem:[%s2 + $0x470] sm:$0xf]
        %v554 = vld [vmem:[%s2 + $0x474] sm:$0xf]
        %v555 = vld [vmem:[%s2 + $0x478] sm:$0xf]
        %v556 = vld [vmem:[%s2 + $0x47c] sm:$0xf]
        %v557 = vld [vmem:[%s2 + $0x480] sm:$0xf]
        %v558 = vld [vmem:[%s2 + $0x484] sm:$0xf]
        %v559 = vld [vmem:[%s2 + $0x488] sm:$0xf]
        %v560 = vld [vmem:[%s2 + $0x48c] sm:$0xf]
        %v561 = vld [vmem:[%s2 + $0x490] sm:$0xf]
        %v562 = vld [vmem:[%s2 + $0x494] sm:$0xf]
        %v563 = vld [vmem:[%s2 + $0x498] sm:$0xf]
        %v564 = vld [vmem:[%s2 + $0x49c] sm:$0xf]
        %v565 = vld [vmem:[%s2 + $0x4a0] sm:$0xf]
        %v566 = vld [vmem:[%s2 + $0x4a4] sm:$0xf]
        %v567 = vld [vmem:[%s2 + $0x4a8] sm:$0xf]
        %v568 = vld [vmem:[%s2 + $0x4ac] sm:$0xf]
        %v569 = vld [vmem:[%s2 + $0x4b0] sm:$0xf]
        %v570 = vld [vmem:[%s2 + $0x4b4] sm:$0xf]
        %v571 = vld [vmem:[%s2 + $0x4b8] sm:$0xf]
        %v572 = vld [vmem:[%s2 + $0x4bc] sm:$0xf]
        %v573 = vld [vmem:[%s2 + $0x4c0] sm:$0xf]
        %v574 = vld [vmem:[%s2 + $0x4c4] sm:$0xf]
        %v575 = vld [vmem:[%s2 + $0x4c8] sm:$0xf]
        %v576 = vld [vmem:[%s2 + $0x4cc] sm:$0xf]
        %v577 = vld [vmem:[%s2 + $0x4d0] sm:$0xf]
        %v578 = vld [vmem:[%s2 + $0x4d4] sm:$0xf]
        %v579 = vld [vmem:[%s2 + $0x4d8] sm:$0xf]
        %v580 = vld [vmem:[%s2 + $0x4dc] sm:$0xf]
        %v581 = vld [vmem:[%s2 + $0x4e0] sm:$0xf]
        %v582 = vld [vmem:[%s2 + $0x4e4] sm:$0xf]
        %v583 = vld [vmem:[%s2 + $0x4e8] sm:$0xf]
        %v584 = vld [vmem:[%s2 + $0x4ec] sm:$0xf]
        %v585 = vld [vmem:[%s2 + $0x4f0] sm:$0xf]
        %v586 = vld [vmem:[%s2 + $0x4f4] sm:$0xf]
        %v587 = vld [vmem:[%s2 + $0x4f8] sm:$0xf]
        %v588 = vld [vmem:[%s2 + $0x4fc] sm:$0xf]
        %v629 = vunpack.c.l.b16 %v229
        %v630 = vunpack.c.h.b16 %v229
        %v631 = vunpack.c.l.b16 %v230
        %v632 = vunpack.c.h.b16 %v230
        %v633 = vunpack.c.l.b16 %v231
        %v634 = vunpack.c.h.b16 %v231
        %v635 = vunpack.c.l.b16 %v232
        %v636 = vunpack.c.h.b16 %v232
        %v637 = vunpack.c.l.b16 %v233
        %v638 = vunpack.c.h.b16 %v233
        %v639 = vunpack.c.l.b16 %v234
        %v640 = vunpack.c.h.b16 %v234
        %v641 = vunpack.c.l.b16 %v235
        %v642 = vunpack.c.h.b16 %v235
        %v643 = vunpack.c.l.b16 %v236
        %v644 = vunpack.c.h.b16 %v236
        %v645 = vunpack.c.l.b16 %v237
        %v646 = vunpack.c.h.b16 %v237
        %v647 = vunpack.c.l.b16 %v238
        %v648 = vunpack.c.h.b16 %v238
        %v649 = vunpack.c.l.b16 %v239
        %v650 = vunpack.c.h.b16 %v239
        %v651 = vunpack.c.l.b16 %v240
        %v652 = vunpack.c.h.b16 %v240
        %v653 = vunpack.c.l.b16 %v241
        %v654 = vunpack.c.h.b16 %v241
        %v655 = vunpack.c.l.b16 %v242
        %v656 = vunpack.c.h.b16 %v242
        %v657 = vunpack.c.l.b16 %v243
        %v658 = vunpack.c.h.b16 %v243
        %v659 = vunpack.c.l.b16 %v244
        %v660 = vunpack.c.h.b16 %v244
        %v661 = vunpack.c.l.b16 %v245
        %v662 = vunpack.c.h.b16 %v245
        %v663 = vunpack.c.l.b16 %v246
        %v664 = vunpack.c.h.b16 %v246
        %v665 = vunpack.c.l.b16 %v247
        %v666 = vunpack.c.h.b16 %v247
        %v667 = vunpack.c.l.b16 %v248
        %v668 = vunpack.c.h.b16 %v248
        %v669 = vunpack.c.l.b16 %v249
        %v670 = vunpack.c.h.b16 %v249
        %v671 = vunpack.c.l.b16 %v250
        %v672 = vunpack.c.h.b16 %v250
        %v673 = vunpack.c.l.b16 %v251
        %v674 = vunpack.c.h.b16 %v251
        %v675 = vunpack.c.l.b16 %v252
        %v676 = vunpack.c.h.b16 %v252
        %v677 = vunpack.c.l.b16 %v253
        %v678 = vunpack.c.h.b16 %v253
        %v679 = vunpack.c.l.b16 %v254
        %v680 = vunpack.c.h.b16 %v254
        %v681 = vunpack.c.l.b16 %v255
        %v682 = vunpack.c.h.b16 %v255
        %v683 = vunpack.c.l.b16 %v256
        %v684 = vunpack.c.h.b16 %v256
        %v685 = vunpack.c.l.b16 %v257
        %v686 = vunpack.c.h.b16 %v257
        %v687 = vunpack.c.l.b16 %v258
        %v688 = vunpack.c.h.b16 %v258
        %v689 = vunpack.c.l.b16 %v259
        %v690 = vunpack.c.h.b16 %v259
        %v691 = vunpack.c.l.b16 %v260
        %v692 = vunpack.c.h.b16 %v260
        %v693 = vunpack.c.l.b16 %v261
        %v694 = vunpack.c.h.b16 %v261
        %v695 = vunpack.c.l.b16 %v262
        %v696 = vunpack.c.h.b16 %v262
        %v697 = vunpack.c.l.b16 %v263
        %v698 = vunpack.c.h.b16 %v263
        %v699 = vunpack.c.l.b16 %v264
        %v700 = vunpack.c.h.b16 %v264
        %v701 = vunpack.c.l.b16 %v265
        %v702 = vunpack.c.h.b16 %v265
        %v703 = vunpack.c.l.b16 %v266
        %v704 = vunpack.c.h.b16 %v266
        %v705 = vunpack.c.l.b16 %v267
        %v706 = vunpack.c.h.b16 %v267
        %v707 = vunpack.c.l.b16 %v268
        %v708 = vunpack.c.h.b16 %v268
        %v709 = vpack.c.b16 %v649, %v629
        %v710 = vpack.c.b16 %v650, %v630
        %v711 = vpack.c.b16 %v651, %v631
        %v712 = vpack.c.b16 %v652, %v632
        %v713 = vpack.c.b16 %v653, %v633
        %v714 = vpack.c.b16 %v654, %v634
        %v715 = vpack.c.b16 %v655, %v635
        %v716 = vpack.c.b16 %v656, %v636
        %v717 = vpack.c.b16 %v657, %v637
        %v718 = vpack.c.b16 %v658, %v638
        %v719 = vpack.c.b16 %v659, %v639
        %v720 = vpack.c.b16 %v660, %v640
        %v721 = vpack.c.b16 %v661, %v641
        %v722 = vpack.c.b16 %v662, %v642
        %v723 = vpack.c.b16 %v663, %v643
        %v724 = vpack.c.b16 %v664, %v644
        %v725 = vpack.c.b16 %v665, %v645
        %v726 = vpack.c.b16 %v666, %v646
        %v727 = vpack.c.b16 %v667, %v647
        %v728 = vpack.c.b16 %v668, %v648
        %v729 = vpack.c.b16 %v689, %v669
        %v730 = vpack.c.b16 %v690, %v670
        %v731 = vpack.c.b16 %v691, %v671
        %v732 = vpack.c.b16 %v692, %v672
        %v733 = vpack.c.b16 %v693, %v673
        %v734 = vpack.c.b16 %v694, %v674
        %v735 = vpack.c.b16 %v695, %v675
        %v736 = vpack.c.b16 %v696, %v676
        %v737 = vpack.c.b16 %v697, %v677
        %v738 = vpack.c.b16 %v698, %v678
        %v739 = vpack.c.b16 %v699, %v679
        %v740 = vpack.c.b16 %v700, %v680
        %v741 = vpack.c.b16 %v701, %v681
        %v742 = vpack.c.b16 %v702, %v682
        %v743 = vpack.c.b16 %v703, %v683
        %v744 = vpack.c.b16 %v704, %v684
        %v745 = vpack.c.b16 %v705, %v685
        %v746 = vpack.c.b16 %v706, %v686
        %v747 = vpack.c.b16 %v707, %v687
        %v748 = vpack.c.b16 %v708, %v688
        %v1109 = vunpack.c.l.b16 %v269
        %v1110 = vunpack.c.l.b16 %v270
        %v1111 = vunpack.c.l.b16 %v271
        %v1112 = vunpack.c.l.b16 %v272
        %v1113 = vunpack.c.l.b16 %v273
        %v1114 = vunpack.c.l.b16 %v274
        %v1115 = vunpack.c.l.b16 %v275
        %v1116 = vunpack.c.l.b16 %v276
        %v1117 = vunpack.c.l.b16 %v277
        %v1118 = vunpack.c.l.b16 %v278
        %v1119 = vunpack.c.l.b16 %v279
        %v1120 = vunpack.c.l.b16 %v280
        %v1121 = vunpack.c.l.b16 %v281
        %v1122 = vunpack.c.l.b16 %v282
        %v1123 = vunpack.c.l.b16 %v283
        %v1124 = vunpack.c.l.b16 %v284
        %v1125 = vunpack.c.l.b16 %v285
        %v1126 = vunpack.c.l.b16 %v286
        %v1127 = vunpack.c.l.b16 %v287
        %v1128 = vunpack.c.l.b16 %v288
        %v1129 = vunpack.c.l.b16 %v289
        %v1130 = vunpack.c.l.b16 %v290
        %v1131 = vunpack.c.l.b16 %v291
        %v1132 = vunpack.c.l.b16 %v292
        %v1133 = vunpack.c.l.b16 %v293
        %v1134 = vunpack.c.l.b16 %v294
        %v1135 = vunpack.c.l.b16 %v295
        %v1136 = vunpack.c.l.b16 %v296
        %v1137 = vunpack.c.l.b16 %v297
        %v1138 = vunpack.c.l.b16 %v298
        %v1139 = vunpack.c.l.b16 %v299
        %v1140 = vunpack.c.l.b16 %v300
        %v1141 = vunpack.c.l.b16 %v301
        %v1142 = vunpack.c.l.b16 %v302
        %v1143 = vunpack.c.l.b16 %v303
        %v1144 = vunpack.c.l.b16 %v304
        %v1145 = vunpack.c.l.b16 %v305
        %v1146 = vunpack.c.l.b16 %v306
        %v1147 = vunpack.c.l.b16 %v307
        %v1148 = vunpack.c.l.b16 %v308
        %v1149 = vunpack.c.l.b16 %v309
        %v1150 = vunpack.c.l.b16 %v310
        %v1151 = vunpack.c.l.b16 %v311
        %v1152 = vunpack.c.l.b16 %v312
        %v1153 = vunpack.c.l.b16 %v313
        %v1154 = vunpack.c.l.b16 %v314
        %v1155 = vunpack.c.l.b16 %v315
        %v1156 = vunpack.c.l.b16 %v316
        %v1157 = vunpack.c.l.b16 %v317
        %v1158 = vunpack.c.l.b16 %v318
        %v1159 = vunpack.c.l.b16 %v319
        %v1160 = vunpack.c.l.b16 %v320
        %v1161 = vunpack.c.l.b16 %v321
        %v1162 = vunpack.c.l.b16 %v322
        %v1163 = vunpack.c.l.b16 %v323
        %v1164 = vunpack.c.l.b16 %v324
        %v1165 = vunpack.c.l.b16 %v325
        %v1166 = vunpack.c.l.b16 %v326
        %v1167 = vunpack.c.l.b16 %v327
        %v1168 = vunpack.c.l.b16 %v328
        %v1169 = vunpack.c.l.b16 %v329
        %v1170 = vunpack.c.l.b16 %v330
        %v1171 = vunpack.c.l.b16 %v331
        %v1172 = vunpack.c.l.b16 %v332
        %v1173 = vunpack.c.l.b16 %v333
        %v1174 = vunpack.c.l.b16 %v334
        %v1175 = vunpack.c.l.b16 %v335
        %v1176 = vunpack.c.l.b16 %v336
        %v1177 = vunpack.c.l.b16 %v337
        %v1178 = vunpack.c.l.b16 %v338
        %v1179 = vunpack.c.l.b16 %v339
        %v1180 = vunpack.c.l.b16 %v340
        %v1181 = vunpack.c.l.b16 %v341
        %v1182 = vunpack.c.l.b16 %v342
        %v1183 = vunpack.c.l.b16 %v343
        %v1184 = vunpack.c.l.b16 %v344
        %v1185 = vunpack.c.l.b16 %v345
        %v1186 = vunpack.c.l.b16 %v346
        %v1187 = vunpack.c.l.b16 %v347
        %v1188 = vunpack.c.l.b16 %v348
        %v1189 = vunpack.c.l.b16 %v349
        %v1190 = vunpack.c.l.b16 %v350
        %v1191 = vunpack.c.l.b16 %v351
        %v1192 = vunpack.c.l.b16 %v352
        %v1193 = vunpack.c.l.b16 %v353
        %v1194 = vunpack.c.l.b16 %v354
        %v1195 = vunpack.c.l.b16 %v355
        %v1196 = vunpack.c.l.b16 %v356
        %v1197 = vunpack.c.l.b16 %v357
        %v1198 = vunpack.c.l.b16 %v358
        %v1199 = vunpack.c.l.b16 %v359
        %v1200 = vunpack.c.l.b16 %v360
        %v1201 = vunpack.c.l.b16 %v361
        %v1202 = vunpack.c.l.b16 %v362
        %v1203 = vunpack.c.l.b16 %v363
        %v1204 = vunpack.c.l.b16 %v364
        %v1205 = vunpack.c.l.b16 %v365
        %v1206 = vunpack.c.l.b16 %v366
        %v1207 = vunpack.c.l.b16 %v367
        %v1208 = vunpack.c.l.b16 %v368
        %v1209 = vunpack.c.l.b16 %v369
        %v1210 = vunpack.c.l.b16 %v370
        %v1211 = vunpack.c.l.b16 %v371
        %v1212 = vunpack.c.l.b16 %v372
        %v1213 = vunpack.c.l.b16 %v373
        %v1214 = vunpack.c.l.b16 %v374
        %v1215 = vunpack.c.l.b16 %v375
        %v1216 = vunpack.c.l.b16 %v376
        %v1217 = vunpack.c.l.b16 %v377
        %v1218 = vunpack.c.l.b16 %v378
        %v1219 = vunpack.c.l.b16 %v379
        %v1220 = vunpack.c.l.b16 %v380
        %v1221 = vunpack.c.l.b16 %v381
        %v1222 = vunpack.c.l.b16 %v382
        %v1223 = vunpack.c.l.b16 %v383
        %v1224 = vunpack.c.l.b16 %v384
        %v1225 = vunpack.c.l.b16 %v385
        %v1226 = vunpack.c.l.b16 %v386
        %v1227 = vunpack.c.l.b16 %v387
        %v1228 = vunpack.c.l.b16 %v388
        %v1229 = vunpack.c.l.b16 %v389
        %v1230 = vunpack.c.l.b16 %v390
        %v1231 = vunpack.c.l.b16 %v391
        %v1232 = vunpack.c.l.b16 %v392
        %v1233 = vunpack.c.l.b16 %v393
        %v1234 = vunpack.c.l.b16 %v394
        %v1235 = vunpack.c.l.b16 %v395
        %v1236 = vunpack.c.l.b16 %v396
        %v1237 = vunpack.c.l.b16 %v397
        %v1238 = vunpack.c.l.b16 %v398
        %v1239 = vunpack.c.l.b16 %v399
        %v1240 = vunpack.c.l.b16 %v400
        %v1241 = vunpack.c.l.b16 %v401
        %v1242 = vunpack.c.l.b16 %v402
        %v1243 = vunpack.c.l.b16 %v403
        %v1244 = vunpack.c.l.b16 %v404
        %v1245 = vunpack.c.l.b16 %v405
        %v1246 = vunpack.c.l.b16 %v406
        %v1247 = vunpack.c.l.b16 %v407
        %v1248 = vunpack.c.l.b16 %v408
        %v1249 = vunpack.c.l.b16 %v409
        %v1250 = vunpack.c.l.b16 %v410
        %v1251 = vunpack.c.l.b16 %v411
        %v1252 = vunpack.c.l.b16 %v412
        %v1253 = vunpack.c.l.b16 %v413
        %v1254 = vunpack.c.l.b16 %v414
        %v1255 = vunpack.c.l.b16 %v415
        %v1256 = vunpack.c.l.b16 %v416
        %v1257 = vunpack.c.l.b16 %v417
        %v1258 = vunpack.c.l.b16 %v418
        %v1259 = vunpack.c.l.b16 %v419
        %v1260 = vunpack.c.l.b16 %v420
        %v1261 = vunpack.c.l.b16 %v421
        %v1262 = vunpack.c.l.b16 %v422
        %v1263 = vunpack.c.l.b16 %v423
        %v1264 = vunpack.c.l.b16 %v424
        %v1265 = vunpack.c.l.b16 %v425
        %v1266 = vunpack.c.l.b16 %v426
        %v1267 = vunpack.c.l.b16 %v427
        %v1268 = vunpack.c.l.b16 %v428
        %v1269 = vunpack.c.l.b16 %v429
        %v1270 = vunpack.c.l.b16 %v430
        %v1271 = vunpack.c.l.b16 %v431
        %v1272 = vunpack.c.l.b16 %v432
        %v1273 = vunpack.c.l.b16 %v433
        %v1274 = vunpack.c.l.b16 %v434
        %v1275 = vunpack.c.l.b16 %v435
        %v1276 = vunpack.c.l.b16 %v436
        %v1277 = vunpack.c.l.b16 %v437
        %v1278 = vunpack.c.l.b16 %v438
        %v1279 = vunpack.c.l.b16 %v439
        %v1280 = vunpack.c.l.b16 %v440
        %v1281 = vunpack.c.l.b16 %v441
        %v1282 = vunpack.c.l.b16 %v442
        %v1283 = vunpack.c.l.b16 %v443
        %v1284 = vunpack.c.l.b16 %v444
        %v1285 = vunpack.c.l.b16 %v445
        %v1286 = vunpack.c.l.b16 %v446
        %v1287 = vunpack.c.l.b16 %v447
        %v1288 = vunpack.c.l.b16 %v448
        %v1289 = vunpack.c.l.b16 %v449
        %v1290 = vunpack.c.l.b16 %v450
        %v1291 = vunpack.c.l.b16 %v451
        %v1292 = vunpack.c.l.b16 %v452
        %v1293 = vunpack.c.l.b16 %v453
        %v1294 = vunpack.c.l.b16 %v454
        %v1295 = vunpack.c.l.b16 %v455
        %v1296 = vunpack.c.l.b16 %v456
        %v1297 = vunpack.c.l.b16 %v457
        %v1298 = vunpack.c.l.b16 %v458
        %v1299 = vunpack.c.l.b16 %v459
        %v1300 = vunpack.c.l.b16 %v460
        %v1301 = vunpack.c.l.b16 %v461
        %v1302 = vunpack.c.l.b16 %v462
        %v1303 = vunpack.c.l.b16 %v463
        %v1304 = vunpack.c.l.b16 %v464
        %v1305 = vunpack.c.l.b16 %v465
        %v1306 = vunpack.c.l.b16 %v466
        %v1307 = vunpack.c.l.b16 %v467
        %v1308 = vunpack.c.l.b16 %v468
        %v1309 = vunpack.c.l.b16 %v469
        %v1310 = vunpack.c.l.b16 %v470
        %v1311 = vunpack.c.l.b16 %v471
        %v1312 = vunpack.c.l.b16 %v472
        %v1313 = vunpack.c.l.b16 %v473
        %v1314 = vunpack.c.l.b16 %v474
        %v1315 = vunpack.c.l.b16 %v475
        %v1316 = vunpack.c.l.b16 %v476
        %v1317 = vunpack.c.l.b16 %v477
        %v1318 = vunpack.c.l.b16 %v478
        %v1319 = vunpack.c.l.b16 %v479
        %v1320 = vunpack.c.l.b16 %v480
        %v1321 = vunpack.c.l.b16 %v481
        %v1322 = vunpack.c.l.b16 %v482
        %v1323 = vunpack.c.l.b16 %v483
        %v1324 = vunpack.c.l.b16 %v484
        %v1325 = vunpack.c.l.b16 %v485
        %v1326 = vunpack.c.l.b16 %v486
        %v1327 = vunpack.c.l.b16 %v487
        %v1328 = vunpack.c.l.b16 %v488
        %v1329 = vunpack.c.l.b16 %v489
        %v1330 = vunpack.c.l.b16 %v490
        %v1331 = vunpack.c.l.b16 %v491
        %v1332 = vunpack.c.l.b16 %v492
        %v1333 = vunpack.c.l.b16 %v493
        %v1334 = vunpack.c.l.b16 %v494
        %v1335 = vunpack.c.l.b16 %v495
        %v1336 = vunpack.c.l.b16 %v496
        %v1337 = vunpack.c.l.b16 %v497
        %v1338 = vunpack.c.l.b16 %v498
        %v1339 = vunpack.c.l.b16 %v499
        %v1340 = vunpack.c.l.b16 %v500
        %v1341 = vunpack.c.l.b16 %v501
        %v1342 = vunpack.c.l.b16 %v502
        %v1343 = vunpack.c.l.b16 %v503
        %v1344 = vunpack.c.l.b16 %v504
        %v1345 = vunpack.c.l.b16 %v505
        %v1346 = vunpack.c.l.b16 %v506
        %v1347 = vunpack.c.l.b16 %v507
        %v1348 = vunpack.c.l.b16 %v508
        %v1349 = vunpack.c.l.b16 %v509
        %v1350 = vunpack.c.l.b16 %v510
        %v1351 = vunpack.c.l.b16 %v511
        %v1352 = vunpack.c.l.b16 %v512
        %v1353 = vunpack.c.l.b16 %v513
        %v1354 = vunpack.c.l.b16 %v514
        %v1355 = vunpack.c.l.b16 %v515
        %v1356 = vunpack.c.l.b16 %v516
        %v1357 = vunpack.c.l.b16 %v517
        %v1358 = vunpack.c.l.b16 %v518
        %v1359 = vunpack.c.l.b16 %v519
        %v1360 = vunpack.c.l.b16 %v520
        %v1361 = vunpack.c.l.b16 %v521
        %v1362 = vunpack.c.l.b16 %v522
        %v1363 = vunpack.c.l.b16 %v523
        %v1364 = vunpack.c.l.b16 %v524
        %v1365 = vunpack.c.l.b16 %v525
        %v1366 = vunpack.c.l.b16 %v526
        %v1367 = vunpack.c.l.b16 %v527
        %v1368 = vunpack.c.l.b16 %v528
        %v1369 = vunpack.c.l.b16 %v529
        %v1370 = vunpack.c.l.b16 %v530
        %v1371 = vunpack.c.l.b16 %v531
        %v1372 = vunpack.c.l.b16 %v532
        %v1373 = vunpack.c.l.b16 %v533
        %v1374 = vunpack.c.l.b16 %v534
        %v1375 = vunpack.c.l.b16 %v535
        %v1376 = vunpack.c.l.b16 %v536
        %v1377 = vunpack.c.l.b16 %v537
        %v1378 = vunpack.c.l.b16 %v538
        %v1379 = vunpack.c.l.b16 %v539
        %v1380 = vunpack.c.l.b16 %v540
        %v1381 = vunpack.c.l.b16 %v541
        %v1382 = vunpack.c.l.b16 %v542
        %v1383 = vunpack.c.l.b16 %v543
        %v1384 = vunpack.c.l.b16 %v544
        %v1385 = vunpack.c.l.b16 %v545
        %v1386 = vunpack.c.l.b16 %v546
        %v1387 = vunpack.c.l.b16 %v547
        %v1388 = vunpack.c.l.b16 %v548
        %v1389 = vunpack.c.l.b16 %v549
        %v1390 = vunpack.c.l.b16 %v550
        %v1391 = vunpack.c.l.b16 %v551
        %v1392 = vunpack.c.l.b16 %v552
        %v1393 = vunpack.c.l.b16 %v553
        %v1394 = vunpack.c.l.b16 %v554
        %v1395 = vunpack.c.l.b16 %v555
        %v1396 = vunpack.c.l.b16 %v556
        %v1397 = vunpack.c.l.b16 %v557
        %v1398 = vunpack.c.l.b16 %v558
        %v1399 = vunpack.c.l.b16 %v559
        %v1400 = vunpack.c.l.b16 %v560
        %v1401 = vunpack.c.l.b16 %v561
        %v1402 = vunpack.c.l.b16 %v562
        %v1403 = vunpack.c.l.b16 %v563
        %v1404 = vunpack.c.l.b16 %v564
        %v1405 = vunpack.c.l.b16 %v565
        %v1406 = vunpack.c.l.b16 %v566
        %v1407 = vunpack.c.l.b16 %v567
        %v1408 = vunpack.c.l.b16 %v568
        %v1409 = vunpack.c.l.b16 %v569
        %v1410 = vunpack.c.l.b16 %v570
        %v1411 = vunpack.c.l.b16 %v571
        %v1412 = vunpack.c.l.b16 %v572
        %v1413 = vunpack.c.l.b16 %v573
        %v1414 = vunpack.c.l.b16 %v574
        %v1415 = vunpack.c.l.b16 %v575
        %v1416 = vunpack.c.l.b16 %v576
        %v1417 = vunpack.c.l.b16 %v577
        %v1418 = vunpack.c.l.b16 %v578
        %v1419 = vunpack.c.l.b16 %v579
        %v1420 = vunpack.c.l.b16 %v580
        %v1421 = vunpack.c.l.b16 %v581
        %v1422 = vunpack.c.l.b16 %v582
        %v1423 = vunpack.c.l.b16 %v583
        %v1424 = vunpack.c.l.b16 %v584
        %v1425 = vunpack.c.l.b16 %v585
        %v1426 = vunpack.c.l.b16 %v586
        %v1427 = vunpack.c.l.b16 %v587
        %v1428 = vunpack.c.l.b16 %v588
        %v1429 = vpack.c.b16 %v1110, %v1109
        %v1430 = vpack.c.b16 %v1112, %v1111
        %v1431 = vpack.c.b16 %v1114, %v1113
        %v1432 = vpack.c.b16 %v1116, %v1115
        %v1433 = vpack.c.b16 %v1118, %v1117
        %v1434 = vpack.c.b16 %v1120, %v1119
        %v1435 = vpack.c.b16 %v1122, %v1121
        %v1436 = vpack.c.b16 %v1124, %v1123
        %v1437 = vpack.c.b16 %v1126, %v1125
        %v1438 = vpack.c.b16 %v1128, %v1127
        %v1439 = vpack.c.b16 %v1130, %v1129
        %v1440 = vpack.c.b16 %v1132, %v1131
        %v1441 = vpack.c.b16 %v1134, %v1133
        %v1442 = vpack.c.b16 %v1136, %v1135
        %v1443 = vpack.c.b16 %v1138, %v1137
        %v1444 = vpack.c.b16 %v1140, %v1139
        %v1445 = vpack.c.b16 %v1142, %v1141
        %v1446 = vpack.c.b16 %v1144, %v1143
        %v1447 = vpack.c.b16 %v1146, %v1145
        %v1448 = vpack.c.b16 %v1148, %v1147
        %v1449 = vpack.c.b16 %v1150, %v1149
        %v1450 = vpack.c.b16 %v1152, %v1151
        %v1451 = vpack.c.b16 %v1154, %v1153
        %v1452 = vpack.c.b16 %v1156, %v1155
        %v1453 = vpack.c.b16 %v1158, %v1157
        %v1454 = vpack.c.b16 %v1160, %v1159
        %v1455 = vpack.c.b16 %v1162, %v1161
        %v1456 = vpack.c.b16 %v1164, %v1163
        %v1457 = vpack.c.b16 %v1166, %v1165
        %v1458 = vpack.c.b16 %v1168, %v1167
        %v1459 = vpack.c.b16 %v1170, %v1169
        %v1460 = vpack.c.b16 %v1172, %v1171
        %v1461 = vpack.c.b16 %v1174, %v1173
        %v1462 = vpack.c.b16 %v1176, %v1175
        %v1463 = vpack.c.b16 %v1178, %v1177
        %v1464 = vpack.c.b16 %v1180, %v1179
        %v1465 = vpack.c.b16 %v1182, %v1181
        %v1466 = vpack.c.b16 %v1184, %v1183
        %v1467 = vpack.c.b16 %v1186, %v1185
        %v1468 = vpack.c.b16 %v1188, %v1187
        %v1469 = vpack.c.b16 %v1190, %v1189
        %v1470 = vpack.c.b16 %v1192, %v1191
        %v1471 = vpack.c.b16 %v1194, %v1193
        %v1472 = vpack.c.b16 %v1196, %v1195
        %v1473 = vpack.c.b16 %v1198, %v1197
        %v1474 = vpack.c.b16 %v1200, %v1199
        %v1475 = vpack.c.b16 %v1202, %v1201
        %v1476 = vpack.c.b16 %v1204, %v1203
        %v1477 = vpack.c.b16 %v1206, %v1205
        %v1478 = vpack.c.b16 %v1208, %v1207
        %v1479 = vpack.c.b16 %v1210, %v1209
        %v1480 = vpack.c.b16 %v1212, %v1211
        %v1481 = vpack.c.b16 %v1214, %v1213
        %v1482 = vpack.c.b16 %v1216, %v1215
        %v1483 = vpack.c.b16 %v1218, %v1217
        %v1484 = vpack.c.b16 %v1220, %v1219
        %v1485 = vpack.c.b16 %v1222, %v1221
        %v1486 = vpack.c.b16 %v1224, %v1223
        %v1487 = vpack.c.b16 %v1226, %v1225
        %v1488 = vpack.c.b16 %v1228, %v1227
        %v1489 = vpack.c.b16 %v1230, %v1229
        %v1490 = vpack.c.b16 %v1232, %v1231
        %v1491 = vpack.c.b16 %v1234, %v1233
        %v1492 = vpack.c.b16 %v1236, %v1235
        %v1493 = vpack.c.b16 %v1238, %v1237
        %v1494 = vpack.c.b16 %v1240, %v1239
        %v1495 = vpack.c.b16 %v1242, %v1241
        %v1496 = vpack.c.b16 %v1244, %v1243
        %v1497 = vpack.c.b16 %v1246, %v1245
        %v1498 = vpack.c.b16 %v1248, %v1247
        %v1499 = vpack.c.b16 %v1250, %v1249
        %v1500 = vpack.c.b16 %v1252, %v1251
        %v1501 = vpack.c.b16 %v1254, %v1253
        %v1502 = vpack.c.b16 %v1256, %v1255
        %v1503 = vpack.c.b16 %v1258, %v1257
        %v1504 = vpack.c.b16 %v1260, %v1259
        %v1505 = vpack.c.b16 %v1262, %v1261
        %v1506 = vpack.c.b16 %v1264, %v1263
        %v1507 = vpack.c.b16 %v1266, %v1265
        %v1508 = vpack.c.b16 %v1268, %v1267
        %v1509 = vpack.c.b16 %v1270, %v1269
        %v1510 = vpack.c.b16 %v1272, %v1271
        %v1511 = vpack.c.b16 %v1274, %v1273
        %v1512 = vpack.c.b16 %v1276, %v1275
        %v1513 = vpack.c.b16 %v1278, %v1277
        %v1514 = vpack.c.b16 %v1280, %v1279
        %v1515 = vpack.c.b16 %v1282, %v1281
        %v1516 = vpack.c.b16 %v1284, %v1283
        %v1517 = vpack.c.b16 %v1286, %v1285
        %v1518 = vpack.c.b16 %v1288, %v1287
        %v1519 = vpack.c.b16 %v1290, %v1289
        %v1520 = vpack.c.b16 %v1292, %v1291
        %v1521 = vpack.c.b16 %v1294, %v1293
        %v1522 = vpack.c.b16 %v1296, %v1295
        %v1523 = vpack.c.b16 %v1298, %v1297
        %v1524 = vpack.c.b16 %v1300, %v1299
        %v1525 = vpack.c.b16 %v1302, %v1301
        %v1526 = vpack.c.b16 %v1304, %v1303
        %v1527 = vpack.c.b16 %v1306, %v1305
        %v1528 = vpack.c.b16 %v1308, %v1307
        %v1529 = vpack.c.b16 %v1310, %v1309
        %v1530 = vpack.c.b16 %v1312, %v1311
        %v1531 = vpack.c.b16 %v1314, %v1313
        %v1532 = vpack.c.b16 %v1316, %v1315
        %v1533 = vpack.c.b16 %v1318, %v1317
        %v1534 = vpack.c.b16 %v1320, %v1319
        %v1535 = vpack.c.b16 %v1322, %v1321
        %v1536 = vpack.c.b16 %v1324, %v1323
        %v1537 = vpack.c.b16 %v1326, %v1325
        %v1538 = vpack.c.b16 %v1328, %v1327
        %v1539 = vpack.c.b16 %v1330, %v1329
        %v1540 = vpack.c.b16 %v1332, %v1331
        %v1541 = vpack.c.b16 %v1334, %v1333
        %v1542 = vpack.c.b16 %v1336, %v1335
        %v1543 = vpack.c.b16 %v1338, %v1337
        %v1544 = vpack.c.b16 %v1340, %v1339
        %v1545 = vpack.c.b16 %v1342, %v1341
        %v1546 = vpack.c.b16 %v1344, %v1343
        %v1547 = vpack.c.b16 %v1346, %v1345
        %v1548 = vpack.c.b16 %v1348, %v1347
        %v1549 = vpack.c.b16 %v1350, %v1349
        %v1550 = vpack.c.b16 %v1352, %v1351
        %v1551 = vpack.c.b16 %v1354, %v1353
        %v1552 = vpack.c.b16 %v1356, %v1355
        %v1553 = vpack.c.b16 %v1358, %v1357
        %v1554 = vpack.c.b16 %v1360, %v1359
        %v1555 = vpack.c.b16 %v1362, %v1361
        %v1556 = vpack.c.b16 %v1364, %v1363
        %v1557 = vpack.c.b16 %v1366, %v1365
        %v1558 = vpack.c.b16 %v1368, %v1367
        %v1559 = vpack.c.b16 %v1370, %v1369
        %v1560 = vpack.c.b16 %v1372, %v1371
        %v1561 = vpack.c.b16 %v1374, %v1373
        %v1562 = vpack.c.b16 %v1376, %v1375
        %v1563 = vpack.c.b16 %v1378, %v1377
        %v1564 = vpack.c.b16 %v1380, %v1379
        %v1565 = vpack.c.b16 %v1382, %v1381
        %v1566 = vpack.c.b16 %v1384, %v1383
        %v1567 = vpack.c.b16 %v1386, %v1385
        %v1568 = vpack.c.b16 %v1388, %v1387
        %v1569 = vpack.c.b16 %v1390, %v1389
        %v1570 = vpack.c.b16 %v1392, %v1391
        %v1571 = vpack.c.b16 %v1394, %v1393
        %v1572 = vpack.c.b16 %v1396, %v1395
        %v1573 = vpack.c.b16 %v1398, %v1397
        %v1574 = vpack.c.b16 %v1400, %v1399
        %v1575 = vpack.c.b16 %v1402, %v1401
        %v1576 = vpack.c.b16 %v1404, %v1403
        %v1577 = vpack.c.b16 %v1406, %v1405
        %v1578 = vpack.c.b16 %v1408, %v1407
        %v1579 = vpack.c.b16 %v1410, %v1409
        %v1580 = vpack.c.b16 %v1412, %v1411
        %v1581 = vpack.c.b16 %v1414, %v1413
        %v1582 = vpack.c.b16 %v1416, %v1415
        %v1583 = vpack.c.b16 %v1418, %v1417
        %v1584 = vpack.c.b16 %v1420, %v1419
        %v1585 = vpack.c.b16 %v1422, %v1421
        %v1586 = vpack.c.b16 %v1424, %v1423
        %v1587 = vpack.c.b16 %v1426, %v1425
        %v1588 = vpack.c.b16 %v1428, %v1427
        %1749 = vmatprep.subr.bf16.mxu0 0
        %1750 = vmatpush1.bf16.msra.mxu0 %v1429
        %1751 = vmatprep.subr.bf16.mxu0 0
        %1752 = vmatpush1.bf16.msra.mxu0 %v1430
        %1753 = vmatprep.subr.bf16.mxu0 0
        %1754 = vmatpush1.bf16.msra.mxu0 %v1431
        %1755 = vmatprep.subr.bf16.mxu0 0
        %1756 = vmatpush1.bf16.msra.mxu0 %v1432
        %1757 = vmatprep.subr.bf16.mxu0 0
        %1758 = vmatpush1.bf16.msra.mxu0 %v1433
        %1759 = vmatprep.subr.bf16.mxu0 0
        %1760 = vmatpush1.bf16.msra.mxu0 %v1434
        %1761 = vmatprep.subr.bf16.mxu0 0
        %1762 = vmatpush1.bf16.msra.mxu0 %v1435
        %1763 = vmatprep.subr.bf16.mxu0 0
        %1764 = vmatpush1.bf16.msra.mxu0 %v1436
        %1765 = vmatprep.subr.bf16.mxu0 0
        %1766 = vmatpush1.bf16.msra.mxu0 %v1437
        %1767 = vmatprep.subr.bf16.mxu0 0
        %1768 = vmatpush1.bf16.msra.mxu0 %v1438
        %1769 = vmatprep.subr.bf16.mxu0 0
        %1770 = vmatpush1.bf16.msra.mxu0 %v1439
        %1771 = vmatprep.subr.bf16.mxu0 0
        %1772 = vmatpush1.bf16.msra.mxu0 %v1440
        %1773 = vmatprep.subr.bf16.mxu0 0
        %1774 = vmatpush1.bf16.msra.mxu0 %v1441
        %1775 = vmatprep.subr.bf16.mxu0 0
        %1776 = vmatpush1.bf16.msra.mxu0 %v1442
        %1777 = vmatprep.subr.bf16.mxu0 0
        %1778 = vmatpush1.bf16.msra.mxu0 %v1443
        %1779 = vmatprep.subr.bf16.mxu0 0
        %1780 = vmatpush1.bf16.msra.mxu0 %v1444
        %1781 = vmatprep.mubr.bf16.mxu0 %v710
        %1782 = vmatmul.mubr.bf16.gmra.mrb[0].mxu0 %v709
        %v1783 = vpop.f32.mrb[0].mxu0
        %v1784 = vadd.f32 0.0, %v1783
        %v1785 = vpop.f32.mrb[0].mxu0
        %v1786 = vpop.f32.mrb[0].mxu0
        %v1787 = vadd.f32 0.0, %v1786
        %v1788 = vpop.f32.mrb[0].mxu0
        %1789 = vmatprep.mubr.bf16.mxu0 %v730
        %1790 = vmatmul.mubr.bf16.gmra.mrb[0].mxu0 %v729
        %v1791 = vpop.f32.mrb[0].mxu0
        %v1792 = vadd.f32 0.0, %v1791
        %v1793 = vpop.f32.mrb[0].mxu0
        %v1794 = vpop.f32.mrb[0].mxu0
        %v1795 = vadd.f32 0.0, %v1794
        %v1796 = vpop.f32.mrb[0].mxu0
        %1797 = vdwg.mxu0
        %1798 = vmatprep.subr.bf16.mxu0 0
        %1799 = vmatpush1.bf16.msra.mxu0 %v1445
        %1800 = vmatprep.subr.bf16.mxu0 0
        %1801 = vmatpush1.bf16.msra.mxu0 %v1446
        %1802 = vmatprep.subr.bf16.mxu0 0
        %1803 = vmatpush1.bf16.msra.mxu0 %v1447
        %1804 = vmatprep.subr.bf16.mxu0 0
        %1805 = vmatpush1.bf16.msra.mxu0 %v1448
        %1806 = vmatprep.subr.bf16.mxu0 0
        %1807 = vmatpush1.bf16.msra.mxu0 %v1449
        %1808 = vmatprep.subr.bf16.mxu0 0
        %1809 = vmatpush1.bf16.msra.mxu0 %v1450
        %1810 = vmatprep.subr.bf16.mxu0 0
        %1811 = vmatpush1.bf16.msra.mxu0 %v1451
        %1812 = vmatprep.subr.bf16.mxu0 0
        %1813 = vmatpush1.bf16.msra.mxu0 %v1452
        %1814 = vmatprep.subr.bf16.mxu0 0
        %1815 = vmatpush1.bf16.msra.mxu0 %v1453
        %1816 = vmatprep.subr.bf16.mxu0 0
        %1817 = vmatpush1.bf16.msra.mxu0 %v1454
        %1818 = vmatprep.subr.bf16.mxu0 0
        %1819 = vmatpush1.bf16.msra.mxu0 %v1455
        %1820 = vmatprep.subr.bf16.mxu0 0
        %1821 = vmatpush1.bf16.msra.mxu0 %v1456
        %1822 = vmatprep.subr.bf16.mxu0 0
        %1823 = vmatpush1.bf16.msra.mxu0 %v1457
        %1824 = vmatprep.subr.bf16.mxu0 0
        %1825 = vmatpush1.bf16.msra.mxu0 %v1458
        %1826 = vmatprep.subr.bf16.mxu0 0
        %1827 = vmatpush1.bf16.msra.mxu0 %v1459
        %1828 = vmatprep.subr.bf16.mxu0 0
        %1829 = vmatpush1.bf16.msra.mxu0 %v1460
        %1830 = vmatprep.mubr.bf16.mxu0 %v712
        %1831 = vmatmul.mubr.bf16.gmra.mrb[0].mxu0 %v711
        %v1832 = vpop.f32.mrb[0].mxu0
        %v1833 = vadd.f32 %v1784, %v1832
        %v1834 = vpop.f32.mrb[0].mxu0
        %v1835 = vpop.f32.mrb[0].mxu0
        %v1836 = vadd.f32 %v1787, %v1835
        %v1837 = vpop.f32.mrb[0].mxu0
        %1838 = vmatprep.mubr.bf16.mxu0 %v732
        %1839 = vmatmul.mubr.bf16.gmra.mrb[0].mxu0 %v731
        %v1840 = vpop.f32.mrb[0].mxu0
        %v1841 = vadd.f32 %v1792, %v1840
        %v1842 = vpop.f32.mrb[0].mxu0
        %v1843 = vpop.f32.mrb[0].mxu0
        %v1844 = vadd.f32 %v1795, %v1843
        %v1845 = vpop.f32.mrb[0].mxu0
        %1846 = vdwg.mxu0
        %1847 = vmatprep.subr.bf16.mxu0 0
        %1848 = vmatpush1.bf16.msra.mxu0 %v1461
        %1849 = vmatprep.subr.bf16.mxu0 0
        %1850 = vmatpush1.bf16.msra.mxu0 %v1462
        %1851 = vmatprep.subr.bf16.mxu0 0
        %1852 = vmatpush1.bf16.msra.mxu0 %v1463
        %1853 = vmatprep.subr.bf16.mxu0 0
        %1854 = vmatpush1.bf16.msra.mxu0 %v1464
        %1855 = vmatprep.subr.bf16.mxu0 0
        %1856 = vmatpush1.bf16.msra.mxu0 %v1465
        %1857 = vmatprep.subr.bf16.mxu0 0
        %1858 = vmatpush1.bf16.msra.mxu0 %v1466
        %1859 = vmatprep.subr.bf16.mxu0 0
        %1860 = vmatpush1.bf16.msra.mxu0 %v1467
        %1861 = vmatprep.subr.bf16.mxu0 0
        %1862 = vmatpush1.bf16.msra.mxu0 %v1468
        %1863 = vmatprep.subr.bf16.mxu0 0
        %1864 = vmatpush1.bf16.msra.mxu0 %v1469
        %1865 = vmatprep.subr.bf16.mxu0 0
        %1866 = vmatpush1.bf16.msra.mxu0 %v1470
        %1867 = vmatprep.subr.bf16.mxu0 0
        %1868 = vmatpush1.bf16.msra.mxu0 %v1471
        %1869 = vmatprep.subr.bf16.mxu0 0
        %1870 = vmatpush1.bf16.msra.mxu0 %v1472
        %1871 = vmatprep.subr.bf16.mxu0 0
        %1872 = vmatpush1.bf16.msra.mxu0 %v1473
        %1873 = vmatprep.subr.bf16.mxu0 0
        %1874 = vmatpush1.bf16.msra.mxu0 %v1474
        %1875 = vmatprep.subr.bf16.mxu0 0
        %1876 = vmatpush1.bf16.msra.mxu0 %v1475
        %1877 = vmatprep.subr.bf16.mxu0 0
        %1878 = vmatpush1.bf16.msra.mxu0 %v1476
        %1879 = vmatprep.mubr.bf16.mxu0 %v714
        %1880 = vmatmul.mubr.bf16.gmra.mrb[0].mxu0 %v713
        %v1881 = vpop.f32.mrb[0].mxu0
        %v1882 = vadd.f32 %v1833, %v1881
        %v1883 = vpop.f32.mrb[0].mxu0
        %v1884 = vpop.f32.mrb[0].mxu0
        %v1885 = vadd.f32 %v1836, %v1884
        %v1886 = vpop.f32.mrb[0].mxu0
        %1887 = vmatprep.mubr.bf16.mxu0 %v734
        %1888 = vmatmul.mubr.bf16.gmra.mrb[0].mxu0 %v733
        %v1889 = vpop.f32.mrb[0].mxu0
        %v1890 = vadd.f32 %v1841, %v1889
        %v1891 = vpop.f32.mrb[0].mxu0
        %v1892 = vpop.f32.mrb[0].mxu0
        %v1893 = vadd.f32 %v1844, %v1892
        %v1894 = vpop.f32.mrb[0].mxu0
        %1895 = vdwg.mxu0
        %1896 = vmatprep.subr.bf16.mxu0 0
        %1897 = vmatpush1.bf16.msra.mxu0 %v1477
        %1898 = vmatprep.subr.bf16.mxu0 0
        %1899 = vmatpush1.bf16.msra.mxu0 %v1478
        %1900 = vmatprep.subr.bf16.mxu0 0
        %1901 = vmatpush1.bf16.msra.mxu0 %v1479
        %1902 = vmatprep.subr.bf16.mxu0 0
        %1903 = vmatpush1.bf16.msra.mxu0 %v1480
        %1904 = vmatprep.subr.bf16.mxu0 0
        %1905 = vmatpush1.bf16.msra.mxu0 %v1481
        %1906 = vmatprep.subr.bf16.mxu0 0
        %1907 = vmatpush1.bf16.msra.mxu0 %v1482
        %1908 = vmatprep.subr.bf16.mxu0 0
        %1909 = vmatpush1.bf16.msra.mxu0 %v1483
        %1910 = vmatprep.subr.bf16.mxu0 0
        %1911 = vmatpush1.bf16.msra.mxu0 %v1484
        %1912 = vmatprep.subr.bf16.mxu0 0
        %1913 = vmatpush1.bf16.msra.mxu0 %v1485
        %1914 = vmatprep.subr.bf16.mxu0 0
        %1915 = vmatpush1.bf16.msra.mxu0 %v1486
        %1916 = vmatprep.subr.bf16.mxu0 0
        %1917 = vmatpush1.bf16.msra.mxu0 %v1487
        %1918 = vmatprep.subr.bf16.mxu0 0
        %1919 = vmatpush1.bf16.msra.mxu0 %v1488
        %1920 = vmatprep.subr.bf16.mxu0 0
        %1921 = vmatpush1.bf16.msra.mxu0 %v1489
        %1922 = vmatprep.subr.bf16.mxu0 0
        %1923 = vmatpush1.bf16.msra.mxu0 %v1490
        %1924 = vmatprep.subr.bf16.mxu0 0
        %1925 = vmatpush1.bf16.msra.mxu0 %v1491
        %1926 = vmatprep.subr.bf16.mxu0 0
        %1927 = vmatpush1.bf16.msra.mxu0 %v1492
        %1928 = vmatprep.mubr.bf16.mxu0 %v716
        %1929 = vmatmul.mubr.bf16.gmra.mrb[0].mxu0 %v715
        %v1930 = vpop.f32.mrb[0].mxu0
        %v1931 = vadd.f32 %v1882, %v1930
        %v1932 = vpop.f32.mrb[0].mxu0
        %v1933 = vpop.f32.mrb[0].mxu0
        %v1934 = vadd.f32 %v1885, %v1933
        %v1935 = vpop.f32.mrb[0].mxu0
        %1936 = vmatprep.mubr.bf16.mxu0 %v736
        %1937 = vmatmul.mubr.bf16.gmra.mrb[0].mxu0 %v735
        %v1938 = vpop.f32.mrb[0].mxu0
        %v1939 = vadd.f32 %v1890, %v1938
        %v1940 = vpop.f32.mrb[0].mxu0
        %v1941 = vpop.f32.mrb[0].mxu0
        %v1942 = vadd.f32 %v1893, %v1941
        %v1943 = vpop.f32.mrb[0].mxu0
        %1944 = vdwg.mxu0
        %1945 = vmatprep.subr.bf16.mxu0 0
        %1946 = vmatpush1.bf16.msra.mxu0 %v1493
        %1947 = vmatprep.subr.bf16.mxu0 0
        %1948 = vmatpush1.bf16.msra.mxu0 %v1494
        %1949 = vmatprep.subr.bf16.mxu0 0
        %1950 = vmatpush1.bf16.msra.mxu0 %v1495
        %1951 = vmatprep.subr.bf16.mxu0 0
        %1952 = vmatpush1.bf16.msra.mxu0 %v1496
        %1953 = vmatprep.subr.bf16.mxu0 0
        %1954 = vmatpush1.bf16.msra.mxu0 %v1497
        %1955 = vmatprep.subr.bf16.mxu0 0
        %1956 = vmatpush1.bf16.msra.mxu0 %v1498
        %1957 = vmatprep.subr.bf16.mxu0 0
        %1958 = vmatpush1.bf16.msra.mxu0 %v1499
        %1959 = vmatprep.subr.bf16.mxu0 0
        %1960 = vmatpush1.bf16.msra.mxu0 %v1500
        %1961 = vmatprep.subr.bf16.mxu0 0
        %1962 = vmatpush1.bf16.msra.mxu0 %v1501
        %1963 = vmatprep.subr.bf16.mxu0 0
        %1964 = vmatpush1.bf16.msra.mxu0 %v1502
        %1965 = vmatprep.subr.bf16.mxu0 0
        %1966 = vmatpush1.bf16.msra.mxu0 %v1503
        %1967 = vmatprep.subr.bf16.mxu0 0
        %1968 = vmatpush1.bf16.msra.mxu0 %v1504
        %1969 = vmatprep.subr.bf16.mxu0 0
        %1970 = vmatpush1.bf16.msra.mxu0 %v1505
        %1971 = vmatprep.subr.bf16.mxu0 0
        %1972 = vmatpush1.bf16.msra.mxu0 %v1506
        %1973 = vmatprep.subr.bf16.mxu0 0
        %1974 = vmatpush1.bf16.msra.mxu0 %v1507
        %1975 = vmatprep.subr.bf16.mxu0 0
        %1976 = vmatpush1.bf16.msra.mxu0 %v1508
        %1977 = vmatprep.mubr.bf16.mxu0 %v718
        %1978 = vmatmul.mubr.bf16.gmra.mrb[0].mxu0 %v717
        %v1979 = vpop.f32.mrb[0].mxu0
        %v1980 = vadd.f32 %v1931, %v1979
        %v1981 = vpop.f32.mrb[0].mxu0
        %v1982 = vpop.f32.mrb[0].mxu0
        %v1983 = vadd.f32 %v1934, %v1982
        %v1984 = vpop.f32.mrb[0].mxu0
        %1985 = vmatprep.mubr.bf16.mxu0 %v738
        %1986 = vmatmul.mubr.bf16.gmra.mrb[0].mxu0 %v737
        %v1987 = vpop.f32.mrb[0].mxu0
        %v1988 = vadd.f32 %v1939, %v1987
        %v1989 = vpop.f32.mrb[0].mxu0
        %v1990 = vpop.f32.mrb[0].mxu0
        %v1991 = vadd.f32 %v1942, %v1990
        %v1992 = vpop.f32.mrb[0].mxu0
        %1993 = vdwg.mxu0
        %1994 = vmatprep.subr.bf16.mxu0 0
        %1995 = vmatpush1.bf16.msra.mxu0 %v1509
        %1996 = vmatprep.subr.bf16.mxu0 0
        %1997 = vmatpush1.bf16.msra.mxu0 %v1510
        %1998 = vmatprep.subr.bf16.mxu0 0
        %1999 = vmatpush1.bf16.msra.mxu0 %v1511
        %2000 = vmatprep.subr.bf16.mxu0 0
        %2001 = vmatpush1.bf16.msra.mxu0 %v1512
        %2002 = vmatprep.subr.bf16.mxu0 0
        %2003 = vmatpush1.bf16.msra.mxu0 %v1513
        %2004 = vmatprep.subr.bf16.mxu0 0
        %2005 = vmatpush1.bf16.msra.mxu0 %v1514
        %2006 = vmatprep.subr.bf16.mxu0 0
        %2007 = vmatpush1.bf16.msra.mxu0 %v1515
        %2008 = vmatprep.subr.bf16.mxu0 0
        %2009 = vmatpush1.bf16.msra.mxu0 %v1516
        %2010 = vmatprep.subr.bf16.mxu0 0
        %2011 = vmatpush1.bf16.msra.mxu0 %v1517
        %2012 = vmatprep.subr.bf16.mxu0 0
        %2013 = vmatpush1.bf16.msra.mxu0 %v1518
        %2014 = vmatprep.subr.bf16.mxu0 0
        %2015 = vmatpush1.bf16.msra.mxu0 %v1519
        %2016 = vmatprep.subr.bf16.mxu0 0
        %2017 = vmatpush1.bf16.msra.mxu0 %v1520
        %2018 = vmatprep.subr.bf16.mxu0 0
        %2019 = vmatpush1.bf16.msra.mxu0 %v1521
        %2020 = vmatprep.subr.bf16.mxu0 0
        %2021 = vmatpush1.bf16.msra.mxu0 %v1522
        %2022 = vmatprep.subr.bf16.mxu0 0
        %2023 = vmatpush1.bf16.msra.mxu0 %v1523
        %2024 = vmatprep.subr.bf16.mxu0 0
        %2025 = vmatpush1.bf16.msra.mxu0 %v1524
        %2026 = vmatprep.mubr.bf16.mxu0 %v720
        %2027 = vmatmul.mubr.bf16.gmra.mrb[0].mxu0 %v719
        %v2028 = vpop.f32.mrb[0].mxu0
        %v2029 = vadd.f32 %v1980, %v2028
        %v2030 = vpop.f32.mrb[0].mxu0
        %v2031 = vpop.f32.mrb[0].mxu0
        %v2032 = vadd.f32 %v1983, %v2031
        %v2033 = vpop.f32.mrb[0].mxu0
        %2034 = vmatprep.mubr.bf16.mxu0 %v740
        %2035 = vmatmul.mubr.bf16.gmra.mrb[0].mxu0 %v739
        %v2036 = vpop.f32.mrb[0].mxu0
        %v2037 = vadd.f32 %v1988, %v2036
        %v2038 = vpop.f32.mrb[0].mxu0
        %v2039 = vpop.f32.mrb[0].mxu0
        %v2040 = vadd.f32 %v1991, %v2039
        %v2041 = vpop.f32.mrb[0].mxu0
        %2042 = vdwg.mxu0
        %2043 = vmatprep.subr.bf16.mxu0 0
        %2044 = vmatpush1.bf16.msra.mxu0 %v1525
        %2045 = vmatprep.subr.bf16.mxu0 0
        %2046 = vmatpush1.bf16.msra.mxu0 %v1526
        %2047 = vmatprep.subr.bf16.mxu0 0
        %2048 = vmatpush1.bf16.msra.mxu0 %v1527
        %2049 = vmatprep.subr.bf16.mxu0 0
        %2050 = vmatpush1.bf16.msra.mxu0 %v1528
        %2051 = vmatprep.subr.bf16.mxu0 0
        %2052 = vmatpush1.bf16.msra.mxu0 %v1529
        %2053 = vmatprep.subr.bf16.mxu0 0
        %2054 = vmatpush1.bf16.msra.mxu0 %v1530
        %2055 = vmatprep.subr.bf16.mxu0 0
        %2056 = vmatpush1.bf16.msra.mxu0 %v1531
        %2057 = vmatprep.subr.bf16.mxu0 0
        %2058 = vmatpush1.bf16.msra.mxu0 %v1532
        %2059 = vmatprep.subr.bf16.mxu0 0
        %2060 = vmatpush1.bf16.msra.mxu0 %v1533
        %2061 = vmatprep.subr.bf16.mxu0 0
        %2062 = vmatpush1.bf16.msra.mxu0 %v1534
        %2063 = vmatprep.subr.bf16.mxu0 0
        %2064 = vmatpush1.bf16.msra.mxu0 %v1535
        %2065 = vmatprep.subr.bf16.mxu0 0
        %2066 = vmatpush1.bf16.msra.mxu0 %v1536
        %2067 = vmatprep.subr.bf16.mxu0 0
        %2068 = vmatpush1.bf16.msra.mxu0 %v1537
        %2069 = vmatprep.subr.bf16.mxu0 0
        %2070 = vmatpush1.bf16.msra.mxu0 %v1538
        %2071 = vmatprep.subr.bf16.mxu0 0
        %2072 = vmatpush1.bf16.msra.mxu0 %v1539
        %2073 = vmatprep.subr.bf16.mxu0 0
        %2074 = vmatpush1.bf16.msra.mxu0 %v1540
        %2075 = vmatprep.mubr.bf16.mxu0 %v722
        %2076 = vmatmul.mubr.bf16.gmra.mrb[0].mxu0 %v721
        %v2077 = vpop.f32.mrb[0].mxu0
        %v2078 = vadd.f32 %v2029, %v2077
        %v2079 = vpop.f32.mrb[0].mxu0
        %v2080 = vpop.f32.mrb[0].mxu0
        %v2081 = vadd.f32 %v2032, %v2080
        %v2082 = vpop.f32.mrb[0].mxu0
        %2083 = vmatprep.mubr.bf16.mxu0 %v742
        %2084 = vmatmul.mubr.bf16.gmra.mrb[0].mxu0 %v741
        %v2085 = vpop.f32.mrb[0].mxu0
        %v2086 = vadd.f32 %v2037, %v2085
        %v2087 = vpop.f32.mrb[0].mxu0
        %v2088 = vpop.f32.mrb[0].mxu0
        %v2089 = vadd.f32 %v2040, %v2088
        %v2090 = vpop.f32.mrb[0].mxu0
        %2091 = vdwg.mxu0
        %2092 = vmatprep.subr.bf16.mxu0 0
        %2093 = vmatpush1.bf16.msra.mxu0 %v1541
        %2094 = vmatprep.subr.bf16.mxu0 0
        %2095 = vmatpush1.bf16.msra.mxu0 %v1542
        %2096 = vmatprep.subr.bf16.mxu0 0
        %2097 = vmatpush1.bf16.msra.mxu0 %v1543
        %2098 = vmatprep.subr.bf16.mxu0 0
        %2099 = vmatpush1.bf16.msra.mxu0 %v1544
        %2100 = vmatprep.subr.bf16.mxu0 0
        %2101 = vmatpush1.bf16.msra.mxu0 %v1545
        %2102 = vmatprep.subr.bf16.mxu0 0
        %2103 = vmatpush1.bf16.msra.mxu0 %v1546
        %2104 = vmatprep.subr.bf16.mxu0 0
        %2105 = vmatpush1.bf16.msra.mxu0 %v1547
        %2106 = vmatprep.subr.bf16.mxu0 0
        %2107 = vmatpush1.bf16.msra.mxu0 %v1548
        %2108 = vmatprep.subr.bf16.mxu0 0
        %2109 = vmatpush1.bf16.msra.mxu0 %v1549
        %2110 = vmatprep.subr.bf16.mxu0 0
        %2111 = vmatpush1.bf16.msra.mxu0 %v1550
        %2112 = vmatprep.subr.bf16.mxu0 0
        %2113 = vmatpush1.bf16.msra.mxu0 %v1551
        %2114 = vmatprep.subr.bf16.mxu0 0
        %2115 = vmatpush1.bf16.msra.mxu0 %v1552
        %2116 = vmatprep.subr.bf16.mxu0 0
        %2117 = vmatpush1.bf16.msra.mxu0 %v1553
        %2118 = vmatprep.subr.bf16.mxu0 0
        %2119 = vmatpush1.bf16.msra.mxu0 %v1554
        %2120 = vmatprep.subr.bf16.mxu0 0
        %2121 = vmatpush1.bf16.msra.mxu0 %v1555
        %2122 = vmatprep.subr.bf16.mxu0 0
        %2123 = vmatpush1.bf16.msra.mxu0 %v1556
        %2124 = vmatprep.mubr.bf16.mxu0 %v724
        %2125 = vmatmul.mubr.bf16.gmra.mrb[0].mxu0 %v723
        %v2126 = vpop.f32.mrb[0].mxu0
        %v2127 = vadd.f32 %v2078, %v2126
        %v2128 = vpop.f32.mrb[0].mxu0
        %v2129 = vpop.f32.mrb[0].mxu0
        %v2130 = vadd.f32 %v2081, %v2129
        %v2131 = vpop.f32.mrb[0].mxu0
        %2132 = vmatprep.mubr.bf16.mxu0 %v744
        %2133 = vmatmul.mubr.bf16.gmra.mrb[0].mxu0 %v743
        %v2134 = vpop.f32.mrb[0].mxu0
        %v2135 = vadd.f32 %v2086, %v2134
        %v2136 = vpop.f32.mrb[0].mxu0
        %v2137 = vpop.f32.mrb[0].mxu0
        %v2138 = vadd.f32 %v2089, %v2137
        %v2139 = vpop.f32.mrb[0].mxu0
        %2140 = vdwg.mxu0
        %2141 = vmatprep.subr.bf16.mxu0 0
        %2142 = vmatpush1.bf16.msra.mxu0 %v1557
        %2143 = vmatprep.subr.bf16.mxu0 0
        %2144 = vmatpush1.bf16.msra.mxu0 %v1558
        %2145 = vmatprep.subr.bf16.mxu0 0
        %2146 = vmatpush1.bf16.msra.mxu0 %v1559
        %2147 = vmatprep.subr.bf16.mxu0 0
        %2148 = vmatpush1.bf16.msra.mxu0 %v1560
        %2149 = vmatprep.subr.bf16.mxu0 0
        %2150 = vmatpush1.bf16.msra.mxu0 %v1561
        %2151 = vmatprep.subr.bf16.mxu0 0
        %2152 = vmatpush1.bf16.msra.mxu0 %v1562
        %2153 = vmatprep.subr.bf16.mxu0 0
        %2154 = vmatpush1.bf16.msra.mxu0 %v1563
        %2155 = vmatprep.subr.bf16.mxu0 0
        %2156 = vmatpush1.bf16.msra.mxu0 %v1564
        %2157 = vmatprep.subr.bf16.mxu0 0
        %2158 = vmatpush1.bf16.msra.mxu0 %v1565
        %2159 = vmatprep.subr.bf16.mxu0 0
        %2160 = vmatpush1.bf16.msra.mxu0 %v1566
        %2161 = vmatprep.subr.bf16.mxu0 0
        %2162 = vmatpush1.bf16.msra.mxu0 %v1567
        %2163 = vmatprep.subr.bf16.mxu0 0
        %2164 = vmatpush1.bf16.msra.mxu0 %v1568
        %2165 = vmatprep.subr.bf16.mxu0 0
        %2166 = vmatpush1.bf16.msra.mxu0 %v1569
        %2167 = vmatprep.subr.bf16.mxu0 0
        %2168 = vmatpush1.bf16.msra.mxu0 %v1570
        %2169 = vmatprep.subr.bf16.mxu0 0
        %2170 = vmatpush1.bf16.msra.mxu0 %v1571
        %2171 = vmatprep.subr.bf16.mxu0 0
        %2172 = vmatpush1.bf16.msra.mxu0 %v1572
        %2173 = vmatprep.mubr.bf16.mxu0 %v726
        %2174 = vmatmul.mubr.bf16.gmra.mrb[0].mxu0 %v725
        %v2175 = vpop.f32.mrb[0].mxu0
        %v2176 = vadd.f32 %v2127, %v2175
        %v2177 = vpop.f32.mrb[0].mxu0
        %v2178 = vpop.f32.mrb[0].mxu0
        %v2179 = vadd.f32 %v2130, %v2178
        %v2180 = vpop.f32.mrb[0].mxu0
        %2181 = vmatprep.mubr.bf16.mxu0 %v746
        %2182 = vmatmul.mubr.bf16.gmra.mrb[0].mxu0 %v745
        %v2183 = vpop.f32.mrb[0].mxu0
        %v2184 = vadd.f32 %v2135, %v2183
        %v2185 = vpop.f32.mrb[0].mxu0
        %v2186 = vpop.f32.mrb[0].mxu0
        %v2187 = vadd.f32 %v2138, %v2186
        %v2188 = vpop.f32.mrb[0].mxu0
        %2189 = vdwg.mxu0
        %2190 = vmatprep.subr.bf16.mxu0 0
        %2191 = vmatpush1.bf16.msra.mxu0 %v1573
        %2192 = vmatprep.subr.bf16.mxu0 0
        %2193 = vmatpush1.bf16.msra.mxu0 %v1574
        %2194 = vmatprep.subr.bf16.mxu0 0
        %2195 = vmatpush1.bf16.msra.mxu0 %v1575
        %2196 = vmatprep.subr.bf16.mxu0 0
        %2197 = vmatpush1.bf16.msra.mxu0 %v1576
        %2198 = vmatprep.subr.bf16.mxu0 0
        %2199 = vmatpush1.bf16.msra.mxu0 %v1577
        %2200 = vmatprep.subr.bf16.mxu0 0
        %2201 = vmatpush1.bf16.msra.mxu0 %v1578
        %2202 = vmatprep.subr.bf16.mxu0 0
        %2203 = vmatpush1.bf16.msra.mxu0 %v1579
        %2204 = vmatprep.subr.bf16.mxu0 0
        %2205 = vmatpush1.bf16.msra.mxu0 %v1580
        %2206 = vmatprep.subr.bf16.mxu0 0
        %2207 = vmatpush1.bf16.msra.mxu0 %v1581
        %2208 = vmatprep.subr.bf16.mxu0 0
        %2209 = vmatpush1.bf16.msra.mxu0 %v1582
        %2210 = vmatprep.subr.bf16.mxu0 0
        %2211 = vmatpush1.bf16.msra.mxu0 %v1583
        %2212 = vmatprep.subr.bf16.mxu0 0
        %2213 = vmatpush1.bf16.msra.mxu0 %v1584
        %2214 = vmatprep.subr.bf16.mxu0 0
        %2215 = vmatpush1.bf16.msra.mxu0 %v1585
        %2216 = vmatprep.subr.bf16.mxu0 0
        %2217 = vmatpush1.bf16.msra.mxu0 %v1586
        %2218 = vmatprep.subr.bf16.mxu0 0
        %2219 = vmatpush1.bf16.msra.mxu0 %v1587
        %2220 = vmatprep.subr.bf16.mxu0 0
        %2221 = vmatpush1.bf16.msra.mxu0 %v1588
        %2222 = vmatprep.mubr.bf16.mxu0 %v728
        %2223 = vmatmul.mubr.bf16.gmra.mrb[0].mxu0 %v727
        %v2224 = vpop.f32.mrb[0].mxu0
        %v2225 = vadd.f32 %v2176, %v2224
        %v2226 = vpop.f32.mrb[0].mxu0
        %v2227 = vpop.f32.mrb[0].mxu0
        %v2228 = vadd.f32 %v2179, %v2227
        %v2229 = vpop.f32.mrb[0].mxu0
        %2230 = vmatprep.mubr.bf16.mxu0 %v748
        %2231 = vmatmul.mubr.bf16.gmra.mrb[0].mxu0 %v747
        %v2232 = vpop.f32.mrb[0].mxu0
        %v2233 = vadd.f32 %v2184, %v2232
        %v2234 = vpop.f32.mrb[0].mxu0
        %v2235 = vpop.f32.mrb[0].mxu0
        %v2236 = vadd.f32 %v2187, %v2235
        %v2237 = vpop.f32.mrb[0].mxu0
        %2238 = vdwg.mxu0
        %v2239 = vadd.f32 %v225, %v2225
        %v2240 = vadd.f32 %v226, %v2228
        %v2241 = vadd.f32 %v227, %v2233
        %v2242 = vadd.f32 %v228, %v2236
        %v2243 = vld [vmem:[%s3] sm:$0x1]
        %v2245 = vlaneseq
        %v2246 = vshrl.u32 %v2245, 7
        %v2247 = vsub.s32 0, %v2246
        %v2248 = vrot.slane %v2243, %v2247
        %v2250 = vadd.f32 %v2239, %v2248
        %v2251 = vadd.f32 %v2240, %v2248
        %v2252 = vadd.f32 %v2241, %v2248
        %v2253 = vadd.f32 %v2242, %v2248
        %2254 = vst [vmem:[%s209] sm:$0xff] %v2250
        %2255 = vst [vmem:[%s209 + $0x8] sm:$0xff] %v2251
        %2256 = vst [vmem:[%s209 + $0x10] sm:$0xff] %v2252
        %2257 = vst [vmem:[%s209 + $0x18] sm:$0xff] %v2253
        %s2258 = sand.u32 %s120, 1
        %s2259 = scalar_lea.sflag [#allocation3], %s2258
        %s2260 = sand.u32 %s120, 1
        %s2261 = smul.addr %s2260, 32
        %s2262 = scalar_lea.vmem [#allocation2], %s2261
        // Predicated region
        $region37: #{transformer_block.5} parent=35 // pred_check
          %p2263 = pneg %p130
        $region38: #{transformer_block.5} parent=35 // pred_check_branch
          %2265 = sbr.rel (%p2263) target = $region40
        $region39: #{transformer_block.5} parent=35 // pred_region
          %s2266 = smul.u32 4, %s18
          %s2268 = ssub.s32 512, 512
          %2269 = vsyncadd %s2259, %s2268
          %s2270 = smul.addr %s2266, 128
          %s2271 = scalar_lea.hbm %s4, %s2270
          %s2272 = sshll.u32 %s2262, 4
          %s2273 = int_to_ptr.vmem [resolvable:$true] %s2272
          %2278 = dma.vmem_to_hbm [thread:$0]  %s2273, 512, %s2271, %s2259, 128, 128, 8
        $region40: #{transformer_block.5} parent=35 // pred_fallthru
          _
      $region36: #{transformer_block.5} parent=5 // pred_fallthru
        _
      %p2279 = scmp.le.s32.totalorder 2, %s13
      // Predicated region
      $region41: #{transformer_block.5} parent=5 // pred_check
        %p2280 = pneg %p2279
      $region42: #{transformer_block.5} parent=5 // pred_check_branch
        %2282 = sbr.rel (%p2280) target = $region44
      $region43: #{transformer_block.5} parent=5 // pred_region
        %s2283 = ssub.s32 %s13, 2
        // Predicated region
        $region45: #{transformer_block.5} parent=43 // pred_check
          %p2284 = pneg %p136
        $region46: #{transformer_block.5} parent=43 // pred_check_branch
          %2286 = sbr.rel (%p2284) target = $region48
        $region47: #{transformer_block.5} parent=43 // pred_region
          %s2287 = sand.u32 %s121, 1
          %s2288 = scalar_lea.sflag [#allocation3], %s2287
          %s2289 = sand.u32 %s121, 1
          %s2290 = smul.addr %s2289, 32
          %s2291 = scalar_lea.vmem [#allocation2], %s2290
          %2292 = dma.done %s2288, 512
        $region48: #{transformer_block.5} parent=43 // pred_fallthru
          _
      $region44: #{transformer_block.5} parent=5 // pred_fallthru
        _
    $region6: #{transformer_block.5} parent=1 // loop_footer
      %s17 = sadd.s32 1, %s13
    $region7: #{transformer_block.5} parent=1 // loop_footer_branch
      %12 = sbr.rel target = $region3
    $region8: #{transformer_block.5} parent=1 // loop_exit
      _
    %2293 = vsyncpa [#allocation3], 1
    %s2294 = scalar_lea.sflag [#allocation3], 1
    %2295 = vsyncpa %s2294, 1

</llo_original>
